<compile_context>
chip_gen: v7x
topology: tpu7x:2x2x1
jax: 0.10.0
libtpu: 0.0.40
codegen_flags: <defaults>
</compile_context>

<pallas_src>
import functools
import math

import jax
import jax.numpy as jnp
from jax.experimental import pallas as pl
from jax.experimental.pallas import tpu as pltpu


# -----------------------------------------------------------------------------
# Fused kernel: conv+pool backbone stand-in + iqa_fc + MHA(+seq-mean) + head.
# -----------------------------------------------------------------------------
def vqa_fused_kernel(
    patch_ref, convw_ref, iqaw_ref, iqab_ref, wqkv_ref, bqkv_ref,
    wo_ref, bo_ref, w1_ref, b1_ref, w2_ref, b2_ref,
    o_ref, feat_ref, *, num_heads,
):
    seq = patch_ref.shape[1]
    hw = patch_ref.shape[2]
    n_pool = convw_ref.shape[1]
    e = wo_ref.shape[0]
    hd = e // num_heads
    inv_hw = 1.0 / hw
    inv_seq = 1.0 / seq
    scale = 1.0 / math.sqrt(hd)

    # --- frozen backbone stand-in: 3x3 conv (bias folded via ones column) +
    #     ReLU + AdaptiveConcatPool2d.  8 frames per grid step; the (hw, 512)
    #     f32 activation stays in VMEM, only the pooled (1, 1024) row is kept.
    for i in range(seq):
        x = patch_ref[0, i]                                           # (hw, Kpad) bf16
        conv = jnp.dot(x, convw_ref[...], preferred_element_type=jnp.float32)
        conv = jnp.maximum(conv, 0.0)                                 # (hw, 512) f32
        feat_ref[i:i + 1, :n_pool] = jnp.max(conv, axis=0, keepdims=True)       # max pool
        feat_ref[i:i + 1, n_pool:] = jnp.sum(conv, axis=0, keepdims=True) * inv_hw  # avg pool

    # --- iqa_fc: Linear(1024, E) + ReLU, one (T,1024)@(1024,E) bf16 matmul.
    feat = jnp.maximum(
        jnp.dot(feat_ref[...].astype(jnp.bfloat16), iqaw_ref[...],
                preferred_element_type=jnp.float32) + iqab_ref[...],
        0.0)                                                          # (T, E) f32

    # --- fused Q|K|V projection: one (T, E) @ (E, 3E) matmul.
    qkv = jnp.dot(feat.astype(jnp.bfloat16), wqkv_ref[...],
                  preferred_element_type=jnp.float32) + bqkv_ref[...]  # (T, 3E) f32

    # --- MultiheadAttention(E, H) fused with torch.mean(attention, 0):
    #     mean over queries of (P V Wo + bo) == (query-mean of P) V Wo + bo.
    #     Heads are static 32-lane slices (no lane-splitting reshape: batching
    #     heads via (H,T,hd) einsum would force a cross-lane relayout; with
    #     H=4 / T=8 this unroll is a handful of tiny MXU ops).
    attn_mean = bo_ref[...]                                           # (1, E) f32
    for h_idx in range(num_heads):
        lo = h_idx * hd
        qh = (qkv[:, lo:lo + hd] * scale).astype(jnp.bfloat16)        # (T, hd)
        kh = qkv[:, e + lo:e + lo + hd].astype(jnp.bfloat16)
        vh = qkv[:, 2 * e + lo:2 * e + lo + hd].astype(jnp.bfloat16)
        s = jax.lax.dot_general(qh, kh, (((1,), (1,)), ((), ())),
                                preferred_element_type=jnp.float32)   # (T, T)
        s = s - jnp.max(s, axis=-1, keepdims=True)
        p = jnp.exp(s)
        p = p / jnp.sum(p, axis=-1, keepdims=True)                    # exact softmax; dropout = id
        p_mean = jnp.sum(p, axis=0, keepdims=True) * inv_seq          # (1, T) query-row mean
        ctx = jnp.dot(p_mean.astype(jnp.bfloat16), vh,
                      preferred_element_type=jnp.float32)             # (1, hd)
        attn_mean = attn_mean + jnp.dot(
            ctx.astype(jnp.bfloat16), wo_ref[lo:lo + hd, :],
            preferred_element_type=jnp.float32)                       # (1, E)

    # --- head: Linear(E, 32) + ReLU + [Dropout=id] + Linear(32, 1)
    h1 = jnp.maximum(
        jnp.dot(attn_mean.astype(jnp.bfloat16), w1_ref[...],
                preferred_element_type=jnp.float32) + b1_ref[...],
        0.0)                                                          # (1, 32)
    out = jnp.dot(h1.astype(jnp.bfloat16), w2_ref[...],
                  preferred_element_type=jnp.float32) + b2_ref[...]   # (1, 1)
    # lane-broadcast so the writeback is one unmasked (1, 128) store; the
    # wrapper slices column 0.
    o_ref[0] = jnp.broadcast_to(out, (1, o_ref.shape[2]))


# -----------------------------------------------------------------------------
# Glue: im2col (3x3, stride 1, SAME padding) -> (N, H*W, C*9).
# TODO(synk): at real backbone resolution fuse im2col in-kernel (shifted loads)
# or use XLA conv_general_dilated; at these toy shapes the patch tensor is tiny.
# -----------------------------------------------------------------------------
def im2col_3x3(x):  # x: (N, C, H, W)
    n, c, h, w = x.shape
    xp = jnp.pad(x, ((0, 0), (0, 0), (1, 1), (1, 1)))
    cols = [xp[:, :, di:di + h, dj:dj + w] for di in range(3) for dj in range(3)]
    p = jnp.stack(cols, axis=2)                                       # (N, C, 9, H, W)
    return p.transpose(0, 3, 4, 1, 2).reshape(n, h * w, c * 9)        # (N, H*W, C*9)


# -----------------------------------------------------------------------------
# Full VQAModel forward.
# -----------------------------------------------------------------------------
def vqa_forward(video, params, *, num_heads=4):
    b, t, c, h, w = video.shape
    hw = h * w
    kpad, n_pool = params["conv_wb"].shape
    e = params["wo"].shape[0]
    fc_mid = params["fc_w1"].shape[1]

    # TimeDistributed collapse (B,T,C,H,W)->(B*T,C,H,W), with the original
    # code's y.view(-1, B, E) reinterpretation folded in: attention row
    # (seq=i, batch=j) reads frame i*B + j.  Permuting the (tiny) frame tensor
    # here fuses into the im2col XLA ops, so each grid step of the kernel reads
    # one contiguous (T, hw, K) block and no pooled features ever hit HBM.
    frames = video.reshape(b * t, c, h, w).astype(jnp.bfloat16)
    frames = frames.reshape(t, b, c, h, w).transpose(1, 0, 2, 3, 4).reshape(b * t, c, h, w)

    patches = im2col_3x3(frames)                                      # (B*T, hw, C*9) bf16
    ones = jnp.ones((b * t, hw, 1), patches.dtype)                    # bias column
    zpad = jnp.zeros((b * t, hw, kpad - c * 9 - 1), patches.dtype)    # align K to 32
    patches = jnp.concatenate([patches, ones, zpad], axis=-1)
    patches = patches.reshape(b, t, hw, kpad)                         # (B, T, hw, Kpad)

    kernel = functools.partial(vqa_fused_kernel, num_heads=num_heads)
    wspec = lambda j: (0, 0)
    out = pl.pallas_call(
        kernel,
        out_shape=jax.ShapeDtypeStruct((b, 1, 128), jnp.float32),
        grid=(b,),
        in_specs=[
            pl.BlockSpec((1, t, hw, kpad), lambda j: (j, 0, 0, 0)),   # per-batch patch block
            pl.BlockSpec((kpad, n_pool), wspec),                      # conv weight (+bias row)
            pl.BlockSpec((2 * n_pool, e), wspec),                     # iqa_fc W
            pl.BlockSpec((1, e), wspec),                              # iqa_fc b
            pl.BlockSpec((e, 3 * e), wspec),                          # W_qkv (pre-concatenated)
            pl.BlockSpec((1, 3 * e), wspec),                          # b_qkv
            pl.BlockSpec((e, e), wspec),                              # W_o
            pl.BlockSpec((1, e), wspec),                              # b_o
            pl.BlockSpec((e, fc_mid), wspec),                         # fc W1
            pl.BlockSpec((1, fc_mid), wspec),                         # fc b1
            pl.BlockSpec((fc_mid, 1), wspec),                         # fc W2
            pl.BlockSpec((1, 1), wspec),                              # fc b2
        ],
        out_specs=pl.BlockSpec((1, 1, 128), lambda j: (j, 0, 0)),
        scratch_shapes=[pltpu.VMEM((t, 2 * n_pool), jnp.float32)],    # pooled (T, 1024)
        compiler_params=pltpu.CompilerParams(dimension_semantics=("parallel",)),
    )(
        patches,
        params["conv_wb"], params["iqa_w"], params["iqa_b"],
        params["wqkv"], params["bqkv"], params["wo"], params["bo"],
        params["fc_w1"], params["fc_b1"], params["fc_w2"], params["fc_b2"],
    )
    return out[:, 0, :1]                                              # (B, 1)


def init_params(key, *, c_in=3, c_body=512, emb=128, fc_mid=32):
    ks = jax.random.split(key, 14)
    n = lambda k, shp, s: (s * jax.random.normal(k, shp)).astype(jnp.float32)
    conv_w = n(ks[0], (c_in * 9, c_body), 0.1)
    conv_b = n(ks[1], (c_body,), 0.1)
    kpad = ((c_in * 9 + 1 + 31) // 32) * 32                           # 27 + bias col -> 32
    conv_wb = jnp.zeros((kpad, c_body), jnp.float32)
    conv_wb = conv_wb.at[:c_in * 9].set(conv_w).at[c_in * 9].set(conv_b)
    wq, bq = n(ks[4], (emb, emb), 0.08), n(ks[5], (1, emb), 0.02)
    wk, bk = n(ks[6], (emb, emb), 0.08), n(ks[7], (1, emb), 0.02)
    wv, bv = n(ks[8], (emb, emb), 0.08), n(ks[9], (1, emb), 0.02)
    # MXU operands pre-cast to bf16 once (f32 accumulation in-kernel); biases
    # stay f32 and are added after accumulation.  Q|K|V weights pre-concatenated.
    return {
        "conv_wb": conv_wb.astype(jnp.bfloat16),
        "iqa_w": n(ks[2], (2 * c_body, emb), 0.03).astype(jnp.bfloat16),
        "iqa_b": n(ks[3], (1, emb), 0.03),
        "wqkv": jnp.concatenate([wq, wk, wv], axis=1).astype(jnp.bfloat16),
        "bqkv": jnp.concatenate([bq, bk, bv], axis=1),
        "wo": n(ks[10], (emb, emb), 0.08).astype(jnp.bfloat16),
        "bo": n(ks[11], (1, emb), 0.02),
        "fc_w1": n(ks[12], (emb, fc_mid), 0.1).astype(jnp.bfloat16),
        "fc_b1": jnp.zeros((1, fc_mid), jnp.float32),
        "fc_w2": n(ks[13], (fc_mid, 1), 0.1).astype(jnp.bfloat16),
        "fc_b2": jnp.zeros((1, 1), jnp.float32),
    }


if __name__ == "__main__":
    key = jax.random.PRNGKey(0)
    k_video, k_params = jax.random.split(key)

    B, T, C, H, W = 2, 8, 3, 16, 16          # nframes = 8
    video = jax.random.normal(k_video, (B, T, C, H, W), dtype=jnp.float32)
    params = init_params(k_params)

    out = jax.jit(functools.partial(vqa_forward, num_heads=4))(video, params)
    out = jax.block_until_ready(out)

    assert out.shape == (B, 1), out.shape
    assert bool(jnp.all(jnp.isfinite(out)))
    print("KERNEL_OK")
</pallas_src>

<mosaic_0001>
module attributes {stable_mosaic.version = 11 : i64} {
  func.func @vqa_fused_kernel(%arg0: i32, %arg1: memref<1x8x256x32xbf16, #tpu.memory_space<vmem>>, %arg2: memref<32x512xbf16, #tpu.memory_space<vmem>>, %arg3: memref<1024x128xbf16, #tpu.memory_space<vmem>>, %arg4: memref<1x128xf32, #tpu.memory_space<vmem>>, %arg5: memref<128x384xbf16, #tpu.memory_space<vmem>>, %arg6: memref<1x384xf32, #tpu.memory_space<vmem>>, %arg7: memref<128x128xbf16, #tpu.memory_space<vmem>>, %arg8: memref<1x128xf32, #tpu.memory_space<vmem>>, %arg9: memref<128x32xbf16, #tpu.memory_space<vmem>>, %arg10: memref<1x32xf32, #tpu.memory_space<vmem>>, %arg11: memref<32x1xbf16, #tpu.memory_space<vmem>>, %arg12: memref<1x1xf32, #tpu.memory_space<vmem>>, %arg13: memref<1x1x128xf32, #tpu.memory_space<vmem>>, %arg14: memref<8x1024xf32, #tpu.memory_space<vmem>>) attributes {dimension_semantics = [#tpu.dimension_semantics<parallel>], iteration_bounds = array<i64: 2>, scalar_prefetch = 0 : i64, scratch_operands = 1 : i64, tpu.core_type = #tpu.core_type<tc>, window_params = [{transform_indices = @transform_0, window_bounds = array<i64: 1, 8, 256, 32>}, {pipeline_mode = #tpu.pipeline_mode<synchronous>, transform_indices = @transform_1, window_bounds = array<i64: 32, 512>}, {pipeline_mode = #tpu.pipeline_mode<synchronous>, transform_indices = @transform_2, window_bounds = array<i64: 1024, 128>}, {pipeline_mode = #tpu.pipeline_mode<synchronous>, transform_indices = @transform_3, window_bounds = array<i64: 1, 128>}, {pipeline_mode = #tpu.pipeline_mode<synchronous>, transform_indices = @transform_4, window_bounds = array<i64: 128, 384>}, {pipeline_mode = #tpu.pipeline_mode<synchronous>, transform_indices = @transform_5, window_bounds = array<i64: 1, 384>}, {pipeline_mode = #tpu.pipeline_mode<synchronous>, transform_indices = @transform_6, window_bounds = array<i64: 128, 128>}, {pipeline_mode = #tpu.pipeline_mode<synchronous>, transform_indices = @transform_7, window_bounds = array<i64: 1, 128>}, {pipeline_mode = #tpu.pipeline_mode<synchronous>, transform_indices = @transform_8, window_bounds = array<i64: 128, 32>}, {pipeline_mode = #tpu.pipeline_mode<synchronous>, transform_indices = @transform_9, window_bounds = array<i64: 1, 32>}, {pipeline_mode = #tpu.pipeline_mode<synchronous>, transform_indices = @transform_10, window_bounds = array<i64: 32, 1>}, {pipeline_mode = #tpu.pipeline_mode<synchronous>, transform_indices = @transform_11, window_bounds = array<i64: 1, 1>}, {transform_indices = @transform_12, window_bounds = array<i64: 1, 1, 128>}]} {
    %c0 = arith.constant 0 : index
    %c0_0 = arith.constant 0 : index
    %c0_1 = arith.constant 0 : index
    %c0_2 = arith.constant 0 : index
    %0 = vector.load %arg1[%c0, %c0_0, %c0_1, %c0_2] : memref<1x8x256x32xbf16, #tpu.memory_space<vmem>>, vector<1x1x256x32xbf16>
    %1 = vector.shape_cast %0 : vector<1x1x256x32xbf16> to vector<256x32xbf16>
    %c0_3 = arith.constant 0 : index
    %c0_4 = arith.constant 0 : index
    %2 = vector.load %arg2[%c0_3, %c0_4] : memref<32x512xbf16, #tpu.memory_space<vmem>>, vector<32x512xbf16>
    %cst = arith.constant dense<0.000000e+00> : vector<256x512xf32>
    %3 = tpu.matmul %1, %2, %cst {dimension_numbers = #tpu.dot_dimension_numbers<[1], [0], [0], [1], [0, 0, 1, 1], [], []>} : vector<256x32xbf16>, vector<32x512xbf16>, vector<256x512xf32> -> vector<256x512xf32>
    %cst_5 = arith.constant 0.000000e+00 : f32
    %4 = vector.broadcast %cst_5 : f32 to vector<256x512xf32>
    %5 = arith.maximumf %3, %4 : vector<256x512xf32>
    %cst_6 = arith.constant dense<0xFF800000> : vector<512xf32>
    %6 = vector.multi_reduction <maximumf>, %5, %cst_6 [0] : vector<256x512xf32> to vector<512xf32>
    %7 = vector.shape_cast %6 : vector<512xf32> to vector<1x512xf32>
    %c0_7 = arith.constant 0 : index
    %c0_8 = arith.constant 0 : index
    %8 = vector.load %arg14[%c0_7, %c0_8] : memref<8x1024xf32, #tpu.memory_space<vmem>>, vector<1x512xf32>
    tpu.vector_store %arg14[%c0_7, %c0_8], %7 {strides = array<i32>} : memref<8x1024xf32, #tpu.memory_space<vmem>>, vector<1x512xf32>,
    %cst_9 = arith.constant dense<0.000000e+00> : vector<512xf32>
    %9 = vector.multi_reduction <add>, %5, %cst_9 [0] : vector<256x512xf32> to vector<512xf32>
    %10 = vector.shape_cast %9 : vector<512xf32> to vector<1x512xf32>
    %cst_10 = arith.constant 3.906250e-03 : f32
    %11 = vector.broadcast %cst_10 : f32 to vector<1x512xf32>
    %12 = arith.mulf %10, %11 : vector<1x512xf32>
    %c0_11 = arith.constant 0 : index
    %c512 = arith.constant 512 : index
    %13 = vector.load %arg14[%c0_11, %c512] : memref<8x1024xf32, #tpu.memory_space<vmem>>, vector<1x512xf32>
    tpu.vector_store %arg14[%c0_11, %c512], %12 {strides = array<i32>} : memref<8x1024xf32, #tpu.memory_space<vmem>>, vector<1x512xf32>,
    %c0_12 = arith.constant 0 : index
    %c1 = arith.constant 1 : index
    %c0_13 = arith.constant 0 : index
    %c0_14 = arith.constant 0 : index
    %14 = vector.load %arg1[%c0_12, %c1, %c0_13, %c0_14] : memref<1x8x256x32xbf16, #tpu.memory_space<vmem>>, vector<1x1x256x32xbf16>
    %15 = vector.shape_cast %14 : vector<1x1x256x32xbf16> to vector<256x32xbf16>
    %c0_15 = arith.constant 0 : index
    %c0_16 = arith.constant 0 : index
    %16 = vector.load %arg2[%c0_15, %c0_16] : memref<32x512xbf16, #tpu.memory_space<vmem>>, vector<32x512xbf16>
    %cst_17 = arith.constant dense<0.000000e+00> : vector<256x512xf32>
    %17 = tpu.matmul %15, %16, %cst_17 {dimension_numbers = #tpu.dot_dimension_numbers<[1], [0], [0], [1], [0, 0, 1, 1], [], []>} : vector<256x32xbf16>, vector<32x512xbf16>, vector<256x512xf32> -> vector<256x512xf32>
    %cst_18 = arith.constant 0.000000e+00 : f32
    %18 = vector.broadcast %cst_18 : f32 to vector<256x512xf32>
    %19 = arith.maximumf %17, %18 : vector<256x512xf32>
    %cst_19 = arith.constant dense<0xFF800000> : vector<512xf32>
    %20 = vector.multi_reduction <maximumf>, %19, %cst_19 [0] : vector<256x512xf32> to vector<512xf32>
    %21 = vector.shape_cast %20 : vector<512xf32> to vector<1x512xf32>
    %c1_20 = arith.constant 1 : index
    %c0_21 = arith.constant 0 : index
    %22 = vector.load %arg14[%c1_20, %c0_21] : memref<8x1024xf32, #tpu.memory_space<vmem>>, vector<1x512xf32>
    tpu.vector_store %arg14[%c1_20, %c0_21], %21 {strides = array<i32>} : memref<8x1024xf32, #tpu.memory_space<vmem>>, vector<1x512xf32>,
    %cst_22 = arith.constant dense<0.000000e+00> : vector<512xf32>
    %23 = vector.multi_reduction <add>, %19, %cst_22 [0] : vector<256x512xf32> to vector<512xf32>
    %24 = vector.shape_cast %23 : vector<512xf32> to vector<1x512xf32>
    %cst_23 = arith.constant 3.906250e-03 : f32
    %25 = vector.broadcast %cst_23 : f32 to vector<1x512xf32>
    %26 = arith.mulf %24, %25 : vector<1x512xf32>
    %c1_24 = arith.constant 1 : index
    %c512_25 = arith.constant 512 : index
    %27 = vector.load %arg14[%c1_24, %c512_25] : memref<8x1024xf32, #tpu.memory_space<vmem>>, vector<1x512xf32>
    tpu.vector_store %arg14[%c1_24, %c512_25], %26 {strides = array<i32>} : memref<8x1024xf32, #tpu.memory_space<vmem>>, vector<1x512xf32>,
    %c0_26 = arith.constant 0 : index
    %c2 = arith.constant 2 : index
    %c0_27 = arith.constant 0 : index
    %c0_28 = arith.constant 0 : index
    %28 = vector.load %arg1[%c0_26, %c2, %c0_27, %c0_28] : memref<1x8x256x32xbf16, #tpu.memory_space<vmem>>, vector<1x1x256x32xbf16>
    %29 = vector.shape_cast %28 : vector<1x1x256x32xbf16> to vector<256x32xbf16>
    %c0_29 = arith.constant 0 : index
    %c0_30 = arith.constant 0 : index
    %30 = vector.load %arg2[%c0_29, %c0_30] : memref<32x512xbf16, #tpu.memory_space<vmem>>, vector<32x512xbf16>
    %cst_31 = arith.constant dense<0.000000e+00> : vector<256x512xf32>
    %31 = tpu.matmul %29, %30, %cst_31 {dimension_numbers = #tpu.dot_dimension_numbers<[1], [0], [0], [1], [0, 0, 1, 1], [], []>} : vector<256x32xbf16>, vector<32x512xbf16>, vector<256x512xf32> -> vector<256x512xf32>
    %cst_32 = arith.constant 0.000000e+00 : f32
    %32 = vector.broadcast %cst_32 : f32 to vector<256x512xf32>
    %33 = arith.maximumf %31, %32 : vector<256x512xf32>
    %cst_33 = arith.constant dense<0xFF800000> : vector<512xf32>
    %34 = vector.multi_reduction <maximumf>, %33, %cst_33 [0] : vector<256x512xf32> to vector<512xf32>
    %35 = vector.shape_cast %34 : vector<512xf32> to vector<1x512xf32>
    %c2_34 = arith.constant 2 : index
    %c0_35 = arith.constant 0 : index
    %36 = vector.load %arg14[%c2_34, %c0_35] : memref<8x1024xf32, #tpu.memory_space<vmem>>, vector<1x512xf32>
    tpu.vector_store %arg14[%c2_34, %c0_35], %35 {strides = array<i32>} : memref<8x1024xf32, #tpu.memory_space<vmem>>, vector<1x512xf32>,
    %cst_36 = arith.constant dense<0.000000e+00> : vector<512xf32>
    %37 = vector.multi_reduction <add>, %33, %cst_36 [0] : vector<256x512xf32> to vector<512xf32>
    %38 = vector.shape_cast %37 : vector<512xf32> to vector<1x512xf32>
    %cst_37 = arith.constant 3.906250e-03 : f32
    %39 = vector.broadcast %cst_37 : f32 to vector<1x512xf32>
    %40 = arith.mulf %38, %39 : vector<1x512xf32>
    %c2_38 = arith.constant 2 : index
    %c512_39 = arith.constant 512 : index
    %41 = vector.load %arg14[%c2_38, %c512_39] : memref<8x1024xf32, #tpu.memory_space<vmem>>, vector<1x512xf32>
    tpu.vector_store %arg14[%c2_38, %c512_39], %40 {strides = array<i32>} : memref<8x1024xf32, #tpu.memory_space<vmem>>, vector<1x512xf32>,
    %c0_40 = arith.constant 0 : index
    %c3 = arith.constant 3 : index
    %c0_41 = arith.constant 0 : index
    %c0_42 = arith.constant 0 : index
    %42 = vector.load %arg1[%c0_40, %c3, %c0_41, %c0_42] : memref<1x8x256x32xbf16, #tpu.memory_space<vmem>>, vector<1x1x256x32xbf16>
    %43 = vector.shape_cast %42 : vector<1x1x256x32xbf16> to vector<256x32xbf16>
    %c0_43 = arith.constant 0 : index
    %c0_44 = arith.constant 0 : index
    %44 = vector.load %arg2[%c0_43, %c0_44] : memref<32x512xbf16, #tpu.memory_space<vmem>>, vector<32x512xbf16>
    %cst_45 = arith.constant dense<0.000000e+00> : vector<256x512xf32>
    %45 = tpu.matmul %43, %44, %cst_45 {dimension_numbers = #tpu.dot_dimension_numbers<[1], [0], [0], [1], [0, 0, 1, 1], [], []>} : vector<256x32xbf16>, vector<32x512xbf16>, vector<256x512xf32> -> vector<256x512xf32>
    %cst_46 = arith.constant 0.000000e+00 : f32
    %46 = vector.broadcast %cst_46 : f32 to vector<256x512xf32>
    %47 = arith.maximumf %45, %46 : vector<256x512xf32>
    %cst_47 = arith.constant dense<0xFF800000> : vector<512xf32>
    %48 = vector.multi_reduction <maximumf>, %47, %cst_47 [0] : vector<256x512xf32> to vector<512xf32>
    %49 = vector.shape_cast %48 : vector<512xf32> to vector<1x512xf32>
    %c3_48 = arith.constant 3 : index
    %c0_49 = arith.constant 0 : index
    %50 = vector.load %arg14[%c3_48, %c0_49] : memref<8x1024xf32, #tpu.memory_space<vmem>>, vector<1x512xf32>
    tpu.vector_store %arg14[%c3_48, %c0_49], %49 {strides = array<i32>} : memref<8x1024xf32, #tpu.memory_space<vmem>>, vector<1x512xf32>,
    %cst_50 = arith.constant dense<0.000000e+00> : vector<512xf32>
    %51 = vector.multi_reduction <add>, %47, %cst_50 [0] : vector<256x512xf32> to vector<512xf32>
    %52 = vector.shape_cast %51 : vector<512xf32> to vector<1x512xf32>
    %cst_51 = arith.constant 3.906250e-03 : f32
    %53 = vector.broadcast %cst_51 : f32 to vector<1x512xf32>
    %54 = arith.mulf %52, %53 : vector<1x512xf32>
    %c3_52 = arith.constant 3 : index
    %c512_53 = arith.constant 512 : index
    %55 = vector.load %arg14[%c3_52, %c512_53] : memref<8x1024xf32, #tpu.memory_space<vmem>>, vector<1x512xf32>
    tpu.vector_store %arg14[%c3_52, %c512_53], %54 {strides = array<i32>} : memref<8x1024xf32, #tpu.memory_space<vmem>>, vector<1x512xf32>,
    %c0_54 = arith.constant 0 : index
    %c4 = arith.constant 4 : index
    %c0_55 = arith.constant 0 : index
    %c0_56 = arith.constant 0 : index
    %56 = vector.load %arg1[%c0_54, %c4, %c0_55, %c0_56] : memref<1x8x256x32xbf16, #tpu.memory_space<vmem>>, vector<1x1x256x32xbf16>
    %57 = vector.shape_cast %56 : vector<1x1x256x32xbf16> to vector<256x32xbf16>
    %c0_57 = arith.constant 0 : index
    %c0_58 = arith.constant 0 : index
    %58 = vector.load %arg2[%c0_57, %c0_58] : memref<32x512xbf16, #tpu.memory_space<vmem>>, vector<32x512xbf16>
    %cst_59 = arith.constant dense<0.000000e+00> : vector<256x512xf32>
    %59 = tpu.matmul %57, %58, %cst_59 {dimension_numbers = #tpu.dot_dimension_numbers<[1], [0], [0], [1], [0, 0, 1, 1], [], []>} : vector<256x32xbf16>, vector<32x512xbf16>, vector<256x512xf32> -> vector<256x512xf32>
    %cst_60 = arith.constant 0.000000e+00 : f32
    %60 = vector.broadcast %cst_60 : f32 to vector<256x512xf32>
    %61 = arith.maximumf %59, %60 : vector<256x512xf32>
    %cst_61 = arith.constant dense<0xFF800000> : vector<512xf32>
    %62 = vector.multi_reduction <maximumf>, %61, %cst_61 [0] : vector<256x512xf32> to vector<512xf32>
    %63 = vector.shape_cast %62 : vector<512xf32> to vector<1x512xf32>
    %c4_62 = arith.constant 4 : index
    %c0_63 = arith.constant 0 : index
    %64 = vector.load %arg14[%c4_62, %c0_63] : memref<8x1024xf32, #tpu.memory_space<vmem>>, vector<1x512xf32>
    tpu.vector_store %arg14[%c4_62, %c0_63], %63 {strides = array<i32>} : memref<8x1024xf32, #tpu.memory_space<vmem>>, vector<1x512xf32>,
    %cst_64 = arith.constant dense<0.000000e+00> : vector<512xf32>
    %65 = vector.multi_reduction <add>, %61, %cst_64 [0] : vector<256x512xf32> to vector<512xf32>
    %66 = vector.shape_cast %65 : vector<512xf32> to vector<1x512xf32>
    %cst_65 = arith.constant 3.906250e-03 : f32
    %67 = vector.broadcast %cst_65 : f32 to vector<1x512xf32>
    %68 = arith.mulf %66, %67 : vector<1x512xf32>
    %c4_66 = arith.constant 4 : index
    %c512_67 = arith.constant 512 : index
    %69 = vector.load %arg14[%c4_66, %c512_67] : memref<8x1024xf32, #tpu.memory_space<vmem>>, vector<1x512xf32>
    tpu.vector_store %arg14[%c4_66, %c512_67], %68 {strides = array<i32>} : memref<8x1024xf32, #tpu.memory_space<vmem>>, vector<1x512xf32>,
    %c0_68 = arith.constant 0 : index
    %c5 = arith.constant 5 : index
    %c0_69 = arith.constant 0 : index
    %c0_70 = arith.constant 0 : index
    %70 = vector.load %arg1[%c0_68, %c5, %c0_69, %c0_70] : memref<1x8x256x32xbf16, #tpu.memory_space<vmem>>, vector<1x1x256x32xbf16>
    %71 = vector.shape_cast %70 : vector<1x1x256x32xbf16> to vector<256x32xbf16>
    %c0_71 = arith.constant 0 : index
    %c0_72 = arith.constant 0 : index
    %72 = vector.load %arg2[%c0_71, %c0_72] : memref<32x512xbf16, #tpu.memory_space<vmem>>, vector<32x512xbf16>
    %cst_73 = arith.constant dense<0.000000e+00> : vector<256x512xf32>
    %73 = tpu.matmul %71, %72, %cst_73 {dimension_numbers = #tpu.dot_dimension_numbers<[1], [0], [0], [1], [0, 0, 1, 1], [], []>} : vector<256x32xbf16>, vector<32x512xbf16>, vector<256x512xf32> -> vector<256x512xf32>
    %cst_74 = arith.constant 0.000000e+00 : f32
    %74 = vector.broadcast %cst_74 : f32 to vector<256x512xf32>
    %75 = arith.maximumf %73, %74 : vector<256x512xf32>
    %cst_75 = arith.constant dense<0xFF800000> : vector<512xf32>
    %76 = vector.multi_reduction <maximumf>, %75, %cst_75 [0] : vector<256x512xf32> to vector<512xf32>
    %77 = vector.shape_cast %76 : vector<512xf32> to vector<1x512xf32>
    %c5_76 = arith.constant 5 : index
    %c0_77 = arith.constant 0 : index
    %78 = vector.load %arg14[%c5_76, %c0_77] : memref<8x1024xf32, #tpu.memory_space<vmem>>, vector<1x512xf32>
    tpu.vector_store %arg14[%c5_76, %c0_77], %77 {strides = array<i32>} : memref<8x1024xf32, #tpu.memory_space<vmem>>, vector<1x512xf32>,
    %cst_78 = arith.constant dense<0.000000e+00> : vector<512xf32>
    %79 = vector.multi_reduction <add>, %75, %cst_78 [0] : vector<256x512xf32> to vector<512xf32>
    %80 = vector.shape_cast %79 : vector<512xf32> to vector<1x512xf32>
    %cst_79 = arith.constant 3.906250e-03 : f32
    %81 = vector.broadcast %cst_79 : f32 to vector<1x512xf32>
    %82 = arith.mulf %80, %81 : vector<1x512xf32>
    %c5_80 = arith.constant 5 : index
    %c512_81 = arith.constant 512 : index
    %83 = vector.load %arg14[%c5_80, %c512_81] : memref<8x1024xf32, #tpu.memory_space<vmem>>, vector<1x512xf32>
    tpu.vector_store %arg14[%c5_80, %c512_81], %82 {strides = array<i32>} : memref<8x1024xf32, #tpu.memory_space<vmem>>, vector<1x512xf32>,
    %c0_82 = arith.constant 0 : index
    %c6 = arith.constant 6 : index
    %c0_83 = arith.constant 0 : index
    %c0_84 = arith.constant 0 : index
    %84 = vector.load %arg1[%c0_82, %c6, %c0_83, %c0_84] : memref<1x8x256x32xbf16, #tpu.memory_space<vmem>>, vector<1x1x256x32xbf16>
    %85 = vector.shape_cast %84 : vector<1x1x256x32xbf16> to vector<256x32xbf16>
    %c0_85 = arith.constant 0 : index
    %c0_86 = arith.constant 0 : index
    %86 = vector.load %arg2[%c0_85, %c0_86] : memref<32x512xbf16, #tpu.memory_space<vmem>>, vector<32x512xbf16>
    %cst_87 = arith.constant dense<0.000000e+00> : vector<256x512xf32>
    %87 = tpu.matmul %85, %86, %cst_87 {dimension_numbers = #tpu.dot_dimension_numbers<[1], [0], [0], [1], [0, 0, 1, 1], [], []>} : vector<256x32xbf16>, vector<32x512xbf16>, vector<256x512xf32> -> vector<256x512xf32>
    %cst_88 = arith.constant 0.000000e+00 : f32
    %88 = vector.broadcast %cst_88 : f32 to vector<256x512xf32>
    %89 = arith.maximumf %87, %88 : vector<256x512xf32>
    %cst_89 = arith.constant dense<0xFF800000> : vector<512xf32>
    %90 = vector.multi_reduction <maximumf>, %89, %cst_89 [0] : vector<256x512xf32> to vector<512xf32>
    %91 = vector.shape_cast %90 : vector<512xf32> to vector<1x512xf32>
    %c6_90 = arith.constant 6 : index
    %c0_91 = arith.constant 0 : index
    %92 = vector.load %arg14[%c6_90, %c0_91] : memref<8x1024xf32, #tpu.memory_space<vmem>>, vector<1x512xf32>
    tpu.vector_store %arg14[%c6_90, %c0_91], %91 {strides = array<i32>} : memref<8x1024xf32, #tpu.memory_space<vmem>>, vector<1x512xf32>,
    %cst_92 = arith.constant dense<0.000000e+00> : vector<512xf32>
    %93 = vector.multi_reduction <add>, %89, %cst_92 [0] : vector<256x512xf32> to vector<512xf32>
    %94 = vector.shape_cast %93 : vector<512xf32> to vector<1x512xf32>
    %cst_93 = arith.constant 3.906250e-03 : f32
    %95 = vector.broadcast %cst_93 : f32 to vector<1x512xf32>
    %96 = arith.mulf %94, %95 : vector<1x512xf32>
    %c6_94 = arith.constant 6 : index
    %c512_95 = arith.constant 512 : index
    %97 = vector.load %arg14[%c6_94, %c512_95] : memref<8x1024xf32, #tpu.memory_space<vmem>>, vector<1x512xf32>
    tpu.vector_store %arg14[%c6_94, %c512_95], %96 {strides = array<i32>} : memref<8x1024xf32, #tpu.memory_space<vmem>>, vector<1x512xf32>,
    %c0_96 = arith.constant 0 : index
    %c7 = arith.constant 7 : index
    %c0_97 = arith.constant 0 : index
    %c0_98 = arith.constant 0 : index
    %98 = vector.load %arg1[%c0_96, %c7, %c0_97, %c0_98] : memref<1x8x256x32xbf16, #tpu.memory_space<vmem>>, vector<1x1x256x32xbf16>
    %99 = vector.shape_cast %98 : vector<1x1x256x32xbf16> to vector<256x32xbf16>
    %c0_99 = arith.constant 0 : index
    %c0_100 = arith.constant 0 : index
    %100 = vector.load %arg2[%c0_99, %c0_100] : memref<32x512xbf16, #tpu.memory_space<vmem>>, vector<32x512xbf16>
    %cst_101 = arith.constant dense<0.000000e+00> : vector<256x512xf32>
    %101 = tpu.matmul %99, %100, %cst_101 {dimension_numbers = #tpu.dot_dimension_numbers<[1], [0], [0], [1], [0, 0, 1, 1], [], []>} : vector<256x32xbf16>, vector<32x512xbf16>, vector<256x512xf32> -> vector<256x512xf32>
    %cst_102 = arith.constant 0.000000e+00 : f32
    %102 = vector.broadcast %cst_102 : f32 to vector<256x512xf32>
    %103 = arith.maximumf %101, %102 : vector<256x512xf32>
    %cst_103 = arith.constant dense<0xFF800000> : vector<512xf32>
    %104 = vector.multi_reduction <maximumf>, %103, %cst_103 [0] : vector<256x512xf32> to vector<512xf32>
    %105 = vector.shape_cast %104 : vector<512xf32> to vector<1x512xf32>
    %c7_104 = arith.constant 7 : index
    %c0_105 = arith.constant 0 : index
    %106 = vector.load %arg14[%c7_104, %c0_105] : memref<8x1024xf32, #tpu.memory_space<vmem>>, vector<1x512xf32>
    tpu.vector_store %arg14[%c7_104, %c0_105], %105 {strides = array<i32>} : memref<8x1024xf32, #tpu.memory_space<vmem>>, vector<1x512xf32>,
    %cst_106 = arith.constant dense<0.000000e+00> : vector<512xf32>
    %107 = vector.multi_reduction <add>, %103, %cst_106 [0] : vector<256x512xf32> to vector<512xf32>
    %108 = vector.shape_cast %107 : vector<512xf32> to vector<1x512xf32>
    %cst_107 = arith.constant 3.906250e-03 : f32
    %109 = vector.broadcast %cst_107 : f32 to vector<1x512xf32>
    %110 = arith.mulf %108, %109 : vector<1x512xf32>
    %c7_108 = arith.constant 7 : index
    %c512_109 = arith.constant 512 : index
    %111 = vector.load %arg14[%c7_108, %c512_109] : memref<8x1024xf32, #tpu.memory_space<vmem>>, vector<1x512xf32>
    tpu.vector_store %arg14[%c7_108, %c512_109], %110 {strides = array<i32>} : memref<8x1024xf32, #tpu.memory_space<vmem>>, vector<1x512xf32>,
    %c0_110 = arith.constant 0 : index
    %c0_111 = arith.constant 0 : index
    %112 = vector.load %arg14[%c0_110, %c0_111] : memref<8x1024xf32, #tpu.memory_space<vmem>>, vector<8x1024xf32>
    %113 = arith.truncf %112 : vector<8x1024xf32> to vector<8x1024xbf16>
    %c0_112 = arith.constant 0 : index
    %c0_113 = arith.constant 0 : index
    %114 = vector.load %arg3[%c0_112, %c0_113] : memref<1024x128xbf16, #tpu.memory_space<vmem>>, vector<1024x128xbf16>
    %cst_114 = arith.constant dense<0.000000e+00> : vector<8x128xf32>
    %115 = tpu.matmul %113, %114, %cst_114 {dimension_numbers = #tpu.dot_dimension_numbers<[1], [0], [0], [1], [0, 0, 1, 1], [], []>} : vector<8x1024xbf16>, vector<1024x128xbf16>, vector<8x128xf32> -> vector<8x128xf32>
    %c0_115 = arith.constant 0 : index
    %c0_116 = arith.constant 0 : index
    %116 = vector.load %arg4[%c0_115, %c0_116] : memref<1x128xf32, #tpu.memory_space<vmem>>, vector<1x128xf32>
    %117 = vector.broadcast %116 : vector<1x128xf32> to vector<8x128xf32>
    %118 = arith.addf %115, %117 : vector<8x128xf32>
    %cst_117 = arith.constant 0.000000e+00 : f32
    %119 = vector.broadcast %cst_117 : f32 to vector<8x128xf32>
    %120 = arith.maximumf %118, %119 : vector<8x128xf32>
    %121 = arith.truncf %120 : vector<8x128xf32> to vector<8x128xbf16>
    %c0_118 = arith.constant 0 : index
    %c0_119 = arith.constant 0 : index
    %122 = vector.load %arg5[%c0_118, %c0_119] : memref<128x384xbf16, #tpu.memory_space<vmem>>, vector<128x384xbf16>
    %cst_120 = arith.constant dense<0.000000e+00> : vector<8x384xf32>
    %123 = tpu.matmul %121, %122, %cst_120 {dimension_numbers = #tpu.dot_dimension_numbers<[1], [0], [0], [1], [0, 0, 1, 1], [], []>} : vector<8x128xbf16>, vector<128x384xbf16>, vector<8x384xf32> -> vector<8x384xf32>
    %c0_121 = arith.constant 0 : index
    %c0_122 = arith.constant 0 : index
    %124 = vector.load %arg6[%c0_121, %c0_122] : memref<1x384xf32, #tpu.memory_space<vmem>>, vector<1x384xf32>
    %125 = vector.broadcast %124 : vector<1x384xf32> to vector<8x384xf32>
    %126 = arith.addf %123, %125 : vector<8x384xf32>
    %c0_123 = arith.constant 0 : index
    %c0_124 = arith.constant 0 : index
    %127 = vector.load %arg8[%c0_123, %c0_124] : memref<1x128xf32, #tpu.memory_space<vmem>>, vector<1x128xf32>
    %128 = vector.extract_strided_slice %126 {offsets = [0, 0], sizes = [8, 32], strides = [1, 1]} : vector<8x384xf32> to vector<8x32xf32>
    %cst_125 = arith.constant 0.176776692 : f32
    %129 = vector.broadcast %cst_125 : f32 to vector<8x32xf32>
    %130 = arith.mulf %128, %129 : vector<8x32xf32>
    %131 = arith.truncf %130 : vector<8x32xf32> to vector<8x32xbf16>
    %132 = vector.extract_strided_slice %126 {offsets = [0, 128], sizes = [8, 32], strides = [1, 1]} : vector<8x384xf32> to vector<8x32xf32>
    %133 = arith.truncf %132 : vector<8x32xf32> to vector<8x32xbf16>
    %134 = vector.extract_strided_slice %126 {offsets = [0, 256], sizes = [8, 32], strides = [1, 1]} : vector<8x384xf32> to vector<8x32xf32>
    %135 = arith.truncf %134 : vector<8x32xf32> to vector<8x32xbf16>
    %cst_126 = arith.constant dense<0.000000e+00> : vector<8x8xf32>
    %136 = tpu.matmul %131, %133, %cst_126 {dimension_numbers = #tpu.dot_dimension_numbers<[1], [1], [0], [0], [0, 0, 1, 0], [], []>} : vector<8x32xbf16>, vector<8x32xbf16>, vector<8x8xf32> -> vector<8x8xf32>
    %cst_127 = arith.constant dense<0xFF800000> : vector<8xf32>
    %137 = vector.multi_reduction <maximumf>, %136, %cst_127 [1] : vector<8x8xf32> to vector<8xf32>
    %138 = vector.shape_cast %137 : vector<8xf32> to vector<8x1xf32>
    %139 = vector.broadcast %138 : vector<8x1xf32> to vector<8x8xf32>
    %140 = arith.subf %136, %139 : vector<8x8xf32>
    %141 = math.exp %140 : vector<8x8xf32>
    %cst_128 = arith.constant dense<0.000000e+00> : vector<8xf32>
    %142 = vector.multi_reduction <add>, %141, %cst_128 [1] : vector<8x8xf32> to vector<8xf32>
    %143 = vector.shape_cast %142 : vector<8xf32> to vector<8x1xf32>
    %144 = vector.broadcast %143 : vector<8x1xf32> to vector<8x8xf32>
    %145 = arith.divf %141, %144 : vector<8x8xf32>
    %cst_129 = arith.constant dense<0.000000e+00> : vector<8xf32>
    %146 = vector.multi_reduction <add>, %145, %cst_129 [0] : vector<8x8xf32> to vector<8xf32>
    %147 = vector.shape_cast %146 : vector<8xf32> to vector<1x8xf32>
    %cst_130 = arith.constant 1.250000e-01 : f32
    %148 = vector.broadcast %cst_130 : f32 to vector<1x8xf32>
    %149 = arith.mulf %147, %148 : vector<1x8xf32>
    %150 = arith.truncf %149 : vector<1x8xf32> to vector<1x8xbf16>
    %cst_131 = arith.constant dense<0.000000e+00> : vector<1x32xf32>
    %151 = tpu.matmul %150, %135, %cst_131 {dimension_numbers = #tpu.dot_dimension_numbers<[1], [0], [0], [1], [0, 0, 1, 1], [], []>} : vector<1x8xbf16>, vector<8x32xbf16>, vector<1x32xf32> -> vector<1x32xf32>
    %152 = arith.truncf %151 : vector<1x32xf32> to vector<1x32xbf16>
    %c0_132 = arith.constant 0 : index
    %c0_133 = arith.constant 0 : index
    %153 = vector.load %arg7[%c0_132, %c0_133] : memref<128x128xbf16, #tpu.memory_space<vmem>>, vector<32x128xbf16>
    %cst_134 = arith.constant dense<0.000000e+00> : vector<1x128xf32>
    %154 = tpu.matmul %152, %153, %cst_134 {dimension_numbers = #tpu.dot_dimension_numbers<[1], [0], [0], [1], [0, 0, 1, 1], [], []>} : vector<1x32xbf16>, vector<32x128xbf16>, vector<1x128xf32> -> vector<1x128xf32>
    %155 = arith.addf %127, %154 : vector<1x128xf32>
    %156 = vector.extract_strided_slice %126 {offsets = [0, 32], sizes = [8, 32], strides = [1, 1]} : vector<8x384xf32> to vector<8x32xf32>
    %cst_135 = arith.constant 0.176776692 : f32
    %157 = vector.broadcast %cst_135 : f32 to vector<8x32xf32>
    %158 = arith.mulf %156, %157 : vector<8x32xf32>
    %159 = arith.truncf %158 : vector<8x32xf32> to vector<8x32xbf16>
    %160 = vector.extract_strided_slice %126 {offsets = [0, 160], sizes = [8, 32], strides = [1, 1]} : vector<8x384xf32> to vector<8x32xf32>
    %161 = arith.truncf %160 : vector<8x32xf32> to vector<8x32xbf16>
    %162 = vector.extract_strided_slice %126 {offsets = [0, 288], sizes = [8, 32], strides = [1, 1]} : vector<8x384xf32> to vector<8x32xf32>
    %163 = arith.truncf %162 : vector<8x32xf32> to vector<8x32xbf16>
    %cst_136 = arith.constant dense<0.000000e+00> : vector<8x8xf32>
    %164 = tpu.matmul %159, %161, %cst_136 {dimension_numbers = #tpu.dot_dimension_numbers<[1], [1], [0], [0], [0, 0, 1, 0], [], []>} : vector<8x32xbf16>, vector<8x32xbf16>, vector<8x8xf32> -> vector<8x8xf32>
    %cst_137 = arith.constant dense<0xFF800000> : vector<8xf32>
    %165 = vector.multi_reduction <maximumf>, %164, %cst_137 [1] : vector<8x8xf32> to vector<8xf32>
    %166 = vector.shape_cast %165 : vector<8xf32> to vector<8x1xf32>
    %167 = vector.broadcast %166 : vector<8x1xf32> to vector<8x8xf32>
    %168 = arith.subf %164, %167 : vector<8x8xf32>
    %169 = math.exp %168 : vector<8x8xf32>
    %cst_138 = arith.constant dense<0.000000e+00> : vector<8xf32>
    %170 = vector.multi_reduction <add>, %169, %cst_138 [1] : vector<8x8xf32> to vector<8xf32>
    %171 = vector.shape_cast %170 : vector<8xf32> to vector<8x1xf32>
    %172 = vector.broadcast %171 : vector<8x1xf32> to vector<8x8xf32>
    %173 = arith.divf %169, %172 : vector<8x8xf32>
    %cst_139 = arith.constant dense<0.000000e+00> : vector<8xf32>
    %174 = vector.multi_reduction <add>, %173, %cst_139 [0] : vector<8x8xf32> to vector<8xf32>
    %175 = vector.shape_cast %174 : vector<8xf32> to vector<1x8xf32>
    %cst_140 = arith.constant 1.250000e-01 : f32
    %176 = vector.broadcast %cst_140 : f32 to vector<1x8xf32>
    %177 = arith.mulf %175, %176 : vector<1x8xf32>
    %178 = arith.truncf %177 : vector<1x8xf32> to vector<1x8xbf16>
    %cst_141 = arith.constant dense<0.000000e+00> : vector<1x32xf32>
    %179 = tpu.matmul %178, %163, %cst_141 {dimension_numbers = #tpu.dot_dimension_numbers<[1], [0], [0], [1], [0, 0, 1, 1], [], []>} : vector<1x8xbf16>, vector<8x32xbf16>, vector<1x32xf32> -> vector<1x32xf32>
    %180 = arith.truncf %179 : vector<1x32xf32> to vector<1x32xbf16>
    %c32 = arith.constant 32 : index
    %c0_142 = arith.constant 0 : index
    %181 = vector.load %arg7[%c32, %c0_142] : memref<128x128xbf16, #tpu.memory_space<vmem>>, vector<32x128xbf16>
    %cst_143 = arith.constant dense<0.000000e+00> : vector<1x128xf32>
    %182 = tpu.matmul %180, %181, %cst_143 {dimension_numbers = #tpu.dot_dimension_numbers<[1], [0], [0], [1], [0, 0, 1, 1], [], []>} : vector<1x32xbf16>, vector<32x128xbf16>, vector<1x128xf32> -> vector<1x128xf32>
    %183 = arith.addf %155, %182 : vector<1x128xf32>
    %184 = vector.extract_strided_slice %126 {offsets = [0, 64], sizes = [8, 32], strides = [1, 1]} : vector<8x384xf32> to vector<8x32xf32>
    %cst_144 = arith.constant 0.176776692 : f32
    %185 = vector.broadcast %cst_144 : f32 to vector<8x32xf32>
    %186 = arith.mulf %184, %185 : vector<8x32xf32>
    %187 = arith.truncf %186 : vector<8x32xf32> to vector<8x32xbf16>
    %188 = vector.extract_strided_slice %126 {offsets = [0, 192], sizes = [8, 32], strides = [1, 1]} : vector<8x384xf32> to vector<8x32xf32>
    %189 = arith.truncf %188 : vector<8x32xf32> to vector<8x32xbf16>
    %190 = vector.extract_strided_slice %126 {offsets = [0, 320], sizes = [8, 32], strides = [1, 1]} : vector<8x384xf32> to vector<8x32xf32>
    %191 = arith.truncf %190 : vector<8x32xf32> to vector<8x32xbf16>
    %cst_145 = arith.constant dense<0.000000e+00> : vector<8x8xf32>
    %192 = tpu.matmul %187, %189, %cst_145 {dimension_numbers = #tpu.dot_dimension_numbers<[1], [1], [0], [0], [0, 0, 1, 0], [], []>} : vector<8x32xbf16>, vector<8x32xbf16>, vector<8x8xf32> -> vector<8x8xf32>
    %cst_146 = arith.constant dense<0xFF800000> : vector<8xf32>
    %193 = vector.multi_reduction <maximumf>, %192, %cst_146 [1] : vector<8x8xf32> to vector<8xf32>
    %194 = vector.shape_cast %193 : vector<8xf32> to vector<8x1xf32>
    %195 = vector.broadcast %194 : vector<8x1xf32> to vector<8x8xf32>
    %196 = arith.subf %192, %195 : vector<8x8xf32>
    %197 = math.exp %196 : vector<8x8xf32>
    %cst_147 = arith.constant dense<0.000000e+00> : vector<8xf32>
    %198 = vector.multi_reduction <add>, %197, %cst_147 [1] : vector<8x8xf32> to vector<8xf32>
    %199 = vector.shape_cast %198 : vector<8xf32> to vector<8x1xf32>
    %200 = vector.broadcast %199 : vector<8x1xf32> to vector<8x8xf32>
    %201 = arith.divf %197, %200 : vector<8x8xf32>
    %cst_148 = arith.constant dense<0.000000e+00> : vector<8xf32>
    %202 = vector.multi_reduction <add>, %201, %cst_148 [0] : vector<8x8xf32> to vector<8xf32>
    %203 = vector.shape_cast %202 : vector<8xf32> to vector<1x8xf32>
    %cst_149 = arith.constant 1.250000e-01 : f32
    %204 = vector.broadcast %cst_149 : f32 to vector<1x8xf32>
    %205 = arith.mulf %203, %204 : vector<1x8xf32>
    %206 = arith.truncf %205 : vector<1x8xf32> to vector<1x8xbf16>
    %cst_150 = arith.constant dense<0.000000e+00> : vector<1x32xf32>
    %207 = tpu.matmul %206, %191, %cst_150 {dimension_numbers = #tpu.dot_dimension_numbers<[1], [0], [0], [1], [0, 0, 1, 1], [], []>} : vector<1x8xbf16>, vector<8x32xbf16>, vector<1x32xf32> -> vector<1x32xf32>
    %208 = arith.truncf %207 : vector<1x32xf32> to vector<1x32xbf16>
    %c64 = arith.constant 64 : index
    %c0_151 = arith.constant 0 : index
    %209 = vector.load %arg7[%c64, %c0_151] : memref<128x128xbf16, #tpu.memory_space<vmem>>, vector<32x128xbf16>
    %cst_152 = arith.constant dense<0.000000e+00> : vector<1x128xf32>
    %210 = tpu.matmul %208, %209, %cst_152 {dimension_numbers = #tpu.dot_dimension_numbers<[1], [0], [0], [1], [0, 0, 1, 1], [], []>} : vector<1x32xbf16>, vector<32x128xbf16>, vector<1x128xf32> -> vector<1x128xf32>
    %211 = arith.addf %183, %210 : vector<1x128xf32>
    %212 = vector.extract_strided_slice %126 {offsets = [0, 96], sizes = [8, 32], strides = [1, 1]} : vector<8x384xf32> to vector<8x32xf32>
    %cst_153 = arith.constant 0.176776692 : f32
    %213 = vector.broadcast %cst_153 : f32 to vector<8x32xf32>
    %214 = arith.mulf %212, %213 : vector<8x32xf32>
    %215 = arith.truncf %214 : vector<8x32xf32> to vector<8x32xbf16>
    %216 = vector.extract_strided_slice %126 {offsets = [0, 224], sizes = [8, 32], strides = [1, 1]} : vector<8x384xf32> to vector<8x32xf32>
    %217 = arith.truncf %216 : vector<8x32xf32> to vector<8x32xbf16>
    %218 = vector.extract_strided_slice %126 {offsets = [0, 352], sizes = [8, 32], strides = [1, 1]} : vector<8x384xf32> to vector<8x32xf32>
    %219 = arith.truncf %218 : vector<8x32xf32> to vector<8x32xbf16>
    %cst_154 = arith.constant dense<0.000000e+00> : vector<8x8xf32>
    %220 = tpu.matmul %215, %217, %cst_154 {dimension_numbers = #tpu.dot_dimension_numbers<[1], [1], [0], [0], [0, 0, 1, 0], [], []>} : vector<8x32xbf16>, vector<8x32xbf16>, vector<8x8xf32> -> vector<8x8xf32>
    %cst_155 = arith.constant dense<0xFF800000> : vector<8xf32>
    %221 = vector.multi_reduction <maximumf>, %220, %cst_155 [1] : vector<8x8xf32> to vector<8xf32>
    %222 = vector.shape_cast %221 : vector<8xf32> to vector<8x1xf32>
    %223 = vector.broadcast %222 : vector<8x1xf32> to vector<8x8xf32>
    %224 = arith.subf %220, %223 : vector<8x8xf32>
    %225 = math.exp %224 : vector<8x8xf32>
    %cst_156 = arith.constant dense<0.000000e+00> : vector<8xf32>
    %226 = vector.multi_reduction <add>, %225, %cst_156 [1] : vector<8x8xf32> to vector<8xf32>
    %227 = vector.shape_cast %226 : vector<8xf32> to vector<8x1xf32>
    %228 = vector.broadcast %227 : vector<8x1xf32> to vector<8x8xf32>
    %229 = arith.divf %225, %228 : vector<8x8xf32>
    %cst_157 = arith.constant dense<0.000000e+00> : vector<8xf32>
    %230 = vector.multi_reduction <add>, %229, %cst_157 [0] : vector<8x8xf32> to vector<8xf32>
    %231 = vector.shape_cast %230 : vector<8xf32> to vector<1x8xf32>
    %cst_158 = arith.constant 1.250000e-01 : f32
    %232 = vector.broadcast %cst_158 : f32 to vector<1x8xf32>
    %233 = arith.mulf %231, %232 : vector<1x8xf32>
    %234 = arith.truncf %233 : vector<1x8xf32> to vector<1x8xbf16>
    %cst_159 = arith.constant dense<0.000000e+00> : vector<1x32xf32>
    %235 = tpu.matmul %234, %219, %cst_159 {dimension_numbers = #tpu.dot_dimension_numbers<[1], [0], [0], [1], [0, 0, 1, 1], [], []>} : vector<1x8xbf16>, vector<8x32xbf16>, vector<1x32xf32> -> vector<1x32xf32>
    %236 = arith.truncf %235 : vector<1x32xf32> to vector<1x32xbf16>
    %c96 = arith.constant 96 : index
    %c0_160 = arith.constant 0 : index
    %237 = vector.load %arg7[%c96, %c0_160] : memref<128x128xbf16, #tpu.memory_space<vmem>>, vector<32x128xbf16>
    %cst_161 = arith.constant dense<0.000000e+00> : vector<1x128xf32>
    %238 = tpu.matmul %236, %237, %cst_161 {dimension_numbers = #tpu.dot_dimension_numbers<[1], [0], [0], [1], [0, 0, 1, 1], [], []>} : vector<1x32xbf16>, vector<32x128xbf16>, vector<1x128xf32> -> vector<1x128xf32>
    %239 = arith.addf %211, %238 : vector<1x128xf32>
    %240 = arith.truncf %239 : vector<1x128xf32> to vector<1x128xbf16>
    %c0_162 = arith.constant 0 : index
    %c0_163 = arith.constant 0 : index
    %241 = vector.load %arg9[%c0_162, %c0_163] : memref<128x32xbf16, #tpu.memory_space<vmem>>, vector<128x32xbf16>
    %cst_164 = arith.constant dense<0.000000e+00> : vector<1x32xf32>
    %242 = tpu.matmul %240, %241, %cst_164 {dimension_numbers = #tpu.dot_dimension_numbers<[1], [0], [0], [1], [0, 0, 1, 1], [], []>} : vector<1x128xbf16>, vector<128x32xbf16>, vector<1x32xf32> -> vector<1x32xf32>
    %c0_165 = arith.constant 0 : index
    %c0_166 = arith.constant 0 : index
    %243 = vector.load %arg10[%c0_165, %c0_166] : memref<1x32xf32, #tpu.memory_space<vmem>>, vector<1x32xf32>
    %244 = arith.addf %242, %243 : vector<1x32xf32>
    %cst_167 = arith.constant 0.000000e+00 : f32
    %245 = vector.broadcast %cst_167 : f32 to vector<1x32xf32>
    %246 = arith.maximumf %244, %245 : vector<1x32xf32>
    %247 = arith.truncf %246 : vector<1x32xf32> to vector<1x32xbf16>
    %c0_168 = arith.constant 0 : index
    %c0_169 = arith.constant 0 : index
    %248 = vector.load %arg11[%c0_168, %c0_169] : memref<32x1xbf16, #tpu.memory_space<vmem>>, vector<32x1xbf16>
    %cst_170 = arith.constant dense<0.000000e+00> : vector<1x1xf32>
    %249 = tpu.matmul %247, %248, %cst_170 {dimension_numbers = #tpu.dot_dimension_numbers<[1], [0], [0], [1], [0, 0, 1, 1], [], []>} : vector<1x32xbf16>, vector<32x1xbf16>, vector<1x1xf32> -> vector<1x1xf32>
    %c0_171 = arith.constant 0 : index
    %c0_172 = arith.constant 0 : index
    %250 = vector.load %arg12[%c0_171, %c0_172] : memref<1x1xf32, #tpu.memory_space<vmem>>, vector<1x1xf32>
    %251 = arith.addf %249, %250 : vector<1x1xf32>
    %252 = vector.shape_cast %251 : vector<1x1xf32> to vector<1x1xf32>
    %253 = vector.broadcast %252 : vector<1x1xf32> to vector<1x128xf32>
    %c0_173 = arith.constant 0 : index
    %c0_174 = arith.constant 0 : index
    %c0_175 = arith.constant 0 : index
    %254 = vector.load %arg13[%c0_173, %c0_174, %c0_175] : memref<1x1x128xf32, #tpu.memory_space<vmem>>, vector<1x1x128xf32>
    %255 = vector.shape_cast %254 : vector<1x1x128xf32> to vector<1x128xf32>
    %256 = vector.shape_cast %253 : vector<1x128xf32> to vector<1x1x128xf32>
    tpu.vector_store %arg13[%c0_173, %c0_174, %c0_175], %256 {strides = array<i32>} : memref<1x1x128xf32, #tpu.memory_space<vmem>>, vector<1x1x128xf32>,
    return
  }
  func.func @transform_0(%arg0: i32) -> (i32, i32, i32, i32) {
    %c0_i32 = arith.constant 0 : i32
    %c0_i32_0 = arith.constant 0 : i32
    %c0_i32_1 = arith.constant 0 : i32
    %c0_i32_2 = arith.constant 0 : i32
    return %arg0, %c0_i32, %c0_i32_0, %c0_i32_1 : i32, i32, i32, i32
  }
  func.func @transform_1(%arg0: i32) -> (i32, i32) {
    %c0_i32 = arith.constant 0 : i32
    %c0_i32_0 = arith.constant 0 : i32
    %c0_i32_1 = arith.constant 0 : i32
    return %c0_i32, %c0_i32_0 : i32, i32
  }
  func.func @transform_2(%arg0: i32) -> (i32, i32) {
    %c0_i32 = arith.constant 0 : i32
    %c0_i32_0 = arith.constant 0 : i32
    %c0_i32_1 = arith.constant 0 : i32
    return %c0_i32, %c0_i32_0 : i32, i32
  }
  func.func @transform_3(%arg0: i32) -> (i32, i32) {
    %c0_i32 = arith.constant 0 : i32
    %c0_i32_0 = arith.constant 0 : i32
    %c0_i32_1 = arith.constant 0 : i32
    return %c0_i32, %c0_i32_0 : i32, i32
  }
  func.func @transform_4(%arg0: i32) -> (i32, i32) {
    %c0_i32 = arith.constant 0 : i32
    %c0_i32_0 = arith.constant 0 : i32
    %c0_i32_1 = arith.constant 0 : i32
    return %c0_i32, %c0_i32_0 : i32, i32
  }
  func.func @transform_5(%arg0: i32) -> (i32, i32) {
    %c0_i32 = arith.constant 0 : i32
    %c0_i32_0 = arith.constant 0 : i32
    %c0_i32_1 = arith.constant 0 : i32
    return %c0_i32, %c0_i32_0 : i32, i32
  }
  func.func @transform_6(%arg0: i32) -> (i32, i32) {
    %c0_i32 = arith.constant 0 : i32
    %c0_i32_0 = arith.constant 0 : i32
    %c0_i32_1 = arith.constant 0 : i32
    return %c0_i32, %c0_i32_0 : i32, i32
  }
  func.func @transform_7(%arg0: i32) -> (i32, i32) {
    %c0_i32 = arith.constant 0 : i32
    %c0_i32_0 = arith.constant 0 : i32
    %c0_i32_1 = arith.constant 0 : i32
    return %c0_i32, %c0_i32_0 : i32, i32
  }
  func.func @transform_8(%arg0: i32) -> (i32, i32) {
    %c0_i32 = arith.constant 0 : i32
    %c0_i32_0 = arith.constant 0 : i32
    %c0_i32_1 = arith.constant 0 : i32
    return %c0_i32, %c0_i32_0 : i32, i32
  }
  func.func @transform_9(%arg0: i32) -> (i32, i32) {
    %c0_i32 = arith.constant 0 : i32
    %c0_i32_0 = arith.constant 0 : i32
    %c0_i32_1 = arith.constant 0 : i32
    return %c0_i32, %c0_i32_0 : i32, i32
  }
  func.func @transform_10(%arg0: i32) -> (i32, i32) {
    %c0_i32 = arith.constant 0 : i32
    %c0_i32_0 = arith.constant 0 : i32
    %c0_i32_1 = arith.constant 0 : i32
    return %c0_i32, %c0_i32_0 : i32, i32
  }
  func.func @transform_11(%arg0: i32) -> (i32, i32) {
    %c0_i32 = arith.constant 0 : i32
    %c0_i32_0 = arith.constant 0 : i32
    %c0_i32_1 = arith.constant 0 : i32
    return %c0_i32, %c0_i32_0 : i32, i32
  }
  func.func @transform_12(%arg0: i32) -> (i32, i32, i32) {
    %c0_i32 = arith.constant 0 : i32
    %c0_i32_0 = arith.constant 0 : i32
    %c0_i32_1 = arith.constant 0 : i32
    return %arg0, %c0_i32, %c0_i32_0 : i32, i32, i32
  }
}

</mosaic_0001>

<llo_original>
// kernel: vqa_forward.1
$region0: #{vqa_forward.1}
  #allocation0 [shape = 'u32[]', space=smem, size = 0x4, offset = 0x4, fixed_abs, tag = 'smem constant byte address 0x4 - core index']
  #allocation1 [shape = 'u32[144,128]{1,0:T(1,128)}', space=vmem, size = 0x12000, scoped, tag = 'internal scratch']
  #allocation2 [shape = 'f32[8,1024]{1,0:T(8,128)}', space=vmem, size = 0x8000, scoped, tag = 'scratch operand']
  #allocation3 [shape = 'f32[1,1]{1,0:T(1,128)S(1)}', space=vmem, size = 0x200, scoped, tag = 'scoped memory for vqa_forward.1']
  %s0 = inlined_call_operand.vmem [shape: bf16[2,8,256,32], index: 0, kind: input, shape index: {}]
  %s1 = inlined_call_operand.vmem [shape: bf16[32,512], index: 1, kind: input, shape index: {}]
  %s2 = inlined_call_operand.vmem [shape: bf16[1024,128], index: 2, kind: input, shape index: {}]
  %s3 = inlined_call_operand.vmem [shape: f32[1,128], index: 3, kind: input, shape index: {}]
  %s4 = inlined_call_operand.vmem [shape: bf16[128,384], index: 4, kind: input, shape index: {}]
  %s5 = inlined_call_operand.vmem [shape: f32[1,384], index: 5, kind: input, shape index: {}]
  %s6 = inlined_call_operand.vmem [shape: bf16[128,128], index: 6, kind: input, shape index: {}]
  %s7 = inlined_call_operand.vmem [shape: f32[1,128], index: 7, kind: input, shape index: {}]
  %s8 = inlined_call_operand.vmem [shape: bf16[128,32], index: 8, kind: input, shape index: {}]
  %s9 = inlined_call_operand.vmem [shape: f32[1,32], index: 9, kind: input, shape index: {}]
  %s10 = inlined_call_operand.vmem [shape: bf16[32,1], index: 10, kind: input, shape index: {}]
  %s11 = inlined_call_operand.<no memory space> [shape: f32[1,1], index: 11, kind: input, shape index: {}]
  %s12 = inlined_call_operand.vmem [shape: f32[2,1,128], index: 12, kind: output, shape index: {}]
  %s13 = sld [smem:[#allocation0]]
  $region81: #{vqa_forward.1} parent=0
    _
  %s15 = ssub.s32 1, %s13
  %s16 = scalar_select 0, %s15, %s13
  %v17 = vstv %s11
  %18 = vst [vmem:[#allocation3] sm:$0x1] %v17
  loop: start=0, step=1, limit=4
  $region2: #{vqa_forward.1} parent=0 // loop_pre_header
    _
  $region3: #{vqa_forward.1} parent=0 // loop_header
    %s20 = sphi 0, %s24
    %p21 = scmp.ge.s32.totalorder %s20, 4
    %s30 = sphi 0, %s32
    %s33 = sphi 0, %s30
    %s34 = sphi 0, %s33
    %s50 = sphi 0, %s34
    %s54 = sphi 0, %s54
    %s56 = sphi 0, %s54
    %s57 = sphi 0, %s56
    %s71 = sphi 0, %s57
    %s75 = sphi 0, %s75
    %s77 = sphi 0, %s75
    %s78 = sphi 0, %s77
    %s92 = sphi 0, %s78
    %s96 = sphi 0, %s96
    %s98 = sphi 0, %s96
    %s99 = sphi 0, %s98
    %s113 = sphi 0, %s99
    %s117 = sphi 0, %s117
    %s119 = sphi 0, %s117
    %s120 = sphi 0, %s119
    %s134 = sphi 0, %s120
    %s138 = sphi 0, %s138
    %s140 = sphi 0, %s138
    %s141 = sphi 0, %s140
    %s155 = sphi 0, %s141
    %s159 = sphi 0, %s159
    %s161 = sphi 0, %s159
    %s162 = sphi 0, %s161
    %s176 = sphi 0, %s162
    %s180 = sphi 0, %s180
    %s182 = sphi 0, %s180
    %s183 = sphi 0, %s182
    %s197 = sphi 0, %s183
    %s201 = sphi 0, %s201
    %s203 = sphi 0, %s201
    %s204 = sphi 0, %s203
    %s218 = sphi 0, %s204
    %s222 = sphi 0, %s222
    %s224 = sphi 0, %s222
    %s225 = sphi 0, %s224
    %s239 = sphi 0, %s225
    %s243 = sphi 0, %s243
    %s245 = sphi 0, %s243
    %s246 = sphi 0, %s245
    %s260 = sphi 0, %s246
    %s264 = sphi 0, %s264
    %s266 = sphi 0, %s264
    %s267 = sphi 0, %s266
    %s281 = sphi 0, %s267
    %s287 = sphi 0, %s289
    %s290 = sphi 0, %s287
    %s291 = sphi 0, %s290
    %s307 = sphi 0, %s291
  $region4: #{vqa_forward.1} parent=0 // loop_header_branch
    %23 = sbr.rel (%p21) target = $region8
  $region5: #{vqa_forward.1} parent=0 // loop_body
    %s25 = ssub.s32 %s20, 1
    %s26 = ssub.s32 %s20, 2
    %s27 = sadd.s32 %s20, 1
    %s28 = ssub.s32 %s20, %s27
    %p29 = scmp.eq.s32.totalorder %s28, 0
    %s31 = sadd.s32 %s30, 1
    %s32 = scalar_select %p29, %s30, %s31
    %p35 = pneg %p29
    %p36 = scmp.eq.s32.totalorder %s20, 1
    %p37 = por %p35, %p36
    %p38 = scmp.ne.s32.totalorder %s30, %s33
    %p39 = scmp.eq.s32.totalorder %s20, 0
    %p40 = por %p38, %p39
    %p41 = scmp.ne.s32.totalorder %s30, %s33
    %p42 = scmp.eq.s32.totalorder %s25, 1
    %p43 = por %p41, %p42
    %p44 = scmp.ne.s32.totalorder %s33, %s34
    %p45 = scmp.eq.s32.totalorder %s25, 0
    %p46 = por %p44, %p45
    %p47 = scmp.ne.s32.totalorder %s33, %s34
    %p48 = scmp.eq.s32.totalorder %s26, 1
    %p49 = por %p47, %p48
    %p51 = scmp.ne.s32.totalorder %s34, %s50
    %p52 = scmp.eq.s32.totalorder %s26, 0
    %p53 = por %p51, %p52
    %s55 = sadd.s32 %s54, 1
    %p58 = scmp.eq.s32.totalorder %s20, 1
    %p59 = scmp.ne.s32.totalorder %s54, %s56
    %p60 = scmp.eq.s32.totalorder %s20, 0
    %p61 = por %p59, %p60
    %p62 = scmp.ne.s32.totalorder %s54, %s56
    %p63 = scmp.eq.s32.totalorder %s25, 1
    %p64 = por %p62, %p63
    %p65 = scmp.ne.s32.totalorder %s56, %s57
    %p66 = scmp.eq.s32.totalorder %s25, 0
    %p67 = por %p65, %p66
    %p68 = scmp.ne.s32.totalorder %s56, %s57
    %p69 = scmp.eq.s32.totalorder %s26, 1
    %p70 = por %p68, %p69
    %p72 = scmp.ne.s32.totalorder %s57, %s71
    %p73 = scmp.eq.s32.totalorder %s26, 0
    %p74 = por %p72, %p73
    %s76 = sadd.s32 %s75, 1
    %p79 = scmp.eq.s32.totalorder %s20, 1
    %p80 = scmp.ne.s32.totalorder %s75, %s77
    %p81 = scmp.eq.s32.totalorder %s20, 0
    %p82 = por %p80, %p81
    %p83 = scmp.ne.s32.totalorder %s75, %s77
    %p84 = scmp.eq.s32.totalorder %s25, 1
    %p85 = por %p83, %p84
    %p86 = scmp.ne.s32.totalorder %s77, %s78
    %p87 = scmp.eq.s32.totalorder %s25, 0
    %p88 = por %p86, %p87
    %p89 = scmp.ne.s32.totalorder %s77, %s78
    %p90 = scmp.eq.s32.totalorder %s26, 1
    %p91 = por %p89, %p90
    %p93 = scmp.ne.s32.totalorder %s78, %s92
    %p94 = scmp.eq.s32.totalorder %s26, 0
    %p95 = por %p93, %p94
    %s97 = sadd.s32 %s96, 1
    %p100 = scmp.eq.s32.totalorder %s20, 1
    %p101 = scmp.ne.s32.totalorder %s96, %s98
    %p102 = scmp.eq.s32.totalorder %s20, 0
    %p103 = por %p101, %p102
    %p104 = scmp.ne.s32.totalorder %s96, %s98
    %p105 = scmp.eq.s32.totalorder %s25, 1
    %p106 = por %p104, %p105
    %p107 = scmp.ne.s32.totalorder %s98, %s99
    %p108 = scmp.eq.s32.totalorder %s25, 0
    %p109 = por %p107, %p108
    %p110 = scmp.ne.s32.totalorder %s98, %s99
    %p111 = scmp.eq.s32.totalorder %s26, 1
    %p112 = por %p110, %p111
    %p114 = scmp.ne.s32.totalorder %s99, %s113
    %p115 = scmp.eq.s32.totalorder %s26, 0
    %p116 = por %p114, %p115
    %s118 = sadd.s32 %s117, 1
    %p121 = scmp.eq.s32.totalorder %s20, 1
    %p122 = scmp.ne.s32.totalorder %s117, %s119
    %p123 = scmp.eq.s32.totalorder %s20, 0
    %p124 = por %p122, %p123
    %p125 = scmp.ne.s32.totalorder %s117, %s119
    %p126 = scmp.eq.s32.totalorder %s25, 1
    %p127 = por %p125, %p126
    %p128 = scmp.ne.s32.totalorder %s119, %s120
    %p129 = scmp.eq.s32.totalorder %s25, 0
    %p130 = por %p128, %p129
    %p131 = scmp.ne.s32.totalorder %s119, %s120
    %p132 = scmp.eq.s32.totalorder %s26, 1
    %p133 = por %p131, %p132
    %p135 = scmp.ne.s32.totalorder %s120, %s134
    %p136 = scmp.eq.s32.totalorder %s26, 0
    %p137 = por %p135, %p136
    %s139 = sadd.s32 %s138, 1
    %p142 = scmp.eq.s32.totalorder %s20, 1
    %p143 = scmp.ne.s32.totalorder %s138, %s140
    %p144 = scmp.eq.s32.totalorder %s20, 0
    %p145 = por %p143, %p144
    %p146 = scmp.ne.s32.totalorder %s138, %s140
    %p147 = scmp.eq.s32.totalorder %s25, 1
    %p148 = por %p146, %p147
    %p149 = scmp.ne.s32.totalorder %s140, %s141
    %p150 = scmp.eq.s32.totalorder %s25, 0
    %p151 = por %p149, %p150
    %p152 = scmp.ne.s32.totalorder %s140, %s141
    %p153 = scmp.eq.s32.totalorder %s26, 1
    %p154 = por %p152, %p153
    %p156 = scmp.ne.s32.totalorder %s141, %s155
    %p157 = scmp.eq.s32.totalorder %s26, 0
    %p158 = por %p156, %p157
    %s160 = sadd.s32 %s159, 1
    %p163 = scmp.eq.s32.totalorder %s20, 1
    %p164 = scmp.ne.s32.totalorder %s159, %s161
    %p165 = scmp.eq.s32.totalorder %s20, 0
    %p166 = por %p164, %p165
    %p167 = scmp.ne.s32.totalorder %s159, %s161
    %p168 = scmp.eq.s32.totalorder %s25, 1
    %p169 = por %p167, %p168
    %p170 = scmp.ne.s32.totalorder %s161, %s162
    %p171 = scmp.eq.s32.totalorder %s25, 0
    %p172 = por %p170, %p171
    %p173 = scmp.ne.s32.totalorder %s161, %s162
    %p174 = scmp.eq.s32.totalorder %s26, 1
    %p175 = por %p173, %p174
    %p177 = scmp.ne.s32.totalorder %s162, %s176
    %p178 = scmp.eq.s32.totalorder %s26, 0
    %p179 = por %p177, %p178
    %s181 = sadd.s32 %s180, 1
    %p184 = scmp.eq.s32.totalorder %s20, 1
    %p185 = scmp.ne.s32.totalorder %s180, %s182
    %p186 = scmp.eq.s32.totalorder %s20, 0
    %p187 = por %p185, %p186
    %p188 = scmp.ne.s32.totalorder %s180, %s182
    %p189 = scmp.eq.s32.totalorder %s25, 1
    %p190 = por %p188, %p189
    %p191 = scmp.ne.s32.totalorder %s182, %s183
    %p192 = scmp.eq.s32.totalorder %s25, 0
    %p193 = por %p191, %p192
    %p194 = scmp.ne.s32.totalorder %s182, %s183
    %p195 = scmp.eq.s32.totalorder %s26, 1
    %p196 = por %p194, %p195
    %p198 = scmp.ne.s32.totalorder %s183, %s197
    %p199 = scmp.eq.s32.totalorder %s26, 0
    %p200 = por %p198, %p199
    %s202 = sadd.s32 %s201, 1
    %p205 = scmp.eq.s32.totalorder %s20, 1
    %p206 = scmp.ne.s32.totalorder %s201, %s203
    %p207 = scmp.eq.s32.totalorder %s20, 0
    %p208 = por %p206, %p207
    %p209 = scmp.ne.s32.totalorder %s201, %s203
    %p210 = scmp.eq.s32.totalorder %s25, 1
    %p211 = por %p209, %p210
    %p212 = scmp.ne.s32.totalorder %s203, %s204
    %p213 = scmp.eq.s32.totalorder %s25, 0
    %p214 = por %p212, %p213
    %p215 = scmp.ne.s32.totalorder %s203, %s204
    %p216 = scmp.eq.s32.totalorder %s26, 1
    %p217 = por %p215, %p216
    %p219 = scmp.ne.s32.totalorder %s204, %s218
    %p220 = scmp.eq.s32.totalorder %s26, 0
    %p221 = por %p219, %p220
    %s223 = sadd.s32 %s222, 1
    %p226 = scmp.eq.s32.totalorder %s20, 1
    %p227 = scmp.ne.s32.totalorder %s222, %s224
    %p228 = scmp.eq.s32.totalorder %s20, 0
    %p229 = por %p227, %p228
    %p230 = scmp.ne.s32.totalorder %s222, %s224
    %p231 = scmp.eq.s32.totalorder %s25, 1
    %p232 = por %p230, %p231
    %p233 = scmp.ne.s32.totalorder %s224, %s225
    %p234 = scmp.eq.s32.totalorder %s25, 0
    %p235 = por %p233, %p234
    %p236 = scmp.ne.s32.totalorder %s224, %s225
    %p237 = scmp.eq.s32.totalorder %s26, 1
    %p238 = por %p236, %p237
    %p240 = scmp.ne.s32.totalorder %s225, %s239
    %p241 = scmp.eq.s32.totalorder %s26, 0
    %p242 = por %p240, %p241
    %s244 = sadd.s32 %s243, 1
    %p247 = scmp.eq.s32.totalorder %s20, 1
    %p248 = scmp.ne.s32.totalorder %s243, %s245
    %p249 = scmp.eq.s32.totalorder %s20, 0
    %p250 = por %p248, %p249
    %p251 = scmp.ne.s32.totalorder %s243, %s245
    %p252 = scmp.eq.s32.totalorder %s25, 1
    %p253 = por %p251, %p252
    %p254 = scmp.ne.s32.totalorder %s245, %s246
    %p255 = scmp.eq.s32.totalorder %s25, 0
    %p256 = por %p254, %p255
    %p257 = scmp.ne.s32.totalorder %s245, %s246
    %p258 = scmp.eq.s32.totalorder %s26, 1
    %p259 = por %p257, %p258
    %p261 = scmp.ne.s32.totalorder %s246, %s260
    %p262 = scmp.eq.s32.totalorder %s26, 0
    %p263 = por %p261, %p262
    %s265 = sadd.s32 %s264, 1
    %p268 = scmp.eq.s32.totalorder %s20, 1
    %p269 = scmp.ne.s32.totalorder %s264, %s266
    %p270 = scmp.eq.s32.totalorder %s20, 0
    %p271 = por %p269, %p270
    %p272 = scmp.ne.s32.totalorder %s264, %s266
    %p273 = scmp.eq.s32.totalorder %s25, 1
    %p274 = por %p272, %p273
    %p275 = scmp.ne.s32.totalorder %s266, %s267
    %p276 = scmp.eq.s32.totalorder %s25, 0
    %p277 = por %p275, %p276
    %p278 = scmp.ne.s32.totalorder %s266, %s267
    %p279 = scmp.eq.s32.totalorder %s26, 1
    %p280 = por %p278, %p279
    %p282 = scmp.ne.s32.totalorder %s267, %s281
    %p283 = scmp.eq.s32.totalorder %s26, 0
    %p284 = por %p282, %p283
    %s285 = ssub.s32 %s20, %s27
    %p286 = scmp.eq.s32.totalorder %s285, 0
    %s288 = sadd.s32 %s287, 1
    %s289 = scalar_select %p286, %s287, %s288
    %p292 = pneg %p286
    %p293 = scmp.eq.s32.totalorder %s20, 1
    %p294 = por %p292, %p293
    %p295 = scmp.ne.s32.totalorder %s287, %s290
    %p296 = scmp.eq.s32.totalorder %s20, 0
    %p297 = por %p295, %p296
    %p298 = scmp.ne.s32.totalorder %s287, %s290
    %p299 = scmp.eq.s32.totalorder %s25, 1
    %p300 = por %p298, %p299
    %p301 = scmp.ne.s32.totalorder %s290, %s291
    %p302 = scmp.eq.s32.totalorder %s25, 0
    %p303 = por %p301, %p302
    %p304 = scmp.ne.s32.totalorder %s290, %s291
    %p305 = scmp.eq.s32.totalorder %s26, 1
    %p306 = por %p304, %p305
    %p308 = scmp.ne.s32.totalorder %s291, %s307
    %p309 = scmp.eq.s32.totalorder %s26, 0
    %p310 = por %p308, %p309
    %p311 = scmp.le.s32.totalorder 1, %s20
    %p312 = scmp.lt.s32.totalorder %s20, 3
    %p313 = pnand %p311, %p312
    %p314 = pneg %p313
    // Predicated region
    $region9: #{vqa_forward.1} parent=5 // pred_check
      _
    $region10: #{vqa_forward.1} parent=5 // pred_check_branch
      %316 = sbr.rel (%p313) target = $region12
    $region11: #{vqa_forward.1} parent=5 // pred_region
      %s317 = ssub.s32 %s20, 1
      // Predicated region
      $region13: #{vqa_forward.1} parent=11 // pred_check
        %p318 = pneg %p67
      $region14: #{vqa_forward.1} parent=11 // pred_check_branch
        %320 = sbr.rel (%p318) target = $region16
      $region15: #{vqa_forward.1} parent=11 // pred_region
        _
      $region16: #{vqa_forward.1} parent=11 // pred_fallthru
        _
      // Predicated region
      $region17: #{vqa_forward.1} parent=11 // pred_check
        %p321 = pneg %p88
      $region18: #{vqa_forward.1} parent=11 // pred_check_branch
        %323 = sbr.rel (%p321) target = $region20
      $region19: #{vqa_forward.1} parent=11 // pred_region
        _
      $region20: #{vqa_forward.1} parent=11 // pred_fallthru
        _
      // Predicated region
      $region21: #{vqa_forward.1} parent=11 // pred_check
        %p324 = pneg %p109
      $region22: #{vqa_forward.1} parent=11 // pred_check_branch
        %326 = sbr.rel (%p324) target = $region24
      $region23: #{vqa_forward.1} parent=11 // pred_region
        _
      $region24: #{vqa_forward.1} parent=11 // pred_fallthru
        _
      // Predicated region
      $region25: #{vqa_forward.1} parent=11 // pred_check
        %p327 = pneg %p130
      $region26: #{vqa_forward.1} parent=11 // pred_check_branch
        %329 = sbr.rel (%p327) target = $region28
      $region27: #{vqa_forward.1} parent=11 // pred_region
        _
      $region28: #{vqa_forward.1} parent=11 // pred_fallthru
        _
      // Predicated region
      $region29: #{vqa_forward.1} parent=11 // pred_check
        %p330 = pneg %p151
      $region30: #{vqa_forward.1} parent=11 // pred_check_branch
        %332 = sbr.rel (%p330) target = $region32
      $region31: #{vqa_forward.1} parent=11 // pred_region
        _
      $region32: #{vqa_forward.1} parent=11 // pred_fallthru
        _
      // Predicated region
      $region33: #{vqa_forward.1} parent=11 // pred_check
        %p333 = pneg %p172
      $region34: #{vqa_forward.1} parent=11 // pred_check_branch
        %335 = sbr.rel (%p333) target = $region36
      $region35: #{vqa_forward.1} parent=11 // pred_region
        _
      $region36: #{vqa_forward.1} parent=11 // pred_fallthru
        _
      // Predicated region
      $region37: #{vqa_forward.1} parent=11 // pred_check
        %p336 = pneg %p193
      $region38: #{vqa_forward.1} parent=11 // pred_check_branch
        %338 = sbr.rel (%p336) target = $region40
      $region39: #{vqa_forward.1} parent=11 // pred_region
        _
      $region40: #{vqa_forward.1} parent=11 // pred_fallthru
        _
      // Predicated region
      $region41: #{vqa_forward.1} parent=11 // pred_check
        %p339 = pneg %p214
      $region42: #{vqa_forward.1} parent=11 // pred_check_branch
        %341 = sbr.rel (%p339) target = $region44
      $region43: #{vqa_forward.1} parent=11 // pred_region
        _
      $region44: #{vqa_forward.1} parent=11 // pred_fallthru
        _
      // Predicated region
      $region45: #{vqa_forward.1} parent=11 // pred_check
        %p342 = pneg %p235
      $region46: #{vqa_forward.1} parent=11 // pred_check_branch
        %344 = sbr.rel (%p342) target = $region48
      $region47: #{vqa_forward.1} parent=11 // pred_region
        _
      $region48: #{vqa_forward.1} parent=11 // pred_fallthru
        _
      // Predicated region
      $region49: #{vqa_forward.1} parent=11 // pred_check
        %p345 = pneg %p256
      $region50: #{vqa_forward.1} parent=11 // pred_check_branch
        %347 = sbr.rel (%p345) target = $region52
      $region51: #{vqa_forward.1} parent=11 // pred_region
        _
      $region52: #{vqa_forward.1} parent=11 // pred_fallthru
        _
      // Predicated region
      $region53: #{vqa_forward.1} parent=11 // pred_check
        %p348 = pneg %p277
      $region54: #{vqa_forward.1} parent=11 // pred_check_branch
        %350 = sbr.rel (%p348) target = $region56
      $region55: #{vqa_forward.1} parent=11 // pred_region
        _
      $region56: #{vqa_forward.1} parent=11 // pred_fallthru
        _
    $region12: #{vqa_forward.1} parent=5 // pred_fallthru
      _
    %p351 = scmp.lt.s32.totalorder %s20, 2
    // Predicated region
    $region57: #{vqa_forward.1} parent=5 // pred_check
      %p352 = pneg %p351
    $region58: #{vqa_forward.1} parent=5 // pred_check_branch
      %354 = sbr.rel (%p352) target = $region60
    $region59: #{vqa_forward.1} parent=5 // pred_region
      // Predicated region
      $region61: #{vqa_forward.1} parent=59 // pred_check
        %p355 = pneg %p40
      $region62: #{vqa_forward.1} parent=59 // pred_check_branch
        %357 = sbr.rel (%p355) target = $region64
      $region63: #{vqa_forward.1} parent=59 // pred_region
        %p358 = scmp.lt.s32.totalorder %s20, 1
        %s359 = scalar_select %p358, %s20, 1
        %s360 = smul.addr %s359, 256
        %s361 = smul.addr %s360, 4
        %s362 = scalar_lea.vmem %s0, %s361
      $region64: #{vqa_forward.1} parent=59 // pred_fallthru
        _
    $region60: #{vqa_forward.1} parent=5 // pred_fallthru
      _
    %p363 = scmp.le.s32.totalorder 1, %s20
    %p364 = scmp.lt.s32.totalorder %s20, 3
    %p365 = pnand %p363, %p364
    %p366 = pneg %p365
    // Predicated region
    $region65: #{vqa_forward.1} parent=5 // pred_check
      _
    $region66: #{vqa_forward.1} parent=5 // pred_check_branch
      %368 = sbr.rel (%p365) target = $region68
    $region67: #{vqa_forward.1} parent=5 // pred_region
      %s369 = ssub.s32 %s20, 1
      %p370 = scmp.lt.s32.totalorder %s25, 1
      %s371 = scalar_select %p370, %s25, 1
      %s372 = smul.addr %s371, 256
      %s373 = smul.addr %s372, 4
      %s374 = scalar_lea.vmem %s0, %s373
      %p375 = pneg %p46
      %p376 = pneg %p43
      %p377 = pneg %p67
      %p378 = pneg %p64
      %p379 = pneg %p88
      %p380 = pneg %p85
      %p381 = pneg %p109
      %p382 = pneg %p106
      %p383 = pneg %p130
      %p384 = pneg %p127
      %p385 = pneg %p151
      %p386 = pneg %p148
      %p387 = pneg %p172
      %p388 = pneg %p169
      %p389 = pneg %p193
      %p390 = pneg %p190
      %p391 = pneg %p214
      %p392 = pneg %p211
      %p393 = pneg %p235
      %p394 = pneg %p232
      %p395 = pneg %p256
      %p396 = pneg %p253
      %p397 = pneg %p277
      %p398 = pneg %p274
      %p399 = pneg %p303
      %p400 = pneg %p300
      %p401 = scmp.lt.s32.totalorder %s25, 1
      %s402 = scalar_select %p401, %s25, 1
      %s403 = scalar_lea.vmem %s12, %s402
      %p404 = scmp.lt.s32.totalorder %s25, 1
      %s405 = scalar_select %p404, %s25, 1
      %s406 = smul.addr %s405, 256
      %s407 = smul.addr %s406, 4
      %s408 = scalar_lea.vmem %s0, %s407
      %p409 = scmp.lt.s32.totalorder %s25, 1
      %s410 = scalar_select %p409, %s25, 1
      %s411 = scalar_lea.vmem %s12, %s410
      %v413 = vld [vmem:[%s408] sm:$0xf]
      %v414 = vld [vmem:[%s408 + $0x4] sm:$0xf]
      %v415 = vld [vmem:[%s408 + $0x8] sm:$0xf]
      %v416 = vld [vmem:[%s408 + $0xc] sm:$0xf]
      %v417 = vld [vmem:[%s408 + $0x10] sm:$0xf]
      %v418 = vld [vmem:[%s408 + $0x14] sm:$0xf]
      %v419 = vld [vmem:[%s408 + $0x18] sm:$0xf]
      %v420 = vld [vmem:[%s408 + $0x1c] sm:$0xf]
      %v421 = vld [vmem:[%s408 + $0x20] sm:$0xf]
      %v422 = vld [vmem:[%s408 + $0x24] sm:$0xf]
      %v423 = vld [vmem:[%s408 + $0x28] sm:$0xf]
      %v424 = vld [vmem:[%s408 + $0x2c] sm:$0xf]
      %v425 = vld [vmem:[%s408 + $0x30] sm:$0xf]
      %v426 = vld [vmem:[%s408 + $0x34] sm:$0xf]
      %v427 = vld [vmem:[%s408 + $0x38] sm:$0xf]
      %v428 = vld [vmem:[%s408 + $0x3c] sm:$0xf]
      %v429 = vld [vmem:[%s408 + $0x40] sm:$0xf]
      %v430 = vld [vmem:[%s408 + $0x44] sm:$0xf]
      %v431 = vld [vmem:[%s408 + $0x48] sm:$0xf]
      %v432 = vld [vmem:[%s408 + $0x4c] sm:$0xf]
      %v433 = vld [vmem:[%s408 + $0x50] sm:$0xf]
      %v434 = vld [vmem:[%s408 + $0x54] sm:$0xf]
      %v435 = vld [vmem:[%s408 + $0x58] sm:$0xf]
      %v436 = vld [vmem:[%s408 + $0x5c] sm:$0xf]
      %v437 = vld [vmem:[%s408 + $0x60] sm:$0xf]
      %v438 = vld [vmem:[%s408 + $0x64] sm:$0xf]
      %v439 = vld [vmem:[%s408 + $0x68] sm:$0xf]
      %v440 = vld [vmem:[%s408 + $0x6c] sm:$0xf]
      %v441 = vld [vmem:[%s408 + $0x70] sm:$0xf]
      %v442 = vld [vmem:[%s408 + $0x74] sm:$0xf]
      %v443 = vld [vmem:[%s408 + $0x78] sm:$0xf]
      %v444 = vld [vmem:[%s408 + $0x7c] sm:$0xf]
      %v445 = vld [vmem:[%s1] sm:$0xff]
      %v446 = vld [vmem:[%s1 + $0x8] sm:$0xff]
      %v447 = vld [vmem:[%s1 + $0x10] sm:$0xff]
      %v448 = vld [vmem:[%s1 + $0x18] sm:$0xff]
      %v449 = vld [vmem:[%s1 + $0x20] sm:$0xff]
      %v450 = vld [vmem:[%s1 + $0x28] sm:$0xff]
      %v451 = vld [vmem:[%s1 + $0x30] sm:$0xff]
      %v452 = vld [vmem:[%s1 + $0x38] sm:$0xff]
      %v485 = vunpack.c.l.b16 %v413
      %v486 = vunpack.c.l.b16 %v414
      %v487 = vunpack.c.l.b16 %v415
      %v488 = vunpack.c.l.b16 %v416
      %v489 = vunpack.c.l.b16 %v417
      %v490 = vunpack.c.l.b16 %v418
      %v491 = vunpack.c.l.b16 %v419
      %v492 = vunpack.c.l.b16 %v420
      %v493 = vunpack.c.l.b16 %v421
      %v494 = vunpack.c.l.b16 %v422
      %v495 = vunpack.c.l.b16 %v423
      %v496 = vunpack.c.l.b16 %v424
      %v497 = vunpack.c.l.b16 %v425
      %v498 = vunpack.c.l.b16 %v426
      %v499 = vunpack.c.l.b16 %v427
      %v500 = vunpack.c.l.b16 %v428
      %v501 = vunpack.c.l.b16 %v429
      %v502 = vunpack.c.l.b16 %v430
      %v503 = vunpack.c.l.b16 %v431
      %v504 = vunpack.c.l.b16 %v432
      %v505 = vunpack.c.l.b16 %v433
      %v506 = vunpack.c.l.b16 %v434
      %v507 = vunpack.c.l.b16 %v435
      %v508 = vunpack.c.l.b16 %v436
      %v509 = vunpack.c.l.b16 %v437
      %v510 = vunpack.c.l.b16 %v438
      %v511 = vunpack.c.l.b16 %v439
      %v512 = vunpack.c.l.b16 %v440
      %v513 = vunpack.c.l.b16 %v441
      %v514 = vunpack.c.l.b16 %v442
      %v515 = vunpack.c.l.b16 %v443
      %v516 = vunpack.c.l.b16 %v444
      %v517 = vpack.c.b16 %v486, %v485
      %v518 = vpack.c.b16 %v488, %v487
      %v519 = vpack.c.b16 %v490, %v489
      %v520 = vpack.c.b16 %v492, %v491
      %v521 = vpack.c.b16 %v494, %v493
      %v522 = vpack.c.b16 %v496, %v495
      %v523 = vpack.c.b16 %v498, %v497
      %v524 = vpack.c.b16 %v500, %v499
      %v525 = vpack.c.b16 %v502, %v501
      %v526 = vpack.c.b16 %v504, %v503
      %v527 = vpack.c.b16 %v506, %v505
      %v528 = vpack.c.b16 %v508, %v507
      %v529 = vpack.c.b16 %v510, %v509
      %v530 = vpack.c.b16 %v512, %v511
      %v531 = vpack.c.b16 %v514, %v513
      %v532 = vpack.c.b16 %v516, %v515
      %v541 = vunpack.c.l.b16 %v445
      %v542 = vunpack.c.h.b16 %v445
      %v543 = vunpack.c.l.b16 %v446
      %v544 = vunpack.c.h.b16 %v446
      %v545 = vunpack.c.l.b16 %v447
      %v546 = vunpack.c.h.b16 %v447
      %v547 = vunpack.c.l.b16 %v448
      %v548 = vunpack.c.h.b16 %v448
      %v549 = vunpack.c.l.b16 %v449
      %v550 = vunpack.c.h.b16 %v449
      %v551 = vunpack.c.l.b16 %v450
      %v552 = vunpack.c.h.b16 %v450
      %v553 = vunpack.c.l.b16 %v451
      %v554 = vunpack.c.h.b16 %v451
      %v555 = vunpack.c.l.b16 %v452
      %v556 = vunpack.c.h.b16 %v452
      %v557 = vpack.c.b16 %v545, %v541
      %v558 = vpack.c.b16 %v546, %v542
      %v559 = vpack.c.b16 %v547, %v543
      %v560 = vpack.c.b16 %v548, %v544
      %v561 = vpack.c.b16 %v553, %v549
      %v562 = vpack.c.b16 %v554, %v550
      %v563 = vpack.c.b16 %v555, %v551
      %v564 = vpack.c.b16 %v556, %v552
      %vm573 = vcmask 261120
      %v575 = vsel %vm573, %v517, 0
      %v578 = vsel %vm573, %v518, 0
      %v581 = vsel %vm573, %v519, 0
      %v584 = vsel %vm573, %v520, 0
      %v587 = vsel %vm573, %v521, 0
      %v590 = vsel %vm573, %v522, 0
      %v593 = vsel %vm573, %v523, 0
      %v596 = vsel %vm573, %v524, 0
      %v599 = vsel %vm573, %v525, 0
      %v602 = vsel %vm573, %v526, 0
      %v605 = vsel %vm573, %v527, 0
      %v608 = vsel %vm573, %v528, 0
      %v611 = vsel %vm573, %v529, 0
      %v614 = vsel %vm573, %v530, 0
      %v617 = vsel %vm573, %v531, 0
      %v620 = vsel %vm573, %v532, 0
      %622 = vmatprep.subr.bf16.mxu0 %v558
      %623 = vmatpush1.bf16.msra.mxu0 %v557
      %624 = vmatprep.subr.bf16.mxu0 %v562
      %625 = vmatpush1.bf16.msra.mxu0 %v561
      %626 = vmatprep.subr.bf16.mxu0 0
      %627 = vmatpush1.bf16.msra.mxu0 0
      %628 = vmatprep.subr.bf16.mxu0 0
      %629 = vmatpush1.bf16.msra.mxu0 0
      %630 = vmatprep.subr.bf16.mxu0 0
      %631 = vmatpush1.bf16.msra.mxu0 0
      %632 = vmatprep.subr.bf16.mxu0 0
      %633 = vmatpush1.bf16.msra.mxu0 0
      %634 = vmatprep.subr.bf16.mxu0 0
      %635 = vmatpush1.bf16.msra.mxu0 0
      %636 = vmatprep.subr.bf16.mxu0 0
      %637 = vmatpush1.bf16.msra.mxu0 0
      %638 = vmatprep.subr.bf16.mxu0 0
      %639 = vmatpush1.bf16.msra.mxu0 0
      %640 = vmatprep.subr.bf16.mxu0 0
      %641 = vmatpush1.bf16.msra.mxu0 0
      %642 = vmatprep.subr.bf16.mxu0 0
      %643 = vmatpush1.bf16.msra.mxu0 0
      %644 = vmatprep.subr.bf16.mxu0 0
      %645 = vmatpush1.bf16.msra.mxu0 0
      %646 = vmatprep.subr.bf16.mxu0 0
      %647 = vmatpush1.bf16.msra.mxu0 0
      %648 = vmatprep.subr.bf16.mxu0 0
      %649 = vmatpush1.bf16.msra.mxu0 0
      %650 = vmatprep.subr.bf16.mxu0 0
      %651 = vmatpush1.bf16.msra.mxu0 0
      %652 = vmatprep.subr.bf16.mxu0 0
      %653 = vmatpush1.bf16.msra.mxu0 0
      %654 = vmatprep.mubr.bf16.mxu0 0
      %655 = vmatmul.mubr.bf16.gmra.mrb[0].mxu0 %v575
      %v656 = vpop.f32.mrb[0].mxu0
      %v657 = vadd.f32 0.0, %v656
      %v658 = vpop.f32.mrb[0].mxu0
      %v659 = vadd.f32 0.0, %v658
      %v660 = vpop.f32.mrb[0].mxu0
      %v661 = vadd.f32 0.0, %v660
      %v662 = vpop.f32.mrb[0].mxu0
      %v663 = vadd.f32 0.0, %v662
      %664 = vmatprep.mubr.bf16.mxu0 0
      %665 = vmatmul.mubr.bf16.gmra.mrb[0].mxu0 %v578
      %v666 = vpop.f32.mrb[0].mxu0
      %v667 = vadd.f32 0.0, %v666
      %v668 = vpop.f32.mrb[0].mxu0
      %v669 = vadd.f32 0.0, %v668
      %v670 = vpop.f32.mrb[0].mxu0
      %v671 = vadd.f32 0.0, %v670
      %v672 = vpop.f32.mrb[0].mxu0
      %v673 = vadd.f32 0.0, %v672
      %674 = vmatprep.mubr.bf16.mxu0 0
      %675 = vmatmul.mubr.bf16.gmra.mrb[0].mxu0 %v581
      %v676 = vpop.f32.mrb[0].mxu0
      %v677 = vadd.f32 0.0, %v676
      %v678 = vpop.f32.mrb[0].mxu0
      %v679 = vadd.f32 0.0, %v678
      %v680 = vpop.f32.mrb[0].mxu0
      %v681 = vadd.f32 0.0, %v680
      %v682 = vpop.f32.mrb[0].mxu0
      %v683 = vadd.f32 0.0, %v682
      %684 = vmatprep.mubr.bf16.mxu0 0
      %685 = vmatmul.mubr.bf16.gmra.mrb[0].mxu0 %v584
      %v686 = vpop.f32.mrb[0].mxu0
      %v687 = vadd.f32 0.0, %v686
      %v688 = vpop.f32.mrb[0].mxu0
      %v689 = vadd.f32 0.0, %v688
      %v690 = vpop.f32.mrb[0].mxu0
      %v691 = vadd.f32 0.0, %v690
      %v692 = vpop.f32.mrb[0].mxu0
      %v693 = vadd.f32 0.0, %v692
      %694 = vmatprep.mubr.bf16.mxu0 0
      %695 = vmatmul.mubr.bf16.gmra.mrb[0].mxu0 %v587
      %v696 = vpop.f32.mrb[0].mxu0
      %v697 = vadd.f32 0.0, %v696
      %v698 = vpop.f32.mrb[0].mxu0
      %v699 = vadd.f32 0.0, %v698
      %v700 = vpop.f32.mrb[0].mxu0
      %v701 = vadd.f32 0.0, %v700
      %v702 = vpop.f32.mrb[0].mxu0
      %v703 = vadd.f32 0.0, %v702
      %704 = vmatprep.mubr.bf16.mxu0 0
      %705 = vmatmul.mubr.bf16.gmra.mrb[0].mxu0 %v590
      %v706 = vpop.f32.mrb[0].mxu0
      %v707 = vadd.f32 0.0, %v706
      %v708 = vpop.f32.mrb[0].mxu0
      %v709 = vadd.f32 0.0, %v708
      %v710 = vpop.f32.mrb[0].mxu0
      %v711 = vadd.f32 0.0, %v710
      %v712 = vpop.f32.mrb[0].mxu0
      %v713 = vadd.f32 0.0, %v712
      %714 = vmatprep.mubr.bf16.mxu0 0
      %715 = vmatmul.mubr.bf16.gmra.mrb[0].mxu0 %v593
      %v716 = vpop.f32.mrb[0].mxu0
      %v717 = vadd.f32 0.0, %v716
      %v718 = vpop.f32.mrb[0].mxu0
      %v719 = vadd.f32 0.0, %v718
      %v720 = vpop.f32.mrb[0].mxu0
      %v721 = vadd.f32 0.0, %v720
      %v722 = vpop.f32.mrb[0].mxu0
      %v723 = vadd.f32 0.0, %v722
      %724 = vmatprep.mubr.bf16.mxu0 0
      %725 = vmatmul.mubr.bf16.gmra.mrb[0].mxu0 %v596
      %v726 = vpop.f32.mrb[0].mxu0
      %v727 = vadd.f32 0.0, %v726
      %v728 = vpop.f32.mrb[0].mxu0
      %v729 = vadd.f32 0.0, %v728
      %v730 = vpop.f32.mrb[0].mxu0
      %v731 = vadd.f32 0.0, %v730
      %v732 = vpop.f32.mrb[0].mxu0
      %v733 = vadd.f32 0.0, %v732
      %734 = vmatprep.mubr.bf16.mxu0 0
      %735 = vmatmul.mubr.bf16.gmra.mrb[0].mxu0 %v599
      %v736 = vpop.f32.mrb[0].mxu0
      %v737 = vadd.f32 0.0, %v736
      %v738 = vpop.f32.mrb[0].mxu0
      %v739 = vadd.f32 0.0, %v738
      %v740 = vpop.f32.mrb[0].mxu0
      %v741 = vadd.f32 0.0, %v740
      %v742 = vpop.f32.mrb[0].mxu0
      %v743 = vadd.f32 0.0, %v742
      %744 = vmatprep.mubr.bf16.mxu0 0
      %745 = vmatmul.mubr.bf16.gmra.mrb[0].mxu0 %v602
      %v746 = vpop.f32.mrb[0].mxu0
      %v747 = vadd.f32 0.0, %v746
      %v748 = vpop.f32.mrb[0].mxu0
      %v749 = vadd.f32 0.0, %v748
      %v750 = vpop.f32.mrb[0].mxu0
      %v751 = vadd.f32 0.0, %v750
      %v752 = vpop.f32.mrb[0].mxu0
      %v753 = vadd.f32 0.0, %v752
      %754 = vmatprep.mubr.bf16.mxu0 0
      %755 = vmatmul.mubr.bf16.gmra.mrb[0].mxu0 %v605
      %v756 = vpop.f32.mrb[0].mxu0
      %v757 = vadd.f32 0.0, %v756
      %v758 = vpop.f32.mrb[0].mxu0
      %v759 = vadd.f32 0.0, %v758
      %v760 = vpop.f32.mrb[0].mxu0
      %v761 = vadd.f32 0.0, %v760
      %v762 = vpop.f32.mrb[0].mxu0
      %v763 = vadd.f32 0.0, %v762
      %764 = vmatprep.mubr.bf16.mxu0 0
      %765 = vmatmul.mubr.bf16.gmra.mrb[0].mxu0 %v608
      %v766 = vpop.f32.mrb[0].mxu0
      %v767 = vadd.f32 0.0, %v766
      %v768 = vpop.f32.mrb[0].mxu0
      %v769 = vadd.f32 0.0, %v768
      %v770 = vpop.f32.mrb[0].mxu0
      %v771 = vadd.f32 0.0, %v770
      %v772 = vpop.f32.mrb[0].mxu0
      %v773 = vadd.f32 0.0, %v772
      %774 = vmatprep.mubr.bf16.mxu0 0
      %775 = vmatmul.mubr.bf16.gmra.mrb[0].mxu0 %v611
      %v776 = vpop.f32.mrb[0].mxu0
      %v777 = vadd.f32 0.0, %v776
      %v778 = vpop.f32.mrb[0].mxu0
      %v779 = vadd.f32 0.0, %v778
      %v780 = vpop.f32.mrb[0].mxu0
      %v781 = vadd.f32 0.0, %v780
      %v782 = vpop.f32.mrb[0].mxu0
      %v783 = vadd.f32 0.0, %v782
      %784 = vmatprep.mubr.bf16.mxu0 0
      %785 = vmatmul.mubr.bf16.gmra.mrb[0].mxu0 %v614
      %v786 = vpop.f32.mrb[0].mxu0
      %v787 = vadd.f32 0.0, %v786
      %v788 = vpop.f32.mrb[0].mxu0
      %v789 = vadd.f32 0.0, %v788
      %v790 = vpop.f32.mrb[0].mxu0
      %v791 = vadd.f32 0.0, %v790
      %v792 = vpop.f32.mrb[0].mxu0
      %v793 = vadd.f32 0.0, %v792
      %794 = vmatprep.mubr.bf16.mxu0 0
      %795 = vmatmul.mubr.bf16.gmra.mrb[0].mxu0 %v617
      %v796 = vpop.f32.mrb[0].mxu0
      %v797 = vadd.f32 0.0, %v796
      %v798 = vpop.f32.mrb[0].mxu0
      %v799 = vadd.f32 0.0, %v798
      %v800 = vpop.f32.mrb[0].mxu0
      %v801 = vadd.f32 0.0, %v800
      %v802 = vpop.f32.mrb[0].mxu0
      %v803 = vadd.f32 0.0, %v802
      %804 = vmatprep.mubr.bf16.mxu0 0
      %805 = vmatmul.mubr.bf16.gmra.mrb[0].mxu0 %v620
      %v806 = vpop.f32.mrb[0].mxu0
      %v807 = vadd.f32 0.0, %v806
      %v808 = vpop.f32.mrb[0].mxu0
      %v809 = vadd.f32 0.0, %v808
      %v810 = vpop.f32.mrb[0].mxu0
      %v811 = vadd.f32 0.0, %v810
      %v812 = vpop.f32.mrb[0].mxu0
      %v813 = vadd.f32 0.0, %v812
      %814 = vdwg.mxu0
      %815 = vmatprep.subr.bf16.mxu0 %v560
      %816 = vmatpush1.bf16.msra.mxu0 %v559
      %817 = vmatprep.subr.bf16.mxu0 %v564
      %818 = vmatpush1.bf16.msra.mxu0 %v563
      %819 = vmatprep.subr.bf16.mxu0 0
      %820 = vmatpush1.bf16.msra.mxu0 0
      %821 = vmatprep.subr.bf16.mxu0 0
      %822 = vmatpush1.bf16.msra.mxu0 0
      %823 = vmatprep.subr.bf16.mxu0 0
      %824 = vmatpush1.bf16.msra.mxu0 0
      %825 = vmatprep.subr.bf16.mxu0 0
      %826 = vmatpush1.bf16.msra.mxu0 0
      %827 = vmatprep.subr.bf16.mxu0 0
      %828 = vmatpush1.bf16.msra.mxu0 0
      %829 = vmatprep.subr.bf16.mxu0 0
      %830 = vmatpush1.bf16.msra.mxu0 0
      %831 = vmatprep.subr.bf16.mxu0 0
      %832 = vmatpush1.bf16.msra.mxu0 0
      %833 = vmatprep.subr.bf16.mxu0 0
      %834 = vmatpush1.bf16.msra.mxu0 0
      %835 = vmatprep.subr.bf16.mxu0 0
      %836 = vmatpush1.bf16.msra.mxu0 0
      %837 = vmatprep.subr.bf16.mxu0 0
      %838 = vmatpush1.bf16.msra.mxu0 0
      %839 = vmatprep.subr.bf16.mxu0 0
      %840 = vmatpush1.bf16.msra.mxu0 0
      %841 = vmatprep.subr.bf16.mxu0 0
      %842 = vmatpush1.bf16.msra.mxu0 0
      %843 = vmatprep.subr.bf16.mxu0 0
      %844 = vmatpush1.bf16.msra.mxu0 0
      %845 = vmatprep.subr.bf16.mxu0 0
      %846 = vmatpush1.bf16.msra.mxu0 0
      %847 = vmatprep.mubr.bf16.mxu0 0
      %848 = vmatmul.mubr.bf16.gmra.mrb[0].mxu0 %v575
      %v849 = vpop.f32.mrb[0].mxu0
      %v850 = vadd.f32 0.0, %v849
      %v851 = vpop.f32.mrb[0].mxu0
      %v852 = vadd.f32 0.0, %v851
      %v853 = vpop.f32.mrb[0].mxu0
      %v854 = vadd.f32 0.0, %v853
      %v855 = vpop.f32.mrb[0].mxu0
      %v856 = vadd.f32 0.0, %v855
      %857 = vmatprep.mubr.bf16.mxu0 0
      %858 = vmatmul.mubr.bf16.gmra.mrb[0].mxu0 %v578
      %v859 = vpop.f32.mrb[0].mxu0
      %v860 = vadd.f32 0.0, %v859
      %v861 = vpop.f32.mrb[0].mxu0
      %v862 = vadd.f32 0.0, %v861
      %v863 = vpop.f32.mrb[0].mxu0
      %v864 = vadd.f32 0.0, %v863
      %v865 = vpop.f32.mrb[0].mxu0
      %v866 = vadd.f32 0.0, %v865
      %867 = vmatprep.mubr.bf16.mxu0 0
      %868 = vmatmul.mubr.bf16.gmra.mrb[0].mxu0 %v581
      %v869 = vpop.f32.mrb[0].mxu0
      %v870 = vadd.f32 0.0, %v869
      %v871 = vpop.f32.mrb[0].mxu0
      %v872 = vadd.f32 0.0, %v871
      %v873 = vpop.f32.mrb[0].mxu0
      %v874 = vadd.f32 0.0, %v873
      %v875 = vpop.f32.mrb[0].mxu0
      %v876 = vadd.f32 0.0, %v875
      %877 = vmatprep.mubr.bf16.mxu0 0
      %878 = vmatmul.mubr.bf16.gmra.mrb[0].mxu0 %v584
      %v879 = vpop.f32.mrb[0].mxu0
      %v880 = vadd.f32 0.0, %v879
      %v881 = vpop.f32.mrb[0].mxu0
      %v882 = vadd.f32 0.0, %v881
      %v883 = vpop.f32.mrb[0].mxu0
      %v884 = vadd.f32 0.0, %v883
      %v885 = vpop.f32.mrb[0].mxu0
      %v886 = vadd.f32 0.0, %v885
      %887 = vmatprep.mubr.bf16.mxu0 0
      %888 = vmatmul.mubr.bf16.gmra.mrb[0].mxu0 %v587
      %v889 = vpop.f32.mrb[0].mxu0
      %v890 = vadd.f32 0.0, %v889
      %v891 = vpop.f32.mrb[0].mxu0
      %v892 = vadd.f32 0.0, %v891
      %v893 = vpop.f32.mrb[0].mxu0
      %v894 = vadd.f32 0.0, %v893
      %v895 = vpop.f32.mrb[0].mxu0
      %v896 = vadd.f32 0.0, %v895
      %897 = vmatprep.mubr.bf16.mxu0 0
      %898 = vmatmul.mubr.bf16.gmra.mrb[0].mxu0 %v590
      %v899 = vpop.f32.mrb[0].mxu0
      %v900 = vadd.f32 0.0, %v899
      %v901 = vpop.f32.mrb[0].mxu0
      %v902 = vadd.f32 0.0, %v901
      %v903 = vpop.f32.mrb[0].mxu0
      %v904 = vadd.f32 0.0, %v903
      %v905 = vpop.f32.mrb[0].mxu0
      %v906 = vadd.f32 0.0, %v905
      %907 = vmatprep.mubr.bf16.mxu0 0
      %908 = vmatmul.mubr.bf16.gmra.mrb[0].mxu0 %v593
      %v909 = vpop.f32.mrb[0].mxu0
      %v910 = vadd.f32 0.0, %v909
      %v911 = vpop.f32.mrb[0].mxu0
      %v912 = vadd.f32 0.0, %v911
      %v913 = vpop.f32.mrb[0].mxu0
      %v914 = vadd.f32 0.0, %v913
      %v915 = vpop.f32.mrb[0].mxu0
      %v916 = vadd.f32 0.0, %v915
      %917 = vmatprep.mubr.bf16.mxu0 0
      %918 = vmatmul.mubr.bf16.gmra.mrb[0].mxu0 %v596
      %v919 = vpop.f32.mrb[0].mxu0
      %v920 = vadd.f32 0.0, %v919
      %v921 = vpop.f32.mrb[0].mxu0
      %v922 = vadd.f32 0.0, %v921
      %v923 = vpop.f32.mrb[0].mxu0
      %v924 = vadd.f32 0.0, %v923
      %v925 = vpop.f32.mrb[0].mxu0
      %v926 = vadd.f32 0.0, %v925
      %927 = vmatprep.mubr.bf16.mxu0 0
      %928 = vmatmul.mubr.bf16.gmra.mrb[0].mxu0 %v599
      %v929 = vpop.f32.mrb[0].mxu0
      %v930 = vadd.f32 0.0, %v929
      %v931 = vpop.f32.mrb[0].mxu0
      %v932 = vadd.f32 0.0, %v931
      %v933 = vpop.f32.mrb[0].mxu0
      %v934 = vadd.f32 0.0, %v933
      %v935 = vpop.f32.mrb[0].mxu0
      %v936 = vadd.f32 0.0, %v935
      %937 = vmatprep.mubr.bf16.mxu0 0
      %938 = vmatmul.mubr.bf16.gmra.mrb[0].mxu0 %v602
      %v939 = vpop.f32.mrb[0].mxu0
      %v940 = vadd.f32 0.0, %v939
      %v941 = vpop.f32.mrb[0].mxu0
      %v942 = vadd.f32 0.0, %v941
      %v943 = vpop.f32.mrb[0].mxu0
      %v944 = vadd.f32 0.0, %v943
      %v945 = vpop.f32.mrb[0].mxu0
      %v946 = vadd.f32 0.0, %v945
      %947 = vmatprep.mubr.bf16.mxu0 0
      %948 = vmatmul.mubr.bf16.gmra.mrb[0].mxu0 %v605
      %v949 = vpop.f32.mrb[0].mxu0
      %v950 = vadd.f32 0.0, %v949
      %v951 = vpop.f32.mrb[0].mxu0
      %v952 = vadd.f32 0.0, %v951
      %v953 = vpop.f32.mrb[0].mxu0
      %v954 = vadd.f32 0.0, %v953
      %v955 = vpop.f32.mrb[0].mxu0
      %v956 = vadd.f32 0.0, %v955
      %957 = vmatprep.mubr.bf16.mxu0 0
      %958 = vmatmul.mubr.bf16.gmra.mrb[0].mxu0 %v608
      %v959 = vpop.f32.mrb[0].mxu0
      %v960 = vadd.f32 0.0, %v959
      %v961 = vpop.f32.mrb[0].mxu0
      %v962 = vadd.f32 0.0, %v961
      %v963 = vpop.f32.mrb[0].mxu0
      %v964 = vadd.f32 0.0, %v963
      %v965 = vpop.f32.mrb[0].mxu0
      %v966 = vadd.f32 0.0, %v965
      %967 = vmatprep.mubr.bf16.mxu0 0
      %968 = vmatmul.mubr.bf16.gmra.mrb[0].mxu0 %v611
      %v969 = vpop.f32.mrb[0].mxu0
      %v970 = vadd.f32 0.0, %v969
      %v971 = vpop.f32.mrb[0].mxu0
      %v972 = vadd.f32 0.0, %v971
      %v973 = vpop.f32.mrb[0].mxu0
      %v974 = vadd.f32 0.0, %v973
      %v975 = vpop.f32.mrb[0].mxu0
      %v976 = vadd.f32 0.0, %v975
      %977 = vmatprep.mubr.bf16.mxu0 0
      %978 = vmatmul.mubr.bf16.gmra.mrb[0].mxu0 %v614
      %v979 = vpop.f32.mrb[0].mxu0
      %v980 = vadd.f32 0.0, %v979
      %v981 = vpop.f32.mrb[0].mxu0
      %v982 = vadd.f32 0.0, %v981
      %v983 = vpop.f32.mrb[0].mxu0
      %v984 = vadd.f32 0.0, %v983
      %v985 = vpop.f32.mrb[0].mxu0
      %v986 = vadd.f32 0.0, %v985
      %987 = vmatprep.mubr.bf16.mxu0 0
      %988 = vmatmul.mubr.bf16.gmra.mrb[0].mxu0 %v617
      %v989 = vpop.f32.mrb[0].mxu0
      %v990 = vadd.f32 0.0, %v989
      %v991 = vpop.f32.mrb[0].mxu0
      %v992 = vadd.f32 0.0, %v991
      %v993 = vpop.f32.mrb[0].mxu0
      %v994 = vadd.f32 0.0, %v993
      %v995 = vpop.f32.mrb[0].mxu0
      %v996 = vadd.f32 0.0, %v995
      %997 = vmatprep.mubr.bf16.mxu0 0
      %998 = vmatmul.mubr.bf16.gmra.mrb[0].mxu0 %v620
      %v999 = vpop.f32.mrb[0].mxu0
      %v1000 = vadd.f32 0.0, %v999
      %v1001 = vpop.f32.mrb[0].mxu0
      %v1002 = vadd.f32 0.0, %v1001
      %v1003 = vpop.f32.mrb[0].mxu0
      %v1004 = vadd.f32 0.0, %v1003
      %v1005 = vpop.f32.mrb[0].mxu0
      %v1006 = vadd.f32 0.0, %v1005
      %1007 = vdwg.mxu0
      %v1008 = vmax.f32 %v657, 0.0
      %v1009 = vmax.f32 %v659, 0.0
      %v1010 = vmax.f32 %v850, 0.0
      %v1011 = vmax.f32 %v852, 0.0
      %v1012 = vmax.f32 %v661, 0.0
      %v1013 = vmax.f32 %v663, 0.0
      %v1014 = vmax.f32 %v854, 0.0
      %v1015 = vmax.f32 %v856, 0.0
      %v1016 = vmax.f32 %v667, 0.0
      %v1017 = vmax.f32 %v669, 0.0
      %v1018 = vmax.f32 %v860, 0.0
      %v1019 = vmax.f32 %v862, 0.0
      %v1020 = vmax.f32 %v671, 0.0
      %v1021 = vmax.f32 %v673, 0.0
      %v1022 = vmax.f32 %v864, 0.0
      %v1023 = vmax.f32 %v866, 0.0
      %v1024 = vmax.f32 %v677, 0.0
      %v1025 = vmax.f32 %v679, 0.0
      %v1026 = vmax.f32 %v870, 0.0
      %v1027 = vmax.f32 %v872, 0.0
      %v1028 = vmax.f32 %v681, 0.0
      %v1029 = vmax.f32 %v683, 0.0
      %v1030 = vmax.f32 %v874, 0.0
      %v1031 = vmax.f32 %v876, 0.0
      %v1032 = vmax.f32 %v687, 0.0
      %v1033 = vmax.f32 %v689, 0.0
      %v1034 = vmax.f32 %v880, 0.0
      %v1035 = vmax.f32 %v882, 0.0
      %v1036 = vmax.f32 %v691, 0.0
      %v1037 = vmax.f32 %v693, 0.0
      %v1038 = vmax.f32 %v884, 0.0
      %v1039 = vmax.f32 %v886, 0.0
      %v1040 = vmax.f32 %v697, 0.0
      %v1041 = vmax.f32 %v699, 0.0
      %v1042 = vmax.f32 %v890, 0.0
      %v1043 = vmax.f32 %v892, 0.0
      %v1044 = vmax.f32 %v701, 0.0
      %v1045 = vmax.f32 %v703, 0.0
      %v1046 = vmax.f32 %v894, 0.0
      %v1047 = vmax.f32 %v896, 0.0
      %v1048 = vmax.f32 %v707, 0.0
      %v1049 = vmax.f32 %v709, 0.0
      %v1050 = vmax.f32 %v900, 0.0
      %v1051 = vmax.f32 %v902, 0.0
      %v1052 = vmax.f32 %v711, 0.0
      %v1053 = vmax.f32 %v713, 0.0
      %v1054 = vmax.f32 %v904, 0.0
      %v1055 = vmax.f32 %v906, 0.0
      %v1056 = vmax.f32 %v717, 0.0
      %v1057 = vmax.f32 %v719, 0.0
      %v1058 = vmax.f32 %v910, 0.0
      %v1059 = vmax.f32 %v912, 0.0
      %v1060 = vmax.f32 %v721, 0.0
      %v1061 = vmax.f32 %v723, 0.0
      %v1062 = vmax.f32 %v914, 0.0
      %v1063 = vmax.f32 %v916, 0.0
      %v1064 = vmax.f32 %v727, 0.0
      %v1065 = vmax.f32 %v729, 0.0
      %v1066 = vmax.f32 %v920, 0.0
      %v1067 = vmax.f32 %v922, 0.0
      %v1068 = vmax.f32 %v731, 0.0
      %v1069 = vmax.f32 %v733, 0.0
      %v1070 = vmax.f32 %v924, 0.0
      %v1071 = vmax.f32 %v926, 0.0
      %v1072 = vmax.f32 %v737, 0.0
      %v1073 = vmax.f32 %v739, 0.0
      %v1074 = vmax.f32 %v930, 0.0
      %v1075 = vmax.f32 %v932, 0.0
      %v1076 = vmax.f32 %v741, 0.0
      %v1077 = vmax.f32 %v743, 0.0
      %v1078 = vmax.f32 %v934, 0.0
      %v1079 = vmax.f32 %v936, 0.0
      %v1080 = vmax.f32 %v747, 0.0
      %v1081 = vmax.f32 %v749, 0.0
      %v1082 = vmax.f32 %v940, 0.0
      %v1083 = vmax.f32 %v942, 0.0
      %v1084 = vmax.f32 %v751, 0.0
      %v1085 = vmax.f32 %v753, 0.0
      %v1086 = vmax.f32 %v944, 0.0
      %v1087 = vmax.f32 %v946, 0.0
      %v1088 = vmax.f32 %v757, 0.0
      %v1089 = vmax.f32 %v759, 0.0
      %v1090 = vmax.f32 %v950, 0.0
      %v1091 = vmax.f32 %v952, 0.0
      %v1092 = vmax.f32 %v761, 0.0
      %v1093 = vmax.f32 %v763, 0.0
      %v1094 = vmax.f32 %v954, 0.0
      %v1095 = vmax.f32 %v956, 0.0
      %v1096 = vmax.f32 %v767, 0.0
      %v1097 = vmax.f32 %v769, 0.0
      %v1098 = vmax.f32 %v960, 0.0
      %v1099 = vmax.f32 %v962, 0.0
      %v1100 = vmax.f32 %v771, 0.0
      %v1101 = vmax.f32 %v773, 0.0
      %v1102 = vmax.f32 %v964, 0.0
      %v1103 = vmax.f32 %v966, 0.0
      %v1104 = vmax.f32 %v777, 0.0
      %v1105 = vmax.f32 %v779, 0.0
      %v1106 = vmax.f32 %v970, 0.0
      %v1107 = vmax.f32 %v972, 0.0
      %v1108 = vmax.f32 %v781, 0.0
      %v1109 = vmax.f32 %v783, 0.0
      %v1110 = vmax.f32 %v974, 0.0
      %v1111 = vmax.f32 %v976, 0.0
      %v1112 = vmax.f32 %v787, 0.0
      %v1113 = vmax.f32 %v789, 0.0
      %v1114 = vmax.f32 %v980, 0.0
      %v1115 = vmax.f32 %v982, 0.0
      %v1116 = vmax.f32 %v791, 0.0
      %v1117 = vmax.f32 %v793, 0.0
      %v1118 = vmax.f32 %v984, 0.0
      %v1119 = vmax.f32 %v986, 0.0
      %v1120 = vmax.f32 %v797, 0.0
      %v1121 = vmax.f32 %v799, 0.0
      %v1122 = vmax.f32 %v990, 0.0
      %v1123 = vmax.f32 %v992, 0.0
      %v1124 = vmax.f32 %v801, 0.0
      %v1125 = vmax.f32 %v803, 0.0
      %v1126 = vmax.f32 %v994, 0.0
      %v1127 = vmax.f32 %v996, 0.0
      %v1128 = vmax.f32 %v807, 0.0
      %v1129 = vmax.f32 %v809, 0.0
      %v1130 = vmax.f32 %v1000, 0.0
      %v1131 = vmax.f32 %v1002, 0.0
      %v1132 = vmax.f32 %v811, 0.0
      %v1133 = vmax.f32 %v813, 0.0
      %v1134 = vmax.f32 %v1004, 0.0
      %v1135 = vmax.f32 %v1006, 0.0
      %v1136 = vmax.f32 %v1008, %v1012
      %v1137 = vmax.f32 %v1136, %v1016
      %v1138 = vmax.f32 %v1137, %v1020
      %v1139 = vmax.f32 %v1138, %v1024
      %v1140 = vmax.f32 %v1139, %v1028
      %v1141 = vmax.f32 %v1140, %v1032
      %v1142 = vmax.f32 %v1141, %v1036
      %v1143 = vmax.f32 %v1142, %v1040
      %v1144 = vmax.f32 %v1143, %v1044
      %v1145 = vmax.f32 %v1144, %v1048
      %v1146 = vmax.f32 %v1145, %v1052
      %v1147 = vmax.f32 %v1146, %v1056
      %v1148 = vmax.f32 %v1147, %v1060
      %v1149 = vmax.f32 %v1148, %v1064
      %v1150 = vmax.f32 %v1149, %v1068
      %v1151 = vmax.f32 %v1150, %v1072
      %v1152 = vmax.f32 %v1151, %v1076
      %v1153 = vmax.f32 %v1152, %v1080
      %v1154 = vmax.f32 %v1153, %v1084
      %v1155 = vmax.f32 %v1154, %v1088
      %v1156 = vmax.f32 %v1155, %v1092
      %v1157 = vmax.f32 %v1156, %v1096
      %v1158 = vmax.f32 %v1157, %v1100
      %v1159 = vmax.f32 %v1158, %v1104
      %v1160 = vmax.f32 %v1159, %v1108
      %v1161 = vmax.f32 %v1160, %v1112
      %v1162 = vmax.f32 %v1161, %v1116
      %v1163 = vmax.f32 %v1162, %v1120
      %v1164 = vmax.f32 %v1163, %v1124
      %v1165 = vmax.f32 %v1164, %v1128
      %v1166 = vmax.f32 %v1165, %v1132
      %v1167 = vrot.slane %v1166, 4
      %v1168 = vmax.f32 %v1166, %v1167
      %v1169 = vrot.slane %v1168, 2
      %v1170 = vmax.f32 %v1168, %v1169
      %v1171 = vrot.slane %v1170, 1
      %v1172 = vmax.f32 %v1170, %v1171
      %v1173 = vmax.f32 %v1009, %v1013
      %v1174 = vmax.f32 %v1173, %v1017
      %v1175 = vmax.f32 %v1174, %v1021
      %v1176 = vmax.f32 %v1175, %v1025
      %v1177 = vmax.f32 %v1176, %v1029
      %v1178 = vmax.f32 %v1177, %v1033
      %v1179 = vmax.f32 %v1178, %v1037
      %v1180 = vmax.f32 %v1179, %v1041
      %v1181 = vmax.f32 %v1180, %v1045
      %v1182 = vmax.f32 %v1181, %v1049
      %v1183 = vmax.f32 %v1182, %v1053
      %v1184 = vmax.f32 %v1183, %v1057
      %v1185 = vmax.f32 %v1184, %v1061
      %v1186 = vmax.f32 %v1185, %v1065
      %v1187 = vmax.f32 %v1186, %v1069
      %v1188 = vmax.f32 %v1187, %v1073
      %v1189 = vmax.f32 %v1188, %v1077
      %v1190 = vmax.f32 %v1189, %v1081
      %v1191 = vmax.f32 %v1190, %v1085
      %v1192 = vmax.f32 %v1191, %v1089
      %v1193 = vmax.f32 %v1192, %v1093
      %v1194 = vmax.f32 %v1193, %v1097
      %v1195 = vmax.f32 %v1194, %v1101
      %v1196 = vmax.f32 %v1195, %v1105
      %v1197 = vmax.f32 %v1196, %v1109
      %v1198 = vmax.f32 %v1197, %v1113
      %v1199 = vmax.f32 %v1198, %v1117
      %v1200 = vmax.f32 %v1199, %v1121
      %v1201 = vmax.f32 %v1200, %v1125
      %v1202 = vmax.f32 %v1201, %v1129
      %v1203 = vmax.f32 %v1202, %v1133
      %v1204 = vrot.slane %v1203, 4
      %v1205 = vmax.f32 %v1203, %v1204
      %v1206 = vrot.slane %v1205, 2
      %v1207 = vmax.f32 %v1205, %v1206
      %v1208 = vrot.slane %v1207, 1
      %v1209 = vmax.f32 %v1207, %v1208
      %v1210 = vmax.f32 %v1010, %v1014
      %v1211 = vmax.f32 %v1210, %v1018
      %v1212 = vmax.f32 %v1211, %v1022
      %v1213 = vmax.f32 %v1212, %v1026
      %v1214 = vmax.f32 %v1213, %v1030
      %v1215 = vmax.f32 %v1214, %v1034
      %v1216 = vmax.f32 %v1215, %v1038
      %v1217 = vmax.f32 %v1216, %v1042
      %v1218 = vmax.f32 %v1217, %v1046
      %v1219 = vmax.f32 %v1218, %v1050
      %v1220 = vmax.f32 %v1219, %v1054
      %v1221 = vmax.f32 %v1220, %v1058
      %v1222 = vmax.f32 %v1221, %v1062
      %v1223 = vmax.f32 %v1222, %v1066
      %v1224 = vmax.f32 %v1223, %v1070
      %v1225 = vmax.f32 %v1224, %v1074
      %v1226 = vmax.f32 %v1225, %v1078
      %v1227 = vmax.f32 %v1226, %v1082
      %v1228 = vmax.f32 %v1227, %v1086
      %v1229 = vmax.f32 %v1228, %v1090
      %v1230 = vmax.f32 %v1229, %v1094
      %v1231 = vmax.f32 %v1230, %v1098
      %v1232 = vmax.f32 %v1231, %v1102
      %v1233 = vmax.f32 %v1232, %v1106
      %v1234 = vmax.f32 %v1233, %v1110
      %v1235 = vmax.f32 %v1234, %v1114
      %v1236 = vmax.f32 %v1235, %v1118
      %v1237 = vmax.f32 %v1236, %v1122
      %v1238 = vmax.f32 %v1237, %v1126
      %v1239 = vmax.f32 %v1238, %v1130
      %v1240 = vmax.f32 %v1239, %v1134
      %v1241 = vrot.slane %v1240, 4
      %v1242 = vmax.f32 %v1240, %v1241
      %v1243 = vrot.slane %v1242, 2
      %v1244 = vmax.f32 %v1242, %v1243
      %v1245 = vrot.slane %v1244, 1
      %v1246 = vmax.f32 %v1244, %v1245
      %v1247 = vmax.f32 %v1011, %v1015
      %v1248 = vmax.f32 %v1247, %v1019
      %v1249 = vmax.f32 %v1248, %v1023
      %v1250 = vmax.f32 %v1249, %v1027
      %v1251 = vmax.f32 %v1250, %v1031
      %v1252 = vmax.f32 %v1251, %v1035
      %v1253 = vmax.f32 %v1252, %v1039
      %v1254 = vmax.f32 %v1253, %v1043
      %v1255 = vmax.f32 %v1254, %v1047
      %v1256 = vmax.f32 %v1255, %v1051
      %v1257 = vmax.f32 %v1256, %v1055
      %v1258 = vmax.f32 %v1257, %v1059
      %v1259 = vmax.f32 %v1258, %v1063
      %v1260 = vmax.f32 %v1259, %v1067
      %v1261 = vmax.f32 %v1260, %v1071
      %v1262 = vmax.f32 %v1261, %v1075
      %v1263 = vmax.f32 %v1262, %v1079
      %v1264 = vmax.f32 %v1263, %v1083
      %v1265 = vmax.f32 %v1264, %v1087
      %v1266 = vmax.f32 %v1265, %v1091
      %v1267 = vmax.f32 %v1266, %v1095
      %v1268 = vmax.f32 %v1267, %v1099
      %v1269 = vmax.f32 %v1268, %v1103
      %v1270 = vmax.f32 %v1269, %v1107
      %v1271 = vmax.f32 %v1270, %v1111
      %v1272 = vmax.f32 %v1271, %v1115
      %v1273 = vmax.f32 %v1272, %v1119
      %v1274 = vmax.f32 %v1273, %v1123
      %v1275 = vmax.f32 %v1274, %v1127
      %v1276 = vmax.f32 %v1275, %v1131
      %v1277 = vmax.f32 %v1276, %v1135
      %v1278 = vrot.slane %v1277, 4
      %v1279 = vmax.f32 %v1277, %v1278
      %v1280 = vrot.slane %v1279, 2
      %v1281 = vmax.f32 %v1279, %v1280
      %v1282 = vrot.slane %v1281, 1
      %v1283 = vmax.f32 %v1281, %v1282
      %v1288 = vcombine.low %v1172, %v1209
      %v1289 = vcombine.low %v1246, %v1283
      %v1291 = vunpack.c.l.s4 1966171168
      %v1292 = vunpack.c.0.s8 %v1291
      %v1293 = vlaneseq
      %v1294 = vshrl.u32 %v1293, 7
      %v1295 = vsub.s32 %v1292, %v1294
      %v1296 = vrot.slane %v1288, %v1295
      %v1298 = vunpack.c.l.s4 1966171168
      %v1299 = vunpack.c.0.s8 %v1298
      %v1300 = vlaneseq
      %v1301 = vshrl.u32 %v1300, 7
      %v1302 = vsub.s32 %v1299, %v1301
      %v1303 = vrot.slane %v1289, %v1302
      %v1304 = vcombine.low %v1296, %v1303
      %v1306 = vunpack.c.l.s4 1966171168
      %v1307 = vunpack.c.0.s8 %v1306
      %v1308 = vlaneseq
      %v1309 = vshrl.u32 %v1308, 7
      %v1310 = vsub.s32 %v1307, %v1309
      %v1311 = vrot.slane %v1304, %v1310
      %v1313 = vlaneseq
      %vm1314 = vcmp.ge.s32.totalorder %v1313, 0
      %vm1315 = vcmp.lt.s32.totalorder %v1313, 512
      %vm1316 = vmand %vm1314, %vm1315
      %1317 = vst.msk [vmem:[#allocation2] ss:$8 sm:$0xf] %vm1316, %v1311
      %1318 = vst.msk [vmem:[#allocation2] ss:$8 sm:$0x0] %vm1316, %v1311
      %v1319 = vadd.f32 %v1008, %v1012
      %v1320 = vadd.f32 %v1319, %v1016
      %v1321 = vadd.f32 %v1320, %v1020
      %v1322 = vadd.f32 %v1321, %v1024
      %v1323 = vadd.f32 %v1322, %v1028
      %v1324 = vadd.f32 %v1323, %v1032
      %v1325 = vadd.f32 %v1324, %v1036
      %v1326 = vadd.f32 %v1325, %v1040
      %v1327 = vadd.f32 %v1326, %v1044
      %v1328 = vadd.f32 %v1327, %v1048
      %v1329 = vadd.f32 %v1328, %v1052
      %v1330 = vadd.f32 %v1329, %v1056
      %v1331 = vadd.f32 %v1330, %v1060
      %v1332 = vadd.f32 %v1331, %v1064
      %v1333 = vadd.f32 %v1332, %v1068
      %v1334 = vadd.f32 %v1333, %v1072
      %v1335 = vadd.f32 %v1334, %v1076
      %v1336 = vadd.f32 %v1335, %v1080
      %v1337 = vadd.f32 %v1336, %v1084
      %v1338 = vadd.f32 %v1337, %v1088
      %v1339 = vadd.f32 %v1338, %v1092
      %v1340 = vadd.f32 %v1339, %v1096
      %v1341 = vadd.f32 %v1340, %v1100
      %v1342 = vadd.f32 %v1341, %v1104
      %v1343 = vadd.f32 %v1342, %v1108
      %v1344 = vadd.f32 %v1343, %v1112
      %v1345 = vadd.f32 %v1344, %v1116
      %v1346 = vadd.f32 %v1345, %v1120
      %v1347 = vadd.f32 %v1346, %v1124
      %v1348 = vadd.f32 %v1347, %v1128
      %v1349 = vadd.f32 %v1348, %v1132
      %v1350 = vrot.slane %v1349, 4
      %v1351 = vadd.f32 %v1349, %v1350
      %v1352 = vrot.slane %v1351, 2
      %v1353 = vadd.f32 %v1351, %v1352
      %v1354 = vrot.slane %v1353, 1
      %v1355 = vadd.f32 %v1353, %v1354
      %v1356 = vadd.f32 %v1009, %v1013
      %v1357 = vadd.f32 %v1356, %v1017
      %v1358 = vadd.f32 %v1357, %v1021
      %v1359 = vadd.f32 %v1358, %v1025
      %v1360 = vadd.f32 %v1359, %v1029
      %v1361 = vadd.f32 %v1360, %v1033
      %v1362 = vadd.f32 %v1361, %v1037
      %v1363 = vadd.f32 %v1362, %v1041
      %v1364 = vadd.f32 %v1363, %v1045
      %v1365 = vadd.f32 %v1364, %v1049
      %v1366 = vadd.f32 %v1365, %v1053
      %v1367 = vadd.f32 %v1366, %v1057
      %v1368 = vadd.f32 %v1367, %v1061
      %v1369 = vadd.f32 %v1368, %v1065
      %v1370 = vadd.f32 %v1369, %v1069
      %v1371 = vadd.f32 %v1370, %v1073
      %v1372 = vadd.f32 %v1371, %v1077
      %v1373 = vadd.f32 %v1372, %v1081
      %v1374 = vadd.f32 %v1373, %v1085
      %v1375 = vadd.f32 %v1374, %v1089
      %v1376 = vadd.f32 %v1375, %v1093
      %v1377 = vadd.f32 %v1376, %v1097
      %v1378 = vadd.f32 %v1377, %v1101
      %v1379 = vadd.f32 %v1378, %v1105
      %v1380 = vadd.f32 %v1379, %v1109
      %v1381 = vadd.f32 %v1380, %v1113
      %v1382 = vadd.f32 %v1381, %v1117
      %v1383 = vadd.f32 %v1382, %v1121
      %v1384 = vadd.f32 %v1383, %v1125
      %v1385 = vadd.f32 %v1384, %v1129
      %v1386 = vadd.f32 %v1385, %v1133
      %v1387 = vrot.slane %v1386, 4
      %v1388 = vadd.f32 %v1386, %v1387
      %v1389 = vrot.slane %v1388, 2
      %v1390 = vadd.f32 %v1388, %v1389
      %v1391 = vrot.slane %v1390, 1
      %v1392 = vadd.f32 %v1390, %v1391
      %v1393 = vadd.f32 %v1010, %v1014
      %v1394 = vadd.f32 %v1393, %v1018
      %v1395 = vadd.f32 %v1394, %v1022
      %v1396 = vadd.f32 %v1395, %v1026
      %v1397 = vadd.f32 %v1396, %v1030
      %v1398 = vadd.f32 %v1397, %v1034
      %v1399 = vadd.f32 %v1398, %v1038
      %v1400 = vadd.f32 %v1399, %v1042
      %v1401 = vadd.f32 %v1400, %v1046
      %v1402 = vadd.f32 %v1401, %v1050
      %v1403 = vadd.f32 %v1402, %v1054
      %v1404 = vadd.f32 %v1403, %v1058
      %v1405 = vadd.f32 %v1404, %v1062
      %v1406 = vadd.f32 %v1405, %v1066
      %v1407 = vadd.f32 %v1406, %v1070
      %v1408 = vadd.f32 %v1407, %v1074
      %v1409 = vadd.f32 %v1408, %v1078
      %v1410 = vadd.f32 %v1409, %v1082
      %v1411 = vadd.f32 %v1410, %v1086
      %v1412 = vadd.f32 %v1411, %v1090
      %v1413 = vadd.f32 %v1412, %v1094
      %v1414 = vadd.f32 %v1413, %v1098
      %v1415 = vadd.f32 %v1414, %v1102
      %v1416 = vadd.f32 %v1415, %v1106
      %v1417 = vadd.f32 %v1416, %v1110
      %v1418 = vadd.f32 %v1417, %v1114
      %v1419 = vadd.f32 %v1418, %v1118
      %v1420 = vadd.f32 %v1419, %v1122
      %v1421 = vadd.f32 %v1420, %v1126
      %v1422 = vadd.f32 %v1421, %v1130
      %v1423 = vadd.f32 %v1422, %v1134
      %v1424 = vrot.slane %v1423, 4
      %v1425 = vadd.f32 %v1423, %v1424
      %v1426 = vrot.slane %v1425, 2
      %v1427 = vadd.f32 %v1425, %v1426
      %v1428 = vrot.slane %v1427, 1
      %v1429 = vadd.f32 %v1427, %v1428
      %v1430 = vadd.f32 %v1011, %v1015
      %v1431 = vadd.f32 %v1430, %v1019
      %v1432 = vadd.f32 %v1431, %v1023
      %v1433 = vadd.f32 %v1432, %v1027
      %v1434 = vadd.f32 %v1433, %v1031
      %v1435 = vadd.f32 %v1434, %v1035
      %v1436 = vadd.f32 %v1435, %v1039
      %v1437 = vadd.f32 %v1436, %v1043
      %v1438 = vadd.f32 %v1437, %v1047
      %v1439 = vadd.f32 %v1438, %v1051
      %v1440 = vadd.f32 %v1439, %v1055
      %v1441 = vadd.f32 %v1440, %v1059
      %v1442 = vadd.f32 %v1441, %v1063
      %v1443 = vadd.f32 %v1442, %v1067
      %v1444 = vadd.f32 %v1443, %v1071
      %v1445 = vadd.f32 %v1444, %v1075
      %v1446 = vadd.f32 %v1445, %v1079
      %v1447 = vadd.f32 %v1446, %v1083
      %v1448 = vadd.f32 %v1447, %v1087
      %v1449 = vadd.f32 %v1448, %v1091
      %v1450 = vadd.f32 %v1449, %v1095
      %v1451 = vadd.f32 %v1450, %v1099
      %v1452 = vadd.f32 %v1451, %v1103
      %v1453 = vadd.f32 %v1452, %v1107
      %v1454 = vadd.f32 %v1453, %v1111
      %v1455 = vadd.f32 %v1454, %v1115
      %v1456 = vadd.f32 %v1455, %v1119
      %v1457 = vadd.f32 %v1456, %v1123
      %v1458 = vadd.f32 %v1457, %v1127
      %v1459 = vadd.f32 %v1458, %v1131
      %v1460 = vadd.f32 %v1459, %v1135
      %v1461 = vrot.slane %v1460, 4
      %v1462 = vadd.f32 %v1460, %v1461
      %v1463 = vrot.slane %v1462, 2
      %v1464 = vadd.f32 %v1462, %v1463
      %v1465 = vrot.slane %v1464, 1
      %v1466 = vadd.f32 %v1464, %v1465
      %v1467 = vmul.f32 %v1355, 0.00390625
      %v1468 = vmul.f32 %v1392, 0.00390625
      %v1469 = vmul.f32 %v1429, 0.00390625
      %v1470 = vmul.f32 %v1466, 0.00390625
      %v1475 = vcombine.low %v1467, %v1468
      %v1476 = vcombine.low %v1469, %v1470
      %v1478 = vunpack.c.l.s4 1966171168
      %v1479 = vunpack.c.0.s8 %v1478
      %v1480 = vlaneseq
      %v1481 = vshrl.u32 %v1480, 7
      %v1482 = vsub.s32 %v1479, %v1481
      %v1483 = vrot.slane %v1475, %v1482
      %v1485 = vunpack.c.l.s4 1966171168
      %v1486 = vunpack.c.0.s8 %v1485
      %v1487 = vlaneseq
      %v1488 = vshrl.u32 %v1487, 7
      %v1489 = vsub.s32 %v1486, %v1488
      %v1490 = vrot.slane %v1476, %v1489
      %v1491 = vcombine.low %v1483, %v1490
      %v1493 = vunpack.c.l.s4 1966171168
      %v1494 = vunpack.c.0.s8 %v1493
      %v1495 = vlaneseq
      %v1496 = vshrl.u32 %v1495, 7
      %v1497 = vsub.s32 %v1494, %v1496
      %v1498 = vrot.slane %v1491, %v1497
      %s1500 = scalar_lea.vmem [#allocation2], 32
      %1501 = vst.msk [vmem:[%s1500] ss:$8 sm:$0xf] %vm1316, %v1498
      %1502 = vst.msk [vmem:[%s1500] ss:$8 sm:$0x0] %vm1316, %v1498
      %s1503 = scalar_lea.vmem %s408, 128
      %v1504 = vld [vmem:[%s1503] sm:$0xf]
      %v1505 = vld [vmem:[%s1503 + $0x4] sm:$0xf]
      %v1506 = vld [vmem:[%s1503 + $0x8] sm:$0xf]
      %v1507 = vld [vmem:[%s1503 + $0xc] sm:$0xf]
      %v1508 = vld [vmem:[%s1503 + $0x10] sm:$0xf]
      %v1509 = vld [vmem:[%s1503 + $0x14] sm:$0xf]
      %v1510 = vld [vmem:[%s1503 + $0x18] sm:$0xf]
      %v1511 = vld [vmem:[%s1503 + $0x1c] sm:$0xf]
      %v1512 = vld [vmem:[%s1503 + $0x20] sm:$0xf]
      %v1513 = vld [vmem:[%s1503 + $0x24] sm:$0xf]
      %v1514 = vld [vmem:[%s1503 + $0x28] sm:$0xf]
      %v1515 = vld [vmem:[%s1503 + $0x2c] sm:$0xf]
      %v1516 = vld [vmem:[%s1503 + $0x30] sm:$0xf]
      %v1517 = vld [vmem:[%s1503 + $0x34] sm:$0xf]
      %v1518 = vld [vmem:[%s1503 + $0x38] sm:$0xf]
      %v1519 = vld [vmem:[%s1503 + $0x3c] sm:$0xf]
      %v1520 = vld [vmem:[%s1503 + $0x40] sm:$0xf]
      %v1521 = vld [vmem:[%s1503 + $0x44] sm:$0xf]
      %v1522 = vld [vmem:[%s1503 + $0x48] sm:$0xf]
      %v1523 = vld [vmem:[%s1503 + $0x4c] sm:$0xf]
      %v1524 = vld [vmem:[%s1503 + $0x50] sm:$0xf]
      %v1525 = vld [vmem:[%s1503 + $0x54] sm:$0xf]
      %v1526 = vld [vmem:[%s1503 + $0x58] sm:$0xf]
      %v1527 = vld [vmem:[%s1503 + $0x5c] sm:$0xf]
      %v1528 = vld [vmem:[%s1503 + $0x60] sm:$0xf]
      %v1529 = vld [vmem:[%s1503 + $0x64] sm:$0xf]
      %v1530 = vld [vmem:[%s1503 + $0x68] sm:$0xf]
      %v1531 = vld [vmem:[%s1503 + $0x6c] sm:$0xf]
      %v1532 = vld [vmem:[%s1503 + $0x70] sm:$0xf]
      %v1533 = vld [vmem:[%s1503 + $0x74] sm:$0xf]
      %v1534 = vld [vmem:[%s1503 + $0x78] sm:$0xf]
      %v1535 = vld [vmem:[%s1503 + $0x7c] sm:$0xf]
      %v1536 = vld [vmem:[%s1] sm:$0xff]
      %v1537 = vld [vmem:[%s1 + $0x8] sm:$0xff]
      %v1538 = vld [vmem:[%s1 + $0x10] sm:$0xff]
      %v1539 = vld [vmem:[%s1 + $0x18] sm:$0xff]
      %v1540 = vld [vmem:[%s1 + $0x20] sm:$0xff]
      %v1541 = vld [vmem:[%s1 + $0x28] sm:$0xff]
      %v1542 = vld [vmem:[%s1 + $0x30] sm:$0xff]
      %v1543 = vld [vmem:[%s1 + $0x38] sm:$0xff]
      %v1576 = vunpack.c.l.b16 %v1504
      %v1577 = vunpack.c.l.b16 %v1505
      %v1578 = vunpack.c.l.b16 %v1506
      %v1579 = vunpack.c.l.b16 %v1507
      %v1580 = vunpack.c.l.b16 %v1508
      %v1581 = vunpack.c.l.b16 %v1509
      %v1582 = vunpack.c.l.b16 %v1510
      %v1583 = vunpack.c.l.b16 %v1511
      %v1584 = vunpack.c.l.b16 %v1512
      %v1585 = vunpack.c.l.b16 %v1513
      %v1586 = vunpack.c.l.b16 %v1514
      %v1587 = vunpack.c.l.b16 %v1515
      %v1588 = vunpack.c.l.b16 %v1516
      %v1589 = vunpack.c.l.b16 %v1517
      %v1590 = vunpack.c.l.b16 %v1518
      %v1591 = vunpack.c.l.b16 %v1519
      %v1592 = vunpack.c.l.b16 %v1520
      %v1593 = vunpack.c.l.b16 %v1521
      %v1594 = vunpack.c.l.b16 %v1522
      %v1595 = vunpack.c.l.b16 %v1523
      %v1596 = vunpack.c.l.b16 %v1524
      %v1597 = vunpack.c.l.b16 %v1525
      %v1598 = vunpack.c.l.b16 %v1526
      %v1599 = vunpack.c.l.b16 %v1527
      %v1600 = vunpack.c.l.b16 %v1528
      %v1601 = vunpack.c.l.b16 %v1529
      %v1602 = vunpack.c.l.b16 %v1530
      %v1603 = vunpack.c.l.b16 %v1531
      %v1604 = vunpack.c.l.b16 %v1532
      %v1605 = vunpack.c.l.b16 %v1533
      %v1606 = vunpack.c.l.b16 %v1534
      %v1607 = vunpack.c.l.b16 %v1535
      %v1608 = vpack.c.b16 %v1577, %v1576
      %v1609 = vpack.c.b16 %v1579, %v1578
      %v1610 = vpack.c.b16 %v1581, %v1580
      %v1611 = vpack.c.b16 %v1583, %v1582
      %v1612 = vpack.c.b16 %v1585, %v1584
      %v1613 = vpack.c.b16 %v1587, %v1586
      %v1614 = vpack.c.b16 %v1589, %v1588
      %v1615 = vpack.c.b16 %v1591, %v1590
      %v1616 = vpack.c.b16 %v1593, %v1592
      %v1617 = vpack.c.b16 %v1595, %v1594
      %v1618 = vpack.c.b16 %v1597, %v1596
      %v1619 = vpack.c.b16 %v1599, %v1598
      %v1620 = vpack.c.b16 %v1601, %v1600
      %v1621 = vpack.c.b16 %v1603, %v1602
      %v1622 = vpack.c.b16 %v1605, %v1604
      %v1623 = vpack.c.b16 %v1607, %v1606
      %v1632 = vunpack.c.l.b16 %v1536
      %v1633 = vunpack.c.h.b16 %v1536
      %v1634 = vunpack.c.l.b16 %v1537
      %v1635 = vunpack.c.h.b16 %v1537
      %v1636 = vunpack.c.l.b16 %v1538
      %v1637 = vunpack.c.h.b16 %v1538
      %v1638 = vunpack.c.l.b16 %v1539
      %v1639 = vunpack.c.h.b16 %v1539
      %v1640 = vunpack.c.l.b16 %v1540
      %v1641 = vunpack.c.h.b16 %v1540
      %v1642 = vunpack.c.l.b16 %v1541
      %v1643 = vunpack.c.h.b16 %v1541
      %v1644 = vunpack.c.l.b16 %v1542
      %v1645 = vunpack.c.h.b16 %v1542
      %v1646 = vunpack.c.l.b16 %v1543
      %v1647 = vunpack.c.h.b16 %v1543
      %v1648 = vpack.c.b16 %v1636, %v1632
      %v1649 = vpack.c.b16 %v1637, %v1633
      %v1650 = vpack.c.b16 %v1638, %v1634
      %v1651 = vpack.c.b16 %v1639, %v1635
      %v1652 = vpack.c.b16 %v1644, %v1640
      %v1653 = vpack.c.b16 %v1645, %v1641
      %v1654 = vpack.c.b16 %v1646, %v1642
      %v1655 = vpack.c.b16 %v1647, %v1643
      %v1665 = vsel %vm573, %v1608, 0
      %v1668 = vsel %vm573, %v1609, 0
      %v1671 = vsel %vm573, %v1610, 0
      %v1674 = vsel %vm573, %v1611, 0
      %v1677 = vsel %vm573, %v1612, 0
      %v1680 = vsel %vm573, %v1613, 0
      %v1683 = vsel %vm573, %v1614, 0
      %v1686 = vsel %vm573, %v1615, 0
      %v1689 = vsel %vm573, %v1616, 0
      %v1692 = vsel %vm573, %v1617, 0
      %v1695 = vsel %vm573, %v1618, 0
      %v1698 = vsel %vm573, %v1619, 0
      %v1701 = vsel %vm573, %v1620, 0
      %v1704 = vsel %vm573, %v1621, 0
      %v1707 = vsel %vm573, %v1622, 0
      %v1710 = vsel %vm573, %v1623, 0
      %1712 = vmatprep.subr.bf16.mxu0 %v1649
      %1713 = vmatpush1.bf16.msra.mxu0 %v1648
      %1714 = vmatprep.subr.bf16.mxu0 %v1653
      %1715 = vmatpush1.bf16.msra.mxu0 %v1652
      %1716 = vmatprep.subr.bf16.mxu0 0
      %1717 = vmatpush1.bf16.msra.mxu0 0
      %1718 = vmatprep.subr.bf16.mxu0 0
      %1719 = vmatpush1.bf16.msra.mxu0 0
      %1720 = vmatprep.subr.bf16.mxu0 0
      %1721 = vmatpush1.bf16.msra.mxu0 0
      %1722 = vmatprep.subr.bf16.mxu0 0
      %1723 = vmatpush1.bf16.msra.mxu0 0
      %1724 = vmatprep.subr.bf16.mxu0 0
      %1725 = vmatpush1.bf16.msra.mxu0 0
      %1726 = vmatprep.subr.bf16.mxu0 0
      %1727 = vmatpush1.bf16.msra.mxu0 0
      %1728 = vmatprep.subr.bf16.mxu0 0
      %1729 = vmatpush1.bf16.msra.mxu0 0
      %1730 = vmatprep.subr.bf16.mxu0 0
      %1731 = vmatpush1.bf16.msra.mxu0 0
      %1732 = vmatprep.subr.bf16.mxu0 0
      %1733 = vmatpush1.bf16.msra.mxu0 0
      %1734 = vmatprep.subr.bf16.mxu0 0
      %1735 = vmatpush1.bf16.msra.mxu0 0
      %1736 = vmatprep.subr.bf16.mxu0 0
      %1737 = vmatpush1.bf16.msra.mxu0 0
      %1738 = vmatprep.subr.bf16.mxu0 0
      %1739 = vmatpush1.bf16.msra.mxu0 0
      %1740 = vmatprep.subr.bf16.mxu0 0
      %1741 = vmatpush1.bf16.msra.mxu0 0
      %1742 = vmatprep.subr.bf16.mxu0 0
      %1743 = vmatpush1.bf16.msra.mxu0 0
      %1744 = vmatprep.mubr.bf16.mxu0 0
      %1745 = vmatmul.mubr.bf16.gmra.mrb[0].mxu0 %v1665
      %v1746 = vpop.f32.mrb[0].mxu0
      %v1747 = vadd.f32 0.0, %v1746
      %v1748 = vpop.f32.mrb[0].mxu0
      %v1749 = vadd.f32 0.0, %v1748
      %v1750 = vpop.f32.mrb[0].mxu0
      %v1751 = vadd.f32 0.0, %v1750
      %v1752 = vpop.f32.mrb[0].mxu0
      %v1753 = vadd.f32 0.0, %v1752
      %1754 = vmatprep.mubr.bf16.mxu0 0
      %1755 = vmatmul.mubr.bf16.gmra.mrb[0].mxu0 %v1668
      %v1756 = vpop.f32.mrb[0].mxu0
      %v1757 = vadd.f32 0.0, %v1756
      %v1758 = vpop.f32.mrb[0].mxu0
      %v1759 = vadd.f32 0.0, %v1758
      %v1760 = vpop.f32.mrb[0].mxu0
      %v1761 = vadd.f32 0.0, %v1760
      %v1762 = vpop.f32.mrb[0].mxu0
      %v1763 = vadd.f32 0.0, %v1762
      %1764 = vmatprep.mubr.bf16.mxu0 0
      %1765 = vmatmul.mubr.bf16.gmra.mrb[0].mxu0 %v1671
      %v1766 = vpop.f32.mrb[0].mxu0
      %v1767 = vadd.f32 0.0, %v1766
      %v1768 = vpop.f32.mrb[0].mxu0
      %v1769 = vadd.f32 0.0, %v1768
      %v1770 = vpop.f32.mrb[0].mxu0
      %v1771 = vadd.f32 0.0, %v1770
      %v1772 = vpop.f32.mrb[0].mxu0
      %v1773 = vadd.f32 0.0, %v1772
      %1774 = vmatprep.mubr.bf16.mxu0 0
      %1775 = vmatmul.mubr.bf16.gmra.mrb[0].mxu0 %v1674
      %v1776 = vpop.f32.mrb[0].mxu0
      %v1777 = vadd.f32 0.0, %v1776
      %v1778 = vpop.f32.mrb[0].mxu0
      %v1779 = vadd.f32 0.0, %v1778
      %v1780 = vpop.f32.mrb[0].mxu0
      %v1781 = vadd.f32 0.0, %v1780
      %v1782 = vpop.f32.mrb[0].mxu0
      %v1783 = vadd.f32 0.0, %v1782
      %1784 = vmatprep.mubr.bf16.mxu0 0
      %1785 = vmatmul.mubr.bf16.gmra.mrb[0].mxu0 %v1677
      %v1786 = vpop.f32.mrb[0].mxu0
      %v1787 = vadd.f32 0.0, %v1786
      %v1788 = vpop.f32.mrb[0].mxu0
      %v1789 = vadd.f32 0.0, %v1788
      %v1790 = vpop.f32.mrb[0].mxu0
      %v1791 = vadd.f32 0.0, %v1790
      %v1792 = vpop.f32.mrb[0].mxu0
      %v1793 = vadd.f32 0.0, %v1792
      %1794 = vmatprep.mubr.bf16.mxu0 0
      %1795 = vmatmul.mubr.bf16.gmra.mrb[0].mxu0 %v1680
      %v1796 = vpop.f32.mrb[0].mxu0
      %v1797 = vadd.f32 0.0, %v1796
      %v1798 = vpop.f32.mrb[0].mxu0
      %v1799 = vadd.f32 0.0, %v1798
      %v1800 = vpop.f32.mrb[0].mxu0
      %v1801 = vadd.f32 0.0, %v1800
      %v1802 = vpop.f32.mrb[0].mxu0
      %v1803 = vadd.f32 0.0, %v1802
      %1804 = vmatprep.mubr.bf16.mxu0 0
      %1805 = vmatmul.mubr.bf16.gmra.mrb[0].mxu0 %v1683
      %v1806 = vpop.f32.mrb[0].mxu0
      %v1807 = vadd.f32 0.0, %v1806
      %v1808 = vpop.f32.mrb[0].mxu0
      %v1809 = vadd.f32 0.0, %v1808
      %v1810 = vpop.f32.mrb[0].mxu0
      %v1811 = vadd.f32 0.0, %v1810
      %v1812 = vpop.f32.mrb[0].mxu0
      %v1813 = vadd.f32 0.0, %v1812
      %1814 = vmatprep.mubr.bf16.mxu0 0
      %1815 = vmatmul.mubr.bf16.gmra.mrb[0].mxu0 %v1686
      %v1816 = vpop.f32.mrb[0].mxu0
      %v1817 = vadd.f32 0.0, %v1816
      %v1818 = vpop.f32.mrb[0].mxu0
      %v1819 = vadd.f32 0.0, %v1818
      %v1820 = vpop.f32.mrb[0].mxu0
      %v1821 = vadd.f32 0.0, %v1820
      %v1822 = vpop.f32.mrb[0].mxu0
      %v1823 = vadd.f32 0.0, %v1822
      %1824 = vmatprep.mubr.bf16.mxu0 0
      %1825 = vmatmul.mubr.bf16.gmra.mrb[0].mxu0 %v1689
      %v1826 = vpop.f32.mrb[0].mxu0
      %v1827 = vadd.f32 0.0, %v1826
      %v1828 = vpop.f32.mrb[0].mxu0
      %v1829 = vadd.f32 0.0, %v1828
      %v1830 = vpop.f32.mrb[0].mxu0
      %v1831 = vadd.f32 0.0, %v1830
      %v1832 = vpop.f32.mrb[0].mxu0
      %v1833 = vadd.f32 0.0, %v1832
      %1834 = vmatprep.mubr.bf16.mxu0 0
      %1835 = vmatmul.mubr.bf16.gmra.mrb[0].mxu0 %v1692
      %v1836 = vpop.f32.mrb[0].mxu0
      %v1837 = vadd.f32 0.0, %v1836
      %v1838 = vpop.f32.mrb[0].mxu0
      %v1839 = vadd.f32 0.0, %v1838
      %v1840 = vpop.f32.mrb[0].mxu0
      %v1841 = vadd.f32 0.0, %v1840
      %v1842 = vpop.f32.mrb[0].mxu0
      %v1843 = vadd.f32 0.0, %v1842
      %1844 = vmatprep.mubr.bf16.mxu0 0
      %1845 = vmatmul.mubr.bf16.gmra.mrb[0].mxu0 %v1695
      %v1846 = vpop.f32.mrb[0].mxu0
      %v1847 = vadd.f32 0.0, %v1846
      %v1848 = vpop.f32.mrb[0].mxu0
      %v1849 = vadd.f32 0.0, %v1848
      %v1850 = vpop.f32.mrb[0].mxu0
      %v1851 = vadd.f32 0.0, %v1850
      %v1852 = vpop.f32.mrb[0].mxu0
      %v1853 = vadd.f32 0.0, %v1852
      %1854 = vmatprep.mubr.bf16.mxu0 0
      %1855 = vmatmul.mubr.bf16.gmra.mrb[0].mxu0 %v1698
      %v1856 = vpop.f32.mrb[0].mxu0
      %v1857 = vadd.f32 0.0, %v1856
      %v1858 = vpop.f32.mrb[0].mxu0
      %v1859 = vadd.f32 0.0, %v1858
      %v1860 = vpop.f32.mrb[0].mxu0
      %v1861 = vadd.f32 0.0, %v1860
      %v1862 = vpop.f32.mrb[0].mxu0
      %v1863 = vadd.f32 0.0, %v1862
      %1864 = vmatprep.mubr.bf16.mxu0 0
      %1865 = vmatmul.mubr.bf16.gmra.mrb[0].mxu0 %v1701
      %v1866 = vpop.f32.mrb[0].mxu0
      %v1867 = vadd.f32 0.0, %v1866
      %v1868 = vpop.f32.mrb[0].mxu0
      %v1869 = vadd.f32 0.0, %v1868
      %v1870 = vpop.f32.mrb[0].mxu0
      %v1871 = vadd.f32 0.0, %v1870
      %v1872 = vpop.f32.mrb[0].mxu0
      %v1873 = vadd.f32 0.0, %v1872
      %1874 = vmatprep.mubr.bf16.mxu0 0
      %1875 = vmatmul.mubr.bf16.gmra.mrb[0].mxu0 %v1704
      %v1876 = vpop.f32.mrb[0].mxu0
      %v1877 = vadd.f32 0.0, %v1876
      %v1878 = vpop.f32.mrb[0].mxu0
      %v1879 = vadd.f32 0.0, %v1878
      %v1880 = vpop.f32.mrb[0].mxu0
      %v1881 = vadd.f32 0.0, %v1880
      %v1882 = vpop.f32.mrb[0].mxu0
      %v1883 = vadd.f32 0.0, %v1882
      %1884 = vmatprep.mubr.bf16.mxu0 0
      %1885 = vmatmul.mubr.bf16.gmra.mrb[0].mxu0 %v1707
      %v1886 = vpop.f32.mrb[0].mxu0
      %v1887 = vadd.f32 0.0, %v1886
      %v1888 = vpop.f32.mrb[0].mxu0
      %v1889 = vadd.f32 0.0, %v1888
      %v1890 = vpop.f32.mrb[0].mxu0
      %v1891 = vadd.f32 0.0, %v1890
      %v1892 = vpop.f32.mrb[0].mxu0
      %v1893 = vadd.f32 0.0, %v1892
      %1894 = vmatprep.mubr.bf16.mxu0 0
      %1895 = vmatmul.mubr.bf16.gmra.mrb[0].mxu0 %v1710
      %v1896 = vpop.f32.mrb[0].mxu0
      %v1897 = vadd.f32 0.0, %v1896
      %v1898 = vpop.f32.mrb[0].mxu0
      %v1899 = vadd.f32 0.0, %v1898
      %v1900 = vpop.f32.mrb[0].mxu0
      %v1901 = vadd.f32 0.0, %v1900
      %v1902 = vpop.f32.mrb[0].mxu0
      %v1903 = vadd.f32 0.0, %v1902
      %1904 = vdwg.mxu0
      %1905 = vmatprep.subr.bf16.mxu0 %v1651
      %1906 = vmatpush1.bf16.msra.mxu0 %v1650
      %1907 = vmatprep.subr.bf16.mxu0 %v1655
      %1908 = vmatpush1.bf16.msra.mxu0 %v1654
      %1909 = vmatprep.subr.bf16.mxu0 0
      %1910 = vmatpush1.bf16.msra.mxu0 0
      %1911 = vmatprep.subr.bf16.mxu0 0
      %1912 = vmatpush1.bf16.msra.mxu0 0
      %1913 = vmatprep.subr.bf16.mxu0 0
      %1914 = vmatpush1.bf16.msra.mxu0 0
      %1915 = vmatprep.subr.bf16.mxu0 0
      %1916 = vmatpush1.bf16.msra.mxu0 0
      %1917 = vmatprep.subr.bf16.mxu0 0
      %1918 = vmatpush1.bf16.msra.mxu0 0
      %1919 = vmatprep.subr.bf16.mxu0 0
      %1920 = vmatpush1.bf16.msra.mxu0 0
      %1921 = vmatprep.subr.bf16.mxu0 0
      %1922 = vmatpush1.bf16.msra.mxu0 0
      %1923 = vmatprep.subr.bf16.mxu0 0
      %1924 = vmatpush1.bf16.msra.mxu0 0
      %1925 = vmatprep.subr.bf16.mxu0 0
      %1926 = vmatpush1.bf16.msra.mxu0 0
      %1927 = vmatprep.subr.bf16.mxu0 0
      %1928 = vmatpush1.bf16.msra.mxu0 0
      %1929 = vmatprep.subr.bf16.mxu0 0
      %1930 = vmatpush1.bf16.msra.mxu0 0
      %1931 = vmatprep.subr.bf16.mxu0 0
      %1932 = vmatpush1.bf16.msra.mxu0 0
      %1933 = vmatprep.subr.bf16.mxu0 0
      %1934 = vmatpush1.bf16.msra.mxu0 0
      %1935 = vmatprep.subr.bf16.mxu0 0
      %1936 = vmatpush1.bf16.msra.mxu0 0
      %1937 = vmatprep.mubr.bf16.mxu0 0
      %1938 = vmatmul.mubr.bf16.gmra.mrb[0].mxu0 %v1665
      %v1939 = vpop.f32.mrb[0].mxu0
      %v1940 = vadd.f32 0.0, %v1939
      %v1941 = vpop.f32.mrb[0].mxu0
      %v1942 = vadd.f32 0.0, %v1941
      %v1943 = vpop.f32.mrb[0].mxu0
      %v1944 = vadd.f32 0.0, %v1943
      %v1945 = vpop.f32.mrb[0].mxu0
      %v1946 = vadd.f32 0.0, %v1945
      %1947 = vmatprep.mubr.bf16.mxu0 0
      %1948 = vmatmul.mubr.bf16.gmra.mrb[0].mxu0 %v1668
      %v1949 = vpop.f32.mrb[0].mxu0
      %v1950 = vadd.f32 0.0, %v1949
      %v1951 = vpop.f32.mrb[0].mxu0
      %v1952 = vadd.f32 0.0, %v1951
      %v1953 = vpop.f32.mrb[0].mxu0
      %v1954 = vadd.f32 0.0, %v1953
      %v1955 = vpop.f32.mrb[0].mxu0
      %v1956 = vadd.f32 0.0, %v1955
      %1957 = vmatprep.mubr.bf16.mxu0 0
      %1958 = vmatmul.mubr.bf16.gmra.mrb[0].mxu0 %v1671
      %v1959 = vpop.f32.mrb[0].mxu0
      %v1960 = vadd.f32 0.0, %v1959
      %v1961 = vpop.f32.mrb[0].mxu0
      %v1962 = vadd.f32 0.0, %v1961
      %v1963 = vpop.f32.mrb[0].mxu0
      %v1964 = vadd.f32 0.0, %v1963
      %v1965 = vpop.f32.mrb[0].mxu0
      %v1966 = vadd.f32 0.0, %v1965
      %1967 = vmatprep.mubr.bf16.mxu0 0
      %1968 = vmatmul.mubr.bf16.gmra.mrb[0].mxu0 %v1674
      %v1969 = vpop.f32.mrb[0].mxu0
      %v1970 = vadd.f32 0.0, %v1969
      %v1971 = vpop.f32.mrb[0].mxu0
      %v1972 = vadd.f32 0.0, %v1971
      %v1973 = vpop.f32.mrb[0].mxu0
      %v1974 = vadd.f32 0.0, %v1973
      %v1975 = vpop.f32.mrb[0].mxu0
      %v1976 = vadd.f32 0.0, %v1975
      %1977 = vmatprep.mubr.bf16.mxu0 0
      %1978 = vmatmul.mubr.bf16.gmra.mrb[0].mxu0 %v1677
      %v1979 = vpop.f32.mrb[0].mxu0
      %v1980 = vadd.f32 0.0, %v1979
      %v1981 = vpop.f32.mrb[0].mxu0
      %v1982 = vadd.f32 0.0, %v1981
      %v1983 = vpop.f32.mrb[0].mxu0
      %v1984 = vadd.f32 0.0, %v1983
      %v1985 = vpop.f32.mrb[0].mxu0
      %v1986 = vadd.f32 0.0, %v1985
      %1987 = vmatprep.mubr.bf16.mxu0 0
      %1988 = vmatmul.mubr.bf16.gmra.mrb[0].mxu0 %v1680
      %v1989 = vpop.f32.mrb[0].mxu0
      %v1990 = vadd.f32 0.0, %v1989
      %v1991 = vpop.f32.mrb[0].mxu0
      %v1992 = vadd.f32 0.0, %v1991
      %v1993 = vpop.f32.mrb[0].mxu0
      %v1994 = vadd.f32 0.0, %v1993
      %v1995 = vpop.f32.mrb[0].mxu0
      %v1996 = vadd.f32 0.0, %v1995
      %1997 = vmatprep.mubr.bf16.mxu0 0
      %1998 = vmatmul.mubr.bf16.gmra.mrb[0].mxu0 %v1683
      %v1999 = vpop.f32.mrb[0].mxu0
      %v2000 = vadd.f32 0.0, %v1999
      %v2001 = vpop.f32.mrb[0].mxu0
      %v2002 = vadd.f32 0.0, %v2001
      %v2003 = vpop.f32.mrb[0].mxu0
      %v2004 = vadd.f32 0.0, %v2003
      %v2005 = vpop.f32.mrb[0].mxu0
      %v2006 = vadd.f32 0.0, %v2005
      %2007 = vmatprep.mubr.bf16.mxu0 0
      %2008 = vmatmul.mubr.bf16.gmra.mrb[0].mxu0 %v1686
      %v2009 = vpop.f32.mrb[0].mxu0
      %v2010 = vadd.f32 0.0, %v2009
      %v2011 = vpop.f32.mrb[0].mxu0
      %v2012 = vadd.f32 0.0, %v2011
      %v2013 = vpop.f32.mrb[0].mxu0
      %v2014 = vadd.f32 0.0, %v2013
      %v2015 = vpop.f32.mrb[0].mxu0
      %v2016 = vadd.f32 0.0, %v2015
      %2017 = vmatprep.mubr.bf16.mxu0 0
      %2018 = vmatmul.mubr.bf16.gmra.mrb[0].mxu0 %v1689
      %v2019 = vpop.f32.mrb[0].mxu0
      %v2020 = vadd.f32 0.0, %v2019
      %v2021 = vpop.f32.mrb[0].mxu0
      %v2022 = vadd.f32 0.0, %v2021
      %v2023 = vpop.f32.mrb[0].mxu0
      %v2024 = vadd.f32 0.0, %v2023
      %v2025 = vpop.f32.mrb[0].mxu0
      %v2026 = vadd.f32 0.0, %v2025
      %2027 = vmatprep.mubr.bf16.mxu0 0
      %2028 = vmatmul.mubr.bf16.gmra.mrb[0].mxu0 %v1692
      %v2029 = vpop.f32.mrb[0].mxu0
      %v2030 = vadd.f32 0.0, %v2029
      %v2031 = vpop.f32.mrb[0].mxu0
      %v2032 = vadd.f32 0.0, %v2031
      %v2033 = vpop.f32.mrb[0].mxu0
      %v2034 = vadd.f32 0.0, %v2033
      %v2035 = vpop.f32.mrb[0].mxu0
      %v2036 = vadd.f32 0.0, %v2035
      %2037 = vmatprep.mubr.bf16.mxu0 0
      %2038 = vmatmul.mubr.bf16.gmra.mrb[0].mxu0 %v1695
      %v2039 = vpop.f32.mrb[0].mxu0
      %v2040 = vadd.f32 0.0, %v2039
      %v2041 = vpop.f32.mrb[0].mxu0
      %v2042 = vadd.f32 0.0, %v2041
      %v2043 = vpop.f32.mrb[0].mxu0
      %v2044 = vadd.f32 0.0, %v2043
      %v2045 = vpop.f32.mrb[0].mxu0
      %v2046 = vadd.f32 0.0, %v2045
      %2047 = vmatprep.mubr.bf16.mxu0 0
      %2048 = vmatmul.mubr.bf16.gmra.mrb[0].mxu0 %v1698
      %v2049 = vpop.f32.mrb[0].mxu0
      %v2050 = vadd.f32 0.0, %v2049
      %v2051 = vpop.f32.mrb[0].mxu0
      %v2052 = vadd.f32 0.0, %v2051
      %v2053 = vpop.f32.mrb[0].mxu0
      %v2054 = vadd.f32 0.0, %v2053
      %v2055 = vpop.f32.mrb[0].mxu0
      %v2056 = vadd.f32 0.0, %v2055
      %2057 = vmatprep.mubr.bf16.mxu0 0
      %2058 = vmatmul.mubr.bf16.gmra.mrb[0].mxu0 %v1701
      %v2059 = vpop.f32.mrb[0].mxu0
      %v2060 = vadd.f32 0.0, %v2059
      %v2061 = vpop.f32.mrb[0].mxu0
      %v2062 = vadd.f32 0.0, %v2061
      %v2063 = vpop.f32.mrb[0].mxu0
      %v2064 = vadd.f32 0.0, %v2063
      %v2065 = vpop.f32.mrb[0].mxu0
      %v2066 = vadd.f32 0.0, %v2065
      %2067 = vmatprep.mubr.bf16.mxu0 0
      %2068 = vmatmul.mubr.bf16.gmra.mrb[0].mxu0 %v1704
      %v2069 = vpop.f32.mrb[0].mxu0
      %v2070 = vadd.f32 0.0, %v2069
      %v2071 = vpop.f32.mrb[0].mxu0
      %v2072 = vadd.f32 0.0, %v2071
      %v2073 = vpop.f32.mrb[0].mxu0
      %v2074 = vadd.f32 0.0, %v2073
      %v2075 = vpop.f32.mrb[0].mxu0
      %v2076 = vadd.f32 0.0, %v2075
      %2077 = vmatprep.mubr.bf16.mxu0 0
      %2078 = vmatmul.mubr.bf16.gmra.mrb[0].mxu0 %v1707
      %v2079 = vpop.f32.mrb[0].mxu0
      %v2080 = vadd.f32 0.0, %v2079
      %v2081 = vpop.f32.mrb[0].mxu0
      %v2082 = vadd.f32 0.0, %v2081
      %v2083 = vpop.f32.mrb[0].mxu0
      %v2084 = vadd.f32 0.0, %v2083
      %v2085 = vpop.f32.mrb[0].mxu0
      %v2086 = vadd.f32 0.0, %v2085
      %2087 = vmatprep.mubr.bf16.mxu0 0
      %2088 = vmatmul.mubr.bf16.gmra.mrb[0].mxu0 %v1710
      %v2089 = vpop.f32.mrb[0].mxu0
      %v2090 = vadd.f32 0.0, %v2089
      %v2091 = vpop.f32.mrb[0].mxu0
      %v2092 = vadd.f32 0.0, %v2091
      %v2093 = vpop.f32.mrb[0].mxu0
      %v2094 = vadd.f32 0.0, %v2093
      %v2095 = vpop.f32.mrb[0].mxu0
      %v2096 = vadd.f32 0.0, %v2095
      %2097 = vdwg.mxu0
      %v2098 = vmax.f32 %v1747, 0.0
      %v2099 = vmax.f32 %v1749, 0.0
      %v2100 = vmax.f32 %v1940, 0.0
      %v2101 = vmax.f32 %v1942, 0.0
      %v2102 = vmax.f32 %v1751, 0.0
      %v2103 = vmax.f32 %v1753, 0.0
      %v2104 = vmax.f32 %v1944, 0.0
      %v2105 = vmax.f32 %v1946, 0.0
      %v2106 = vmax.f32 %v1757, 0.0
      %v2107 = vmax.f32 %v1759, 0.0
      %v2108 = vmax.f32 %v1950, 0.0
      %v2109 = vmax.f32 %v1952, 0.0
      %v2110 = vmax.f32 %v1761, 0.0
      %v2111 = vmax.f32 %v1763, 0.0
      %v2112 = vmax.f32 %v1954, 0.0
      %v2113 = vmax.f32 %v1956, 0.0
      %v2114 = vmax.f32 %v1767, 0.0
      %v2115 = vmax.f32 %v1769, 0.0
      %v2116 = vmax.f32 %v1960, 0.0
      %v2117 = vmax.f32 %v1962, 0.0
      %v2118 = vmax.f32 %v1771, 0.0
      %v2119 = vmax.f32 %v1773, 0.0
      %v2120 = vmax.f32 %v1964, 0.0
      %v2121 = vmax.f32 %v1966, 0.0
      %v2122 = vmax.f32 %v1777, 0.0
      %v2123 = vmax.f32 %v1779, 0.0
      %v2124 = vmax.f32 %v1970, 0.0
      %v2125 = vmax.f32 %v1972, 0.0
      %v2126 = vmax.f32 %v1781, 0.0
      %v2127 = vmax.f32 %v1783, 0.0
      %v2128 = vmax.f32 %v1974, 0.0
      %v2129 = vmax.f32 %v1976, 0.0
      %v2130 = vmax.f32 %v1787, 0.0
      %v2131 = vmax.f32 %v1789, 0.0
      %v2132 = vmax.f32 %v1980, 0.0
      %v2133 = vmax.f32 %v1982, 0.0
      %v2134 = vmax.f32 %v1791, 0.0
      %v2135 = vmax.f32 %v1793, 0.0
      %v2136 = vmax.f32 %v1984, 0.0
      %v2137 = vmax.f32 %v1986, 0.0
      %v2138 = vmax.f32 %v1797, 0.0
      %v2139 = vmax.f32 %v1799, 0.0
      %v2140 = vmax.f32 %v1990, 0.0
      %v2141 = vmax.f32 %v1992, 0.0
      %v2142 = vmax.f32 %v1801, 0.0
      %v2143 = vmax.f32 %v1803, 0.0
      %v2144 = vmax.f32 %v1994, 0.0
      %v2145 = vmax.f32 %v1996, 0.0
      %v2146 = vmax.f32 %v1807, 0.0
      %v2147 = vmax.f32 %v1809, 0.0
      %v2148 = vmax.f32 %v2000, 0.0
      %v2149 = vmax.f32 %v2002, 0.0
      %v2150 = vmax.f32 %v1811, 0.0
      %v2151 = vmax.f32 %v1813, 0.0
      %v2152 = vmax.f32 %v2004, 0.0
      %v2153 = vmax.f32 %v2006, 0.0
      %v2154 = vmax.f32 %v1817, 0.0
      %v2155 = vmax.f32 %v1819, 0.0
      %v2156 = vmax.f32 %v2010, 0.0
      %v2157 = vmax.f32 %v2012, 0.0
      %v2158 = vmax.f32 %v1821, 0.0
      %v2159 = vmax.f32 %v1823, 0.0
      %v2160 = vmax.f32 %v2014, 0.0
      %v2161 = vmax.f32 %v2016, 0.0
      %v2162 = vmax.f32 %v1827, 0.0
      %v2163 = vmax.f32 %v1829, 0.0
      %v2164 = vmax.f32 %v2020, 0.0
      %v2165 = vmax.f32 %v2022, 0.0
      %v2166 = vmax.f32 %v1831, 0.0
      %v2167 = vmax.f32 %v1833, 0.0
      %v2168 = vmax.f32 %v2024, 0.0
      %v2169 = vmax.f32 %v2026, 0.0
      %v2170 = vmax.f32 %v1837, 0.0
      %v2171 = vmax.f32 %v1839, 0.0
      %v2172 = vmax.f32 %v2030, 0.0
      %v2173 = vmax.f32 %v2032, 0.0
      %v2174 = vmax.f32 %v1841, 0.0
      %v2175 = vmax.f32 %v1843, 0.0
      %v2176 = vmax.f32 %v2034, 0.0
      %v2177 = vmax.f32 %v2036, 0.0
      %v2178 = vmax.f32 %v1847, 0.0
      %v2179 = vmax.f32 %v1849, 0.0
      %v2180 = vmax.f32 %v2040, 0.0
      %v2181 = vmax.f32 %v2042, 0.0
      %v2182 = vmax.f32 %v1851, 0.0
      %v2183 = vmax.f32 %v1853, 0.0
      %v2184 = vmax.f32 %v2044, 0.0
      %v2185 = vmax.f32 %v2046, 0.0
      %v2186 = vmax.f32 %v1857, 0.0
      %v2187 = vmax.f32 %v1859, 0.0
      %v2188 = vmax.f32 %v2050, 0.0
      %v2189 = vmax.f32 %v2052, 0.0
      %v2190 = vmax.f32 %v1861, 0.0
      %v2191 = vmax.f32 %v1863, 0.0
      %v2192 = vmax.f32 %v2054, 0.0
      %v2193 = vmax.f32 %v2056, 0.0
      %v2194 = vmax.f32 %v1867, 0.0
      %v2195 = vmax.f32 %v1869, 0.0
      %v2196 = vmax.f32 %v2060, 0.0
      %v2197 = vmax.f32 %v2062, 0.0
      %v2198 = vmax.f32 %v1871, 0.0
      %v2199 = vmax.f32 %v1873, 0.0
      %v2200 = vmax.f32 %v2064, 0.0
      %v2201 = vmax.f32 %v2066, 0.0
      %v2202 = vmax.f32 %v1877, 0.0
      %v2203 = vmax.f32 %v1879, 0.0
      %v2204 = vmax.f32 %v2070, 0.0
      %v2205 = vmax.f32 %v2072, 0.0
      %v2206 = vmax.f32 %v1881, 0.0
      %v2207 = vmax.f32 %v1883, 0.0
      %v2208 = vmax.f32 %v2074, 0.0
      %v2209 = vmax.f32 %v2076, 0.0
      %v2210 = vmax.f32 %v1887, 0.0
      %v2211 = vmax.f32 %v1889, 0.0
      %v2212 = vmax.f32 %v2080, 0.0
      %v2213 = vmax.f32 %v2082, 0.0
      %v2214 = vmax.f32 %v1891, 0.0
      %v2215 = vmax.f32 %v1893, 0.0
      %v2216 = vmax.f32 %v2084, 0.0
      %v2217 = vmax.f32 %v2086, 0.0
      %v2218 = vmax.f32 %v1897, 0.0
      %v2219 = vmax.f32 %v1899, 0.0
      %v2220 = vmax.f32 %v2090, 0.0
      %v2221 = vmax.f32 %v2092, 0.0
      %v2222 = vmax.f32 %v1901, 0.0
      %v2223 = vmax.f32 %v1903, 0.0
      %v2224 = vmax.f32 %v2094, 0.0
      %v2225 = vmax.f32 %v2096, 0.0
      %v2226 = vmax.f32 %v2098, %v2102
      %v2227 = vmax.f32 %v2226, %v2106
      %v2228 = vmax.f32 %v2227, %v2110
      %v2229 = vmax.f32 %v2228, %v2114
      %v2230 = vmax.f32 %v2229, %v2118
      %v2231 = vmax.f32 %v2230, %v2122
      %v2232 = vmax.f32 %v2231, %v2126
      %v2233 = vmax.f32 %v2232, %v2130
      %v2234 = vmax.f32 %v2233, %v2134
      %v2235 = vmax.f32 %v2234, %v2138
      %v2236 = vmax.f32 %v2235, %v2142
      %v2237 = vmax.f32 %v2236, %v2146
      %v2238 = vmax.f32 %v2237, %v2150
      %v2239 = vmax.f32 %v2238, %v2154
      %v2240 = vmax.f32 %v2239, %v2158
      %v2241 = vmax.f32 %v2240, %v2162
      %v2242 = vmax.f32 %v2241, %v2166
      %v2243 = vmax.f32 %v2242, %v2170
      %v2244 = vmax.f32 %v2243, %v2174
      %v2245 = vmax.f32 %v2244, %v2178
      %v2246 = vmax.f32 %v2245, %v2182
      %v2247 = vmax.f32 %v2246, %v2186
      %v2248 = vmax.f32 %v2247, %v2190
      %v2249 = vmax.f32 %v2248, %v2194
      %v2250 = vmax.f32 %v2249, %v2198
      %v2251 = vmax.f32 %v2250, %v2202
      %v2252 = vmax.f32 %v2251, %v2206
      %v2253 = vmax.f32 %v2252, %v2210
      %v2254 = vmax.f32 %v2253, %v2214
      %v2255 = vmax.f32 %v2254, %v2218
      %v2256 = vmax.f32 %v2255, %v2222
      %v2257 = vrot.slane %v2256, 4
      %v2258 = vmax.f32 %v2256, %v2257
      %v2259 = vrot.slane %v2258, 2
      %v2260 = vmax.f32 %v2258, %v2259
      %v2261 = vrot.slane %v2260, 1
      %v2262 = vmax.f32 %v2260, %v2261
      %v2263 = vmax.f32 %v2099, %v2103
      %v2264 = vmax.f32 %v2263, %v2107
      %v2265 = vmax.f32 %v2264, %v2111
      %v2266 = vmax.f32 %v2265, %v2115
      %v2267 = vmax.f32 %v2266, %v2119
      %v2268 = vmax.f32 %v2267, %v2123
      %v2269 = vmax.f32 %v2268, %v2127
      %v2270 = vmax.f32 %v2269, %v2131
      %v2271 = vmax.f32 %v2270, %v2135
      %v2272 = vmax.f32 %v2271, %v2139
      %v2273 = vmax.f32 %v2272, %v2143
      %v2274 = vmax.f32 %v2273, %v2147
      %v2275 = vmax.f32 %v2274, %v2151
      %v2276 = vmax.f32 %v2275, %v2155
      %v2277 = vmax.f32 %v2276, %v2159
      %v2278 = vmax.f32 %v2277, %v2163
      %v2279 = vmax.f32 %v2278, %v2167
      %v2280 = vmax.f32 %v2279, %v2171
      %v2281 = vmax.f32 %v2280, %v2175
      %v2282 = vmax.f32 %v2281, %v2179
      %v2283 = vmax.f32 %v2282, %v2183
      %v2284 = vmax.f32 %v2283, %v2187
      %v2285 = vmax.f32 %v2284, %v2191
      %v2286 = vmax.f32 %v2285, %v2195
      %v2287 = vmax.f32 %v2286, %v2199
      %v2288 = vmax.f32 %v2287, %v2203
      %v2289 = vmax.f32 %v2288, %v2207
      %v2290 = vmax.f32 %v2289, %v2211
      %v2291 = vmax.f32 %v2290, %v2215
      %v2292 = vmax.f32 %v2291, %v2219
      %v2293 = vmax.f32 %v2292, %v2223
      %v2294 = vrot.slane %v2293, 4
      %v2295 = vmax.f32 %v2293, %v2294
      %v2296 = vrot.slane %v2295, 2
      %v2297 = vmax.f32 %v2295, %v2296
      %v2298 = vrot.slane %v2297, 1
      %v2299 = vmax.f32 %v2297, %v2298
      %v2300 = vmax.f32 %v2100, %v2104
      %v2301 = vmax.f32 %v2300, %v2108
      %v2302 = vmax.f32 %v2301, %v2112
      %v2303 = vmax.f32 %v2302, %v2116
      %v2304 = vmax.f32 %v2303, %v2120
      %v2305 = vmax.f32 %v2304, %v2124
      %v2306 = vmax.f32 %v2305, %v2128
      %v2307 = vmax.f32 %v2306, %v2132
      %v2308 = vmax.f32 %v2307, %v2136
      %v2309 = vmax.f32 %v2308, %v2140
      %v2310 = vmax.f32 %v2309, %v2144
      %v2311 = vmax.f32 %v2310, %v2148
      %v2312 = vmax.f32 %v2311, %v2152
      %v2313 = vmax.f32 %v2312, %v2156
      %v2314 = vmax.f32 %v2313, %v2160
      %v2315 = vmax.f32 %v2314, %v2164
      %v2316 = vmax.f32 %v2315, %v2168
      %v2317 = vmax.f32 %v2316, %v2172
      %v2318 = vmax.f32 %v2317, %v2176
      %v2319 = vmax.f32 %v2318, %v2180
      %v2320 = vmax.f32 %v2319, %v2184
      %v2321 = vmax.f32 %v2320, %v2188
      %v2322 = vmax.f32 %v2321, %v2192
      %v2323 = vmax.f32 %v2322, %v2196
      %v2324 = vmax.f32 %v2323, %v2200
      %v2325 = vmax.f32 %v2324, %v2204
      %v2326 = vmax.f32 %v2325, %v2208
      %v2327 = vmax.f32 %v2326, %v2212
      %v2328 = vmax.f32 %v2327, %v2216
      %v2329 = vmax.f32 %v2328, %v2220
      %v2330 = vmax.f32 %v2329, %v2224
      %v2331 = vrot.slane %v2330, 4
      %v2332 = vmax.f32 %v2330, %v2331
      %v2333 = vrot.slane %v2332, 2
      %v2334 = vmax.f32 %v2332, %v2333
      %v2335 = vrot.slane %v2334, 1
      %v2336 = vmax.f32 %v2334, %v2335
      %v2337 = vmax.f32 %v2101, %v2105
      %v2338 = vmax.f32 %v2337, %v2109
      %v2339 = vmax.f32 %v2338, %v2113
      %v2340 = vmax.f32 %v2339, %v2117
      %v2341 = vmax.f32 %v2340, %v2121
      %v2342 = vmax.f32 %v2341, %v2125
      %v2343 = vmax.f32 %v2342, %v2129
      %v2344 = vmax.f32 %v2343, %v2133
      %v2345 = vmax.f32 %v2344, %v2137
      %v2346 = vmax.f32 %v2345, %v2141
      %v2347 = vmax.f32 %v2346, %v2145
      %v2348 = vmax.f32 %v2347, %v2149
      %v2349 = vmax.f32 %v2348, %v2153
      %v2350 = vmax.f32 %v2349, %v2157
      %v2351 = vmax.f32 %v2350, %v2161
      %v2352 = vmax.f32 %v2351, %v2165
      %v2353 = vmax.f32 %v2352, %v2169
      %v2354 = vmax.f32 %v2353, %v2173
      %v2355 = vmax.f32 %v2354, %v2177
      %v2356 = vmax.f32 %v2355, %v2181
      %v2357 = vmax.f32 %v2356, %v2185
      %v2358 = vmax.f32 %v2357, %v2189
      %v2359 = vmax.f32 %v2358, %v2193
      %v2360 = vmax.f32 %v2359, %v2197
      %v2361 = vmax.f32 %v2360, %v2201
      %v2362 = vmax.f32 %v2361, %v2205
      %v2363 = vmax.f32 %v2362, %v2209
      %v2364 = vmax.f32 %v2363, %v2213
      %v2365 = vmax.f32 %v2364, %v2217
      %v2366 = vmax.f32 %v2365, %v2221
      %v2367 = vmax.f32 %v2366, %v2225
      %v2368 = vrot.slane %v2367, 4
      %v2369 = vmax.f32 %v2367, %v2368
      %v2370 = vrot.slane %v2369, 2
      %v2371 = vmax.f32 %v2369, %v2370
      %v2372 = vrot.slane %v2371, 1
      %v2373 = vmax.f32 %v2371, %v2372
      %v2378 = vcombine.low %v2262, %v2299
      %v2379 = vcombine.low %v2336, %v2373
      %v2381 = vunpack.c.l.s4 1966171168
      %v2382 = vunpack.c.0.s8 %v2381
      %v2383 = vlaneseq
      %v2384 = vshrl.u32 %v2383, 7
      %v2385 = vsub.s32 %v2382, %v2384
      %v2386 = vrot.slane %v2378, %v2385
      %v2388 = vunpack.c.l.s4 1966171168
      %v2389 = vunpack.c.0.s8 %v2388
      %v2390 = vlaneseq
      %v2391 = vshrl.u32 %v2390, 7
      %v2392 = vsub.s32 %v2389, %v2391
      %v2393 = vrot.slane %v2379, %v2392
      %v2394 = vcombine.low %v2386, %v2393
      %v2396 = vunpack.c.l.s4 1966171168
      %v2397 = vunpack.c.0.s8 %v2396
      %v2398 = vlaneseq
      %v2399 = vshrl.u32 %v2398, 7
      %v2400 = vsub.s32 %v2397, %v2399
      %v2401 = vrot.slane %v2394, %v2400
      %s2403 = scalar_lea.vmem [#allocation2], 1
      %2404 = vst.msk [vmem:[%s2403] ss:$8 sm:$0xf] %vm1316, %v2401
      %2405 = vst.msk [vmem:[%s2403] ss:$8 sm:$0x0] %vm1316, %v2401
      %v2406 = vadd.f32 %v2098, %v2102
      %v2407 = vadd.f32 %v2406, %v2106
      %v2408 = vadd.f32 %v2407, %v2110
      %v2409 = vadd.f32 %v2408, %v2114
      %v2410 = vadd.f32 %v2409, %v2118
      %v2411 = vadd.f32 %v2410, %v2122
      %v2412 = vadd.f32 %v2411, %v2126
      %v2413 = vadd.f32 %v2412, %v2130
      %v2414 = vadd.f32 %v2413, %v2134
      %v2415 = vadd.f32 %v2414, %v2138
      %v2416 = vadd.f32 %v2415, %v2142
      %v2417 = vadd.f32 %v2416, %v2146
      %v2418 = vadd.f32 %v2417, %v2150
      %v2419 = vadd.f32 %v2418, %v2154
      %v2420 = vadd.f32 %v2419, %v2158
      %v2421 = vadd.f32 %v2420, %v2162
      %v2422 = vadd.f32 %v2421, %v2166
      %v2423 = vadd.f32 %v2422, %v2170
      %v2424 = vadd.f32 %v2423, %v2174
      %v2425 = vadd.f32 %v2424, %v2178
      %v2426 = vadd.f32 %v2425, %v2182
      %v2427 = vadd.f32 %v2426, %v2186
      %v2428 = vadd.f32 %v2427, %v2190
      %v2429 = vadd.f32 %v2428, %v2194
      %v2430 = vadd.f32 %v2429, %v2198
      %v2431 = vadd.f32 %v2430, %v2202
      %v2432 = vadd.f32 %v2431, %v2206
      %v2433 = vadd.f32 %v2432, %v2210
      %v2434 = vadd.f32 %v2433, %v2214
      %v2435 = vadd.f32 %v2434, %v2218
      %v2436 = vadd.f32 %v2435, %v2222
      %v2437 = vrot.slane %v2436, 4
      %v2438 = vadd.f32 %v2436, %v2437
      %v2439 = vrot.slane %v2438, 2
      %v2440 = vadd.f32 %v2438, %v2439
      %v2441 = vrot.slane %v2440, 1
      %v2442 = vadd.f32 %v2440, %v2441
      %v2443 = vadd.f32 %v2099, %v2103
      %v2444 = vadd.f32 %v2443, %v2107
      %v2445 = vadd.f32 %v2444, %v2111
      %v2446 = vadd.f32 %v2445, %v2115
      %v2447 = vadd.f32 %v2446, %v2119
      %v2448 = vadd.f32 %v2447, %v2123
      %v2449 = vadd.f32 %v2448, %v2127
      %v2450 = vadd.f32 %v2449, %v2131
      %v2451 = vadd.f32 %v2450, %v2135
      %v2452 = vadd.f32 %v2451, %v2139
      %v2453 = vadd.f32 %v2452, %v2143
      %v2454 = vadd.f32 %v2453, %v2147
      %v2455 = vadd.f32 %v2454, %v2151
      %v2456 = vadd.f32 %v2455, %v2155
      %v2457 = vadd.f32 %v2456, %v2159
      %v2458 = vadd.f32 %v2457, %v2163
      %v2459 = vadd.f32 %v2458, %v2167
      %v2460 = vadd.f32 %v2459, %v2171
      %v2461 = vadd.f32 %v2460, %v2175
      %v2462 = vadd.f32 %v2461, %v2179
      %v2463 = vadd.f32 %v2462, %v2183
      %v2464 = vadd.f32 %v2463, %v2187
      %v2465 = vadd.f32 %v2464, %v2191
      %v2466 = vadd.f32 %v2465, %v2195
      %v2467 = vadd.f32 %v2466, %v2199
      %v2468 = vadd.f32 %v2467, %v2203
      %v2469 = vadd.f32 %v2468, %v2207
      %v2470 = vadd.f32 %v2469, %v2211
      %v2471 = vadd.f32 %v2470, %v2215
      %v2472 = vadd.f32 %v2471, %v2219
      %v2473 = vadd.f32 %v2472, %v2223
      %v2474 = vrot.slane %v2473, 4
      %v2475 = vadd.f32 %v2473, %v2474
      %v2476 = vrot.slane %v2475, 2
      %v2477 = vadd.f32 %v2475, %v2476
      %v2478 = vrot.slane %v2477, 1
      %v2479 = vadd.f32 %v2477, %v2478
      %v2480 = vadd.f32 %v2100, %v2104
      %v2481 = vadd.f32 %v2480, %v2108
      %v2482 = vadd.f32 %v2481, %v2112
      %v2483 = vadd.f32 %v2482, %v2116
      %v2484 = vadd.f32 %v2483, %v2120
      %v2485 = vadd.f32 %v2484, %v2124
      %v2486 = vadd.f32 %v2485, %v2128
      %v2487 = vadd.f32 %v2486, %v2132
      %v2488 = vadd.f32 %v2487, %v2136
      %v2489 = vadd.f32 %v2488, %v2140
      %v2490 = vadd.f32 %v2489, %v2144
      %v2491 = vadd.f32 %v2490, %v2148
      %v2492 = vadd.f32 %v2491, %v2152
      %v2493 = vadd.f32 %v2492, %v2156
      %v2494 = vadd.f32 %v2493, %v2160
      %v2495 = vadd.f32 %v2494, %v2164
      %v2496 = vadd.f32 %v2495, %v2168
      %v2497 = vadd.f32 %v2496, %v2172
      %v2498 = vadd.f32 %v2497, %v2176
      %v2499 = vadd.f32 %v2498, %v2180
      %v2500 = vadd.f32 %v2499, %v2184
      %v2501 = vadd.f32 %v2500, %v2188
      %v2502 = vadd.f32 %v2501, %v2192
      %v2503 = vadd.f32 %v2502, %v2196
      %v2504 = vadd.f32 %v2503, %v2200
      %v2505 = vadd.f32 %v2504, %v2204
      %v2506 = vadd.f32 %v2505, %v2208
      %v2507 = vadd.f32 %v2506, %v2212
      %v2508 = vadd.f32 %v2507, %v2216
      %v2509 = vadd.f32 %v2508, %v2220
      %v2510 = vadd.f32 %v2509, %v2224
      %v2511 = vrot.slane %v2510, 4
      %v2512 = vadd.f32 %v2510, %v2511
      %v2513 = vrot.slane %v2512, 2
      %v2514 = vadd.f32 %v2512, %v2513
      %v2515 = vrot.slane %v2514, 1
      %v2516 = vadd.f32 %v2514, %v2515
      %v2517 = vadd.f32 %v2101, %v2105
      %v2518 = vadd.f32 %v2517, %v2109
      %v2519 = vadd.f32 %v2518, %v2113
      %v2520 = vadd.f32 %v2519, %v2117
      %v2521 = vadd.f32 %v2520, %v2121
      %v2522 = vadd.f32 %v2521, %v2125
      %v2523 = vadd.f32 %v2522, %v2129
      %v2524 = vadd.f32 %v2523, %v2133
      %v2525 = vadd.f32 %v2524, %v2137
      %v2526 = vadd.f32 %v2525, %v2141
      %v2527 = vadd.f32 %v2526, %v2145
      %v2528 = vadd.f32 %v2527, %v2149
      %v2529 = vadd.f32 %v2528, %v2153
      %v2530 = vadd.f32 %v2529, %v2157
      %v2531 = vadd.f32 %v2530, %v2161
      %v2532 = vadd.f32 %v2531, %v2165
      %v2533 = vadd.f32 %v2532, %v2169
      %v2534 = vadd.f32 %v2533, %v2173
      %v2535 = vadd.f32 %v2534, %v2177
      %v2536 = vadd.f32 %v2535, %v2181
      %v2537 = vadd.f32 %v2536, %v2185
      %v2538 = vadd.f32 %v2537, %v2189
      %v2539 = vadd.f32 %v2538, %v2193
      %v2540 = vadd.f32 %v2539, %v2197
      %v2541 = vadd.f32 %v2540, %v2201
      %v2542 = vadd.f32 %v2541, %v2205
      %v2543 = vadd.f32 %v2542, %v2209
      %v2544 = vadd.f32 %v2543, %v2213
      %v2545 = vadd.f32 %v2544, %v2217
      %v2546 = vadd.f32 %v2545, %v2221
      %v2547 = vadd.f32 %v2546, %v2225
      %v2548 = vrot.slane %v2547, 4
      %v2549 = vadd.f32 %v2547, %v2548
      %v2550 = vrot.slane %v2549, 2
      %v2551 = vadd.f32 %v2549, %v2550
      %v2552 = vrot.slane %v2551, 1
      %v2553 = vadd.f32 %v2551, %v2552
      %v2554 = vmul.f32 %v2442, 0.00390625
      %v2555 = vmul.f32 %v2479, 0.00390625
      %v2556 = vmul.f32 %v2516, 0.00390625
      %v2557 = vmul.f32 %v2553, 0.00390625
      %v2562 = vcombine.low %v2554, %v2555
      %v2563 = vcombine.low %v2556, %v2557
      %v2565 = vunpack.c.l.s4 1966171168
      %v2566 = vunpack.c.0.s8 %v2565
      %v2567 = vlaneseq
      %v2568 = vshrl.u32 %v2567, 7
      %v2569 = vsub.s32 %v2566, %v2568
      %v2570 = vrot.slane %v2562, %v2569
      %v2572 = vunpack.c.l.s4 1966171168
      %v2573 = vunpack.c.0.s8 %v2572
      %v2574 = vlaneseq
      %v2575 = vshrl.u32 %v2574, 7
      %v2576 = vsub.s32 %v2573, %v2575
      %v2577 = vrot.slane %v2563, %v2576
      %v2578 = vcombine.low %v2570, %v2577
      %v2580 = vunpack.c.l.s4 1966171168
      %v2581 = vunpack.c.0.s8 %v2580
      %v2582 = vlaneseq
      %v2583 = vshrl.u32 %v2582, 7
      %v2584 = vsub.s32 %v2581, %v2583
      %v2585 = vrot.slane %v2578, %v2584
      %s2587 = scalar_lea.vmem [#allocation2], 33
      %2588 = vst.msk [vmem:[%s2587] ss:$8 sm:$0xf] %vm1316, %v2585
      %2589 = vst.msk [vmem:[%s2587] ss:$8 sm:$0x0] %vm1316, %v2585
      %s2590 = scalar_lea.vmem %s408, 256
      %v2591 = vld [vmem:[%s2590] sm:$0xf]
      %v2592 = vld [vmem:[%s2590 + $0x4] sm:$0xf]
      %v2593 = vld [vmem:[%s2590 + $0x8] sm:$0xf]
      %v2594 = vld [vmem:[%s2590 + $0xc] sm:$0xf]
      %v2595 = vld [vmem:[%s2590 + $0x10] sm:$0xf]
      %v2596 = vld [vmem:[%s2590 + $0x14] sm:$0xf]
      %v2597 = vld [vmem:[%s2590 + $0x18] sm:$0xf]
      %v2598 = vld [vmem:[%s2590 + $0x1c] sm:$0xf]
      %v2599 = vld [vmem:[%s2590 + $0x20] sm:$0xf]
      %v2600 = vld [vmem:[%s2590 + $0x24] sm:$0xf]
      %v2601 = vld [vmem:[%s2590 + $0x28] sm:$0xf]
      %v2602 = vld [vmem:[%s2590 + $0x2c] sm:$0xf]
      %v2603 = vld [vmem:[%s2590 + $0x30] sm:$0xf]
      %v2604 = vld [vmem:[%s2590 + $0x34] sm:$0xf]
      %v2605 = vld [vmem:[%s2590 + $0x38] sm:$0xf]
      %v2606 = vld [vmem:[%s2590 + $0x3c] sm:$0xf]
      %v2607 = vld [vmem:[%s2590 + $0x40] sm:$0xf]
      %v2608 = vld [vmem:[%s2590 + $0x44] sm:$0xf]
      %v2609 = vld [vmem:[%s2590 + $0x48] sm:$0xf]
      %v2610 = vld [vmem:[%s2590 + $0x4c] sm:$0xf]
      %v2611 = vld [vmem:[%s2590 + $0x50] sm:$0xf]
      %v2612 = vld [vmem:[%s2590 + $0x54] sm:$0xf]
      %v2613 = vld [vmem:[%s2590 + $0x58] sm:$0xf]
      %v2614 = vld [vmem:[%s2590 + $0x5c] sm:$0xf]
      %v2615 = vld [vmem:[%s2590 + $0x60] sm:$0xf]
      %v2616 = vld [vmem:[%s2590 + $0x64] sm:$0xf]
      %v2617 = vld [vmem:[%s2590 + $0x68] sm:$0xf]
      %v2618 = vld [vmem:[%s2590 + $0x6c] sm:$0xf]
      %v2619 = vld [vmem:[%s2590 + $0x70] sm:$0xf]
      %v2620 = vld [vmem:[%s2590 + $0x74] sm:$0xf]
      %v2621 = vld [vmem:[%s2590 + $0x78] sm:$0xf]
      %v2622 = vld [vmem:[%s2590 + $0x7c] sm:$0xf]
      %v2623 = vld [vmem:[%s1] sm:$0xff]
      %v2624 = vld [vmem:[%s1 + $0x8] sm:$0xff]
      %v2625 = vld [vmem:[%s1 + $0x10] sm:$0xff]
      %v2626 = vld [vmem:[%s1 + $0x18] sm:$0xff]
      %v2627 = vld [vmem:[%s1 + $0x20] sm:$0xff]
      %v2628 = vld [vmem:[%s1 + $0x28] sm:$0xff]
      %v2629 = vld [vmem:[%s1 + $0x30] sm:$0xff]
      %v2630 = vld [vmem:[%s1 + $0x38] sm:$0xff]
      %v2663 = vunpack.c.l.b16 %v2591
      %v2664 = vunpack.c.l.b16 %v2592
      %v2665 = vunpack.c.l.b16 %v2593
      %v2666 = vunpack.c.l.b16 %v2594
      %v2667 = vunpack.c.l.b16 %v2595
      %v2668 = vunpack.c.l.b16 %v2596
      %v2669 = vunpack.c.l.b16 %v2597
      %v2670 = vunpack.c.l.b16 %v2598
      %v2671 = vunpack.c.l.b16 %v2599
      %v2672 = vunpack.c.l.b16 %v2600
      %v2673 = vunpack.c.l.b16 %v2601
      %v2674 = vunpack.c.l.b16 %v2602
      %v2675 = vunpack.c.l.b16 %v2603
      %v2676 = vunpack.c.l.b16 %v2604
      %v2677 = vunpack.c.l.b16 %v2605
      %v2678 = vunpack.c.l.b16 %v2606
      %v2679 = vunpack.c.l.b16 %v2607
      %v2680 = vunpack.c.l.b16 %v2608
      %v2681 = vunpack.c.l.b16 %v2609
      %v2682 = vunpack.c.l.b16 %v2610
      %v2683 = vunpack.c.l.b16 %v2611
      %v2684 = vunpack.c.l.b16 %v2612
      %v2685 = vunpack.c.l.b16 %v2613
      %v2686 = vunpack.c.l.b16 %v2614
      %v2687 = vunpack.c.l.b16 %v2615
      %v2688 = vunpack.c.l.b16 %v2616
      %v2689 = vunpack.c.l.b16 %v2617
      %v2690 = vunpack.c.l.b16 %v2618
      %v2691 = vunpack.c.l.b16 %v2619
      %v2692 = vunpack.c.l.b16 %v2620
      %v2693 = vunpack.c.l.b16 %v2621
      %v2694 = vunpack.c.l.b16 %v2622
      %v2695 = vpack.c.b16 %v2664, %v2663
      %v2696 = vpack.c.b16 %v2666, %v2665
      %v2697 = vpack.c.b16 %v2668, %v2667
      %v2698 = vpack.c.b16 %v2670, %v2669
      %v2699 = vpack.c.b16 %v2672, %v2671
      %v2700 = vpack.c.b16 %v2674, %v2673
      %v2701 = vpack.c.b16 %v2676, %v2675
      %v2702 = vpack.c.b16 %v2678, %v2677
      %v2703 = vpack.c.b16 %v2680, %v2679
      %v2704 = vpack.c.b16 %v2682, %v2681
      %v2705 = vpack.c.b16 %v2684, %v2683
      %v2706 = vpack.c.b16 %v2686, %v2685
      %v2707 = vpack.c.b16 %v2688, %v2687
      %v2708 = vpack.c.b16 %v2690, %v2689
      %v2709 = vpack.c.b16 %v2692, %v2691
      %v2710 = vpack.c.b16 %v2694, %v2693
      %v2719 = vunpack.c.l.b16 %v2623
      %v2720 = vunpack.c.h.b16 %v2623
      %v2721 = vunpack.c.l.b16 %v2624
      %v2722 = vunpack.c.h.b16 %v2624
      %v2723 = vunpack.c.l.b16 %v2625
      %v2724 = vunpack.c.h.b16 %v2625
      %v2725 = vunpack.c.l.b16 %v2626
      %v2726 = vunpack.c.h.b16 %v2626
      %v2727 = vunpack.c.l.b16 %v2627
      %v2728 = vunpack.c.h.b16 %v2627
      %v2729 = vunpack.c.l.b16 %v2628
      %v2730 = vunpack.c.h.b16 %v2628
      %v2731 = vunpack.c.l.b16 %v2629
      %v2732 = vunpack.c.h.b16 %v2629
      %v2733 = vunpack.c.l.b16 %v2630
      %v2734 = vunpack.c.h.b16 %v2630
      %v2735 = vpack.c.b16 %v2723, %v2719
      %v2736 = vpack.c.b16 %v2724, %v2720
      %v2737 = vpack.c.b16 %v2725, %v2721
      %v2738 = vpack.c.b16 %v2726, %v2722
      %v2739 = vpack.c.b16 %v2731, %v2727
      %v2740 = vpack.c.b16 %v2732, %v2728
      %v2741 = vpack.c.b16 %v2733, %v2729
      %v2742 = vpack.c.b16 %v2734, %v2730
      %v2752 = vsel %vm573, %v2695, 0
      %v2755 = vsel %vm573, %v2696, 0
      %v2758 = vsel %vm573, %v2697, 0
      %v2761 = vsel %vm573, %v2698, 0
      %v2764 = vsel %vm573, %v2699, 0
      %v2767 = vsel %vm573, %v2700, 0
      %v2770 = vsel %vm573, %v2701, 0
      %v2773 = vsel %vm573, %v2702, 0
      %v2776 = vsel %vm573, %v2703, 0
      %v2779 = vsel %vm573, %v2704, 0
      %v2782 = vsel %vm573, %v2705, 0
      %v2785 = vsel %vm573, %v2706, 0
      %v2788 = vsel %vm573, %v2707, 0
      %v2791 = vsel %vm573, %v2708, 0
      %v2794 = vsel %vm573, %v2709, 0
      %v2797 = vsel %vm573, %v2710, 0
      %2799 = vmatprep.subr.bf16.mxu0 %v2736
      %2800 = vmatpush1.bf16.msra.mxu0 %v2735
      %2801 = vmatprep.subr.bf16.mxu0 %v2740
      %2802 = vmatpush1.bf16.msra.mxu0 %v2739
      %2803 = vmatprep.subr.bf16.mxu0 0
      %2804 = vmatpush1.bf16.msra.mxu0 0
      %2805 = vmatprep.subr.bf16.mxu0 0
      %2806 = vmatpush1.bf16.msra.mxu0 0
      %2807 = vmatprep.subr.bf16.mxu0 0
      %2808 = vmatpush1.bf16.msra.mxu0 0
      %2809 = vmatprep.subr.bf16.mxu0 0
      %2810 = vmatpush1.bf16.msra.mxu0 0
      %2811 = vmatprep.subr.bf16.mxu0 0
      %2812 = vmatpush1.bf16.msra.mxu0 0
      %2813 = vmatprep.subr.bf16.mxu0 0
      %2814 = vmatpush1.bf16.msra.mxu0 0
      %2815 = vmatprep.subr.bf16.mxu0 0
      %2816 = vmatpush1.bf16.msra.mxu0 0
      %2817 = vmatprep.subr.bf16.mxu0 0
      %2818 = vmatpush1.bf16.msra.mxu0 0
      %2819 = vmatprep.subr.bf16.mxu0 0
      %2820 = vmatpush1.bf16.msra.mxu0 0
      %2821 = vmatprep.subr.bf16.mxu0 0
      %2822 = vmatpush1.bf16.msra.mxu0 0
      %2823 = vmatprep.subr.bf16.mxu0 0
      %2824 = vmatpush1.bf16.msra.mxu0 0
      %2825 = vmatprep.subr.bf16.mxu0 0
      %2826 = vmatpush1.bf16.msra.mxu0 0
      %2827 = vmatprep.subr.bf16.mxu0 0
      %2828 = vmatpush1.bf16.msra.mxu0 0
      %2829 = vmatprep.subr.bf16.mxu0 0
      %2830 = vmatpush1.bf16.msra.mxu0 0
      %2831 = vmatprep.mubr.bf16.mxu0 0
      %2832 = vmatmul.mubr.bf16.gmra.mrb[0].mxu0 %v2752
      %v2833 = vpop.f32.mrb[0].mxu0
      %v2834 = vadd.f32 0.0, %v2833
      %v2835 = vpop.f32.mrb[0].mxu0
      %v2836 = vadd.f32 0.0, %v2835
      %v2837 = vpop.f32.mrb[0].mxu0
      %v2838 = vadd.f32 0.0, %v2837
      %v2839 = vpop.f32.mrb[0].mxu0
      %v2840 = vadd.f32 0.0, %v2839
      %2841 = vmatprep.mubr.bf16.mxu0 0
      %2842 = vmatmul.mubr.bf16.gmra.mrb[0].mxu0 %v2755
      %v2843 = vpop.f32.mrb[0].mxu0
      %v2844 = vadd.f32 0.0, %v2843
      %v2845 = vpop.f32.mrb[0].mxu0
      %v2846 = vadd.f32 0.0, %v2845
      %v2847 = vpop.f32.mrb[0].mxu0
      %v2848 = vadd.f32 0.0, %v2847
      %v2849 = vpop.f32.mrb[0].mxu0
      %v2850 = vadd.f32 0.0, %v2849
      %2851 = vmatprep.mubr.bf16.mxu0 0
      %2852 = vmatmul.mubr.bf16.gmra.mrb[0].mxu0 %v2758
      %v2853 = vpop.f32.mrb[0].mxu0
      %v2854 = vadd.f32 0.0, %v2853
      %v2855 = vpop.f32.mrb[0].mxu0
      %v2856 = vadd.f32 0.0, %v2855
      %v2857 = vpop.f32.mrb[0].mxu0
      %v2858 = vadd.f32 0.0, %v2857
      %v2859 = vpop.f32.mrb[0].mxu0
      %v2860 = vadd.f32 0.0, %v2859
      %2861 = vmatprep.mubr.bf16.mxu0 0
      %2862 = vmatmul.mubr.bf16.gmra.mrb[0].mxu0 %v2761
      %v2863 = vpop.f32.mrb[0].mxu0
      %v2864 = vadd.f32 0.0, %v2863
      %v2865 = vpop.f32.mrb[0].mxu0
      %v2866 = vadd.f32 0.0, %v2865
      %v2867 = vpop.f32.mrb[0].mxu0
      %v2868 = vadd.f32 0.0, %v2867
      %v2869 = vpop.f32.mrb[0].mxu0
      %v2870 = vadd.f32 0.0, %v2869
      %2871 = vmatprep.mubr.bf16.mxu0 0
      %2872 = vmatmul.mubr.bf16.gmra.mrb[0].mxu0 %v2764
      %v2873 = vpop.f32.mrb[0].mxu0
      %v2874 = vadd.f32 0.0, %v2873
      %v2875 = vpop.f32.mrb[0].mxu0
      %v2876 = vadd.f32 0.0, %v2875
      %v2877 = vpop.f32.mrb[0].mxu0
      %v2878 = vadd.f32 0.0, %v2877
      %v2879 = vpop.f32.mrb[0].mxu0
      %v2880 = vadd.f32 0.0, %v2879
      %2881 = vmatprep.mubr.bf16.mxu0 0
      %2882 = vmatmul.mubr.bf16.gmra.mrb[0].mxu0 %v2767
      %v2883 = vpop.f32.mrb[0].mxu0
      %v2884 = vadd.f32 0.0, %v2883
      %v2885 = vpop.f32.mrb[0].mxu0
      %v2886 = vadd.f32 0.0, %v2885
      %v2887 = vpop.f32.mrb[0].mxu0
      %v2888 = vadd.f32 0.0, %v2887
      %v2889 = vpop.f32.mrb[0].mxu0
      %v2890 = vadd.f32 0.0, %v2889
      %2891 = vmatprep.mubr.bf16.mxu0 0
      %2892 = vmatmul.mubr.bf16.gmra.mrb[0].mxu0 %v2770
      %v2893 = vpop.f32.mrb[0].mxu0
      %v2894 = vadd.f32 0.0, %v2893
      %v2895 = vpop.f32.mrb[0].mxu0
      %v2896 = vadd.f32 0.0, %v2895
      %v2897 = vpop.f32.mrb[0].mxu0
      %v2898 = vadd.f32 0.0, %v2897
      %v2899 = vpop.f32.mrb[0].mxu0
      %v2900 = vadd.f32 0.0, %v2899
      %2901 = vmatprep.mubr.bf16.mxu0 0
      %2902 = vmatmul.mubr.bf16.gmra.mrb[0].mxu0 %v2773
      %v2903 = vpop.f32.mrb[0].mxu0
      %v2904 = vadd.f32 0.0, %v2903
      %v2905 = vpop.f32.mrb[0].mxu0
      %v2906 = vadd.f32 0.0, %v2905
      %v2907 = vpop.f32.mrb[0].mxu0
      %v2908 = vadd.f32 0.0, %v2907
      %v2909 = vpop.f32.mrb[0].mxu0
      %v2910 = vadd.f32 0.0, %v2909
      %2911 = vmatprep.mubr.bf16.mxu0 0
      %2912 = vmatmul.mubr.bf16.gmra.mrb[0].mxu0 %v2776
      %v2913 = vpop.f32.mrb[0].mxu0
      %v2914 = vadd.f32 0.0, %v2913
      %v2915 = vpop.f32.mrb[0].mxu0
      %v2916 = vadd.f32 0.0, %v2915
      %v2917 = vpop.f32.mrb[0].mxu0
      %v2918 = vadd.f32 0.0, %v2917
      %v2919 = vpop.f32.mrb[0].mxu0
      %v2920 = vadd.f32 0.0, %v2919
      %2921 = vmatprep.mubr.bf16.mxu0 0
      %2922 = vmatmul.mubr.bf16.gmra.mrb[0].mxu0 %v2779
      %v2923 = vpop.f32.mrb[0].mxu0
      %v2924 = vadd.f32 0.0, %v2923
      %v2925 = vpop.f32.mrb[0].mxu0
      %v2926 = vadd.f32 0.0, %v2925
      %v2927 = vpop.f32.mrb[0].mxu0
      %v2928 = vadd.f32 0.0, %v2927
      %v2929 = vpop.f32.mrb[0].mxu0
      %v2930 = vadd.f32 0.0, %v2929
      %2931 = vmatprep.mubr.bf16.mxu0 0
      %2932 = vmatmul.mubr.bf16.gmra.mrb[0].mxu0 %v2782
      %v2933 = vpop.f32.mrb[0].mxu0
      %v2934 = vadd.f32 0.0, %v2933
      %v2935 = vpop.f32.mrb[0].mxu0
      %v2936 = vadd.f32 0.0, %v2935
      %v2937 = vpop.f32.mrb[0].mxu0
      %v2938 = vadd.f32 0.0, %v2937
      %v2939 = vpop.f32.mrb[0].mxu0
      %v2940 = vadd.f32 0.0, %v2939
      %2941 = vmatprep.mubr.bf16.mxu0 0
      %2942 = vmatmul.mubr.bf16.gmra.mrb[0].mxu0 %v2785
      %v2943 = vpop.f32.mrb[0].mxu0
      %v2944 = vadd.f32 0.0, %v2943
      %v2945 = vpop.f32.mrb[0].mxu0
      %v2946 = vadd.f32 0.0, %v2945
      %v2947 = vpop.f32.mrb[0].mxu0
      %v2948 = vadd.f32 0.0, %v2947
      %v2949 = vpop.f32.mrb[0].mxu0
      %v2950 = vadd.f32 0.0, %v2949
      %2951 = vmatprep.mubr.bf16.mxu0 0
      %2952 = vmatmul.mubr.bf16.gmra.mrb[0].mxu0 %v2788
      %v2953 = vpop.f32.mrb[0].mxu0
      %v2954 = vadd.f32 0.0, %v2953
      %v2955 = vpop.f32.mrb[0].mxu0
      %v2956 = vadd.f32 0.0, %v2955
      %v2957 = vpop.f32.mrb[0].mxu0
      %v2958 = vadd.f32 0.0, %v2957
      %v2959 = vpop.f32.mrb[0].mxu0
      %v2960 = vadd.f32 0.0, %v2959
      %2961 = vmatprep.mubr.bf16.mxu0 0
      %2962 = vmatmul.mubr.bf16.gmra.mrb[0].mxu0 %v2791
      %v2963 = vpop.f32.mrb[0].mxu0
      %v2964 = vadd.f32 0.0, %v2963
      %v2965 = vpop.f32.mrb[0].mxu0
      %v2966 = vadd.f32 0.0, %v2965
      %v2967 = vpop.f32.mrb[0].mxu0
      %v2968 = vadd.f32 0.0, %v2967
      %v2969 = vpop.f32.mrb[0].mxu0
      %v2970 = vadd.f32 0.0, %v2969
      %2971 = vmatprep.mubr.bf16.mxu0 0
      %2972 = vmatmul.mubr.bf16.gmra.mrb[0].mxu0 %v2794
      %v2973 = vpop.f32.mrb[0].mxu0
      %v2974 = vadd.f32 0.0, %v2973
      %v2975 = vpop.f32.mrb[0].mxu0
      %v2976 = vadd.f32 0.0, %v2975
      %v2977 = vpop.f32.mrb[0].mxu0
      %v2978 = vadd.f32 0.0, %v2977
      %v2979 = vpop.f32.mrb[0].mxu0
      %v2980 = vadd.f32 0.0, %v2979
      %2981 = vmatprep.mubr.bf16.mxu0 0
      %2982 = vmatmul.mubr.bf16.gmra.mrb[0].mxu0 %v2797
      %v2983 = vpop.f32.mrb[0].mxu0
      %v2984 = vadd.f32 0.0, %v2983
      %v2985 = vpop.f32.mrb[0].mxu0
      %v2986 = vadd.f32 0.0, %v2985
      %v2987 = vpop.f32.mrb[0].mxu0
      %v2988 = vadd.f32 0.0, %v2987
      %v2989 = vpop.f32.mrb[0].mxu0
      %v2990 = vadd.f32 0.0, %v2989
      %2991 = vdwg.mxu0
      %2992 = vmatprep.subr.bf16.mxu0 %v2738
      %2993 = vmatpush1.bf16.msra.mxu0 %v2737
      %2994 = vmatprep.subr.bf16.mxu0 %v2742
      %2995 = vmatpush1.bf16.msra.mxu0 %v2741
      %2996 = vmatprep.subr.bf16.mxu0 0
      %2997 = vmatpush1.bf16.msra.mxu0 0
      %2998 = vmatprep.subr.bf16.mxu0 0
      %2999 = vmatpush1.bf16.msra.mxu0 0
      %3000 = vmatprep.subr.bf16.mxu0 0
      %3001 = vmatpush1.bf16.msra.mxu0 0
      %3002 = vmatprep.subr.bf16.mxu0 0
      %3003 = vmatpush1.bf16.msra.mxu0 0
      %3004 = vmatprep.subr.bf16.mxu0 0
      %3005 = vmatpush1.bf16.msra.mxu0 0
      %3006 = vmatprep.subr.bf16.mxu0 0
      %3007 = vmatpush1.bf16.msra.mxu0 0
      %3008 = vmatprep.subr.bf16.mxu0 0
      %3009 = vmatpush1.bf16.msra.mxu0 0
      %3010 = vmatprep.subr.bf16.mxu0 0
      %3011 = vmatpush1.bf16.msra.mxu0 0
      %3012 = vmatprep.subr.bf16.mxu0 0
      %3013 = vmatpush1.bf16.msra.mxu0 0
      %3014 = vmatprep.subr.bf16.mxu0 0
      %3015 = vmatpush1.bf16.msra.mxu0 0
      %3016 = vmatprep.subr.bf16.mxu0 0
      %3017 = vmatpush1.bf16.msra.mxu0 0
      %3018 = vmatprep.subr.bf16.mxu0 0
      %3019 = vmatpush1.bf16.msra.mxu0 0
      %3020 = vmatprep.subr.bf16.mxu0 0
      %3021 = vmatpush1.bf16.msra.mxu0 0
      %3022 = vmatprep.subr.bf16.mxu0 0
      %3023 = vmatpush1.bf16.msra.mxu0 0
      %3024 = vmatprep.mubr.bf16.mxu0 0
      %3025 = vmatmul.mubr.bf16.gmra.mrb[0].mxu0 %v2752
      %v3026 = vpop.f32.mrb[0].mxu0
      %v3027 = vadd.f32 0.0, %v3026
      %v3028 = vpop.f32.mrb[0].mxu0
      %v3029 = vadd.f32 0.0, %v3028
      %v3030 = vpop.f32.mrb[0].mxu0
      %v3031 = vadd.f32 0.0, %v3030
      %v3032 = vpop.f32.mrb[0].mxu0
      %v3033 = vadd.f32 0.0, %v3032
      %3034 = vmatprep.mubr.bf16.mxu0 0
      %3035 = vmatmul.mubr.bf16.gmra.mrb[0].mxu0 %v2755
      %v3036 = vpop.f32.mrb[0].mxu0
      %v3037 = vadd.f32 0.0, %v3036
      %v3038 = vpop.f32.mrb[0].mxu0
      %v3039 = vadd.f32 0.0, %v3038
      %v3040 = vpop.f32.mrb[0].mxu0
      %v3041 = vadd.f32 0.0, %v3040
      %v3042 = vpop.f32.mrb[0].mxu0
      %v3043 = vadd.f32 0.0, %v3042
      %3044 = vmatprep.mubr.bf16.mxu0 0
      %3045 = vmatmul.mubr.bf16.gmra.mrb[0].mxu0 %v2758
      %v3046 = vpop.f32.mrb[0].mxu0
      %v3047 = vadd.f32 0.0, %v3046
      %v3048 = vpop.f32.mrb[0].mxu0
      %v3049 = vadd.f32 0.0, %v3048
      %v3050 = vpop.f32.mrb[0].mxu0
      %v3051 = vadd.f32 0.0, %v3050
      %v3052 = vpop.f32.mrb[0].mxu0
      %v3053 = vadd.f32 0.0, %v3052
      %3054 = vmatprep.mubr.bf16.mxu0 0
      %3055 = vmatmul.mubr.bf16.gmra.mrb[0].mxu0 %v2761
      %v3056 = vpop.f32.mrb[0].mxu0
      %v3057 = vadd.f32 0.0, %v3056
      %v3058 = vpop.f32.mrb[0].mxu0
      %v3059 = vadd.f32 0.0, %v3058
      %v3060 = vpop.f32.mrb[0].mxu0
      %v3061 = vadd.f32 0.0, %v3060
      %v3062 = vpop.f32.mrb[0].mxu0
      %v3063 = vadd.f32 0.0, %v3062
      %3064 = vmatprep.mubr.bf16.mxu0 0
      %3065 = vmatmul.mubr.bf16.gmra.mrb[0].mxu0 %v2764
      %v3066 = vpop.f32.mrb[0].mxu0
      %v3067 = vadd.f32 0.0, %v3066
      %v3068 = vpop.f32.mrb[0].mxu0
      %v3069 = vadd.f32 0.0, %v3068
      %v3070 = vpop.f32.mrb[0].mxu0
      %v3071 = vadd.f32 0.0, %v3070
      %v3072 = vpop.f32.mrb[0].mxu0
      %v3073 = vadd.f32 0.0, %v3072
      %3074 = vmatprep.mubr.bf16.mxu0 0
      %3075 = vmatmul.mubr.bf16.gmra.mrb[0].mxu0 %v2767
      %v3076 = vpop.f32.mrb[0].mxu0
      %v3077 = vadd.f32 0.0, %v3076
      %v3078 = vpop.f32.mrb[0].mxu0
      %v3079 = vadd.f32 0.0, %v3078
      %v3080 = vpop.f32.mrb[0].mxu0
      %v3081 = vadd.f32 0.0, %v3080
      %v3082 = vpop.f32.mrb[0].mxu0
      %v3083 = vadd.f32 0.0, %v3082
      %3084 = vmatprep.mubr.bf16.mxu0 0
      %3085 = vmatmul.mubr.bf16.gmra.mrb[0].mxu0 %v2770
      %v3086 = vpop.f32.mrb[0].mxu0
      %v3087 = vadd.f32 0.0, %v3086
      %v3088 = vpop.f32.mrb[0].mxu0
      %v3089 = vadd.f32 0.0, %v3088
      %v3090 = vpop.f32.mrb[0].mxu0
      %v3091 = vadd.f32 0.0, %v3090
      %v3092 = vpop.f32.mrb[0].mxu0
      %v3093 = vadd.f32 0.0, %v3092
      %3094 = vmatprep.mubr.bf16.mxu0 0
      %3095 = vmatmul.mubr.bf16.gmra.mrb[0].mxu0 %v2773
      %v3096 = vpop.f32.mrb[0].mxu0
      %v3097 = vadd.f32 0.0, %v3096
      %v3098 = vpop.f32.mrb[0].mxu0
      %v3099 = vadd.f32 0.0, %v3098
      %v3100 = vpop.f32.mrb[0].mxu0
      %v3101 = vadd.f32 0.0, %v3100
      %v3102 = vpop.f32.mrb[0].mxu0
      %v3103 = vadd.f32 0.0, %v3102
      %3104 = vmatprep.mubr.bf16.mxu0 0
      %3105 = vmatmul.mubr.bf16.gmra.mrb[0].mxu0 %v2776
      %v3106 = vpop.f32.mrb[0].mxu0
      %v3107 = vadd.f32 0.0, %v3106
      %v3108 = vpop.f32.mrb[0].mxu0
      %v3109 = vadd.f32 0.0, %v3108
      %v3110 = vpop.f32.mrb[0].mxu0
      %v3111 = vadd.f32 0.0, %v3110
      %v3112 = vpop.f32.mrb[0].mxu0
      %v3113 = vadd.f32 0.0, %v3112
      %3114 = vmatprep.mubr.bf16.mxu0 0
      %3115 = vmatmul.mubr.bf16.gmra.mrb[0].mxu0 %v2779
      %v3116 = vpop.f32.mrb[0].mxu0
      %v3117 = vadd.f32 0.0, %v3116
      %v3118 = vpop.f32.mrb[0].mxu0
      %v3119 = vadd.f32 0.0, %v3118
      %v3120 = vpop.f32.mrb[0].mxu0
      %v3121 = vadd.f32 0.0, %v3120
      %v3122 = vpop.f32.mrb[0].mxu0
      %v3123 = vadd.f32 0.0, %v3122
      %3124 = vmatprep.mubr.bf16.mxu0 0
      %3125 = vmatmul.mubr.bf16.gmra.mrb[0].mxu0 %v2782
      %v3126 = vpop.f32.mrb[0].mxu0
      %v3127 = vadd.f32 0.0, %v3126
      %v3128 = vpop.f32.mrb[0].mxu0
      %v3129 = vadd.f32 0.0, %v3128
      %v3130 = vpop.f32.mrb[0].mxu0
      %v3131 = vadd.f32 0.0, %v3130
      %v3132 = vpop.f32.mrb[0].mxu0
      %v3133 = vadd.f32 0.0, %v3132
      %3134 = vmatprep.mubr.bf16.mxu0 0
      %3135 = vmatmul.mubr.bf16.gmra.mrb[0].mxu0 %v2785
      %v3136 = vpop.f32.mrb[0].mxu0
      %v3137 = vadd.f32 0.0, %v3136
      %v3138 = vpop.f32.mrb[0].mxu0
      %v3139 = vadd.f32 0.0, %v3138
      %v3140 = vpop.f32.mrb[0].mxu0
      %v3141 = vadd.f32 0.0, %v3140
      %v3142 = vpop.f32.mrb[0].mxu0
      %v3143 = vadd.f32 0.0, %v3142
      %3144 = vmatprep.mubr.bf16.mxu0 0
      %3145 = vmatmul.mubr.bf16.gmra.mrb[0].mxu0 %v2788
      %v3146 = vpop.f32.mrb[0].mxu0
      %v3147 = vadd.f32 0.0, %v3146
      %v3148 = vpop.f32.mrb[0].mxu0
      %v3149 = vadd.f32 0.0, %v3148
      %v3150 = vpop.f32.mrb[0].mxu0
      %v3151 = vadd.f32 0.0, %v3150
      %v3152 = vpop.f32.mrb[0].mxu0
      %v3153 = vadd.f32 0.0, %v3152
      %3154 = vmatprep.mubr.bf16.mxu0 0
      %3155 = vmatmul.mubr.bf16.gmra.mrb[0].mxu0 %v2791
      %v3156 = vpop.f32.mrb[0].mxu0
      %v3157 = vadd.f32 0.0, %v3156
      %v3158 = vpop.f32.mrb[0].mxu0
      %v3159 = vadd.f32 0.0, %v3158
      %v3160 = vpop.f32.mrb[0].mxu0
      %v3161 = vadd.f32 0.0, %v3160
      %v3162 = vpop.f32.mrb[0].mxu0
      %v3163 = vadd.f32 0.0, %v3162
      %3164 = vmatprep.mubr.bf16.mxu0 0
      %3165 = vmatmul.mubr.bf16.gmra.mrb[0].mxu0 %v2794
      %v3166 = vpop.f32.mrb[0].mxu0
      %v3167 = vadd.f32 0.0, %v3166
      %v3168 = vpop.f32.mrb[0].mxu0
      %v3169 = vadd.f32 0.0, %v3168
      %v3170 = vpop.f32.mrb[0].mxu0
      %v3171 = vadd.f32 0.0, %v3170
      %v3172 = vpop.f32.mrb[0].mxu0
      %v3173 = vadd.f32 0.0, %v3172
      %3174 = vmatprep.mubr.bf16.mxu0 0
      %3175 = vmatmul.mubr.bf16.gmra.mrb[0].mxu0 %v2797
      %v3176 = vpop.f32.mrb[0].mxu0
      %v3177 = vadd.f32 0.0, %v3176
      %v3178 = vpop.f32.mrb[0].mxu0
      %v3179 = vadd.f32 0.0, %v3178
      %v3180 = vpop.f32.mrb[0].mxu0
      %v3181 = vadd.f32 0.0, %v3180
      %v3182 = vpop.f32.mrb[0].mxu0
      %v3183 = vadd.f32 0.0, %v3182
      %3184 = vdwg.mxu0
      %v3185 = vmax.f32 %v2834, 0.0
      %v3186 = vmax.f32 %v2836, 0.0
      %v3187 = vmax.f32 %v3027, 0.0
      %v3188 = vmax.f32 %v3029, 0.0
      %v3189 = vmax.f32 %v2838, 0.0
      %v3190 = vmax.f32 %v2840, 0.0
      %v3191 = vmax.f32 %v3031, 0.0
      %v3192 = vmax.f32 %v3033, 0.0
      %v3193 = vmax.f32 %v2844, 0.0
      %v3194 = vmax.f32 %v2846, 0.0
      %v3195 = vmax.f32 %v3037, 0.0
      %v3196 = vmax.f32 %v3039, 0.0
      %v3197 = vmax.f32 %v2848, 0.0
      %v3198 = vmax.f32 %v2850, 0.0
      %v3199 = vmax.f32 %v3041, 0.0
      %v3200 = vmax.f32 %v3043, 0.0
      %v3201 = vmax.f32 %v2854, 0.0
      %v3202 = vmax.f32 %v2856, 0.0
      %v3203 = vmax.f32 %v3047, 0.0
      %v3204 = vmax.f32 %v3049, 0.0
      %v3205 = vmax.f32 %v2858, 0.0
      %v3206 = vmax.f32 %v2860, 0.0
      %v3207 = vmax.f32 %v3051, 0.0
      %v3208 = vmax.f32 %v3053, 0.0
      %v3209 = vmax.f32 %v2864, 0.0
      %v3210 = vmax.f32 %v2866, 0.0
      %v3211 = vmax.f32 %v3057, 0.0
      %v3212 = vmax.f32 %v3059, 0.0
      %v3213 = vmax.f32 %v2868, 0.0
      %v3214 = vmax.f32 %v2870, 0.0
      %v3215 = vmax.f32 %v3061, 0.0
      %v3216 = vmax.f32 %v3063, 0.0
      %v3217 = vmax.f32 %v2874, 0.0
      %v3218 = vmax.f32 %v2876, 0.0
      %v3219 = vmax.f32 %v3067, 0.0
      %v3220 = vmax.f32 %v3069, 0.0
      %v3221 = vmax.f32 %v2878, 0.0
      %v3222 = vmax.f32 %v2880, 0.0
      %v3223 = vmax.f32 %v3071, 0.0
      %v3224 = vmax.f32 %v3073, 0.0
      %v3225 = vmax.f32 %v2884, 0.0
      %v3226 = vmax.f32 %v2886, 0.0
      %v3227 = vmax.f32 %v3077, 0.0
      %v3228 = vmax.f32 %v3079, 0.0
      %v3229 = vmax.f32 %v2888, 0.0
      %v3230 = vmax.f32 %v2890, 0.0
      %v3231 = vmax.f32 %v3081, 0.0
      %v3232 = vmax.f32 %v3083, 0.0
      %v3233 = vmax.f32 %v2894, 0.0
      %v3234 = vmax.f32 %v2896, 0.0
      %v3235 = vmax.f32 %v3087, 0.0
      %v3236 = vmax.f32 %v3089, 0.0
      %v3237 = vmax.f32 %v2898, 0.0
      %v3238 = vmax.f32 %v2900, 0.0
      %v3239 = vmax.f32 %v3091, 0.0
      %v3240 = vmax.f32 %v3093, 0.0
      %v3241 = vmax.f32 %v2904, 0.0
      %v3242 = vmax.f32 %v2906, 0.0
      %v3243 = vmax.f32 %v3097, 0.0
      %v3244 = vmax.f32 %v3099, 0.0
      %v3245 = vmax.f32 %v2908, 0.0
      %v3246 = vmax.f32 %v2910, 0.0
      %v3247 = vmax.f32 %v3101, 0.0
      %v3248 = vmax.f32 %v3103, 0.0
      %v3249 = vmax.f32 %v2914, 0.0
      %v3250 = vmax.f32 %v2916, 0.0
      %v3251 = vmax.f32 %v3107, 0.0
      %v3252 = vmax.f32 %v3109, 0.0
      %v3253 = vmax.f32 %v2918, 0.0
      %v3254 = vmax.f32 %v2920, 0.0
      %v3255 = vmax.f32 %v3111, 0.0
      %v3256 = vmax.f32 %v3113, 0.0
      %v3257 = vmax.f32 %v2924, 0.0
      %v3258 = vmax.f32 %v2926, 0.0
      %v3259 = vmax.f32 %v3117, 0.0
      %v3260 = vmax.f32 %v3119, 0.0
      %v3261 = vmax.f32 %v2928, 0.0
      %v3262 = vmax.f32 %v2930, 0.0
      %v3263 = vmax.f32 %v3121, 0.0
      %v3264 = vmax.f32 %v3123, 0.0
      %v3265 = vmax.f32 %v2934, 0.0
      %v3266 = vmax.f32 %v2936, 0.0
      %v3267 = vmax.f32 %v3127, 0.0
      %v3268 = vmax.f32 %v3129, 0.0
      %v3269 = vmax.f32 %v2938, 0.0
      %v3270 = vmax.f32 %v2940, 0.0
      %v3271 = vmax.f32 %v3131, 0.0
      %v3272 = vmax.f32 %v3133, 0.0
      %v3273 = vmax.f32 %v2944, 0.0
      %v3274 = vmax.f32 %v2946, 0.0
      %v3275 = vmax.f32 %v3137, 0.0
      %v3276 = vmax.f32 %v3139, 0.0
      %v3277 = vmax.f32 %v2948, 0.0
      %v3278 = vmax.f32 %v2950, 0.0
      %v3279 = vmax.f32 %v3141, 0.0
      %v3280 = vmax.f32 %v3143, 0.0
      %v3281 = vmax.f32 %v2954, 0.0
      %v3282 = vmax.f32 %v2956, 0.0
      %v3283 = vmax.f32 %v3147, 0.0
      %v3284 = vmax.f32 %v3149, 0.0
      %v3285 = vmax.f32 %v2958, 0.0
      %v3286 = vmax.f32 %v2960, 0.0
      %v3287 = vmax.f32 %v3151, 0.0
      %v3288 = vmax.f32 %v3153, 0.0
      %v3289 = vmax.f32 %v2964, 0.0
      %v3290 = vmax.f32 %v2966, 0.0
      %v3291 = vmax.f32 %v3157, 0.0
      %v3292 = vmax.f32 %v3159, 0.0
      %v3293 = vmax.f32 %v2968, 0.0
      %v3294 = vmax.f32 %v2970, 0.0
      %v3295 = vmax.f32 %v3161, 0.0
      %v3296 = vmax.f32 %v3163, 0.0
      %v3297 = vmax.f32 %v2974, 0.0
      %v3298 = vmax.f32 %v2976, 0.0
      %v3299 = vmax.f32 %v3167, 0.0
      %v3300 = vmax.f32 %v3169, 0.0
      %v3301 = vmax.f32 %v2978, 0.0
      %v3302 = vmax.f32 %v2980, 0.0
      %v3303 = vmax.f32 %v3171, 0.0
      %v3304 = vmax.f32 %v3173, 0.0
      %v3305 = vmax.f32 %v2984, 0.0
      %v3306 = vmax.f32 %v2986, 0.0
      %v3307 = vmax.f32 %v3177, 0.0
      %v3308 = vmax.f32 %v3179, 0.0
      %v3309 = vmax.f32 %v2988, 0.0
      %v3310 = vmax.f32 %v2990, 0.0
      %v3311 = vmax.f32 %v3181, 0.0
      %v3312 = vmax.f32 %v3183, 0.0
      %v3313 = vmax.f32 %v3185, %v3189
      %v3314 = vmax.f32 %v3313, %v3193
      %v3315 = vmax.f32 %v3314, %v3197
      %v3316 = vmax.f32 %v3315, %v3201
      %v3317 = vmax.f32 %v3316, %v3205
      %v3318 = vmax.f32 %v3317, %v3209
      %v3319 = vmax.f32 %v3318, %v3213
      %v3320 = vmax.f32 %v3319, %v3217
      %v3321 = vmax.f32 %v3320, %v3221
      %v3322 = vmax.f32 %v3321, %v3225
      %v3323 = vmax.f32 %v3322, %v3229
      %v3324 = vmax.f32 %v3323, %v3233
      %v3325 = vmax.f32 %v3324, %v3237
      %v3326 = vmax.f32 %v3325, %v3241
      %v3327 = vmax.f32 %v3326, %v3245
      %v3328 = vmax.f32 %v3327, %v3249
      %v3329 = vmax.f32 %v3328, %v3253
      %v3330 = vmax.f32 %v3329, %v3257
      %v3331 = vmax.f32 %v3330, %v3261
      %v3332 = vmax.f32 %v3331, %v3265
      %v3333 = vmax.f32 %v3332, %v3269
      %v3334 = vmax.f32 %v3333, %v3273
      %v3335 = vmax.f32 %v3334, %v3277
      %v3336 = vmax.f32 %v3335, %v3281
      %v3337 = vmax.f32 %v3336, %v3285
      %v3338 = vmax.f32 %v3337, %v3289
      %v3339 = vmax.f32 %v3338, %v3293
      %v3340 = vmax.f32 %v3339, %v3297
      %v3341 = vmax.f32 %v3340, %v3301
      %v3342 = vmax.f32 %v3341, %v3305
      %v3343 = vmax.f32 %v3342, %v3309
      %v3344 = vrot.slane %v3343, 4
      %v3345 = vmax.f32 %v3343, %v3344
      %v3346 = vrot.slane %v3345, 2
      %v3347 = vmax.f32 %v3345, %v3346
      %v3348 = vrot.slane %v3347, 1
      %v3349 = vmax.f32 %v3347, %v3348
      %v3350 = vmax.f32 %v3186, %v3190
      %v3351 = vmax.f32 %v3350, %v3194
      %v3352 = vmax.f32 %v3351, %v3198
      %v3353 = vmax.f32 %v3352, %v3202
      %v3354 = vmax.f32 %v3353, %v3206
      %v3355 = vmax.f32 %v3354, %v3210
      %v3356 = vmax.f32 %v3355, %v3214
      %v3357 = vmax.f32 %v3356, %v3218
      %v3358 = vmax.f32 %v3357, %v3222
      %v3359 = vmax.f32 %v3358, %v3226
      %v3360 = vmax.f32 %v3359, %v3230
      %v3361 = vmax.f32 %v3360, %v3234
      %v3362 = vmax.f32 %v3361, %v3238
      %v3363 = vmax.f32 %v3362, %v3242
      %v3364 = vmax.f32 %v3363, %v3246
      %v3365 = vmax.f32 %v3364, %v3250
      %v3366 = vmax.f32 %v3365, %v3254
      %v3367 = vmax.f32 %v3366, %v3258
      %v3368 = vmax.f32 %v3367, %v3262
      %v3369 = vmax.f32 %v3368, %v3266
      %v3370 = vmax.f32 %v3369, %v3270
      %v3371 = vmax.f32 %v3370, %v3274
      %v3372 = vmax.f32 %v3371, %v3278
      %v3373 = vmax.f32 %v3372, %v3282
      %v3374 = vmax.f32 %v3373, %v3286
      %v3375 = vmax.f32 %v3374, %v3290
      %v3376 = vmax.f32 %v3375, %v3294
      %v3377 = vmax.f32 %v3376, %v3298
      %v3378 = vmax.f32 %v3377, %v3302
      %v3379 = vmax.f32 %v3378, %v3306
      %v3380 = vmax.f32 %v3379, %v3310
      %v3381 = vrot.slane %v3380, 4
      %v3382 = vmax.f32 %v3380, %v3381
      %v3383 = vrot.slane %v3382, 2
      %v3384 = vmax.f32 %v3382, %v3383
      %v3385 = vrot.slane %v3384, 1
      %v3386 = vmax.f32 %v3384, %v3385
      %v3387 = vmax.f32 %v3187, %v3191
      %v3388 = vmax.f32 %v3387, %v3195
      %v3389 = vmax.f32 %v3388, %v3199
      %v3390 = vmax.f32 %v3389, %v3203
      %v3391 = vmax.f32 %v3390, %v3207
      %v3392 = vmax.f32 %v3391, %v3211
      %v3393 = vmax.f32 %v3392, %v3215
      %v3394 = vmax.f32 %v3393, %v3219
      %v3395 = vmax.f32 %v3394, %v3223
      %v3396 = vmax.f32 %v3395, %v3227
      %v3397 = vmax.f32 %v3396, %v3231
      %v3398 = vmax.f32 %v3397, %v3235
      %v3399 = vmax.f32 %v3398, %v3239
      %v3400 = vmax.f32 %v3399, %v3243
      %v3401 = vmax.f32 %v3400, %v3247
      %v3402 = vmax.f32 %v3401, %v3251
      %v3403 = vmax.f32 %v3402, %v3255
      %v3404 = vmax.f32 %v3403, %v3259
      %v3405 = vmax.f32 %v3404, %v3263
      %v3406 = vmax.f32 %v3405, %v3267
      %v3407 = vmax.f32 %v3406, %v3271
      %v3408 = vmax.f32 %v3407, %v3275
      %v3409 = vmax.f32 %v3408, %v3279
      %v3410 = vmax.f32 %v3409, %v3283
      %v3411 = vmax.f32 %v3410, %v3287
      %v3412 = vmax.f32 %v3411, %v3291
      %v3413 = vmax.f32 %v3412, %v3295
      %v3414 = vmax.f32 %v3413, %v3299
      %v3415 = vmax.f32 %v3414, %v3303
      %v3416 = vmax.f32 %v3415, %v3307
      %v3417 = vmax.f32 %v3416, %v3311
      %v3418 = vrot.slane %v3417, 4
      %v3419 = vmax.f32 %v3417, %v3418
      %v3420 = vrot.slane %v3419, 2
      %v3421 = vmax.f32 %v3419, %v3420
      %v3422 = vrot.slane %v3421, 1
      %v3423 = vmax.f32 %v3421, %v3422
      %v3424 = vmax.f32 %v3188, %v3192
      %v3425 = vmax.f32 %v3424, %v3196
      %v3426 = vmax.f32 %v3425, %v3200
      %v3427 = vmax.f32 %v3426, %v3204
      %v3428 = vmax.f32 %v3427, %v3208
      %v3429 = vmax.f32 %v3428, %v3212
      %v3430 = vmax.f32 %v3429, %v3216
      %v3431 = vmax.f32 %v3430, %v3220
      %v3432 = vmax.f32 %v3431, %v3224
      %v3433 = vmax.f32 %v3432, %v3228
      %v3434 = vmax.f32 %v3433, %v3232
      %v3435 = vmax.f32 %v3434, %v3236
      %v3436 = vmax.f32 %v3435, %v3240
      %v3437 = vmax.f32 %v3436, %v3244
      %v3438 = vmax.f32 %v3437, %v3248
      %v3439 = vmax.f32 %v3438, %v3252
      %v3440 = vmax.f32 %v3439, %v3256
      %v3441 = vmax.f32 %v3440, %v3260
      %v3442 = vmax.f32 %v3441, %v3264
      %v3443 = vmax.f32 %v3442, %v3268
      %v3444 = vmax.f32 %v3443, %v3272
      %v3445 = vmax.f32 %v3444, %v3276
      %v3446 = vmax.f32 %v3445, %v3280
      %v3447 = vmax.f32 %v3446, %v3284
      %v3448 = vmax.f32 %v3447, %v3288
      %v3449 = vmax.f32 %v3448, %v3292
      %v3450 = vmax.f32 %v3449, %v3296
      %v3451 = vmax.f32 %v3450, %v3300
      %v3452 = vmax.f32 %v3451, %v3304
      %v3453 = vmax.f32 %v3452, %v3308
      %v3454 = vmax.f32 %v3453, %v3312
      %v3455 = vrot.slane %v3454, 4
      %v3456 = vmax.f32 %v3454, %v3455
      %v3457 = vrot.slane %v3456, 2
      %v3458 = vmax.f32 %v3456, %v3457
      %v3459 = vrot.slane %v3458, 1
      %v3460 = vmax.f32 %v3458, %v3459
      %v3465 = vcombine.low %v3349, %v3386
      %v3466 = vcombine.low %v3423, %v3460
      %v3468 = vunpack.c.l.s4 1966171168
      %v3469 = vunpack.c.0.s8 %v3468
      %v3470 = vlaneseq
      %v3471 = vshrl.u32 %v3470, 7
      %v3472 = vsub.s32 %v3469, %v3471
      %v3473 = vrot.slane %v3465, %v3472
      %v3475 = vunpack.c.l.s4 1966171168
      %v3476 = vunpack.c.0.s8 %v3475
      %v3477 = vlaneseq
      %v3478 = vshrl.u32 %v3477, 7
      %v3479 = vsub.s32 %v3476, %v3478
      %v3480 = vrot.slane %v3466, %v3479
      %v3481 = vcombine.low %v3473, %v3480
      %v3483 = vunpack.c.l.s4 1966171168
      %v3484 = vunpack.c.0.s8 %v3483
      %v3485 = vlaneseq
      %v3486 = vshrl.u32 %v3485, 7
      %v3487 = vsub.s32 %v3484, %v3486
      %v3488 = vrot.slane %v3481, %v3487
      %s3490 = scalar_lea.vmem [#allocation2], 2
      %3491 = vst.msk [vmem:[%s3490] ss:$8 sm:$0xf] %vm1316, %v3488
      %3492 = vst.msk [vmem:[%s3490] ss:$8 sm:$0x0] %vm1316, %v3488
      %v3493 = vadd.f32 %v3185, %v3189
      %v3494 = vadd.f32 %v3493, %v3193
      %v3495 = vadd.f32 %v3494, %v3197
      %v3496 = vadd.f32 %v3495, %v3201
      %v3497 = vadd.f32 %v3496, %v3205
      %v3498 = vadd.f32 %v3497, %v3209
      %v3499 = vadd.f32 %v3498, %v3213
      %v3500 = vadd.f32 %v3499, %v3217
      %v3501 = vadd.f32 %v3500, %v3221
      %v3502 = vadd.f32 %v3501, %v3225
      %v3503 = vadd.f32 %v3502, %v3229
      %v3504 = vadd.f32 %v3503, %v3233
      %v3505 = vadd.f32 %v3504, %v3237
      %v3506 = vadd.f32 %v3505, %v3241
      %v3507 = vadd.f32 %v3506, %v3245
      %v3508 = vadd.f32 %v3507, %v3249
      %v3509 = vadd.f32 %v3508, %v3253
      %v3510 = vadd.f32 %v3509, %v3257
      %v3511 = vadd.f32 %v3510, %v3261
      %v3512 = vadd.f32 %v3511, %v3265
      %v3513 = vadd.f32 %v3512, %v3269
      %v3514 = vadd.f32 %v3513, %v3273
      %v3515 = vadd.f32 %v3514, %v3277
      %v3516 = vadd.f32 %v3515, %v3281
      %v3517 = vadd.f32 %v3516, %v3285
      %v3518 = vadd.f32 %v3517, %v3289
      %v3519 = vadd.f32 %v3518, %v3293
      %v3520 = vadd.f32 %v3519, %v3297
      %v3521 = vadd.f32 %v3520, %v3301
      %v3522 = vadd.f32 %v3521, %v3305
      %v3523 = vadd.f32 %v3522, %v3309
      %v3524 = vrot.slane %v3523, 4
      %v3525 = vadd.f32 %v3523, %v3524
      %v3526 = vrot.slane %v3525, 2
      %v3527 = vadd.f32 %v3525, %v3526
      %v3528 = vrot.slane %v3527, 1
      %v3529 = vadd.f32 %v3527, %v3528
      %v3530 = vadd.f32 %v3186, %v3190
      %v3531 = vadd.f32 %v3530, %v3194
      %v3532 = vadd.f32 %v3531, %v3198
      %v3533 = vadd.f32 %v3532, %v3202
      %v3534 = vadd.f32 %v3533, %v3206
      %v3535 = vadd.f32 %v3534, %v3210
      %v3536 = vadd.f32 %v3535, %v3214
      %v3537 = vadd.f32 %v3536, %v3218
      %v3538 = vadd.f32 %v3537, %v3222
      %v3539 = vadd.f32 %v3538, %v3226
      %v3540 = vadd.f32 %v3539, %v3230
      %v3541 = vadd.f32 %v3540, %v3234
      %v3542 = vadd.f32 %v3541, %v3238
      %v3543 = vadd.f32 %v3542, %v3242
      %v3544 = vadd.f32 %v3543, %v3246
      %v3545 = vadd.f32 %v3544, %v3250
      %v3546 = vadd.f32 %v3545, %v3254
      %v3547 = vadd.f32 %v3546, %v3258
      %v3548 = vadd.f32 %v3547, %v3262
      %v3549 = vadd.f32 %v3548, %v3266
      %v3550 = vadd.f32 %v3549, %v3270
      %v3551 = vadd.f32 %v3550, %v3274
      %v3552 = vadd.f32 %v3551, %v3278
      %v3553 = vadd.f32 %v3552, %v3282
      %v3554 = vadd.f32 %v3553, %v3286
      %v3555 = vadd.f32 %v3554, %v3290
      %v3556 = vadd.f32 %v3555, %v3294
      %v3557 = vadd.f32 %v3556, %v3298
      %v3558 = vadd.f32 %v3557, %v3302
      %v3559 = vadd.f32 %v3558, %v3306
      %v3560 = vadd.f32 %v3559, %v3310
      %v3561 = vrot.slane %v3560, 4
      %v3562 = vadd.f32 %v3560, %v3561
      %v3563 = vrot.slane %v3562, 2
      %v3564 = vadd.f32 %v3562, %v3563
      %v3565 = vrot.slane %v3564, 1
      %v3566 = vadd.f32 %v3564, %v3565
      %v3567 = vadd.f32 %v3187, %v3191
      %v3568 = vadd.f32 %v3567, %v3195
      %v3569 = vadd.f32 %v3568, %v3199
      %v3570 = vadd.f32 %v3569, %v3203
      %v3571 = vadd.f32 %v3570, %v3207
      %v3572 = vadd.f32 %v3571, %v3211
      %v3573 = vadd.f32 %v3572, %v3215
      %v3574 = vadd.f32 %v3573, %v3219
      %v3575 = vadd.f32 %v3574, %v3223
      %v3576 = vadd.f32 %v3575, %v3227
      %v3577 = vadd.f32 %v3576, %v3231
      %v3578 = vadd.f32 %v3577, %v3235
      %v3579 = vadd.f32 %v3578, %v3239
      %v3580 = vadd.f32 %v3579, %v3243
      %v3581 = vadd.f32 %v3580, %v3247
      %v3582 = vadd.f32 %v3581, %v3251
      %v3583 = vadd.f32 %v3582, %v3255
      %v3584 = vadd.f32 %v3583, %v3259
      %v3585 = vadd.f32 %v3584, %v3263
      %v3586 = vadd.f32 %v3585, %v3267
      %v3587 = vadd.f32 %v3586, %v3271
      %v3588 = vadd.f32 %v3587, %v3275
      %v3589 = vadd.f32 %v3588, %v3279
      %v3590 = vadd.f32 %v3589, %v3283
      %v3591 = vadd.f32 %v3590, %v3287
      %v3592 = vadd.f32 %v3591, %v3291
      %v3593 = vadd.f32 %v3592, %v3295
      %v3594 = vadd.f32 %v3593, %v3299
      %v3595 = vadd.f32 %v3594, %v3303
      %v3596 = vadd.f32 %v3595, %v3307
      %v3597 = vadd.f32 %v3596, %v3311
      %v3598 = vrot.slane %v3597, 4
      %v3599 = vadd.f32 %v3597, %v3598
      %v3600 = vrot.slane %v3599, 2
      %v3601 = vadd.f32 %v3599, %v3600
      %v3602 = vrot.slane %v3601, 1
      %v3603 = vadd.f32 %v3601, %v3602
      %v3604 = vadd.f32 %v3188, %v3192
      %v3605 = vadd.f32 %v3604, %v3196
      %v3606 = vadd.f32 %v3605, %v3200
      %v3607 = vadd.f32 %v3606, %v3204
      %v3608 = vadd.f32 %v3607, %v3208
      %v3609 = vadd.f32 %v3608, %v3212
      %v3610 = vadd.f32 %v3609, %v3216
      %v3611 = vadd.f32 %v3610, %v3220
      %v3612 = vadd.f32 %v3611, %v3224
      %v3613 = vadd.f32 %v3612, %v3228
      %v3614 = vadd.f32 %v3613, %v3232
      %v3615 = vadd.f32 %v3614, %v3236
      %v3616 = vadd.f32 %v3615, %v3240
      %v3617 = vadd.f32 %v3616, %v3244
      %v3618 = vadd.f32 %v3617, %v3248
      %v3619 = vadd.f32 %v3618, %v3252
      %v3620 = vadd.f32 %v3619, %v3256
      %v3621 = vadd.f32 %v3620, %v3260
      %v3622 = vadd.f32 %v3621, %v3264
      %v3623 = vadd.f32 %v3622, %v3268
      %v3624 = vadd.f32 %v3623, %v3272
      %v3625 = vadd.f32 %v3624, %v3276
      %v3626 = vadd.f32 %v3625, %v3280
      %v3627 = vadd.f32 %v3626, %v3284
      %v3628 = vadd.f32 %v3627, %v3288
      %v3629 = vadd.f32 %v3628, %v3292
      %v3630 = vadd.f32 %v3629, %v3296
      %v3631 = vadd.f32 %v3630, %v3300
      %v3632 = vadd.f32 %v3631, %v3304
      %v3633 = vadd.f32 %v3632, %v3308
      %v3634 = vadd.f32 %v3633, %v3312
      %v3635 = vrot.slane %v3634, 4
      %v3636 = vadd.f32 %v3634, %v3635
      %v3637 = vrot.slane %v3636, 2
      %v3638 = vadd.f32 %v3636, %v3637
      %v3639 = vrot.slane %v3638, 1
      %v3640 = vadd.f32 %v3638, %v3639
      %v3641 = vmul.f32 %v3529, 0.00390625
      %v3642 = vmul.f32 %v3566, 0.00390625
      %v3643 = vmul.f32 %v3603, 0.00390625
      %v3644 = vmul.f32 %v3640, 0.00390625
      %v3649 = vcombine.low %v3641, %v3642
      %v3650 = vcombine.low %v3643, %v3644
      %v3652 = vunpack.c.l.s4 1966171168
      %v3653 = vunpack.c.0.s8 %v3652
      %v3654 = vlaneseq
      %v3655 = vshrl.u32 %v3654, 7
      %v3656 = vsub.s32 %v3653, %v3655
      %v3657 = vrot.slane %v3649, %v3656
      %v3659 = vunpack.c.l.s4 1966171168
      %v3660 = vunpack.c.0.s8 %v3659
      %v3661 = vlaneseq
      %v3662 = vshrl.u32 %v3661, 7
      %v3663 = vsub.s32 %v3660, %v3662
      %v3664 = vrot.slane %v3650, %v3663
      %v3665 = vcombine.low %v3657, %v3664
      %v3667 = vunpack.c.l.s4 1966171168
      %v3668 = vunpack.c.0.s8 %v3667
      %v3669 = vlaneseq
      %v3670 = vshrl.u32 %v3669, 7
      %v3671 = vsub.s32 %v3668, %v3670
      %v3672 = vrot.slane %v3665, %v3671
      %s3674 = scalar_lea.vmem [#allocation2], 34
      %3675 = vst.msk [vmem:[%s3674] ss:$8 sm:$0xf] %vm1316, %v3672
      %3676 = vst.msk [vmem:[%s3674] ss:$8 sm:$0x0] %vm1316, %v3672
      %s3677 = scalar_lea.vmem %s408, 384
      %v3678 = vld [vmem:[%s3677] sm:$0xf]
      %v3679 = vld [vmem:[%s3677 + $0x4] sm:$0xf]
      %v3680 = vld [vmem:[%s3677 + $0x8] sm:$0xf]
      %v3681 = vld [vmem:[%s3677 + $0xc] sm:$0xf]
      %v3682 = vld [vmem:[%s3677 + $0x10] sm:$0xf]
      %v3683 = vld [vmem:[%s3677 + $0x14] sm:$0xf]
      %v3684 = vld [vmem:[%s3677 + $0x18] sm:$0xf]
      %v3685 = vld [vmem:[%s3677 + $0x1c] sm:$0xf]
      %v3686 = vld [vmem:[%s3677 + $0x20] sm:$0xf]
      %v3687 = vld [vmem:[%s3677 + $0x24] sm:$0xf]
      %v3688 = vld [vmem:[%s3677 + $0x28] sm:$0xf]
      %v3689 = vld [vmem:[%s3677 + $0x2c] sm:$0xf]
      %v3690 = vld [vmem:[%s3677 + $0x30] sm:$0xf]
      %v3691 = vld [vmem:[%s3677 + $0x34] sm:$0xf]
      %v3692 = vld [vmem:[%s3677 + $0x38] sm:$0xf]
      %v3693 = vld [vmem:[%s3677 + $0x3c] sm:$0xf]
      %v3694 = vld [vmem:[%s3677 + $0x40] sm:$0xf]
      %v3695 = vld [vmem:[%s3677 + $0x44] sm:$0xf]
      %v3696 = vld [vmem:[%s3677 + $0x48] sm:$0xf]
      %v3697 = vld [vmem:[%s3677 + $0x4c] sm:$0xf]
      %v3698 = vld [vmem:[%s3677 + $0x50] sm:$0xf]
      %v3699 = vld [vmem:[%s3677 + $0x54] sm:$0xf]
      %v3700 = vld [vmem:[%s3677 + $0x58] sm:$0xf]
      %v3701 = vld [vmem:[%s3677 + $0x5c] sm:$0xf]
      %v3702 = vld [vmem:[%s3677 + $0x60] sm:$0xf]
      %v3703 = vld [vmem:[%s3677 + $0x64] sm:$0xf]
      %v3704 = vld [vmem:[%s3677 + $0x68] sm:$0xf]
      %v3705 = vld [vmem:[%s3677 + $0x6c] sm:$0xf]
      %v3706 = vld [vmem:[%s3677 + $0x70] sm:$0xf]
      %v3707 = vld [vmem:[%s3677 + $0x74] sm:$0xf]
      %v3708 = vld [vmem:[%s3677 + $0x78] sm:$0xf]
      %v3709 = vld [vmem:[%s3677 + $0x7c] sm:$0xf]
      %v3710 = vld [vmem:[%s1] sm:$0xff]
      %v3711 = vld [vmem:[%s1 + $0x8] sm:$0xff]
      %v3712 = vld [vmem:[%s1 + $0x10] sm:$0xff]
      %v3713 = vld [vmem:[%s1 + $0x18] sm:$0xff]
      %v3714 = vld [vmem:[%s1 + $0x20] sm:$0xff]
      %v3715 = vld [vmem:[%s1 + $0x28] sm:$0xff]
      %v3716 = vld [vmem:[%s1 + $0x30] sm:$0xff]
      %v3717 = vld [vmem:[%s1 + $0x38] sm:$0xff]
      %v3750 = vunpack.c.l.b16 %v3678
      %v3751 = vunpack.c.l.b16 %v3679
      %v3752 = vunpack.c.l.b16 %v3680
      %v3753 = vunpack.c.l.b16 %v3681
      %v3754 = vunpack.c.l.b16 %v3682
      %v3755 = vunpack.c.l.b16 %v3683
      %v3756 = vunpack.c.l.b16 %v3684
      %v3757 = vunpack.c.l.b16 %v3685
      %v3758 = vunpack.c.l.b16 %v3686
      %v3759 = vunpack.c.l.b16 %v3687
      %v3760 = vunpack.c.l.b16 %v3688
      %v3761 = vunpack.c.l.b16 %v3689
      %v3762 = vunpack.c.l.b16 %v3690
      %v3763 = vunpack.c.l.b16 %v3691
      %v3764 = vunpack.c.l.b16 %v3692
      %v3765 = vunpack.c.l.b16 %v3693
      %v3766 = vunpack.c.l.b16 %v3694
      %v3767 = vunpack.c.l.b16 %v3695
      %v3768 = vunpack.c.l.b16 %v3696
      %v3769 = vunpack.c.l.b16 %v3697
      %v3770 = vunpack.c.l.b16 %v3698
      %v3771 = vunpack.c.l.b16 %v3699
      %v3772 = vunpack.c.l.b16 %v3700
      %v3773 = vunpack.c.l.b16 %v3701
      %v3774 = vunpack.c.l.b16 %v3702
      %v3775 = vunpack.c.l.b16 %v3703
      %v3776 = vunpack.c.l.b16 %v3704
      %v3777 = vunpack.c.l.b16 %v3705
      %v3778 = vunpack.c.l.b16 %v3706
      %v3779 = vunpack.c.l.b16 %v3707
      %v3780 = vunpack.c.l.b16 %v3708
      %v3781 = vunpack.c.l.b16 %v3709
      %v3782 = vpack.c.b16 %v3751, %v3750
      %v3783 = vpack.c.b16 %v3753, %v3752
      %v3784 = vpack.c.b16 %v3755, %v3754
      %v3785 = vpack.c.b16 %v3757, %v3756
      %v3786 = vpack.c.b16 %v3759, %v3758
      %v3787 = vpack.c.b16 %v3761, %v3760
      %v3788 = vpack.c.b16 %v3763, %v3762
      %v3789 = vpack.c.b16 %v3765, %v3764
      %v3790 = vpack.c.b16 %v3767, %v3766
      %v3791 = vpack.c.b16 %v3769, %v3768
      %v3792 = vpack.c.b16 %v3771, %v3770
      %v3793 = vpack.c.b16 %v3773, %v3772
      %v3794 = vpack.c.b16 %v3775, %v3774
      %v3795 = vpack.c.b16 %v3777, %v3776
      %v3796 = vpack.c.b16 %v3779, %v3778
      %v3797 = vpack.c.b16 %v3781, %v3780
      %v3806 = vunpack.c.l.b16 %v3710
      %v3807 = vunpack.c.h.b16 %v3710
      %v3808 = vunpack.c.l.b16 %v3711
      %v3809 = vunpack.c.h.b16 %v3711
      %v3810 = vunpack.c.l.b16 %v3712
      %v3811 = vunpack.c.h.b16 %v3712
      %v3812 = vunpack.c.l.b16 %v3713
      %v3813 = vunpack.c.h.b16 %v3713
      %v3814 = vunpack.c.l.b16 %v3714
      %v3815 = vunpack.c.h.b16 %v3714
      %v3816 = vunpack.c.l.b16 %v3715
      %v3817 = vunpack.c.h.b16 %v3715
      %v3818 = vunpack.c.l.b16 %v3716
      %v3819 = vunpack.c.h.b16 %v3716
      %v3820 = vunpack.c.l.b16 %v3717
      %v3821 = vunpack.c.h.b16 %v3717
      %v3822 = vpack.c.b16 %v3810, %v3806
      %v3823 = vpack.c.b16 %v3811, %v3807
      %v3824 = vpack.c.b16 %v3812, %v3808
      %v3825 = vpack.c.b16 %v3813, %v3809
      %v3826 = vpack.c.b16 %v3818, %v3814
      %v3827 = vpack.c.b16 %v3819, %v3815
      %v3828 = vpack.c.b16 %v3820, %v3816
      %v3829 = vpack.c.b16 %v3821, %v3817
      %v3839 = vsel %vm573, %v3782, 0
      %v3842 = vsel %vm573, %v3783, 0
      %v3845 = vsel %vm573, %v3784, 0
      %v3848 = vsel %vm573, %v3785, 0
      %v3851 = vsel %vm573, %v3786, 0
      %v3854 = vsel %vm573, %v3787, 0
      %v3857 = vsel %vm573, %v3788, 0
      %v3860 = vsel %vm573, %v3789, 0
      %v3863 = vsel %vm573, %v3790, 0
      %v3866 = vsel %vm573, %v3791, 0
      %v3869 = vsel %vm573, %v3792, 0
      %v3872 = vsel %vm573, %v3793, 0
      %v3875 = vsel %vm573, %v3794, 0
      %v3878 = vsel %vm573, %v3795, 0
      %v3881 = vsel %vm573, %v3796, 0
      %v3884 = vsel %vm573, %v3797, 0
      %3886 = vmatprep.subr.bf16.mxu0 %v3823
      %3887 = vmatpush1.bf16.msra.mxu0 %v3822
      %3888 = vmatprep.subr.bf16.mxu0 %v3827
      %3889 = vmatpush1.bf16.msra.mxu0 %v3826
      %3890 = vmatprep.subr.bf16.mxu0 0
      %3891 = vmatpush1.bf16.msra.mxu0 0
      %3892 = vmatprep.subr.bf16.mxu0 0
      %3893 = vmatpush1.bf16.msra.mxu0 0
      %3894 = vmatprep.subr.bf16.mxu0 0
      %3895 = vmatpush1.bf16.msra.mxu0 0
      %3896 = vmatprep.subr.bf16.mxu0 0
      %3897 = vmatpush1.bf16.msra.mxu0 0
      %3898 = vmatprep.subr.bf16.mxu0 0
      %3899 = vmatpush1.bf16.msra.mxu0 0
      %3900 = vmatprep.subr.bf16.mxu0 0
      %3901 = vmatpush1.bf16.msra.mxu0 0
      %3902 = vmatprep.subr.bf16.mxu0 0
      %3903 = vmatpush1.bf16.msra.mxu0 0
      %3904 = vmatprep.subr.bf16.mxu0 0
      %3905 = vmatpush1.bf16.msra.mxu0 0
      %3906 = vmatprep.subr.bf16.mxu0 0
      %3907 = vmatpush1.bf16.msra.mxu0 0
      %3908 = vmatprep.subr.bf16.mxu0 0
      %3909 = vmatpush1.bf16.msra.mxu0 0
      %3910 = vmatprep.subr.bf16.mxu0 0
      %3911 = vmatpush1.bf16.msra.mxu0 0
      %3912 = vmatprep.subr.bf16.mxu0 0
      %3913 = vmatpush1.bf16.msra.mxu0 0
      %3914 = vmatprep.subr.bf16.mxu0 0
      %3915 = vmatpush1.bf16.msra.mxu0 0
      %3916 = vmatprep.subr.bf16.mxu0 0
      %3917 = vmatpush1.bf16.msra.mxu0 0
      %3918 = vmatprep.mubr.bf16.mxu0 0
      %3919 = vmatmul.mubr.bf16.gmra.mrb[0].mxu0 %v3839
      %v3920 = vpop.f32.mrb[0].mxu0
      %v3921 = vadd.f32 0.0, %v3920
      %v3922 = vpop.f32.mrb[0].mxu0
      %v3923 = vadd.f32 0.0, %v3922
      %v3924 = vpop.f32.mrb[0].mxu0
      %v3925 = vadd.f32 0.0, %v3924
      %v3926 = vpop.f32.mrb[0].mxu0
      %v3927 = vadd.f32 0.0, %v3926
      %3928 = vmatprep.mubr.bf16.mxu0 0
      %3929 = vmatmul.mubr.bf16.gmra.mrb[0].mxu0 %v3842
      %v3930 = vpop.f32.mrb[0].mxu0
      %v3931 = vadd.f32 0.0, %v3930
      %v3932 = vpop.f32.mrb[0].mxu0
      %v3933 = vadd.f32 0.0, %v3932
      %v3934 = vpop.f32.mrb[0].mxu0
      %v3935 = vadd.f32 0.0, %v3934
      %v3936 = vpop.f32.mrb[0].mxu0
      %v3937 = vadd.f32 0.0, %v3936
      %3938 = vmatprep.mubr.bf16.mxu0 0
      %3939 = vmatmul.mubr.bf16.gmra.mrb[0].mxu0 %v3845
      %v3940 = vpop.f32.mrb[0].mxu0
      %v3941 = vadd.f32 0.0, %v3940
      %v3942 = vpop.f32.mrb[0].mxu0
      %v3943 = vadd.f32 0.0, %v3942
      %v3944 = vpop.f32.mrb[0].mxu0
      %v3945 = vadd.f32 0.0, %v3944
      %v3946 = vpop.f32.mrb[0].mxu0
      %v3947 = vadd.f32 0.0, %v3946
      %3948 = vmatprep.mubr.bf16.mxu0 0
      %3949 = vmatmul.mubr.bf16.gmra.mrb[0].mxu0 %v3848
      %v3950 = vpop.f32.mrb[0].mxu0
      %v3951 = vadd.f32 0.0, %v3950
      %v3952 = vpop.f32.mrb[0].mxu0
      %v3953 = vadd.f32 0.0, %v3952
      %v3954 = vpop.f32.mrb[0].mxu0
      %v3955 = vadd.f32 0.0, %v3954
      %v3956 = vpop.f32.mrb[0].mxu0
      %v3957 = vadd.f32 0.0, %v3956
      %3958 = vmatprep.mubr.bf16.mxu0 0
      %3959 = vmatmul.mubr.bf16.gmra.mrb[0].mxu0 %v3851
      %v3960 = vpop.f32.mrb[0].mxu0
      %v3961 = vadd.f32 0.0, %v3960
      %v3962 = vpop.f32.mrb[0].mxu0
      %v3963 = vadd.f32 0.0, %v3962
      %v3964 = vpop.f32.mrb[0].mxu0
      %v3965 = vadd.f32 0.0, %v3964
      %v3966 = vpop.f32.mrb[0].mxu0
      %v3967 = vadd.f32 0.0, %v3966
      %3968 = vmatprep.mubr.bf16.mxu0 0
      %3969 = vmatmul.mubr.bf16.gmra.mrb[0].mxu0 %v3854
      %v3970 = vpop.f32.mrb[0].mxu0
      %v3971 = vadd.f32 0.0, %v3970
      %v3972 = vpop.f32.mrb[0].mxu0
      %v3973 = vadd.f32 0.0, %v3972
      %v3974 = vpop.f32.mrb[0].mxu0
      %v3975 = vadd.f32 0.0, %v3974
      %v3976 = vpop.f32.mrb[0].mxu0
      %v3977 = vadd.f32 0.0, %v3976
      %3978 = vmatprep.mubr.bf16.mxu0 0
      %3979 = vmatmul.mubr.bf16.gmra.mrb[0].mxu0 %v3857
      %v3980 = vpop.f32.mrb[0].mxu0
      %v3981 = vadd.f32 0.0, %v3980
      %v3982 = vpop.f32.mrb[0].mxu0
      %v3983 = vadd.f32 0.0, %v3982
      %v3984 = vpop.f32.mrb[0].mxu0
      %v3985 = vadd.f32 0.0, %v3984
      %v3986 = vpop.f32.mrb[0].mxu0
      %v3987 = vadd.f32 0.0, %v3986
      %3988 = vmatprep.mubr.bf16.mxu0 0
      %3989 = vmatmul.mubr.bf16.gmra.mrb[0].mxu0 %v3860
      %v3990 = vpop.f32.mrb[0].mxu0
      %v3991 = vadd.f32 0.0, %v3990
      %v3992 = vpop.f32.mrb[0].mxu0
      %v3993 = vadd.f32 0.0, %v3992
      %v3994 = vpop.f32.mrb[0].mxu0
      %v3995 = vadd.f32 0.0, %v3994
      %v3996 = vpop.f32.mrb[0].mxu0
      %v3997 = vadd.f32 0.0, %v3996
      %3998 = vmatprep.mubr.bf16.mxu0 0
      %3999 = vmatmul.mubr.bf16.gmra.mrb[0].mxu0 %v3863
      %v4000 = vpop.f32.mrb[0].mxu0
      %v4001 = vadd.f32 0.0, %v4000
      %v4002 = vpop.f32.mrb[0].mxu0
      %v4003 = vadd.f32 0.0, %v4002
      %v4004 = vpop.f32.mrb[0].mxu0
      %v4005 = vadd.f32 0.0, %v4004
      %v4006 = vpop.f32.mrb[0].mxu0
      %v4007 = vadd.f32 0.0, %v4006
      %4008 = vmatprep.mubr.bf16.mxu0 0
      %4009 = vmatmul.mubr.bf16.gmra.mrb[0].mxu0 %v3866
      %v4010 = vpop.f32.mrb[0].mxu0
      %v4011 = vadd.f32 0.0, %v4010
      %v4012 = vpop.f32.mrb[0].mxu0
      %v4013 = vadd.f32 0.0, %v4012
      %v4014 = vpop.f32.mrb[0].mxu0
      %v4015 = vadd.f32 0.0, %v4014
      %v4016 = vpop.f32.mrb[0].mxu0
      %v4017 = vadd.f32 0.0, %v4016
      %4018 = vmatprep.mubr.bf16.mxu0 0
      %4019 = vmatmul.mubr.bf16.gmra.mrb[0].mxu0 %v3869
      %v4020 = vpop.f32.mrb[0].mxu0
      %v4021 = vadd.f32 0.0, %v4020
      %v4022 = vpop.f32.mrb[0].mxu0
      %v4023 = vadd.f32 0.0, %v4022
      %v4024 = vpop.f32.mrb[0].mxu0
      %v4025 = vadd.f32 0.0, %v4024
      %v4026 = vpop.f32.mrb[0].mxu0
      %v4027 = vadd.f32 0.0, %v4026
      %4028 = vmatprep.mubr.bf16.mxu0 0
      %4029 = vmatmul.mubr.bf16.gmra.mrb[0].mxu0 %v3872
      %v4030 = vpop.f32.mrb[0].mxu0
      %v4031 = vadd.f32 0.0, %v4030
      %v4032 = vpop.f32.mrb[0].mxu0
      %v4033 = vadd.f32 0.0, %v4032
      %v4034 = vpop.f32.mrb[0].mxu0
      %v4035 = vadd.f32 0.0, %v4034
      %v4036 = vpop.f32.mrb[0].mxu0
      %v4037 = vadd.f32 0.0, %v4036
      %4038 = vmatprep.mubr.bf16.mxu0 0
      %4039 = vmatmul.mubr.bf16.gmra.mrb[0].mxu0 %v3875
      %v4040 = vpop.f32.mrb[0].mxu0
      %v4041 = vadd.f32 0.0, %v4040
      %v4042 = vpop.f32.mrb[0].mxu0
      %v4043 = vadd.f32 0.0, %v4042
      %v4044 = vpop.f32.mrb[0].mxu0
      %v4045 = vadd.f32 0.0, %v4044
      %v4046 = vpop.f32.mrb[0].mxu0
      %v4047 = vadd.f32 0.0, %v4046
      %4048 = vmatprep.mubr.bf16.mxu0 0
      %4049 = vmatmul.mubr.bf16.gmra.mrb[0].mxu0 %v3878
      %v4050 = vpop.f32.mrb[0].mxu0
      %v4051 = vadd.f32 0.0, %v4050
      %v4052 = vpop.f32.mrb[0].mxu0
      %v4053 = vadd.f32 0.0, %v4052
      %v4054 = vpop.f32.mrb[0].mxu0
      %v4055 = vadd.f32 0.0, %v4054
      %v4056 = vpop.f32.mrb[0].mxu0
      %v4057 = vadd.f32 0.0, %v4056
      %4058 = vmatprep.mubr.bf16.mxu0 0
      %4059 = vmatmul.mubr.bf16.gmra.mrb[0].mxu0 %v3881
      %v4060 = vpop.f32.mrb[0].mxu0
      %v4061 = vadd.f32 0.0, %v4060
      %v4062 = vpop.f32.mrb[0].mxu0
      %v4063 = vadd.f32 0.0, %v4062
      %v4064 = vpop.f32.mrb[0].mxu0
      %v4065 = vadd.f32 0.0, %v4064
      %v4066 = vpop.f32.mrb[0].mxu0
      %v4067 = vadd.f32 0.0, %v4066
      %4068 = vmatprep.mubr.bf16.mxu0 0
      %4069 = vmatmul.mubr.bf16.gmra.mrb[0].mxu0 %v3884
      %v4070 = vpop.f32.mrb[0].mxu0
      %v4071 = vadd.f32 0.0, %v4070
      %v4072 = vpop.f32.mrb[0].mxu0
      %v4073 = vadd.f32 0.0, %v4072
      %v4074 = vpop.f32.mrb[0].mxu0
      %v4075 = vadd.f32 0.0, %v4074
      %v4076 = vpop.f32.mrb[0].mxu0
      %v4077 = vadd.f32 0.0, %v4076
      %4078 = vdwg.mxu0
      %4079 = vmatprep.subr.bf16.mxu0 %v3825
      %4080 = vmatpush1.bf16.msra.mxu0 %v3824
      %4081 = vmatprep.subr.bf16.mxu0 %v3829
      %4082 = vmatpush1.bf16.msra.mxu0 %v3828
      %4083 = vmatprep.subr.bf16.mxu0 0
      %4084 = vmatpush1.bf16.msra.mxu0 0
      %4085 = vmatprep.subr.bf16.mxu0 0
      %4086 = vmatpush1.bf16.msra.mxu0 0
      %4087 = vmatprep.subr.bf16.mxu0 0
      %4088 = vmatpush1.bf16.msra.mxu0 0
      %4089 = vmatprep.subr.bf16.mxu0 0
      %4090 = vmatpush1.bf16.msra.mxu0 0
      %4091 = vmatprep.subr.bf16.mxu0 0
      %4092 = vmatpush1.bf16.msra.mxu0 0
      %4093 = vmatprep.subr.bf16.mxu0 0
      %4094 = vmatpush1.bf16.msra.mxu0 0
      %4095 = vmatprep.subr.bf16.mxu0 0
      %4096 = vmatpush1.bf16.msra.mxu0 0
      %4097 = vmatprep.subr.bf16.mxu0 0
      %4098 = vmatpush1.bf16.msra.mxu0 0
      %4099 = vmatprep.subr.bf16.mxu0 0
      %4100 = vmatpush1.bf16.msra.mxu0 0
      %4101 = vmatprep.subr.bf16.mxu0 0
      %4102 = vmatpush1.bf16.msra.mxu0 0
      %4103 = vmatprep.subr.bf16.mxu0 0
      %4104 = vmatpush1.bf16.msra.mxu0 0
      %4105 = vmatprep.subr.bf16.mxu0 0
      %4106 = vmatpush1.bf16.msra.mxu0 0
      %4107 = vmatprep.subr.bf16.mxu0 0
      %4108 = vmatpush1.bf16.msra.mxu0 0
      %4109 = vmatprep.subr.bf16.mxu0 0
      %4110 = vmatpush1.bf16.msra.mxu0 0
      %4111 = vmatprep.mubr.bf16.mxu0 0
      %4112 = vmatmul.mubr.bf16.gmra.mrb[0].mxu0 %v3839
      %v4113 = vpop.f32.mrb[0].mxu0
      %v4114 = vadd.f32 0.0, %v4113
      %v4115 = vpop.f32.mrb[0].mxu0
      %v4116 = vadd.f32 0.0, %v4115
      %v4117 = vpop.f32.mrb[0].mxu0
      %v4118 = vadd.f32 0.0, %v4117
      %v4119 = vpop.f32.mrb[0].mxu0
      %v4120 = vadd.f32 0.0, %v4119
      %4121 = vmatprep.mubr.bf16.mxu0 0
      %4122 = vmatmul.mubr.bf16.gmra.mrb[0].mxu0 %v3842
      %v4123 = vpop.f32.mrb[0].mxu0
      %v4124 = vadd.f32 0.0, %v4123
      %v4125 = vpop.f32.mrb[0].mxu0
      %v4126 = vadd.f32 0.0, %v4125
      %v4127 = vpop.f32.mrb[0].mxu0
      %v4128 = vadd.f32 0.0, %v4127
      %v4129 = vpop.f32.mrb[0].mxu0
      %v4130 = vadd.f32 0.0, %v4129
      %4131 = vmatprep.mubr.bf16.mxu0 0
      %4132 = vmatmul.mubr.bf16.gmra.mrb[0].mxu0 %v3845
      %v4133 = vpop.f32.mrb[0].mxu0
      %v4134 = vadd.f32 0.0, %v4133
      %v4135 = vpop.f32.mrb[0].mxu0
      %v4136 = vadd.f32 0.0, %v4135
      %v4137 = vpop.f32.mrb[0].mxu0
      %v4138 = vadd.f32 0.0, %v4137
      %v4139 = vpop.f32.mrb[0].mxu0
      %v4140 = vadd.f32 0.0, %v4139
      %4141 = vmatprep.mubr.bf16.mxu0 0
      %4142 = vmatmul.mubr.bf16.gmra.mrb[0].mxu0 %v3848
      %v4143 = vpop.f32.mrb[0].mxu0
      %v4144 = vadd.f32 0.0, %v4143
      %v4145 = vpop.f32.mrb[0].mxu0
      %v4146 = vadd.f32 0.0, %v4145
      %v4147 = vpop.f32.mrb[0].mxu0
      %v4148 = vadd.f32 0.0, %v4147
      %v4149 = vpop.f32.mrb[0].mxu0
      %v4150 = vadd.f32 0.0, %v4149
      %4151 = vmatprep.mubr.bf16.mxu0 0
      %4152 = vmatmul.mubr.bf16.gmra.mrb[0].mxu0 %v3851
      %v4153 = vpop.f32.mrb[0].mxu0
      %v4154 = vadd.f32 0.0, %v4153
      %v4155 = vpop.f32.mrb[0].mxu0
      %v4156 = vadd.f32 0.0, %v4155
      %v4157 = vpop.f32.mrb[0].mxu0
      %v4158 = vadd.f32 0.0, %v4157
      %v4159 = vpop.f32.mrb[0].mxu0
      %v4160 = vadd.f32 0.0, %v4159
      %4161 = vmatprep.mubr.bf16.mxu0 0
      %4162 = vmatmul.mubr.bf16.gmra.mrb[0].mxu0 %v3854
      %v4163 = vpop.f32.mrb[0].mxu0
      %v4164 = vadd.f32 0.0, %v4163
      %v4165 = vpop.f32.mrb[0].mxu0
      %v4166 = vadd.f32 0.0, %v4165
      %v4167 = vpop.f32.mrb[0].mxu0
      %v4168 = vadd.f32 0.0, %v4167
      %v4169 = vpop.f32.mrb[0].mxu0
      %v4170 = vadd.f32 0.0, %v4169
      %4171 = vmatprep.mubr.bf16.mxu0 0
      %4172 = vmatmul.mubr.bf16.gmra.mrb[0].mxu0 %v3857
      %v4173 = vpop.f32.mrb[0].mxu0
      %v4174 = vadd.f32 0.0, %v4173
      %v4175 = vpop.f32.mrb[0].mxu0
      %v4176 = vadd.f32 0.0, %v4175
      %v4177 = vpop.f32.mrb[0].mxu0
      %v4178 = vadd.f32 0.0, %v4177
      %v4179 = vpop.f32.mrb[0].mxu0
      %v4180 = vadd.f32 0.0, %v4179
      %4181 = vmatprep.mubr.bf16.mxu0 0
      %4182 = vmatmul.mubr.bf16.gmra.mrb[0].mxu0 %v3860
      %v4183 = vpop.f32.mrb[0].mxu0
      %v4184 = vadd.f32 0.0, %v4183
      %v4185 = vpop.f32.mrb[0].mxu0
      %v4186 = vadd.f32 0.0, %v4185
      %v4187 = vpop.f32.mrb[0].mxu0
      %v4188 = vadd.f32 0.0, %v4187
      %v4189 = vpop.f32.mrb[0].mxu0
      %v4190 = vadd.f32 0.0, %v4189
      %4191 = vmatprep.mubr.bf16.mxu0 0
      %4192 = vmatmul.mubr.bf16.gmra.mrb[0].mxu0 %v3863
      %v4193 = vpop.f32.mrb[0].mxu0
      %v4194 = vadd.f32 0.0, %v4193
      %v4195 = vpop.f32.mrb[0].mxu0
      %v4196 = vadd.f32 0.0, %v4195
      %v4197 = vpop.f32.mrb[0].mxu0
      %v4198 = vadd.f32 0.0, %v4197
      %v4199 = vpop.f32.mrb[0].mxu0
      %v4200 = vadd.f32 0.0, %v4199
      %4201 = vmatprep.mubr.bf16.mxu0 0
      %4202 = vmatmul.mubr.bf16.gmra.mrb[0].mxu0 %v3866
      %v4203 = vpop.f32.mrb[0].mxu0
      %v4204 = vadd.f32 0.0, %v4203
      %v4205 = vpop.f32.mrb[0].mxu0
      %v4206 = vadd.f32 0.0, %v4205
      %v4207 = vpop.f32.mrb[0].mxu0
      %v4208 = vadd.f32 0.0, %v4207
      %v4209 = vpop.f32.mrb[0].mxu0
      %v4210 = vadd.f32 0.0, %v4209
      %4211 = vmatprep.mubr.bf16.mxu0 0
      %4212 = vmatmul.mubr.bf16.gmra.mrb[0].mxu0 %v3869
      %v4213 = vpop.f32.mrb[0].mxu0
      %v4214 = vadd.f32 0.0, %v4213
      %v4215 = vpop.f32.mrb[0].mxu0
      %v4216 = vadd.f32 0.0, %v4215
      %v4217 = vpop.f32.mrb[0].mxu0
      %v4218 = vadd.f32 0.0, %v4217
      %v4219 = vpop.f32.mrb[0].mxu0
      %v4220 = vadd.f32 0.0, %v4219
      %4221 = vmatprep.mubr.bf16.mxu0 0
      %4222 = vmatmul.mubr.bf16.gmra.mrb[0].mxu0 %v3872
      %v4223 = vpop.f32.mrb[0].mxu0
      %v4224 = vadd.f32 0.0, %v4223
      %v4225 = vpop.f32.mrb[0].mxu0
      %v4226 = vadd.f32 0.0, %v4225
      %v4227 = vpop.f32.mrb[0].mxu0
      %v4228 = vadd.f32 0.0, %v4227
      %v4229 = vpop.f32.mrb[0].mxu0
      %v4230 = vadd.f32 0.0, %v4229
      %4231 = vmatprep.mubr.bf16.mxu0 0
      %4232 = vmatmul.mubr.bf16.gmra.mrb[0].mxu0 %v3875
      %v4233 = vpop.f32.mrb[0].mxu0
      %v4234 = vadd.f32 0.0, %v4233
      %v4235 = vpop.f32.mrb[0].mxu0
      %v4236 = vadd.f32 0.0, %v4235
      %v4237 = vpop.f32.mrb[0].mxu0
      %v4238 = vadd.f32 0.0, %v4237
      %v4239 = vpop.f32.mrb[0].mxu0
      %v4240 = vadd.f32 0.0, %v4239
      %4241 = vmatprep.mubr.bf16.mxu0 0
      %4242 = vmatmul.mubr.bf16.gmra.mrb[0].mxu0 %v3878
      %v4243 = vpop.f32.mrb[0].mxu0
      %v4244 = vadd.f32 0.0, %v4243
      %v4245 = vpop.f32.mrb[0].mxu0
      %v4246 = vadd.f32 0.0, %v4245
      %v4247 = vpop.f32.mrb[0].mxu0
      %v4248 = vadd.f32 0.0, %v4247
      %v4249 = vpop.f32.mrb[0].mxu0
      %v4250 = vadd.f32 0.0, %v4249
      %4251 = vmatprep.mubr.bf16.mxu0 0
      %4252 = vmatmul.mubr.bf16.gmra.mrb[0].mxu0 %v3881
      %v4253 = vpop.f32.mrb[0].mxu0
      %v4254 = vadd.f32 0.0, %v4253
      %v4255 = vpop.f32.mrb[0].mxu0
      %v4256 = vadd.f32 0.0, %v4255
      %v4257 = vpop.f32.mrb[0].mxu0
      %v4258 = vadd.f32 0.0, %v4257
      %v4259 = vpop.f32.mrb[0].mxu0
      %v4260 = vadd.f32 0.0, %v4259
      %4261 = vmatprep.mubr.bf16.mxu0 0
      %4262 = vmatmul.mubr.bf16.gmra.mrb[0].mxu0 %v3884
      %v4263 = vpop.f32.mrb[0].mxu0
      %v4264 = vadd.f32 0.0, %v4263
      %v4265 = vpop.f32.mrb[0].mxu0
      %v4266 = vadd.f32 0.0, %v4265
      %v4267 = vpop.f32.mrb[0].mxu0
      %v4268 = vadd.f32 0.0, %v4267
      %v4269 = vpop.f32.mrb[0].mxu0
      %v4270 = vadd.f32 0.0, %v4269
      %4271 = vdwg.mxu0
      %v4272 = vmax.f32 %v3921, 0.0
      %v4273 = vmax.f32 %v3923, 0.0
      %v4274 = vmax.f32 %v4114, 0.0
      %v4275 = vmax.f32 %v4116, 0.0
      %v4276 = vmax.f32 %v3925, 0.0
      %v4277 = vmax.f32 %v3927, 0.0
      %v4278 = vmax.f32 %v4118, 0.0
      %v4279 = vmax.f32 %v4120, 0.0
      %v4280 = vmax.f32 %v3931, 0.0
      %v4281 = vmax.f32 %v3933, 0.0
      %v4282 = vmax.f32 %v4124, 0.0
      %v4283 = vmax.f32 %v4126, 0.0
      %v4284 = vmax.f32 %v3935, 0.0
      %v4285 = vmax.f32 %v3937, 0.0
      %v4286 = vmax.f32 %v4128, 0.0
      %v4287 = vmax.f32 %v4130, 0.0
      %v4288 = vmax.f32 %v3941, 0.0
      %v4289 = vmax.f32 %v3943, 0.0
      %v4290 = vmax.f32 %v4134, 0.0
      %v4291 = vmax.f32 %v4136, 0.0
      %v4292 = vmax.f32 %v3945, 0.0
      %v4293 = vmax.f32 %v3947, 0.0
      %v4294 = vmax.f32 %v4138, 0.0
      %v4295 = vmax.f32 %v4140, 0.0
      %v4296 = vmax.f32 %v3951, 0.0
      %v4297 = vmax.f32 %v3953, 0.0
      %v4298 = vmax.f32 %v4144, 0.0
      %v4299 = vmax.f32 %v4146, 0.0
      %v4300 = vmax.f32 %v3955, 0.0
      %v4301 = vmax.f32 %v3957, 0.0
      %v4302 = vmax.f32 %v4148, 0.0
      %v4303 = vmax.f32 %v4150, 0.0
      %v4304 = vmax.f32 %v3961, 0.0
      %v4305 = vmax.f32 %v3963, 0.0
      %v4306 = vmax.f32 %v4154, 0.0
      %v4307 = vmax.f32 %v4156, 0.0
      %v4308 = vmax.f32 %v3965, 0.0
      %v4309 = vmax.f32 %v3967, 0.0
      %v4310 = vmax.f32 %v4158, 0.0
      %v4311 = vmax.f32 %v4160, 0.0
      %v4312 = vmax.f32 %v3971, 0.0
      %v4313 = vmax.f32 %v3973, 0.0
      %v4314 = vmax.f32 %v4164, 0.0
      %v4315 = vmax.f32 %v4166, 0.0
      %v4316 = vmax.f32 %v3975, 0.0
      %v4317 = vmax.f32 %v3977, 0.0
      %v4318 = vmax.f32 %v4168, 0.0
      %v4319 = vmax.f32 %v4170, 0.0
      %v4320 = vmax.f32 %v3981, 0.0
      %v4321 = vmax.f32 %v3983, 0.0
      %v4322 = vmax.f32 %v4174, 0.0
      %v4323 = vmax.f32 %v4176, 0.0
      %v4324 = vmax.f32 %v3985, 0.0
      %v4325 = vmax.f32 %v3987, 0.0
      %v4326 = vmax.f32 %v4178, 0.0
      %v4327 = vmax.f32 %v4180, 0.0
      %v4328 = vmax.f32 %v3991, 0.0
      %v4329 = vmax.f32 %v3993, 0.0
      %v4330 = vmax.f32 %v4184, 0.0
      %v4331 = vmax.f32 %v4186, 0.0
      %v4332 = vmax.f32 %v3995, 0.0
      %v4333 = vmax.f32 %v3997, 0.0
      %v4334 = vmax.f32 %v4188, 0.0
      %v4335 = vmax.f32 %v4190, 0.0
      %v4336 = vmax.f32 %v4001, 0.0
      %v4337 = vmax.f32 %v4003, 0.0
      %v4338 = vmax.f32 %v4194, 0.0
      %v4339 = vmax.f32 %v4196, 0.0
      %v4340 = vmax.f32 %v4005, 0.0
      %v4341 = vmax.f32 %v4007, 0.0
      %v4342 = vmax.f32 %v4198, 0.0
      %v4343 = vmax.f32 %v4200, 0.0
      %v4344 = vmax.f32 %v4011, 0.0
      %v4345 = vmax.f32 %v4013, 0.0
      %v4346 = vmax.f32 %v4204, 0.0
      %v4347 = vmax.f32 %v4206, 0.0
      %v4348 = vmax.f32 %v4015, 0.0
      %v4349 = vmax.f32 %v4017, 0.0
      %v4350 = vmax.f32 %v4208, 0.0
      %v4351 = vmax.f32 %v4210, 0.0
      %v4352 = vmax.f32 %v4021, 0.0
      %v4353 = vmax.f32 %v4023, 0.0
      %v4354 = vmax.f32 %v4214, 0.0
      %v4355 = vmax.f32 %v4216, 0.0
      %v4356 = vmax.f32 %v4025, 0.0
      %v4357 = vmax.f32 %v4027, 0.0
      %v4358 = vmax.f32 %v4218, 0.0
      %v4359 = vmax.f32 %v4220, 0.0
      %v4360 = vmax.f32 %v4031, 0.0
      %v4361 = vmax.f32 %v4033, 0.0
      %v4362 = vmax.f32 %v4224, 0.0
      %v4363 = vmax.f32 %v4226, 0.0
      %v4364 = vmax.f32 %v4035, 0.0
      %v4365 = vmax.f32 %v4037, 0.0
      %v4366 = vmax.f32 %v4228, 0.0
      %v4367 = vmax.f32 %v4230, 0.0
      %v4368 = vmax.f32 %v4041, 0.0
      %v4369 = vmax.f32 %v4043, 0.0
      %v4370 = vmax.f32 %v4234, 0.0
      %v4371 = vmax.f32 %v4236, 0.0
      %v4372 = vmax.f32 %v4045, 0.0
      %v4373 = vmax.f32 %v4047, 0.0
      %v4374 = vmax.f32 %v4238, 0.0
      %v4375 = vmax.f32 %v4240, 0.0
      %v4376 = vmax.f32 %v4051, 0.0
      %v4377 = vmax.f32 %v4053, 0.0
      %v4378 = vmax.f32 %v4244, 0.0
      %v4379 = vmax.f32 %v4246, 0.0
      %v4380 = vmax.f32 %v4055, 0.0
      %v4381 = vmax.f32 %v4057, 0.0
      %v4382 = vmax.f32 %v4248, 0.0
      %v4383 = vmax.f32 %v4250, 0.0
      %v4384 = vmax.f32 %v4061, 0.0
      %v4385 = vmax.f32 %v4063, 0.0
      %v4386 = vmax.f32 %v4254, 0.0
      %v4387 = vmax.f32 %v4256, 0.0
      %v4388 = vmax.f32 %v4065, 0.0
      %v4389 = vmax.f32 %v4067, 0.0
      %v4390 = vmax.f32 %v4258, 0.0
      %v4391 = vmax.f32 %v4260, 0.0
      %v4392 = vmax.f32 %v4071, 0.0
      %v4393 = vmax.f32 %v4073, 0.0
      %v4394 = vmax.f32 %v4264, 0.0
      %v4395 = vmax.f32 %v4266, 0.0
      %v4396 = vmax.f32 %v4075, 0.0
      %v4397 = vmax.f32 %v4077, 0.0
      %v4398 = vmax.f32 %v4268, 0.0
      %v4399 = vmax.f32 %v4270, 0.0
      %v4400 = vmax.f32 %v4272, %v4276
      %v4401 = vmax.f32 %v4400, %v4280
      %v4402 = vmax.f32 %v4401, %v4284
      %v4403 = vmax.f32 %v4402, %v4288
      %v4404 = vmax.f32 %v4403, %v4292
      %v4405 = vmax.f32 %v4404, %v4296
      %v4406 = vmax.f32 %v4405, %v4300
      %v4407 = vmax.f32 %v4406, %v4304
      %v4408 = vmax.f32 %v4407, %v4308
      %v4409 = vmax.f32 %v4408, %v4312
      %v4410 = vmax.f32 %v4409, %v4316
      %v4411 = vmax.f32 %v4410, %v4320
      %v4412 = vmax.f32 %v4411, %v4324
      %v4413 = vmax.f32 %v4412, %v4328
      %v4414 = vmax.f32 %v4413, %v4332
      %v4415 = vmax.f32 %v4414, %v4336
      %v4416 = vmax.f32 %v4415, %v4340
      %v4417 = vmax.f32 %v4416, %v4344
      %v4418 = vmax.f32 %v4417, %v4348
      %v4419 = vmax.f32 %v4418, %v4352
      %v4420 = vmax.f32 %v4419, %v4356
      %v4421 = vmax.f32 %v4420, %v4360
      %v4422 = vmax.f32 %v4421, %v4364
      %v4423 = vmax.f32 %v4422, %v4368
      %v4424 = vmax.f32 %v4423, %v4372
      %v4425 = vmax.f32 %v4424, %v4376
      %v4426 = vmax.f32 %v4425, %v4380
      %v4427 = vmax.f32 %v4426, %v4384
      %v4428 = vmax.f32 %v4427, %v4388
      %v4429 = vmax.f32 %v4428, %v4392
      %v4430 = vmax.f32 %v4429, %v4396
      %v4431 = vrot.slane %v4430, 4
      %v4432 = vmax.f32 %v4430, %v4431
      %v4433 = vrot.slane %v4432, 2
      %v4434 = vmax.f32 %v4432, %v4433
      %v4435 = vrot.slane %v4434, 1
      %v4436 = vmax.f32 %v4434, %v4435
      %v4437 = vmax.f32 %v4273, %v4277
      %v4438 = vmax.f32 %v4437, %v4281
      %v4439 = vmax.f32 %v4438, %v4285
      %v4440 = vmax.f32 %v4439, %v4289
      %v4441 = vmax.f32 %v4440, %v4293
      %v4442 = vmax.f32 %v4441, %v4297
      %v4443 = vmax.f32 %v4442, %v4301
      %v4444 = vmax.f32 %v4443, %v4305
      %v4445 = vmax.f32 %v4444, %v4309
      %v4446 = vmax.f32 %v4445, %v4313
      %v4447 = vmax.f32 %v4446, %v4317
      %v4448 = vmax.f32 %v4447, %v4321
      %v4449 = vmax.f32 %v4448, %v4325
      %v4450 = vmax.f32 %v4449, %v4329
      %v4451 = vmax.f32 %v4450, %v4333
      %v4452 = vmax.f32 %v4451, %v4337
      %v4453 = vmax.f32 %v4452, %v4341
      %v4454 = vmax.f32 %v4453, %v4345
      %v4455 = vmax.f32 %v4454, %v4349
      %v4456 = vmax.f32 %v4455, %v4353
      %v4457 = vmax.f32 %v4456, %v4357
      %v4458 = vmax.f32 %v4457, %v4361
      %v4459 = vmax.f32 %v4458, %v4365
      %v4460 = vmax.f32 %v4459, %v4369
      %v4461 = vmax.f32 %v4460, %v4373
      %v4462 = vmax.f32 %v4461, %v4377
      %v4463 = vmax.f32 %v4462, %v4381
      %v4464 = vmax.f32 %v4463, %v4385
      %v4465 = vmax.f32 %v4464, %v4389
      %v4466 = vmax.f32 %v4465, %v4393
      %v4467 = vmax.f32 %v4466, %v4397
      %v4468 = vrot.slane %v4467, 4
      %v4469 = vmax.f32 %v4467, %v4468
      %v4470 = vrot.slane %v4469, 2
      %v4471 = vmax.f32 %v4469, %v4470
      %v4472 = vrot.slane %v4471, 1
      %v4473 = vmax.f32 %v4471, %v4472
      %v4474 = vmax.f32 %v4274, %v4278
      %v4475 = vmax.f32 %v4474, %v4282
      %v4476 = vmax.f32 %v4475, %v4286
      %v4477 = vmax.f32 %v4476, %v4290
      %v4478 = vmax.f32 %v4477, %v4294
      %v4479 = vmax.f32 %v4478, %v4298
      %v4480 = vmax.f32 %v4479, %v4302
      %v4481 = vmax.f32 %v4480, %v4306
      %v4482 = vmax.f32 %v4481, %v4310
      %v4483 = vmax.f32 %v4482, %v4314
      %v4484 = vmax.f32 %v4483, %v4318
      %v4485 = vmax.f32 %v4484, %v4322
      %v4486 = vmax.f32 %v4485, %v4326
      %v4487 = vmax.f32 %v4486, %v4330
      %v4488 = vmax.f32 %v4487, %v4334
      %v4489 = vmax.f32 %v4488, %v4338
      %v4490 = vmax.f32 %v4489, %v4342
      %v4491 = vmax.f32 %v4490, %v4346
      %v4492 = vmax.f32 %v4491, %v4350
      %v4493 = vmax.f32 %v4492, %v4354
      %v4494 = vmax.f32 %v4493, %v4358
      %v4495 = vmax.f32 %v4494, %v4362
      %v4496 = vmax.f32 %v4495, %v4366
      %v4497 = vmax.f32 %v4496, %v4370
      %v4498 = vmax.f32 %v4497, %v4374
      %v4499 = vmax.f32 %v4498, %v4378
      %v4500 = vmax.f32 %v4499, %v4382
      %v4501 = vmax.f32 %v4500, %v4386
      %v4502 = vmax.f32 %v4501, %v4390
      %v4503 = vmax.f32 %v4502, %v4394
      %v4504 = vmax.f32 %v4503, %v4398
      %v4505 = vrot.slane %v4504, 4
      %v4506 = vmax.f32 %v4504, %v4505
      %v4507 = vrot.slane %v4506, 2
      %v4508 = vmax.f32 %v4506, %v4507
      %v4509 = vrot.slane %v4508, 1
      %v4510 = vmax.f32 %v4508, %v4509
      %v4511 = vmax.f32 %v4275, %v4279
      %v4512 = vmax.f32 %v4511, %v4283
      %v4513 = vmax.f32 %v4512, %v4287
      %v4514 = vmax.f32 %v4513, %v4291
      %v4515 = vmax.f32 %v4514, %v4295
      %v4516 = vmax.f32 %v4515, %v4299
      %v4517 = vmax.f32 %v4516, %v4303
      %v4518 = vmax.f32 %v4517, %v4307
      %v4519 = vmax.f32 %v4518, %v4311
      %v4520 = vmax.f32 %v4519, %v4315
      %v4521 = vmax.f32 %v4520, %v4319
      %v4522 = vmax.f32 %v4521, %v4323
      %v4523 = vmax.f32 %v4522, %v4327
      %v4524 = vmax.f32 %v4523, %v4331
      %v4525 = vmax.f32 %v4524, %v4335
      %v4526 = vmax.f32 %v4525, %v4339
      %v4527 = vmax.f32 %v4526, %v4343
      %v4528 = vmax.f32 %v4527, %v4347
      %v4529 = vmax.f32 %v4528, %v4351
      %v4530 = vmax.f32 %v4529, %v4355
      %v4531 = vmax.f32 %v4530, %v4359
      %v4532 = vmax.f32 %v4531, %v4363
      %v4533 = vmax.f32 %v4532, %v4367
      %v4534 = vmax.f32 %v4533, %v4371
      %v4535 = vmax.f32 %v4534, %v4375
      %v4536 = vmax.f32 %v4535, %v4379
      %v4537 = vmax.f32 %v4536, %v4383
      %v4538 = vmax.f32 %v4537, %v4387
      %v4539 = vmax.f32 %v4538, %v4391
      %v4540 = vmax.f32 %v4539, %v4395
      %v4541 = vmax.f32 %v4540, %v4399
      %v4542 = vrot.slane %v4541, 4
      %v4543 = vmax.f32 %v4541, %v4542
      %v4544 = vrot.slane %v4543, 2
      %v4545 = vmax.f32 %v4543, %v4544
      %v4546 = vrot.slane %v4545, 1
      %v4547 = vmax.f32 %v4545, %v4546
      %v4552 = vcombine.low %v4436, %v4473
      %v4553 = vcombine.low %v4510, %v4547
      %v4555 = vunpack.c.l.s4 1966171168
      %v4556 = vunpack.c.0.s8 %v4555
      %v4557 = vlaneseq
      %v4558 = vshrl.u32 %v4557, 7
      %v4559 = vsub.s32 %v4556, %v4558
      %v4560 = vrot.slane %v4552, %v4559
      %v4562 = vunpack.c.l.s4 1966171168
      %v4563 = vunpack.c.0.s8 %v4562
      %v4564 = vlaneseq
      %v4565 = vshrl.u32 %v4564, 7
      %v4566 = vsub.s32 %v4563, %v4565
      %v4567 = vrot.slane %v4553, %v4566
      %v4568 = vcombine.low %v4560, %v4567
      %v4570 = vunpack.c.l.s4 1966171168
      %v4571 = vunpack.c.0.s8 %v4570
      %v4572 = vlaneseq
      %v4573 = vshrl.u32 %v4572, 7
      %v4574 = vsub.s32 %v4571, %v4573
      %v4575 = vrot.slane %v4568, %v4574
      %s4577 = scalar_lea.vmem [#allocation2], 3
      %4578 = vst.msk [vmem:[%s4577] ss:$8 sm:$0xf] %vm1316, %v4575
      %4579 = vst.msk [vmem:[%s4577] ss:$8 sm:$0x0] %vm1316, %v4575
      %v4580 = vadd.f32 %v4272, %v4276
      %v4581 = vadd.f32 %v4580, %v4280
      %v4582 = vadd.f32 %v4581, %v4284
      %v4583 = vadd.f32 %v4582, %v4288
      %v4584 = vadd.f32 %v4583, %v4292
      %v4585 = vadd.f32 %v4584, %v4296
      %v4586 = vadd.f32 %v4585, %v4300
      %v4587 = vadd.f32 %v4586, %v4304
      %v4588 = vadd.f32 %v4587, %v4308
      %v4589 = vadd.f32 %v4588, %v4312
      %v4590 = vadd.f32 %v4589, %v4316
      %v4591 = vadd.f32 %v4590, %v4320
      %v4592 = vadd.f32 %v4591, %v4324
      %v4593 = vadd.f32 %v4592, %v4328
      %v4594 = vadd.f32 %v4593, %v4332
      %v4595 = vadd.f32 %v4594, %v4336
      %v4596 = vadd.f32 %v4595, %v4340
      %v4597 = vadd.f32 %v4596, %v4344
      %v4598 = vadd.f32 %v4597, %v4348
      %v4599 = vadd.f32 %v4598, %v4352
      %v4600 = vadd.f32 %v4599, %v4356
      %v4601 = vadd.f32 %v4600, %v4360
      %v4602 = vadd.f32 %v4601, %v4364
      %v4603 = vadd.f32 %v4602, %v4368
      %v4604 = vadd.f32 %v4603, %v4372
      %v4605 = vadd.f32 %v4604, %v4376
      %v4606 = vadd.f32 %v4605, %v4380
      %v4607 = vadd.f32 %v4606, %v4384
      %v4608 = vadd.f32 %v4607, %v4388
      %v4609 = vadd.f32 %v4608, %v4392
      %v4610 = vadd.f32 %v4609, %v4396
      %v4611 = vrot.slane %v4610, 4
      %v4612 = vadd.f32 %v4610, %v4611
      %v4613 = vrot.slane %v4612, 2
      %v4614 = vadd.f32 %v4612, %v4613
      %v4615 = vrot.slane %v4614, 1
      %v4616 = vadd.f32 %v4614, %v4615
      %v4617 = vadd.f32 %v4273, %v4277
      %v4618 = vadd.f32 %v4617, %v4281
      %v4619 = vadd.f32 %v4618, %v4285
      %v4620 = vadd.f32 %v4619, %v4289
      %v4621 = vadd.f32 %v4620, %v4293
      %v4622 = vadd.f32 %v4621, %v4297
      %v4623 = vadd.f32 %v4622, %v4301
      %v4624 = vadd.f32 %v4623, %v4305
      %v4625 = vadd.f32 %v4624, %v4309
      %v4626 = vadd.f32 %v4625, %v4313
      %v4627 = vadd.f32 %v4626, %v4317
      %v4628 = vadd.f32 %v4627, %v4321
      %v4629 = vadd.f32 %v4628, %v4325
      %v4630 = vadd.f32 %v4629, %v4329
      %v4631 = vadd.f32 %v4630, %v4333
      %v4632 = vadd.f32 %v4631, %v4337
      %v4633 = vadd.f32 %v4632, %v4341
      %v4634 = vadd.f32 %v4633, %v4345
      %v4635 = vadd.f32 %v4634, %v4349
      %v4636 = vadd.f32 %v4635, %v4353
      %v4637 = vadd.f32 %v4636, %v4357
      %v4638 = vadd.f32 %v4637, %v4361
      %v4639 = vadd.f32 %v4638, %v4365
      %v4640 = vadd.f32 %v4639, %v4369
      %v4641 = vadd.f32 %v4640, %v4373
      %v4642 = vadd.f32 %v4641, %v4377
      %v4643 = vadd.f32 %v4642, %v4381
      %v4644 = vadd.f32 %v4643, %v4385
      %v4645 = vadd.f32 %v4644, %v4389
      %v4646 = vadd.f32 %v4645, %v4393
      %v4647 = vadd.f32 %v4646, %v4397
      %v4648 = vrot.slane %v4647, 4
      %v4649 = vadd.f32 %v4647, %v4648
      %v4650 = vrot.slane %v4649, 2
      %v4651 = vadd.f32 %v4649, %v4650
      %v4652 = vrot.slane %v4651, 1
      %v4653 = vadd.f32 %v4651, %v4652
      %v4654 = vadd.f32 %v4274, %v4278
      %v4655 = vadd.f32 %v4654, %v4282
      %v4656 = vadd.f32 %v4655, %v4286
      %v4657 = vadd.f32 %v4656, %v4290
      %v4658 = vadd.f32 %v4657, %v4294
      %v4659 = vadd.f32 %v4658, %v4298
      %v4660 = vadd.f32 %v4659, %v4302
      %v4661 = vadd.f32 %v4660, %v4306
      %v4662 = vadd.f32 %v4661, %v4310
      %v4663 = vadd.f32 %v4662, %v4314
      %v4664 = vadd.f32 %v4663, %v4318
      %v4665 = vadd.f32 %v4664, %v4322
      %v4666 = vadd.f32 %v4665, %v4326
      %v4667 = vadd.f32 %v4666, %v4330
      %v4668 = vadd.f32 %v4667, %v4334
      %v4669 = vadd.f32 %v4668, %v4338
      %v4670 = vadd.f32 %v4669, %v4342
      %v4671 = vadd.f32 %v4670, %v4346
      %v4672 = vadd.f32 %v4671, %v4350
      %v4673 = vadd.f32 %v4672, %v4354
      %v4674 = vadd.f32 %v4673, %v4358
      %v4675 = vadd.f32 %v4674, %v4362
      %v4676 = vadd.f32 %v4675, %v4366
      %v4677 = vadd.f32 %v4676, %v4370
      %v4678 = vadd.f32 %v4677, %v4374
      %v4679 = vadd.f32 %v4678, %v4378
      %v4680 = vadd.f32 %v4679, %v4382
      %v4681 = vadd.f32 %v4680, %v4386
      %v4682 = vadd.f32 %v4681, %v4390
      %v4683 = vadd.f32 %v4682, %v4394
      %v4684 = vadd.f32 %v4683, %v4398
      %v4685 = vrot.slane %v4684, 4
      %v4686 = vadd.f32 %v4684, %v4685
      %v4687 = vrot.slane %v4686, 2
      %v4688 = vadd.f32 %v4686, %v4687
      %v4689 = vrot.slane %v4688, 1
      %v4690 = vadd.f32 %v4688, %v4689
      %v4691 = vadd.f32 %v4275, %v4279
      %v4692 = vadd.f32 %v4691, %v4283
      %v4693 = vadd.f32 %v4692, %v4287
      %v4694 = vadd.f32 %v4693, %v4291
      %v4695 = vadd.f32 %v4694, %v4295
      %v4696 = vadd.f32 %v4695, %v4299
      %v4697 = vadd.f32 %v4696, %v4303
      %v4698 = vadd.f32 %v4697, %v4307
      %v4699 = vadd.f32 %v4698, %v4311
      %v4700 = vadd.f32 %v4699, %v4315
      %v4701 = vadd.f32 %v4700, %v4319
      %v4702 = vadd.f32 %v4701, %v4323
      %v4703 = vadd.f32 %v4702, %v4327
      %v4704 = vadd.f32 %v4703, %v4331
      %v4705 = vadd.f32 %v4704, %v4335
      %v4706 = vadd.f32 %v4705, %v4339
      %v4707 = vadd.f32 %v4706, %v4343
      %v4708 = vadd.f32 %v4707, %v4347
      %v4709 = vadd.f32 %v4708, %v4351
      %v4710 = vadd.f32 %v4709, %v4355
      %v4711 = vadd.f32 %v4710, %v4359
      %v4712 = vadd.f32 %v4711, %v4363
      %v4713 = vadd.f32 %v4712, %v4367
      %v4714 = vadd.f32 %v4713, %v4371
      %v4715 = vadd.f32 %v4714, %v4375
      %v4716 = vadd.f32 %v4715, %v4379
      %v4717 = vadd.f32 %v4716, %v4383
      %v4718 = vadd.f32 %v4717, %v4387
      %v4719 = vadd.f32 %v4718, %v4391
      %v4720 = vadd.f32 %v4719, %v4395
      %v4721 = vadd.f32 %v4720, %v4399
      %v4722 = vrot.slane %v4721, 4
      %v4723 = vadd.f32 %v4721, %v4722
      %v4724 = vrot.slane %v4723, 2
      %v4725 = vadd.f32 %v4723, %v4724
      %v4726 = vrot.slane %v4725, 1
      %v4727 = vadd.f32 %v4725, %v4726
      %v4728 = vmul.f32 %v4616, 0.00390625
      %v4729 = vmul.f32 %v4653, 0.00390625
      %v4730 = vmul.f32 %v4690, 0.00390625
      %v4731 = vmul.f32 %v4727, 0.00390625
      %v4736 = vcombine.low %v4728, %v4729
      %v4737 = vcombine.low %v4730, %v4731
      %v4739 = vunpack.c.l.s4 1966171168
      %v4740 = vunpack.c.0.s8 %v4739
      %v4741 = vlaneseq
      %v4742 = vshrl.u32 %v4741, 7
      %v4743 = vsub.s32 %v4740, %v4742
      %v4744 = vrot.slane %v4736, %v4743
      %v4746 = vunpack.c.l.s4 1966171168
      %v4747 = vunpack.c.0.s8 %v4746
      %v4748 = vlaneseq
      %v4749 = vshrl.u32 %v4748, 7
      %v4750 = vsub.s32 %v4747, %v4749
      %v4751 = vrot.slane %v4737, %v4750
      %v4752 = vcombine.low %v4744, %v4751
      %v4754 = vunpack.c.l.s4 1966171168
      %v4755 = vunpack.c.0.s8 %v4754
      %v4756 = vlaneseq
      %v4757 = vshrl.u32 %v4756, 7
      %v4758 = vsub.s32 %v4755, %v4757
      %v4759 = vrot.slane %v4752, %v4758
      %s4761 = scalar_lea.vmem [#allocation2], 35
      %4762 = vst.msk [vmem:[%s4761] ss:$8 sm:$0xf] %vm1316, %v4759
      %4763 = vst.msk [vmem:[%s4761] ss:$8 sm:$0x0] %vm1316, %v4759
      %s4764 = scalar_lea.vmem %s408, 512
      %v4765 = vld [vmem:[%s4764] sm:$0xf]
      %v4766 = vld [vmem:[%s4764 + $0x4] sm:$0xf]
      %v4767 = vld [vmem:[%s4764 + $0x8] sm:$0xf]
      %v4768 = vld [vmem:[%s4764 + $0xc] sm:$0xf]
      %v4769 = vld [vmem:[%s4764 + $0x10] sm:$0xf]
      %v4770 = vld [vmem:[%s4764 + $0x14] sm:$0xf]
      %v4771 = vld [vmem:[%s4764 + $0x18] sm:$0xf]
      %v4772 = vld [vmem:[%s4764 + $0x1c] sm:$0xf]
      %v4773 = vld [vmem:[%s4764 + $0x20] sm:$0xf]
      %v4774 = vld [vmem:[%s4764 + $0x24] sm:$0xf]
      %v4775 = vld [vmem:[%s4764 + $0x28] sm:$0xf]
      %v4776 = vld [vmem:[%s4764 + $0x2c] sm:$0xf]
      %v4777 = vld [vmem:[%s4764 + $0x30] sm:$0xf]
      %v4778 = vld [vmem:[%s4764 + $0x34] sm:$0xf]
      %v4779 = vld [vmem:[%s4764 + $0x38] sm:$0xf]
      %v4780 = vld [vmem:[%s4764 + $0x3c] sm:$0xf]
      %v4781 = vld [vmem:[%s4764 + $0x40] sm:$0xf]
      %v4782 = vld [vmem:[%s4764 + $0x44] sm:$0xf]
      %v4783 = vld [vmem:[%s4764 + $0x48] sm:$0xf]
      %v4784 = vld [vmem:[%s4764 + $0x4c] sm:$0xf]
      %v4785 = vld [vmem:[%s4764 + $0x50] sm:$0xf]
      %v4786 = vld [vmem:[%s4764 + $0x54] sm:$0xf]
      %v4787 = vld [vmem:[%s4764 + $0x58] sm:$0xf]
      %v4788 = vld [vmem:[%s4764 + $0x5c] sm:$0xf]
      %v4789 = vld [vmem:[%s4764 + $0x60] sm:$0xf]
      %v4790 = vld [vmem:[%s4764 + $0x64] sm:$0xf]
      %v4791 = vld [vmem:[%s4764 + $0x68] sm:$0xf]
      %v4792 = vld [vmem:[%s4764 + $0x6c] sm:$0xf]
      %v4793 = vld [vmem:[%s4764 + $0x70] sm:$0xf]
      %v4794 = vld [vmem:[%s4764 + $0x74] sm:$0xf]
      %v4795 = vld [vmem:[%s4764 + $0x78] sm:$0xf]
      %v4796 = vld [vmem:[%s4764 + $0x7c] sm:$0xf]
      %v4797 = vld [vmem:[%s1] sm:$0xff]
      %v4798 = vld [vmem:[%s1 + $0x8] sm:$0xff]
      %v4799 = vld [vmem:[%s1 + $0x10] sm:$0xff]
      %v4800 = vld [vmem:[%s1 + $0x18] sm:$0xff]
      %v4801 = vld [vmem:[%s1 + $0x20] sm:$0xff]
      %v4802 = vld [vmem:[%s1 + $0x28] sm:$0xff]
      %v4803 = vld [vmem:[%s1 + $0x30] sm:$0xff]
      %v4804 = vld [vmem:[%s1 + $0x38] sm:$0xff]
      %v4837 = vunpack.c.l.b16 %v4765
      %v4838 = vunpack.c.l.b16 %v4766
      %v4839 = vunpack.c.l.b16 %v4767
      %v4840 = vunpack.c.l.b16 %v4768
      %v4841 = vunpack.c.l.b16 %v4769
      %v4842 = vunpack.c.l.b16 %v4770
      %v4843 = vunpack.c.l.b16 %v4771
      %v4844 = vunpack.c.l.b16 %v4772
      %v4845 = vunpack.c.l.b16 %v4773
      %v4846 = vunpack.c.l.b16 %v4774
      %v4847 = vunpack.c.l.b16 %v4775
      %v4848 = vunpack.c.l.b16 %v4776
      %v4849 = vunpack.c.l.b16 %v4777
      %v4850 = vunpack.c.l.b16 %v4778
      %v4851 = vunpack.c.l.b16 %v4779
      %v4852 = vunpack.c.l.b16 %v4780
      %v4853 = vunpack.c.l.b16 %v4781
      %v4854 = vunpack.c.l.b16 %v4782
      %v4855 = vunpack.c.l.b16 %v4783
      %v4856 = vunpack.c.l.b16 %v4784
      %v4857 = vunpack.c.l.b16 %v4785
      %v4858 = vunpack.c.l.b16 %v4786
      %v4859 = vunpack.c.l.b16 %v4787
      %v4860 = vunpack.c.l.b16 %v4788
      %v4861 = vunpack.c.l.b16 %v4789
      %v4862 = vunpack.c.l.b16 %v4790
      %v4863 = vunpack.c.l.b16 %v4791
      %v4864 = vunpack.c.l.b16 %v4792
      %v4865 = vunpack.c.l.b16 %v4793
      %v4866 = vunpack.c.l.b16 %v4794
      %v4867 = vunpack.c.l.b16 %v4795
      %v4868 = vunpack.c.l.b16 %v4796
      %v4869 = vpack.c.b16 %v4838, %v4837
      %v4870 = vpack.c.b16 %v4840, %v4839
      %v4871 = vpack.c.b16 %v4842, %v4841
      %v4872 = vpack.c.b16 %v4844, %v4843
      %v4873 = vpack.c.b16 %v4846, %v4845
      %v4874 = vpack.c.b16 %v4848, %v4847
      %v4875 = vpack.c.b16 %v4850, %v4849
      %v4876 = vpack.c.b16 %v4852, %v4851
      %v4877 = vpack.c.b16 %v4854, %v4853
      %v4878 = vpack.c.b16 %v4856, %v4855
      %v4879 = vpack.c.b16 %v4858, %v4857
      %v4880 = vpack.c.b16 %v4860, %v4859
      %v4881 = vpack.c.b16 %v4862, %v4861
      %v4882 = vpack.c.b16 %v4864, %v4863
      %v4883 = vpack.c.b16 %v4866, %v4865
      %v4884 = vpack.c.b16 %v4868, %v4867
      %v4893 = vunpack.c.l.b16 %v4797
      %v4894 = vunpack.c.h.b16 %v4797
      %v4895 = vunpack.c.l.b16 %v4798
      %v4896 = vunpack.c.h.b16 %v4798
      %v4897 = vunpack.c.l.b16 %v4799
      %v4898 = vunpack.c.h.b16 %v4799
      %v4899 = vunpack.c.l.b16 %v4800
      %v4900 = vunpack.c.h.b16 %v4800
      %v4901 = vunpack.c.l.b16 %v4801
      %v4902 = vunpack.c.h.b16 %v4801
      %v4903 = vunpack.c.l.b16 %v4802
      %v4904 = vunpack.c.h.b16 %v4802
      %v4905 = vunpack.c.l.b16 %v4803
      %v4906 = vunpack.c.h.b16 %v4803
      %v4907 = vunpack.c.l.b16 %v4804
      %v4908 = vunpack.c.h.b16 %v4804
      %v4909 = vpack.c.b16 %v4897, %v4893
      %v4910 = vpack.c.b16 %v4898, %v4894
      %v4911 = vpack.c.b16 %v4899, %v4895
      %v4912 = vpack.c.b16 %v4900, %v4896
      %v4913 = vpack.c.b16 %v4905, %v4901
      %v4914 = vpack.c.b16 %v4906, %v4902
      %v4915 = vpack.c.b16 %v4907, %v4903
      %v4916 = vpack.c.b16 %v4908, %v4904
      %v4926 = vsel %vm573, %v4869, 0
      %v4929 = vsel %vm573, %v4870, 0
      %v4932 = vsel %vm573, %v4871, 0
      %v4935 = vsel %vm573, %v4872, 0
      %v4938 = vsel %vm573, %v4873, 0
      %v4941 = vsel %vm573, %v4874, 0
      %v4944 = vsel %vm573, %v4875, 0
      %v4947 = vsel %vm573, %v4876, 0
      %v4950 = vsel %vm573, %v4877, 0
      %v4953 = vsel %vm573, %v4878, 0
      %v4956 = vsel %vm573, %v4879, 0
      %v4959 = vsel %vm573, %v4880, 0
      %v4962 = vsel %vm573, %v4881, 0
      %v4965 = vsel %vm573, %v4882, 0
      %v4968 = vsel %vm573, %v4883, 0
      %v4971 = vsel %vm573, %v4884, 0
      %4973 = vmatprep.subr.bf16.mxu0 %v4910
      %4974 = vmatpush1.bf16.msra.mxu0 %v4909
      %4975 = vmatprep.subr.bf16.mxu0 %v4914
      %4976 = vmatpush1.bf16.msra.mxu0 %v4913
      %4977 = vmatprep.subr.bf16.mxu0 0
      %4978 = vmatpush1.bf16.msra.mxu0 0
      %4979 = vmatprep.subr.bf16.mxu0 0
      %4980 = vmatpush1.bf16.msra.mxu0 0
      %4981 = vmatprep.subr.bf16.mxu0 0
      %4982 = vmatpush1.bf16.msra.mxu0 0
      %4983 = vmatprep.subr.bf16.mxu0 0
      %4984 = vmatpush1.bf16.msra.mxu0 0
      %4985 = vmatprep.subr.bf16.mxu0 0
      %4986 = vmatpush1.bf16.msra.mxu0 0
      %4987 = vmatprep.subr.bf16.mxu0 0
      %4988 = vmatpush1.bf16.msra.mxu0 0
      %4989 = vmatprep.subr.bf16.mxu0 0
      %4990 = vmatpush1.bf16.msra.mxu0 0
      %4991 = vmatprep.subr.bf16.mxu0 0
      %4992 = vmatpush1.bf16.msra.mxu0 0
      %4993 = vmatprep.subr.bf16.mxu0 0
      %4994 = vmatpush1.bf16.msra.mxu0 0
      %4995 = vmatprep.subr.bf16.mxu0 0
      %4996 = vmatpush1.bf16.msra.mxu0 0
      %4997 = vmatprep.subr.bf16.mxu0 0
      %4998 = vmatpush1.bf16.msra.mxu0 0
      %4999 = vmatprep.subr.bf16.mxu0 0
      %5000 = vmatpush1.bf16.msra.mxu0 0
      %5001 = vmatprep.subr.bf16.mxu0 0
      %5002 = vmatpush1.bf16.msra.mxu0 0
      %5003 = vmatprep.subr.bf16.mxu0 0
      %5004 = vmatpush1.bf16.msra.mxu0 0
      %5005 = vmatprep.mubr.bf16.mxu0 0
      %5006 = vmatmul.mubr.bf16.gmra.mrb[0].mxu0 %v4926
      %v5007 = vpop.f32.mrb[0].mxu0
      %v5008 = vadd.f32 0.0, %v5007
      %v5009 = vpop.f32.mrb[0].mxu0
      %v5010 = vadd.f32 0.0, %v5009
      %v5011 = vpop.f32.mrb[0].mxu0
      %v5012 = vadd.f32 0.0, %v5011
      %v5013 = vpop.f32.mrb[0].mxu0
      %v5014 = vadd.f32 0.0, %v5013
      %5015 = vmatprep.mubr.bf16.mxu0 0
      %5016 = vmatmul.mubr.bf16.gmra.mrb[0].mxu0 %v4929
      %v5017 = vpop.f32.mrb[0].mxu0
      %v5018 = vadd.f32 0.0, %v5017
      %v5019 = vpop.f32.mrb[0].mxu0
      %v5020 = vadd.f32 0.0, %v5019
      %v5021 = vpop.f32.mrb[0].mxu0
      %v5022 = vadd.f32 0.0, %v5021
      %v5023 = vpop.f32.mrb[0].mxu0
      %v5024 = vadd.f32 0.0, %v5023
      %5025 = vmatprep.mubr.bf16.mxu0 0
      %5026 = vmatmul.mubr.bf16.gmra.mrb[0].mxu0 %v4932
      %v5027 = vpop.f32.mrb[0].mxu0
      %v5028 = vadd.f32 0.0, %v5027
      %v5029 = vpop.f32.mrb[0].mxu0
      %v5030 = vadd.f32 0.0, %v5029
      %v5031 = vpop.f32.mrb[0].mxu0
      %v5032 = vadd.f32 0.0, %v5031
      %v5033 = vpop.f32.mrb[0].mxu0
      %v5034 = vadd.f32 0.0, %v5033
      %5035 = vmatprep.mubr.bf16.mxu0 0
      %5036 = vmatmul.mubr.bf16.gmra.mrb[0].mxu0 %v4935
      %v5037 = vpop.f32.mrb[0].mxu0
      %v5038 = vadd.f32 0.0, %v5037
      %v5039 = vpop.f32.mrb[0].mxu0
      %v5040 = vadd.f32 0.0, %v5039
      %v5041 = vpop.f32.mrb[0].mxu0
      %v5042 = vadd.f32 0.0, %v5041
      %v5043 = vpop.f32.mrb[0].mxu0
      %v5044 = vadd.f32 0.0, %v5043
      %5045 = vmatprep.mubr.bf16.mxu0 0
      %5046 = vmatmul.mubr.bf16.gmra.mrb[0].mxu0 %v4938
      %v5047 = vpop.f32.mrb[0].mxu0
      %v5048 = vadd.f32 0.0, %v5047
      %v5049 = vpop.f32.mrb[0].mxu0
      %v5050 = vadd.f32 0.0, %v5049
      %v5051 = vpop.f32.mrb[0].mxu0
      %v5052 = vadd.f32 0.0, %v5051
      %v5053 = vpop.f32.mrb[0].mxu0
      %v5054 = vadd.f32 0.0, %v5053
      %5055 = vmatprep.mubr.bf16.mxu0 0
      %5056 = vmatmul.mubr.bf16.gmra.mrb[0].mxu0 %v4941
      %v5057 = vpop.f32.mrb[0].mxu0
      %v5058 = vadd.f32 0.0, %v5057
      %v5059 = vpop.f32.mrb[0].mxu0
      %v5060 = vadd.f32 0.0, %v5059
      %v5061 = vpop.f32.mrb[0].mxu0
      %v5062 = vadd.f32 0.0, %v5061
      %v5063 = vpop.f32.mrb[0].mxu0
      %v5064 = vadd.f32 0.0, %v5063
      %5065 = vmatprep.mubr.bf16.mxu0 0
      %5066 = vmatmul.mubr.bf16.gmra.mrb[0].mxu0 %v4944
      %v5067 = vpop.f32.mrb[0].mxu0
      %v5068 = vadd.f32 0.0, %v5067
      %v5069 = vpop.f32.mrb[0].mxu0
      %v5070 = vadd.f32 0.0, %v5069
      %v5071 = vpop.f32.mrb[0].mxu0
      %v5072 = vadd.f32 0.0, %v5071
      %v5073 = vpop.f32.mrb[0].mxu0
      %v5074 = vadd.f32 0.0, %v5073
      %5075 = vmatprep.mubr.bf16.mxu0 0
      %5076 = vmatmul.mubr.bf16.gmra.mrb[0].mxu0 %v4947
      %v5077 = vpop.f32.mrb[0].mxu0
      %v5078 = vadd.f32 0.0, %v5077
      %v5079 = vpop.f32.mrb[0].mxu0
      %v5080 = vadd.f32 0.0, %v5079
      %v5081 = vpop.f32.mrb[0].mxu0
      %v5082 = vadd.f32 0.0, %v5081
      %v5083 = vpop.f32.mrb[0].mxu0
      %v5084 = vadd.f32 0.0, %v5083
      %5085 = vmatprep.mubr.bf16.mxu0 0
      %5086 = vmatmul.mubr.bf16.gmra.mrb[0].mxu0 %v4950
      %v5087 = vpop.f32.mrb[0].mxu0
      %v5088 = vadd.f32 0.0, %v5087
      %v5089 = vpop.f32.mrb[0].mxu0
      %v5090 = vadd.f32 0.0, %v5089
      %v5091 = vpop.f32.mrb[0].mxu0
      %v5092 = vadd.f32 0.0, %v5091
      %v5093 = vpop.f32.mrb[0].mxu0
      %v5094 = vadd.f32 0.0, %v5093
      %5095 = vmatprep.mubr.bf16.mxu0 0
      %5096 = vmatmul.mubr.bf16.gmra.mrb[0].mxu0 %v4953
      %v5097 = vpop.f32.mrb[0].mxu0
      %v5098 = vadd.f32 0.0, %v5097
      %v5099 = vpop.f32.mrb[0].mxu0
      %v5100 = vadd.f32 0.0, %v5099
      %v5101 = vpop.f32.mrb[0].mxu0
      %v5102 = vadd.f32 0.0, %v5101
      %v5103 = vpop.f32.mrb[0].mxu0
      %v5104 = vadd.f32 0.0, %v5103
      %5105 = vmatprep.mubr.bf16.mxu0 0
      %5106 = vmatmul.mubr.bf16.gmra.mrb[0].mxu0 %v4956
      %v5107 = vpop.f32.mrb[0].mxu0
      %v5108 = vadd.f32 0.0, %v5107
      %v5109 = vpop.f32.mrb[0].mxu0
      %v5110 = vadd.f32 0.0, %v5109
      %v5111 = vpop.f32.mrb[0].mxu0
      %v5112 = vadd.f32 0.0, %v5111
      %v5113 = vpop.f32.mrb[0].mxu0
      %v5114 = vadd.f32 0.0, %v5113
      %5115 = vmatprep.mubr.bf16.mxu0 0
      %5116 = vmatmul.mubr.bf16.gmra.mrb[0].mxu0 %v4959
      %v5117 = vpop.f32.mrb[0].mxu0
      %v5118 = vadd.f32 0.0, %v5117
      %v5119 = vpop.f32.mrb[0].mxu0
      %v5120 = vadd.f32 0.0, %v5119
      %v5121 = vpop.f32.mrb[0].mxu0
      %v5122 = vadd.f32 0.0, %v5121
      %v5123 = vpop.f32.mrb[0].mxu0
      %v5124 = vadd.f32 0.0, %v5123
      %5125 = vmatprep.mubr.bf16.mxu0 0
      %5126 = vmatmul.mubr.bf16.gmra.mrb[0].mxu0 %v4962
      %v5127 = vpop.f32.mrb[0].mxu0
      %v5128 = vadd.f32 0.0, %v5127
      %v5129 = vpop.f32.mrb[0].mxu0
      %v5130 = vadd.f32 0.0, %v5129
      %v5131 = vpop.f32.mrb[0].mxu0
      %v5132 = vadd.f32 0.0, %v5131
      %v5133 = vpop.f32.mrb[0].mxu0
      %v5134 = vadd.f32 0.0, %v5133
      %5135 = vmatprep.mubr.bf16.mxu0 0
      %5136 = vmatmul.mubr.bf16.gmra.mrb[0].mxu0 %v4965
      %v5137 = vpop.f32.mrb[0].mxu0
      %v5138 = vadd.f32 0.0, %v5137
      %v5139 = vpop.f32.mrb[0].mxu0
      %v5140 = vadd.f32 0.0, %v5139
      %v5141 = vpop.f32.mrb[0].mxu0
      %v5142 = vadd.f32 0.0, %v5141
      %v5143 = vpop.f32.mrb[0].mxu0
      %v5144 = vadd.f32 0.0, %v5143
      %5145 = vmatprep.mubr.bf16.mxu0 0
      %5146 = vmatmul.mubr.bf16.gmra.mrb[0].mxu0 %v4968
      %v5147 = vpop.f32.mrb[0].mxu0
      %v5148 = vadd.f32 0.0, %v5147
      %v5149 = vpop.f32.mrb[0].mxu0
      %v5150 = vadd.f32 0.0, %v5149
      %v5151 = vpop.f32.mrb[0].mxu0
      %v5152 = vadd.f32 0.0, %v5151
      %v5153 = vpop.f32.mrb[0].mxu0
      %v5154 = vadd.f32 0.0, %v5153
      %5155 = vmatprep.mubr.bf16.mxu0 0
      %5156 = vmatmul.mubr.bf16.gmra.mrb[0].mxu0 %v4971
      %v5157 = vpop.f32.mrb[0].mxu0
      %v5158 = vadd.f32 0.0, %v5157
      %v5159 = vpop.f32.mrb[0].mxu0
      %v5160 = vadd.f32 0.0, %v5159
      %v5161 = vpop.f32.mrb[0].mxu0
      %v5162 = vadd.f32 0.0, %v5161
      %v5163 = vpop.f32.mrb[0].mxu0
      %v5164 = vadd.f32 0.0, %v5163
      %5165 = vdwg.mxu0
      %5166 = vmatprep.subr.bf16.mxu0 %v4912
      %5167 = vmatpush1.bf16.msra.mxu0 %v4911
      %5168 = vmatprep.subr.bf16.mxu0 %v4916
      %5169 = vmatpush1.bf16.msra.mxu0 %v4915
      %5170 = vmatprep.subr.bf16.mxu0 0
      %5171 = vmatpush1.bf16.msra.mxu0 0
      %5172 = vmatprep.subr.bf16.mxu0 0
      %5173 = vmatpush1.bf16.msra.mxu0 0
      %5174 = vmatprep.subr.bf16.mxu0 0
      %5175 = vmatpush1.bf16.msra.mxu0 0
      %5176 = vmatprep.subr.bf16.mxu0 0
      %5177 = vmatpush1.bf16.msra.mxu0 0
      %5178 = vmatprep.subr.bf16.mxu0 0
      %5179 = vmatpush1.bf16.msra.mxu0 0
      %5180 = vmatprep.subr.bf16.mxu0 0
      %5181 = vmatpush1.bf16.msra.mxu0 0
      %5182 = vmatprep.subr.bf16.mxu0 0
      %5183 = vmatpush1.bf16.msra.mxu0 0
      %5184 = vmatprep.subr.bf16.mxu0 0
      %5185 = vmatpush1.bf16.msra.mxu0 0
      %5186 = vmatprep.subr.bf16.mxu0 0
      %5187 = vmatpush1.bf16.msra.mxu0 0
      %5188 = vmatprep.subr.bf16.mxu0 0
      %5189 = vmatpush1.bf16.msra.mxu0 0
      %5190 = vmatprep.subr.bf16.mxu0 0
      %5191 = vmatpush1.bf16.msra.mxu0 0
      %5192 = vmatprep.subr.bf16.mxu0 0
      %5193 = vmatpush1.bf16.msra.mxu0 0
      %5194 = vmatprep.subr.bf16.mxu0 0
      %5195 = vmatpush1.bf16.msra.mxu0 0
      %5196 = vmatprep.subr.bf16.mxu0 0
      %5197 = vmatpush1.bf16.msra.mxu0 0
      %5198 = vmatprep.mubr.bf16.mxu0 0
      %5199 = vmatmul.mubr.bf16.gmra.mrb[0].mxu0 %v4926
      %v5200 = vpop.f32.mrb[0].mxu0
      %v5201 = vadd.f32 0.0, %v5200
      %v5202 = vpop.f32.mrb[0].mxu0
      %v5203 = vadd.f32 0.0, %v5202
      %v5204 = vpop.f32.mrb[0].mxu0
      %v5205 = vadd.f32 0.0, %v5204
      %v5206 = vpop.f32.mrb[0].mxu0
      %v5207 = vadd.f32 0.0, %v5206
      %5208 = vmatprep.mubr.bf16.mxu0 0
      %5209 = vmatmul.mubr.bf16.gmra.mrb[0].mxu0 %v4929
      %v5210 = vpop.f32.mrb[0].mxu0
      %v5211 = vadd.f32 0.0, %v5210
      %v5212 = vpop.f32.mrb[0].mxu0
      %v5213 = vadd.f32 0.0, %v5212
      %v5214 = vpop.f32.mrb[0].mxu0
      %v5215 = vadd.f32 0.0, %v5214
      %v5216 = vpop.f32.mrb[0].mxu0
      %v5217 = vadd.f32 0.0, %v5216
      %5218 = vmatprep.mubr.bf16.mxu0 0
      %5219 = vmatmul.mubr.bf16.gmra.mrb[0].mxu0 %v4932
      %v5220 = vpop.f32.mrb[0].mxu0
      %v5221 = vadd.f32 0.0, %v5220
      %v5222 = vpop.f32.mrb[0].mxu0
      %v5223 = vadd.f32 0.0, %v5222
      %v5224 = vpop.f32.mrb[0].mxu0
      %v5225 = vadd.f32 0.0, %v5224
      %v5226 = vpop.f32.mrb[0].mxu0
      %v5227 = vadd.f32 0.0, %v5226
      %5228 = vmatprep.mubr.bf16.mxu0 0
      %5229 = vmatmul.mubr.bf16.gmra.mrb[0].mxu0 %v4935
      %v5230 = vpop.f32.mrb[0].mxu0
      %v5231 = vadd.f32 0.0, %v5230
      %v5232 = vpop.f32.mrb[0].mxu0
      %v5233 = vadd.f32 0.0, %v5232
      %v5234 = vpop.f32.mrb[0].mxu0
      %v5235 = vadd.f32 0.0, %v5234
      %v5236 = vpop.f32.mrb[0].mxu0
      %v5237 = vadd.f32 0.0, %v5236
      %5238 = vmatprep.mubr.bf16.mxu0 0
      %5239 = vmatmul.mubr.bf16.gmra.mrb[0].mxu0 %v4938
      %v5240 = vpop.f32.mrb[0].mxu0
      %v5241 = vadd.f32 0.0, %v5240
      %v5242 = vpop.f32.mrb[0].mxu0
      %v5243 = vadd.f32 0.0, %v5242
      %v5244 = vpop.f32.mrb[0].mxu0
      %v5245 = vadd.f32 0.0, %v5244
      %v5246 = vpop.f32.mrb[0].mxu0
      %v5247 = vadd.f32 0.0, %v5246
      %5248 = vmatprep.mubr.bf16.mxu0 0
      %5249 = vmatmul.mubr.bf16.gmra.mrb[0].mxu0 %v4941
      %v5250 = vpop.f32.mrb[0].mxu0
      %v5251 = vadd.f32 0.0, %v5250
      %v5252 = vpop.f32.mrb[0].mxu0
      %v5253 = vadd.f32 0.0, %v5252
      %v5254 = vpop.f32.mrb[0].mxu0
      %v5255 = vadd.f32 0.0, %v5254
      %v5256 = vpop.f32.mrb[0].mxu0
      %v5257 = vadd.f32 0.0, %v5256
      %5258 = vmatprep.mubr.bf16.mxu0 0
      %5259 = vmatmul.mubr.bf16.gmra.mrb[0].mxu0 %v4944
      %v5260 = vpop.f32.mrb[0].mxu0
      %v5261 = vadd.f32 0.0, %v5260
      %v5262 = vpop.f32.mrb[0].mxu0
      %v5263 = vadd.f32 0.0, %v5262
      %v5264 = vpop.f32.mrb[0].mxu0
      %v5265 = vadd.f32 0.0, %v5264
      %v5266 = vpop.f32.mrb[0].mxu0
      %v5267 = vadd.f32 0.0, %v5266
      %5268 = vmatprep.mubr.bf16.mxu0 0
      %5269 = vmatmul.mubr.bf16.gmra.mrb[0].mxu0 %v4947
      %v5270 = vpop.f32.mrb[0].mxu0
      %v5271 = vadd.f32 0.0, %v5270
      %v5272 = vpop.f32.mrb[0].mxu0
      %v5273 = vadd.f32 0.0, %v5272
      %v5274 = vpop.f32.mrb[0].mxu0
      %v5275 = vadd.f32 0.0, %v5274
      %v5276 = vpop.f32.mrb[0].mxu0
      %v5277 = vadd.f32 0.0, %v5276
      %5278 = vmatprep.mubr.bf16.mxu0 0
      %5279 = vmatmul.mubr.bf16.gmra.mrb[0].mxu0 %v4950
      %v5280 = vpop.f32.mrb[0].mxu0
      %v5281 = vadd.f32 0.0, %v5280
      %v5282 = vpop.f32.mrb[0].mxu0
      %v5283 = vadd.f32 0.0, %v5282
      %v5284 = vpop.f32.mrb[0].mxu0
      %v5285 = vadd.f32 0.0, %v5284
      %v5286 = vpop.f32.mrb[0].mxu0
      %v5287 = vadd.f32 0.0, %v5286
      %5288 = vmatprep.mubr.bf16.mxu0 0
      %5289 = vmatmul.mubr.bf16.gmra.mrb[0].mxu0 %v4953
      %v5290 = vpop.f32.mrb[0].mxu0
      %v5291 = vadd.f32 0.0, %v5290
      %v5292 = vpop.f32.mrb[0].mxu0
      %v5293 = vadd.f32 0.0, %v5292
      %v5294 = vpop.f32.mrb[0].mxu0
      %v5295 = vadd.f32 0.0, %v5294
      %v5296 = vpop.f32.mrb[0].mxu0
      %v5297 = vadd.f32 0.0, %v5296
      %5298 = vmatprep.mubr.bf16.mxu0 0
      %5299 = vmatmul.mubr.bf16.gmra.mrb[0].mxu0 %v4956
      %v5300 = vpop.f32.mrb[0].mxu0
      %v5301 = vadd.f32 0.0, %v5300
      %v5302 = vpop.f32.mrb[0].mxu0
      %v5303 = vadd.f32 0.0, %v5302
      %v5304 = vpop.f32.mrb[0].mxu0
      %v5305 = vadd.f32 0.0, %v5304
      %v5306 = vpop.f32.mrb[0].mxu0
      %v5307 = vadd.f32 0.0, %v5306
      %5308 = vmatprep.mubr.bf16.mxu0 0
      %5309 = vmatmul.mubr.bf16.gmra.mrb[0].mxu0 %v4959
      %v5310 = vpop.f32.mrb[0].mxu0
      %v5311 = vadd.f32 0.0, %v5310
      %v5312 = vpop.f32.mrb[0].mxu0
      %v5313 = vadd.f32 0.0, %v5312
      %v5314 = vpop.f32.mrb[0].mxu0
      %v5315 = vadd.f32 0.0, %v5314
      %v5316 = vpop.f32.mrb[0].mxu0
      %v5317 = vadd.f32 0.0, %v5316
      %5318 = vmatprep.mubr.bf16.mxu0 0
      %5319 = vmatmul.mubr.bf16.gmra.mrb[0].mxu0 %v4962
      %v5320 = vpop.f32.mrb[0].mxu0
      %v5321 = vadd.f32 0.0, %v5320
      %v5322 = vpop.f32.mrb[0].mxu0
      %v5323 = vadd.f32 0.0, %v5322
      %v5324 = vpop.f32.mrb[0].mxu0
      %v5325 = vadd.f32 0.0, %v5324
      %v5326 = vpop.f32.mrb[0].mxu0
      %v5327 = vadd.f32 0.0, %v5326
      %5328 = vmatprep.mubr.bf16.mxu0 0
      %5329 = vmatmul.mubr.bf16.gmra.mrb[0].mxu0 %v4965
      %v5330 = vpop.f32.mrb[0].mxu0
      %v5331 = vadd.f32 0.0, %v5330
      %v5332 = vpop.f32.mrb[0].mxu0
      %v5333 = vadd.f32 0.0, %v5332
      %v5334 = vpop.f32.mrb[0].mxu0
      %v5335 = vadd.f32 0.0, %v5334
      %v5336 = vpop.f32.mrb[0].mxu0
      %v5337 = vadd.f32 0.0, %v5336
      %5338 = vmatprep.mubr.bf16.mxu0 0
      %5339 = vmatmul.mubr.bf16.gmra.mrb[0].mxu0 %v4968
      %v5340 = vpop.f32.mrb[0].mxu0
      %v5341 = vadd.f32 0.0, %v5340
      %v5342 = vpop.f32.mrb[0].mxu0
      %v5343 = vadd.f32 0.0, %v5342
      %v5344 = vpop.f32.mrb[0].mxu0
      %v5345 = vadd.f32 0.0, %v5344
      %v5346 = vpop.f32.mrb[0].mxu0
      %v5347 = vadd.f32 0.0, %v5346
      %5348 = vmatprep.mubr.bf16.mxu0 0
      %5349 = vmatmul.mubr.bf16.gmra.mrb[0].mxu0 %v4971
      %v5350 = vpop.f32.mrb[0].mxu0
      %v5351 = vadd.f32 0.0, %v5350
      %v5352 = vpop.f32.mrb[0].mxu0
      %v5353 = vadd.f32 0.0, %v5352
      %v5354 = vpop.f32.mrb[0].mxu0
      %v5355 = vadd.f32 0.0, %v5354
      %v5356 = vpop.f32.mrb[0].mxu0
      %v5357 = vadd.f32 0.0, %v5356
      %5358 = vdwg.mxu0
      %v5359 = vmax.f32 %v5008, 0.0
      %v5360 = vmax.f32 %v5010, 0.0
      %v5361 = vmax.f32 %v5201, 0.0
      %v5362 = vmax.f32 %v5203, 0.0
      %v5363 = vmax.f32 %v5012, 0.0
      %v5364 = vmax.f32 %v5014, 0.0
      %v5365 = vmax.f32 %v5205, 0.0
      %v5366 = vmax.f32 %v5207, 0.0
      %v5367 = vmax.f32 %v5018, 0.0
      %v5368 = vmax.f32 %v5020, 0.0
      %v5369 = vmax.f32 %v5211, 0.0
      %v5370 = vmax.f32 %v5213, 0.0
      %v5371 = vmax.f32 %v5022, 0.0
      %v5372 = vmax.f32 %v5024, 0.0
      %v5373 = vmax.f32 %v5215, 0.0
      %v5374 = vmax.f32 %v5217, 0.0
      %v5375 = vmax.f32 %v5028, 0.0
      %v5376 = vmax.f32 %v5030, 0.0
      %v5377 = vmax.f32 %v5221, 0.0
      %v5378 = vmax.f32 %v5223, 0.0
      %v5379 = vmax.f32 %v5032, 0.0
      %v5380 = vmax.f32 %v5034, 0.0
      %v5381 = vmax.f32 %v5225, 0.0
      %v5382 = vmax.f32 %v5227, 0.0
      %v5383 = vmax.f32 %v5038, 0.0
      %v5384 = vmax.f32 %v5040, 0.0
      %v5385 = vmax.f32 %v5231, 0.0
      %v5386 = vmax.f32 %v5233, 0.0
      %v5387 = vmax.f32 %v5042, 0.0
      %v5388 = vmax.f32 %v5044, 0.0
      %v5389 = vmax.f32 %v5235, 0.0
      %v5390 = vmax.f32 %v5237, 0.0
      %v5391 = vmax.f32 %v5048, 0.0
      %v5392 = vmax.f32 %v5050, 0.0
      %v5393 = vmax.f32 %v5241, 0.0
      %v5394 = vmax.f32 %v5243, 0.0
      %v5395 = vmax.f32 %v5052, 0.0
      %v5396 = vmax.f32 %v5054, 0.0
      %v5397 = vmax.f32 %v5245, 0.0
      %v5398 = vmax.f32 %v5247, 0.0
      %v5399 = vmax.f32 %v5058, 0.0
      %v5400 = vmax.f32 %v5060, 0.0
      %v5401 = vmax.f32 %v5251, 0.0
      %v5402 = vmax.f32 %v5253, 0.0
      %v5403 = vmax.f32 %v5062, 0.0
      %v5404 = vmax.f32 %v5064, 0.0
      %v5405 = vmax.f32 %v5255, 0.0
      %v5406 = vmax.f32 %v5257, 0.0
      %v5407 = vmax.f32 %v5068, 0.0
      %v5408 = vmax.f32 %v5070, 0.0
      %v5409 = vmax.f32 %v5261, 0.0
      %v5410 = vmax.f32 %v5263, 0.0
      %v5411 = vmax.f32 %v5072, 0.0
      %v5412 = vmax.f32 %v5074, 0.0
      %v5413 = vmax.f32 %v5265, 0.0
      %v5414 = vmax.f32 %v5267, 0.0
      %v5415 = vmax.f32 %v5078, 0.0
      %v5416 = vmax.f32 %v5080, 0.0
      %v5417 = vmax.f32 %v5271, 0.0
      %v5418 = vmax.f32 %v5273, 0.0
      %v5419 = vmax.f32 %v5082, 0.0
      %v5420 = vmax.f32 %v5084, 0.0
      %v5421 = vmax.f32 %v5275, 0.0
      %v5422 = vmax.f32 %v5277, 0.0
      %v5423 = vmax.f32 %v5088, 0.0
      %v5424 = vmax.f32 %v5090, 0.0
      %v5425 = vmax.f32 %v5281, 0.0
      %v5426 = vmax.f32 %v5283, 0.0
      %v5427 = vmax.f32 %v5092, 0.0
      %v5428 = vmax.f32 %v5094, 0.0
      %v5429 = vmax.f32 %v5285, 0.0
      %v5430 = vmax.f32 %v5287, 0.0
      %v5431 = vmax.f32 %v5098, 0.0
      %v5432 = vmax.f32 %v5100, 0.0
      %v5433 = vmax.f32 %v5291, 0.0
      %v5434 = vmax.f32 %v5293, 0.0
      %v5435 = vmax.f32 %v5102, 0.0
      %v5436 = vmax.f32 %v5104, 0.0
      %v5437 = vmax.f32 %v5295, 0.0
      %v5438 = vmax.f32 %v5297, 0.0
      %v5439 = vmax.f32 %v5108, 0.0
      %v5440 = vmax.f32 %v5110, 0.0
      %v5441 = vmax.f32 %v5301, 0.0
      %v5442 = vmax.f32 %v5303, 0.0
      %v5443 = vmax.f32 %v5112, 0.0
      %v5444 = vmax.f32 %v5114, 0.0
      %v5445 = vmax.f32 %v5305, 0.0
      %v5446 = vmax.f32 %v5307, 0.0
      %v5447 = vmax.f32 %v5118, 0.0
      %v5448 = vmax.f32 %v5120, 0.0
      %v5449 = vmax.f32 %v5311, 0.0
      %v5450 = vmax.f32 %v5313, 0.0
      %v5451 = vmax.f32 %v5122, 0.0
      %v5452 = vmax.f32 %v5124, 0.0
      %v5453 = vmax.f32 %v5315, 0.0
      %v5454 = vmax.f32 %v5317, 0.0
      %v5455 = vmax.f32 %v5128, 0.0
      %v5456 = vmax.f32 %v5130, 0.0
      %v5457 = vmax.f32 %v5321, 0.0
      %v5458 = vmax.f32 %v5323, 0.0
      %v5459 = vmax.f32 %v5132, 0.0
      %v5460 = vmax.f32 %v5134, 0.0
      %v5461 = vmax.f32 %v5325, 0.0
      %v5462 = vmax.f32 %v5327, 0.0
      %v5463 = vmax.f32 %v5138, 0.0
      %v5464 = vmax.f32 %v5140, 0.0
      %v5465 = vmax.f32 %v5331, 0.0
      %v5466 = vmax.f32 %v5333, 0.0
      %v5467 = vmax.f32 %v5142, 0.0
      %v5468 = vmax.f32 %v5144, 0.0
      %v5469 = vmax.f32 %v5335, 0.0
      %v5470 = vmax.f32 %v5337, 0.0
      %v5471 = vmax.f32 %v5148, 0.0
      %v5472 = vmax.f32 %v5150, 0.0
      %v5473 = vmax.f32 %v5341, 0.0
      %v5474 = vmax.f32 %v5343, 0.0
      %v5475 = vmax.f32 %v5152, 0.0
      %v5476 = vmax.f32 %v5154, 0.0
      %v5477 = vmax.f32 %v5345, 0.0
      %v5478 = vmax.f32 %v5347, 0.0
      %v5479 = vmax.f32 %v5158, 0.0
      %v5480 = vmax.f32 %v5160, 0.0
      %v5481 = vmax.f32 %v5351, 0.0
      %v5482 = vmax.f32 %v5353, 0.0
      %v5483 = vmax.f32 %v5162, 0.0
      %v5484 = vmax.f32 %v5164, 0.0
      %v5485 = vmax.f32 %v5355, 0.0
      %v5486 = vmax.f32 %v5357, 0.0
      %v5487 = vmax.f32 %v5359, %v5363
      %v5488 = vmax.f32 %v5487, %v5367
      %v5489 = vmax.f32 %v5488, %v5371
      %v5490 = vmax.f32 %v5489, %v5375
      %v5491 = vmax.f32 %v5490, %v5379
      %v5492 = vmax.f32 %v5491, %v5383
      %v5493 = vmax.f32 %v5492, %v5387
      %v5494 = vmax.f32 %v5493, %v5391
      %v5495 = vmax.f32 %v5494, %v5395
      %v5496 = vmax.f32 %v5495, %v5399
      %v5497 = vmax.f32 %v5496, %v5403
      %v5498 = vmax.f32 %v5497, %v5407
      %v5499 = vmax.f32 %v5498, %v5411
      %v5500 = vmax.f32 %v5499, %v5415
      %v5501 = vmax.f32 %v5500, %v5419
      %v5502 = vmax.f32 %v5501, %v5423
      %v5503 = vmax.f32 %v5502, %v5427
      %v5504 = vmax.f32 %v5503, %v5431
      %v5505 = vmax.f32 %v5504, %v5435
      %v5506 = vmax.f32 %v5505, %v5439
      %v5507 = vmax.f32 %v5506, %v5443
      %v5508 = vmax.f32 %v5507, %v5447
      %v5509 = vmax.f32 %v5508, %v5451
      %v5510 = vmax.f32 %v5509, %v5455
      %v5511 = vmax.f32 %v5510, %v5459
      %v5512 = vmax.f32 %v5511, %v5463
      %v5513 = vmax.f32 %v5512, %v5467
      %v5514 = vmax.f32 %v5513, %v5471
      %v5515 = vmax.f32 %v5514, %v5475
      %v5516 = vmax.f32 %v5515, %v5479
      %v5517 = vmax.f32 %v5516, %v5483
      %v5518 = vrot.slane %v5517, 4
      %v5519 = vmax.f32 %v5517, %v5518
      %v5520 = vrot.slane %v5519, 2
      %v5521 = vmax.f32 %v5519, %v5520
      %v5522 = vrot.slane %v5521, 1
      %v5523 = vmax.f32 %v5521, %v5522
      %v5524 = vmax.f32 %v5360, %v5364
      %v5525 = vmax.f32 %v5524, %v5368
      %v5526 = vmax.f32 %v5525, %v5372
      %v5527 = vmax.f32 %v5526, %v5376
      %v5528 = vmax.f32 %v5527, %v5380
      %v5529 = vmax.f32 %v5528, %v5384
      %v5530 = vmax.f32 %v5529, %v5388
      %v5531 = vmax.f32 %v5530, %v5392
      %v5532 = vmax.f32 %v5531, %v5396
      %v5533 = vmax.f32 %v5532, %v5400
      %v5534 = vmax.f32 %v5533, %v5404
      %v5535 = vmax.f32 %v5534, %v5408
      %v5536 = vmax.f32 %v5535, %v5412
      %v5537 = vmax.f32 %v5536, %v5416
      %v5538 = vmax.f32 %v5537, %v5420
      %v5539 = vmax.f32 %v5538, %v5424
      %v5540 = vmax.f32 %v5539, %v5428
      %v5541 = vmax.f32 %v5540, %v5432
      %v5542 = vmax.f32 %v5541, %v5436
      %v5543 = vmax.f32 %v5542, %v5440
      %v5544 = vmax.f32 %v5543, %v5444
      %v5545 = vmax.f32 %v5544, %v5448
      %v5546 = vmax.f32 %v5545, %v5452
      %v5547 = vmax.f32 %v5546, %v5456
      %v5548 = vmax.f32 %v5547, %v5460
      %v5549 = vmax.f32 %v5548, %v5464
      %v5550 = vmax.f32 %v5549, %v5468
      %v5551 = vmax.f32 %v5550, %v5472
      %v5552 = vmax.f32 %v5551, %v5476
      %v5553 = vmax.f32 %v5552, %v5480
      %v5554 = vmax.f32 %v5553, %v5484
      %v5555 = vrot.slane %v5554, 4
      %v5556 = vmax.f32 %v5554, %v5555
      %v5557 = vrot.slane %v5556, 2
      %v5558 = vmax.f32 %v5556, %v5557
      %v5559 = vrot.slane %v5558, 1
      %v5560 = vmax.f32 %v5558, %v5559
      %v5561 = vmax.f32 %v5361, %v5365
      %v5562 = vmax.f32 %v5561, %v5369
      %v5563 = vmax.f32 %v5562, %v5373
      %v5564 = vmax.f32 %v5563, %v5377
      %v5565 = vmax.f32 %v5564, %v5381
      %v5566 = vmax.f32 %v5565, %v5385
      %v5567 = vmax.f32 %v5566, %v5389
      %v5568 = vmax.f32 %v5567, %v5393
      %v5569 = vmax.f32 %v5568, %v5397
      %v5570 = vmax.f32 %v5569, %v5401
      %v5571 = vmax.f32 %v5570, %v5405
      %v5572 = vmax.f32 %v5571, %v5409
      %v5573 = vmax.f32 %v5572, %v5413
      %v5574 = vmax.f32 %v5573, %v5417
      %v5575 = vmax.f32 %v5574, %v5421
      %v5576 = vmax.f32 %v5575, %v5425
      %v5577 = vmax.f32 %v5576, %v5429
      %v5578 = vmax.f32 %v5577, %v5433
      %v5579 = vmax.f32 %v5578, %v5437
      %v5580 = vmax.f32 %v5579, %v5441
      %v5581 = vmax.f32 %v5580, %v5445
      %v5582 = vmax.f32 %v5581, %v5449
      %v5583 = vmax.f32 %v5582, %v5453
      %v5584 = vmax.f32 %v5583, %v5457
      %v5585 = vmax.f32 %v5584, %v5461
      %v5586 = vmax.f32 %v5585, %v5465
      %v5587 = vmax.f32 %v5586, %v5469
      %v5588 = vmax.f32 %v5587, %v5473
      %v5589 = vmax.f32 %v5588, %v5477
      %v5590 = vmax.f32 %v5589, %v5481
      %v5591 = vmax.f32 %v5590, %v5485
      %v5592 = vrot.slane %v5591, 4
      %v5593 = vmax.f32 %v5591, %v5592
      %v5594 = vrot.slane %v5593, 2
      %v5595 = vmax.f32 %v5593, %v5594
      %v5596 = vrot.slane %v5595, 1
      %v5597 = vmax.f32 %v5595, %v5596
      %v5598 = vmax.f32 %v5362, %v5366
      %v5599 = vmax.f32 %v5598, %v5370
      %v5600 = vmax.f32 %v5599, %v5374
      %v5601 = vmax.f32 %v5600, %v5378
      %v5602 = vmax.f32 %v5601, %v5382
      %v5603 = vmax.f32 %v5602, %v5386
      %v5604 = vmax.f32 %v5603, %v5390
      %v5605 = vmax.f32 %v5604, %v5394
      %v5606 = vmax.f32 %v5605, %v5398
      %v5607 = vmax.f32 %v5606, %v5402
      %v5608 = vmax.f32 %v5607, %v5406
      %v5609 = vmax.f32 %v5608, %v5410
      %v5610 = vmax.f32 %v5609, %v5414
      %v5611 = vmax.f32 %v5610, %v5418
      %v5612 = vmax.f32 %v5611, %v5422
      %v5613 = vmax.f32 %v5612, %v5426
      %v5614 = vmax.f32 %v5613, %v5430
      %v5615 = vmax.f32 %v5614, %v5434
      %v5616 = vmax.f32 %v5615, %v5438
      %v5617 = vmax.f32 %v5616, %v5442
      %v5618 = vmax.f32 %v5617, %v5446
      %v5619 = vmax.f32 %v5618, %v5450
      %v5620 = vmax.f32 %v5619, %v5454
      %v5621 = vmax.f32 %v5620, %v5458
      %v5622 = vmax.f32 %v5621, %v5462
      %v5623 = vmax.f32 %v5622, %v5466
      %v5624 = vmax.f32 %v5623, %v5470
      %v5625 = vmax.f32 %v5624, %v5474
      %v5626 = vmax.f32 %v5625, %v5478
      %v5627 = vmax.f32 %v5626, %v5482
      %v5628 = vmax.f32 %v5627, %v5486
      %v5629 = vrot.slane %v5628, 4
      %v5630 = vmax.f32 %v5628, %v5629
      %v5631 = vrot.slane %v5630, 2
      %v5632 = vmax.f32 %v5630, %v5631
      %v5633 = vrot.slane %v5632, 1
      %v5634 = vmax.f32 %v5632, %v5633
      %v5639 = vcombine.low %v5523, %v5560
      %v5640 = vcombine.low %v5597, %v5634
      %v5642 = vunpack.c.l.s4 1966171168
      %v5643 = vunpack.c.0.s8 %v5642
      %v5644 = vlaneseq
      %v5645 = vshrl.u32 %v5644, 7
      %v5646 = vsub.s32 %v5643, %v5645
      %v5647 = vrot.slane %v5639, %v5646
      %v5649 = vunpack.c.l.s4 1966171168
      %v5650 = vunpack.c.0.s8 %v5649
      %v5651 = vlaneseq
      %v5652 = vshrl.u32 %v5651, 7
      %v5653 = vsub.s32 %v5650, %v5652
      %v5654 = vrot.slane %v5640, %v5653
      %v5655 = vcombine.low %v5647, %v5654
      %v5657 = vunpack.c.l.s4 1966171168
      %v5658 = vunpack.c.0.s8 %v5657
      %v5659 = vlaneseq
      %v5660 = vshrl.u32 %v5659, 7
      %v5661 = vsub.s32 %v5658, %v5660
      %v5662 = vrot.slane %v5655, %v5661
      %s5664 = scalar_lea.vmem [#allocation2], 4
      %5665 = vst.msk [vmem:[%s5664] ss:$8 sm:$0xf] %vm1316, %v5662
      %5666 = vst.msk [vmem:[%s5664] ss:$8 sm:$0x0] %vm1316, %v5662
      %v5667 = vadd.f32 %v5359, %v5363
      %v5668 = vadd.f32 %v5667, %v5367
      %v5669 = vadd.f32 %v5668, %v5371
      %v5670 = vadd.f32 %v5669, %v5375
      %v5671 = vadd.f32 %v5670, %v5379
      %v5672 = vadd.f32 %v5671, %v5383
      %v5673 = vadd.f32 %v5672, %v5387
      %v5674 = vadd.f32 %v5673, %v5391
      %v5675 = vadd.f32 %v5674, %v5395
      %v5676 = vadd.f32 %v5675, %v5399
      %v5677 = vadd.f32 %v5676, %v5403
      %v5678 = vadd.f32 %v5677, %v5407
      %v5679 = vadd.f32 %v5678, %v5411
      %v5680 = vadd.f32 %v5679, %v5415
      %v5681 = vadd.f32 %v5680, %v5419
      %v5682 = vadd.f32 %v5681, %v5423
      %v5683 = vadd.f32 %v5682, %v5427
      %v5684 = vadd.f32 %v5683, %v5431
      %v5685 = vadd.f32 %v5684, %v5435
      %v5686 = vadd.f32 %v5685, %v5439
      %v5687 = vadd.f32 %v5686, %v5443
      %v5688 = vadd.f32 %v5687, %v5447
      %v5689 = vadd.f32 %v5688, %v5451
      %v5690 = vadd.f32 %v5689, %v5455
      %v5691 = vadd.f32 %v5690, %v5459
      %v5692 = vadd.f32 %v5691, %v5463
      %v5693 = vadd.f32 %v5692, %v5467
      %v5694 = vadd.f32 %v5693, %v5471
      %v5695 = vadd.f32 %v5694, %v5475
      %v5696 = vadd.f32 %v5695, %v5479
      %v5697 = vadd.f32 %v5696, %v5483
      %v5698 = vrot.slane %v5697, 4
      %v5699 = vadd.f32 %v5697, %v5698
      %v5700 = vrot.slane %v5699, 2
      %v5701 = vadd.f32 %v5699, %v5700
      %v5702 = vrot.slane %v5701, 1
      %v5703 = vadd.f32 %v5701, %v5702
      %v5704 = vadd.f32 %v5360, %v5364
      %v5705 = vadd.f32 %v5704, %v5368
      %v5706 = vadd.f32 %v5705, %v5372
      %v5707 = vadd.f32 %v5706, %v5376
      %v5708 = vadd.f32 %v5707, %v5380
      %v5709 = vadd.f32 %v5708, %v5384
      %v5710 = vadd.f32 %v5709, %v5388
      %v5711 = vadd.f32 %v5710, %v5392
      %v5712 = vadd.f32 %v5711, %v5396
      %v5713 = vadd.f32 %v5712, %v5400
      %v5714 = vadd.f32 %v5713, %v5404
      %v5715 = vadd.f32 %v5714, %v5408
      %v5716 = vadd.f32 %v5715, %v5412
      %v5717 = vadd.f32 %v5716, %v5416
      %v5718 = vadd.f32 %v5717, %v5420
      %v5719 = vadd.f32 %v5718, %v5424
      %v5720 = vadd.f32 %v5719, %v5428
      %v5721 = vadd.f32 %v5720, %v5432
      %v5722 = vadd.f32 %v5721, %v5436
      %v5723 = vadd.f32 %v5722, %v5440
      %v5724 = vadd.f32 %v5723, %v5444
      %v5725 = vadd.f32 %v5724, %v5448
      %v5726 = vadd.f32 %v5725, %v5452
      %v5727 = vadd.f32 %v5726, %v5456
      %v5728 = vadd.f32 %v5727, %v5460
      %v5729 = vadd.f32 %v5728, %v5464
      %v5730 = vadd.f32 %v5729, %v5468
      %v5731 = vadd.f32 %v5730, %v5472
      %v5732 = vadd.f32 %v5731, %v5476
      %v5733 = vadd.f32 %v5732, %v5480
      %v5734 = vadd.f32 %v5733, %v5484
      %v5735 = vrot.slane %v5734, 4
      %v5736 = vadd.f32 %v5734, %v5735
      %v5737 = vrot.slane %v5736, 2
      %v5738 = vadd.f32 %v5736, %v5737
      %v5739 = vrot.slane %v5738, 1
      %v5740 = vadd.f32 %v5738, %v5739
      %v5741 = vadd.f32 %v5361, %v5365
      %v5742 = vadd.f32 %v5741, %v5369
      %v5743 = vadd.f32 %v5742, %v5373
      %v5744 = vadd.f32 %v5743, %v5377
      %v5745 = vadd.f32 %v5744, %v5381
      %v5746 = vadd.f32 %v5745, %v5385
      %v5747 = vadd.f32 %v5746, %v5389
      %v5748 = vadd.f32 %v5747, %v5393
      %v5749 = vadd.f32 %v5748, %v5397
      %v5750 = vadd.f32 %v5749, %v5401
      %v5751 = vadd.f32 %v5750, %v5405
      %v5752 = vadd.f32 %v5751, %v5409
      %v5753 = vadd.f32 %v5752, %v5413
      %v5754 = vadd.f32 %v5753, %v5417
      %v5755 = vadd.f32 %v5754, %v5421
      %v5756 = vadd.f32 %v5755, %v5425
      %v5757 = vadd.f32 %v5756, %v5429
      %v5758 = vadd.f32 %v5757, %v5433
      %v5759 = vadd.f32 %v5758, %v5437
      %v5760 = vadd.f32 %v5759, %v5441
      %v5761 = vadd.f32 %v5760, %v5445
      %v5762 = vadd.f32 %v5761, %v5449
      %v5763 = vadd.f32 %v5762, %v5453
      %v5764 = vadd.f32 %v5763, %v5457
      %v5765 = vadd.f32 %v5764, %v5461
      %v5766 = vadd.f32 %v5765, %v5465
      %v5767 = vadd.f32 %v5766, %v5469
      %v5768 = vadd.f32 %v5767, %v5473
      %v5769 = vadd.f32 %v5768, %v5477
      %v5770 = vadd.f32 %v5769, %v5481
      %v5771 = vadd.f32 %v5770, %v5485
      %v5772 = vrot.slane %v5771, 4
      %v5773 = vadd.f32 %v5771, %v5772
      %v5774 = vrot.slane %v5773, 2
      %v5775 = vadd.f32 %v5773, %v5774
      %v5776 = vrot.slane %v5775, 1
      %v5777 = vadd.f32 %v5775, %v5776
      %v5778 = vadd.f32 %v5362, %v5366
      %v5779 = vadd.f32 %v5778, %v5370
      %v5780 = vadd.f32 %v5779, %v5374
      %v5781 = vadd.f32 %v5780, %v5378
      %v5782 = vadd.f32 %v5781, %v5382
      %v5783 = vadd.f32 %v5782, %v5386
      %v5784 = vadd.f32 %v5783, %v5390
      %v5785 = vadd.f32 %v5784, %v5394
      %v5786 = vadd.f32 %v5785, %v5398
      %v5787 = vadd.f32 %v5786, %v5402
      %v5788 = vadd.f32 %v5787, %v5406
      %v5789 = vadd.f32 %v5788, %v5410
      %v5790 = vadd.f32 %v5789, %v5414
      %v5791 = vadd.f32 %v5790, %v5418
      %v5792 = vadd.f32 %v5791, %v5422
      %v5793 = vadd.f32 %v5792, %v5426
      %v5794 = vadd.f32 %v5793, %v5430
      %v5795 = vadd.f32 %v5794, %v5434
      %v5796 = vadd.f32 %v5795, %v5438
      %v5797 = vadd.f32 %v5796, %v5442
      %v5798 = vadd.f32 %v5797, %v5446
      %v5799 = vadd.f32 %v5798, %v5450
      %v5800 = vadd.f32 %v5799, %v5454
      %v5801 = vadd.f32 %v5800, %v5458
      %v5802 = vadd.f32 %v5801, %v5462
      %v5803 = vadd.f32 %v5802, %v5466
      %v5804 = vadd.f32 %v5803, %v5470
      %v5805 = vadd.f32 %v5804, %v5474
      %v5806 = vadd.f32 %v5805, %v5478
      %v5807 = vadd.f32 %v5806, %v5482
      %v5808 = vadd.f32 %v5807, %v5486
      %v5809 = vrot.slane %v5808, 4
      %v5810 = vadd.f32 %v5808, %v5809
      %v5811 = vrot.slane %v5810, 2
      %v5812 = vadd.f32 %v5810, %v5811
      %v5813 = vrot.slane %v5812, 1
      %v5814 = vadd.f32 %v5812, %v5813
      %v5815 = vmul.f32 %v5703, 0.00390625
      %v5816 = vmul.f32 %v5740, 0.00390625
      %v5817 = vmul.f32 %v5777, 0.00390625
      %v5818 = vmul.f32 %v5814, 0.00390625
      %v5823 = vcombine.low %v5815, %v5816
      %v5824 = vcombine.low %v5817, %v5818
      %v5826 = vunpack.c.l.s4 1966171168
      %v5827 = vunpack.c.0.s8 %v5826
      %v5828 = vlaneseq
      %v5829 = vshrl.u32 %v5828, 7
      %v5830 = vsub.s32 %v5827, %v5829
      %v5831 = vrot.slane %v5823, %v5830
      %v5833 = vunpack.c.l.s4 1966171168
      %v5834 = vunpack.c.0.s8 %v5833
      %v5835 = vlaneseq
      %v5836 = vshrl.u32 %v5835, 7
      %v5837 = vsub.s32 %v5834, %v5836
      %v5838 = vrot.slane %v5824, %v5837
      %v5839 = vcombine.low %v5831, %v5838
      %v5841 = vunpack.c.l.s4 1966171168
      %v5842 = vunpack.c.0.s8 %v5841
      %v5843 = vlaneseq
      %v5844 = vshrl.u32 %v5843, 7
      %v5845 = vsub.s32 %v5842, %v5844
      %v5846 = vrot.slane %v5839, %v5845
      %s5848 = scalar_lea.vmem [#allocation2], 36
      %5849 = vst.msk [vmem:[%s5848] ss:$8 sm:$0xf] %vm1316, %v5846
      %5850 = vst.msk [vmem:[%s5848] ss:$8 sm:$0x0] %vm1316, %v5846
      %s5851 = scalar_lea.vmem %s408, 640
      %v5852 = vld [vmem:[%s5851] sm:$0xf]
      %v5853 = vld [vmem:[%s5851 + $0x4] sm:$0xf]
      %v5854 = vld [vmem:[%s5851 + $0x8] sm:$0xf]
      %v5855 = vld [vmem:[%s5851 + $0xc] sm:$0xf]
      %v5856 = vld [vmem:[%s5851 + $0x10] sm:$0xf]
      %v5857 = vld [vmem:[%s5851 + $0x14] sm:$0xf]
      %v5858 = vld [vmem:[%s5851 + $0x18] sm:$0xf]
      %v5859 = vld [vmem:[%s5851 + $0x1c] sm:$0xf]
      %v5860 = vld [vmem:[%s5851 + $0x20] sm:$0xf]
      %v5861 = vld [vmem:[%s5851 + $0x24] sm:$0xf]
      %v5862 = vld [vmem:[%s5851 + $0x28] sm:$0xf]
      %v5863 = vld [vmem:[%s5851 + $0x2c] sm:$0xf]
      %v5864 = vld [vmem:[%s5851 + $0x30] sm:$0xf]
      %v5865 = vld [vmem:[%s5851 + $0x34] sm:$0xf]
      %v5866 = vld [vmem:[%s5851 + $0x38] sm:$0xf]
      %v5867 = vld [vmem:[%s5851 + $0x3c] sm:$0xf]
      %v5868 = vld [vmem:[%s5851 + $0x40] sm:$0xf]
      %v5869 = vld [vmem:[%s5851 + $0x44] sm:$0xf]
      %v5870 = vld [vmem:[%s5851 + $0x48] sm:$0xf]
      %v5871 = vld [vmem:[%s5851 + $0x4c] sm:$0xf]
      %v5872 = vld [vmem:[%s5851 + $0x50] sm:$0xf]
      %v5873 = vld [vmem:[%s5851 + $0x54] sm:$0xf]
      %v5874 = vld [vmem:[%s5851 + $0x58] sm:$0xf]
      %v5875 = vld [vmem:[%s5851 + $0x5c] sm:$0xf]
      %v5876 = vld [vmem:[%s5851 + $0x60] sm:$0xf]
      %v5877 = vld [vmem:[%s5851 + $0x64] sm:$0xf]
      %v5878 = vld [vmem:[%s5851 + $0x68] sm:$0xf]
      %v5879 = vld [vmem:[%s5851 + $0x6c] sm:$0xf]
      %v5880 = vld [vmem:[%s5851 + $0x70] sm:$0xf]
      %v5881 = vld [vmem:[%s5851 + $0x74] sm:$0xf]
      %v5882 = vld [vmem:[%s5851 + $0x78] sm:$0xf]
      %v5883 = vld [vmem:[%s5851 + $0x7c] sm:$0xf]
      %v5884 = vld [vmem:[%s1] sm:$0xff]
      %v5885 = vld [vmem:[%s1 + $0x8] sm:$0xff]
      %v5886 = vld [vmem:[%s1 + $0x10] sm:$0xff]
      %v5887 = vld [vmem:[%s1 + $0x18] sm:$0xff]
      %v5888 = vld [vmem:[%s1 + $0x20] sm:$0xff]
      %v5889 = vld [vmem:[%s1 + $0x28] sm:$0xff]
      %v5890 = vld [vmem:[%s1 + $0x30] sm:$0xff]
      %v5891 = vld [vmem:[%s1 + $0x38] sm:$0xff]
      %v5924 = vunpack.c.l.b16 %v5852
      %v5925 = vunpack.c.l.b16 %v5853
      %v5926 = vunpack.c.l.b16 %v5854
      %v5927 = vunpack.c.l.b16 %v5855
      %v5928 = vunpack.c.l.b16 %v5856
      %v5929 = vunpack.c.l.b16 %v5857
      %v5930 = vunpack.c.l.b16 %v5858
      %v5931 = vunpack.c.l.b16 %v5859
      %v5932 = vunpack.c.l.b16 %v5860
      %v5933 = vunpack.c.l.b16 %v5861
      %v5934 = vunpack.c.l.b16 %v5862
      %v5935 = vunpack.c.l.b16 %v5863
      %v5936 = vunpack.c.l.b16 %v5864
      %v5937 = vunpack.c.l.b16 %v5865
      %v5938 = vunpack.c.l.b16 %v5866
      %v5939 = vunpack.c.l.b16 %v5867
      %v5940 = vunpack.c.l.b16 %v5868
      %v5941 = vunpack.c.l.b16 %v5869
      %v5942 = vunpack.c.l.b16 %v5870
      %v5943 = vunpack.c.l.b16 %v5871
      %v5944 = vunpack.c.l.b16 %v5872
      %v5945 = vunpack.c.l.b16 %v5873
      %v5946 = vunpack.c.l.b16 %v5874
      %v5947 = vunpack.c.l.b16 %v5875
      %v5948 = vunpack.c.l.b16 %v5876
      %v5949 = vunpack.c.l.b16 %v5877
      %v5950 = vunpack.c.l.b16 %v5878
      %v5951 = vunpack.c.l.b16 %v5879
      %v5952 = vunpack.c.l.b16 %v5880
      %v5953 = vunpack.c.l.b16 %v5881
      %v5954 = vunpack.c.l.b16 %v5882
      %v5955 = vunpack.c.l.b16 %v5883
      %v5956 = vpack.c.b16 %v5925, %v5924
      %v5957 = vpack.c.b16 %v5927, %v5926
      %v5958 = vpack.c.b16 %v5929, %v5928
      %v5959 = vpack.c.b16 %v5931, %v5930
      %v5960 = vpack.c.b16 %v5933, %v5932
      %v5961 = vpack.c.b16 %v5935, %v5934
      %v5962 = vpack.c.b16 %v5937, %v5936
      %v5963 = vpack.c.b16 %v5939, %v5938
      %v5964 = vpack.c.b16 %v5941, %v5940
      %v5965 = vpack.c.b16 %v5943, %v5942
      %v5966 = vpack.c.b16 %v5945, %v5944
      %v5967 = vpack.c.b16 %v5947, %v5946
      %v5968 = vpack.c.b16 %v5949, %v5948
      %v5969 = vpack.c.b16 %v5951, %v5950
      %v5970 = vpack.c.b16 %v5953, %v5952
      %v5971 = vpack.c.b16 %v5955, %v5954
      %v5980 = vunpack.c.l.b16 %v5884
      %v5981 = vunpack.c.h.b16 %v5884
      %v5982 = vunpack.c.l.b16 %v5885
      %v5983 = vunpack.c.h.b16 %v5885
      %v5984 = vunpack.c.l.b16 %v5886
      %v5985 = vunpack.c.h.b16 %v5886
      %v5986 = vunpack.c.l.b16 %v5887
      %v5987 = vunpack.c.h.b16 %v5887
      %v5988 = vunpack.c.l.b16 %v5888
      %v5989 = vunpack.c.h.b16 %v5888
      %v5990 = vunpack.c.l.b16 %v5889
      %v5991 = vunpack.c.h.b16 %v5889
      %v5992 = vunpack.c.l.b16 %v5890
      %v5993 = vunpack.c.h.b16 %v5890
      %v5994 = vunpack.c.l.b16 %v5891
      %v5995 = vunpack.c.h.b16 %v5891
      %v5996 = vpack.c.b16 %v5984, %v5980
      %v5997 = vpack.c.b16 %v5985, %v5981
      %v5998 = vpack.c.b16 %v5986, %v5982
      %v5999 = vpack.c.b16 %v5987, %v5983
      %v6000 = vpack.c.b16 %v5992, %v5988
      %v6001 = vpack.c.b16 %v5993, %v5989
      %v6002 = vpack.c.b16 %v5994, %v5990
      %v6003 = vpack.c.b16 %v5995, %v5991
      %v6013 = vsel %vm573, %v5956, 0
      %v6016 = vsel %vm573, %v5957, 0
      %v6019 = vsel %vm573, %v5958, 0
      %v6022 = vsel %vm573, %v5959, 0
      %v6025 = vsel %vm573, %v5960, 0
      %v6028 = vsel %vm573, %v5961, 0
      %v6031 = vsel %vm573, %v5962, 0
      %v6034 = vsel %vm573, %v5963, 0
      %v6037 = vsel %vm573, %v5964, 0
      %v6040 = vsel %vm573, %v5965, 0
      %v6043 = vsel %vm573, %v5966, 0
      %v6046 = vsel %vm573, %v5967, 0
      %v6049 = vsel %vm573, %v5968, 0
      %v6052 = vsel %vm573, %v5969, 0
      %v6055 = vsel %vm573, %v5970, 0
      %v6058 = vsel %vm573, %v5971, 0
      %6060 = vmatprep.subr.bf16.mxu0 %v5997
      %6061 = vmatpush1.bf16.msra.mxu0 %v5996
      %6062 = vmatprep.subr.bf16.mxu0 %v6001
      %6063 = vmatpush1.bf16.msra.mxu0 %v6000
      %6064 = vmatprep.subr.bf16.mxu0 0
      %6065 = vmatpush1.bf16.msra.mxu0 0
      %6066 = vmatprep.subr.bf16.mxu0 0
      %6067 = vmatpush1.bf16.msra.mxu0 0
      %6068 = vmatprep.subr.bf16.mxu0 0
      %6069 = vmatpush1.bf16.msra.mxu0 0
      %6070 = vmatprep.subr.bf16.mxu0 0
      %6071 = vmatpush1.bf16.msra.mxu0 0
      %6072 = vmatprep.subr.bf16.mxu0 0
      %6073 = vmatpush1.bf16.msra.mxu0 0
      %6074 = vmatprep.subr.bf16.mxu0 0
      %6075 = vmatpush1.bf16.msra.mxu0 0
      %6076 = vmatprep.subr.bf16.mxu0 0
      %6077 = vmatpush1.bf16.msra.mxu0 0
      %6078 = vmatprep.subr.bf16.mxu0 0
      %6079 = vmatpush1.bf16.msra.mxu0 0
      %6080 = vmatprep.subr.bf16.mxu0 0
      %6081 = vmatpush1.bf16.msra.mxu0 0
      %6082 = vmatprep.subr.bf16.mxu0 0
      %6083 = vmatpush1.bf16.msra.mxu0 0
      %6084 = vmatprep.subr.bf16.mxu0 0
      %6085 = vmatpush1.bf16.msra.mxu0 0
      %6086 = vmatprep.subr.bf16.mxu0 0
      %6087 = vmatpush1.bf16.msra.mxu0 0
      %6088 = vmatprep.subr.bf16.mxu0 0
      %6089 = vmatpush1.bf16.msra.mxu0 0
      %6090 = vmatprep.subr.bf16.mxu0 0
      %6091 = vmatpush1.bf16.msra.mxu0 0
      %6092 = vmatprep.mubr.bf16.mxu0 0
      %6093 = vmatmul.mubr.bf16.gmra.mrb[0].mxu0 %v6013
      %v6094 = vpop.f32.mrb[0].mxu0
      %v6095 = vadd.f32 0.0, %v6094
      %v6096 = vpop.f32.mrb[0].mxu0
      %v6097 = vadd.f32 0.0, %v6096
      %v6098 = vpop.f32.mrb[0].mxu0
      %v6099 = vadd.f32 0.0, %v6098
      %v6100 = vpop.f32.mrb[0].mxu0
      %v6101 = vadd.f32 0.0, %v6100
      %6102 = vmatprep.mubr.bf16.mxu0 0
      %6103 = vmatmul.mubr.bf16.gmra.mrb[0].mxu0 %v6016
      %v6104 = vpop.f32.mrb[0].mxu0
      %v6105 = vadd.f32 0.0, %v6104
      %v6106 = vpop.f32.mrb[0].mxu0
      %v6107 = vadd.f32 0.0, %v6106
      %v6108 = vpop.f32.mrb[0].mxu0
      %v6109 = vadd.f32 0.0, %v6108
      %v6110 = vpop.f32.mrb[0].mxu0
      %v6111 = vadd.f32 0.0, %v6110
      %6112 = vmatprep.mubr.bf16.mxu0 0
      %6113 = vmatmul.mubr.bf16.gmra.mrb[0].mxu0 %v6019
      %v6114 = vpop.f32.mrb[0].mxu0
      %v6115 = vadd.f32 0.0, %v6114
      %v6116 = vpop.f32.mrb[0].mxu0
      %v6117 = vadd.f32 0.0, %v6116
      %v6118 = vpop.f32.mrb[0].mxu0
      %v6119 = vadd.f32 0.0, %v6118
      %v6120 = vpop.f32.mrb[0].mxu0
      %v6121 = vadd.f32 0.0, %v6120
      %6122 = vmatprep.mubr.bf16.mxu0 0
      %6123 = vmatmul.mubr.bf16.gmra.mrb[0].mxu0 %v6022
      %v6124 = vpop.f32.mrb[0].mxu0
      %v6125 = vadd.f32 0.0, %v6124
      %v6126 = vpop.f32.mrb[0].mxu0
      %v6127 = vadd.f32 0.0, %v6126
      %v6128 = vpop.f32.mrb[0].mxu0
      %v6129 = vadd.f32 0.0, %v6128
      %v6130 = vpop.f32.mrb[0].mxu0
      %v6131 = vadd.f32 0.0, %v6130
      %6132 = vmatprep.mubr.bf16.mxu0 0
      %6133 = vmatmul.mubr.bf16.gmra.mrb[0].mxu0 %v6025
      %v6134 = vpop.f32.mrb[0].mxu0
      %v6135 = vadd.f32 0.0, %v6134
      %v6136 = vpop.f32.mrb[0].mxu0
      %v6137 = vadd.f32 0.0, %v6136
      %v6138 = vpop.f32.mrb[0].mxu0
      %v6139 = vadd.f32 0.0, %v6138
      %v6140 = vpop.f32.mrb[0].mxu0
      %v6141 = vadd.f32 0.0, %v6140
      %6142 = vmatprep.mubr.bf16.mxu0 0
      %6143 = vmatmul.mubr.bf16.gmra.mrb[0].mxu0 %v6028
      %v6144 = vpop.f32.mrb[0].mxu0
      %v6145 = vadd.f32 0.0, %v6144
      %v6146 = vpop.f32.mrb[0].mxu0
      %v6147 = vadd.f32 0.0, %v6146
      %v6148 = vpop.f32.mrb[0].mxu0
      %v6149 = vadd.f32 0.0, %v6148
      %v6150 = vpop.f32.mrb[0].mxu0
      %v6151 = vadd.f32 0.0, %v6150
      %6152 = vmatprep.mubr.bf16.mxu0 0
      %6153 = vmatmul.mubr.bf16.gmra.mrb[0].mxu0 %v6031
      %v6154 = vpop.f32.mrb[0].mxu0
      %v6155 = vadd.f32 0.0, %v6154
      %v6156 = vpop.f32.mrb[0].mxu0
      %v6157 = vadd.f32 0.0, %v6156
      %v6158 = vpop.f32.mrb[0].mxu0
      %v6159 = vadd.f32 0.0, %v6158
      %v6160 = vpop.f32.mrb[0].mxu0
      %v6161 = vadd.f32 0.0, %v6160
      %6162 = vmatprep.mubr.bf16.mxu0 0
      %6163 = vmatmul.mubr.bf16.gmra.mrb[0].mxu0 %v6034
      %v6164 = vpop.f32.mrb[0].mxu0
      %v6165 = vadd.f32 0.0, %v6164
      %v6166 = vpop.f32.mrb[0].mxu0
      %v6167 = vadd.f32 0.0, %v6166
      %v6168 = vpop.f32.mrb[0].mxu0
      %v6169 = vadd.f32 0.0, %v6168
      %v6170 = vpop.f32.mrb[0].mxu0
      %v6171 = vadd.f32 0.0, %v6170
      %6172 = vmatprep.mubr.bf16.mxu0 0
      %6173 = vmatmul.mubr.bf16.gmra.mrb[0].mxu0 %v6037
      %v6174 = vpop.f32.mrb[0].mxu0
      %v6175 = vadd.f32 0.0, %v6174
      %v6176 = vpop.f32.mrb[0].mxu0
      %v6177 = vadd.f32 0.0, %v6176
      %v6178 = vpop.f32.mrb[0].mxu0
      %v6179 = vadd.f32 0.0, %v6178
      %v6180 = vpop.f32.mrb[0].mxu0
      %v6181 = vadd.f32 0.0, %v6180
      %6182 = vmatprep.mubr.bf16.mxu0 0
      %6183 = vmatmul.mubr.bf16.gmra.mrb[0].mxu0 %v6040
      %v6184 = vpop.f32.mrb[0].mxu0
      %v6185 = vadd.f32 0.0, %v6184
      %v6186 = vpop.f32.mrb[0].mxu0
      %v6187 = vadd.f32 0.0, %v6186
      %v6188 = vpop.f32.mrb[0].mxu0
      %v6189 = vadd.f32 0.0, %v6188
      %v6190 = vpop.f32.mrb[0].mxu0
      %v6191 = vadd.f32 0.0, %v6190
      %6192 = vmatprep.mubr.bf16.mxu0 0
      %6193 = vmatmul.mubr.bf16.gmra.mrb[0].mxu0 %v6043
      %v6194 = vpop.f32.mrb[0].mxu0
      %v6195 = vadd.f32 0.0, %v6194
      %v6196 = vpop.f32.mrb[0].mxu0
      %v6197 = vadd.f32 0.0, %v6196
      %v6198 = vpop.f32.mrb[0].mxu0
      %v6199 = vadd.f32 0.0, %v6198
      %v6200 = vpop.f32.mrb[0].mxu0
      %v6201 = vadd.f32 0.0, %v6200
      %6202 = vmatprep.mubr.bf16.mxu0 0
      %6203 = vmatmul.mubr.bf16.gmra.mrb[0].mxu0 %v6046
      %v6204 = vpop.f32.mrb[0].mxu0
      %v6205 = vadd.f32 0.0, %v6204
      %v6206 = vpop.f32.mrb[0].mxu0
      %v6207 = vadd.f32 0.0, %v6206
      %v6208 = vpop.f32.mrb[0].mxu0
      %v6209 = vadd.f32 0.0, %v6208
      %v6210 = vpop.f32.mrb[0].mxu0
      %v6211 = vadd.f32 0.0, %v6210
      %6212 = vmatprep.mubr.bf16.mxu0 0
      %6213 = vmatmul.mubr.bf16.gmra.mrb[0].mxu0 %v6049
      %v6214 = vpop.f32.mrb[0].mxu0
      %v6215 = vadd.f32 0.0, %v6214
      %v6216 = vpop.f32.mrb[0].mxu0
      %v6217 = vadd.f32 0.0, %v6216
      %v6218 = vpop.f32.mrb[0].mxu0
      %v6219 = vadd.f32 0.0, %v6218
      %v6220 = vpop.f32.mrb[0].mxu0
      %v6221 = vadd.f32 0.0, %v6220
      %6222 = vmatprep.mubr.bf16.mxu0 0
      %6223 = vmatmul.mubr.bf16.gmra.mrb[0].mxu0 %v6052
      %v6224 = vpop.f32.mrb[0].mxu0
      %v6225 = vadd.f32 0.0, %v6224
      %v6226 = vpop.f32.mrb[0].mxu0
      %v6227 = vadd.f32 0.0, %v6226
      %v6228 = vpop.f32.mrb[0].mxu0
      %v6229 = vadd.f32 0.0, %v6228
      %v6230 = vpop.f32.mrb[0].mxu0
      %v6231 = vadd.f32 0.0, %v6230
      %6232 = vmatprep.mubr.bf16.mxu0 0
      %6233 = vmatmul.mubr.bf16.gmra.mrb[0].mxu0 %v6055
      %v6234 = vpop.f32.mrb[0].mxu0
      %v6235 = vadd.f32 0.0, %v6234
      %v6236 = vpop.f32.mrb[0].mxu0
      %v6237 = vadd.f32 0.0, %v6236
      %v6238 = vpop.f32.mrb[0].mxu0
      %v6239 = vadd.f32 0.0, %v6238
      %v6240 = vpop.f32.mrb[0].mxu0
      %v6241 = vadd.f32 0.0, %v6240
      %6242 = vmatprep.mubr.bf16.mxu0 0
      %6243 = vmatmul.mubr.bf16.gmra.mrb[0].mxu0 %v6058
      %v6244 = vpop.f32.mrb[0].mxu0
      %v6245 = vadd.f32 0.0, %v6244
      %v6246 = vpop.f32.mrb[0].mxu0
      %v6247 = vadd.f32 0.0, %v6246
      %v6248 = vpop.f32.mrb[0].mxu0
      %v6249 = vadd.f32 0.0, %v6248
      %v6250 = vpop.f32.mrb[0].mxu0
      %v6251 = vadd.f32 0.0, %v6250
      %6252 = vdwg.mxu0
      %6253 = vmatprep.subr.bf16.mxu0 %v5999
      %6254 = vmatpush1.bf16.msra.mxu0 %v5998
      %6255 = vmatprep.subr.bf16.mxu0 %v6003
      %6256 = vmatpush1.bf16.msra.mxu0 %v6002
      %6257 = vmatprep.subr.bf16.mxu0 0
      %6258 = vmatpush1.bf16.msra.mxu0 0
      %6259 = vmatprep.subr.bf16.mxu0 0
      %6260 = vmatpush1.bf16.msra.mxu0 0
      %6261 = vmatprep.subr.bf16.mxu0 0
      %6262 = vmatpush1.bf16.msra.mxu0 0
      %6263 = vmatprep.subr.bf16.mxu0 0
      %6264 = vmatpush1.bf16.msra.mxu0 0
      %6265 = vmatprep.subr.bf16.mxu0 0
      %6266 = vmatpush1.bf16.msra.mxu0 0
      %6267 = vmatprep.subr.bf16.mxu0 0
      %6268 = vmatpush1.bf16.msra.mxu0 0
      %6269 = vmatprep.subr.bf16.mxu0 0
      %6270 = vmatpush1.bf16.msra.mxu0 0
      %6271 = vmatprep.subr.bf16.mxu0 0
      %6272 = vmatpush1.bf16.msra.mxu0 0
      %6273 = vmatprep.subr.bf16.mxu0 0
      %6274 = vmatpush1.bf16.msra.mxu0 0
      %6275 = vmatprep.subr.bf16.mxu0 0
      %6276 = vmatpush1.bf16.msra.mxu0 0
      %6277 = vmatprep.subr.bf16.mxu0 0
      %6278 = vmatpush1.bf16.msra.mxu0 0
      %6279 = vmatprep.subr.bf16.mxu0 0
      %6280 = vmatpush1.bf16.msra.mxu0 0
      %6281 = vmatprep.subr.bf16.mxu0 0
      %6282 = vmatpush1.bf16.msra.mxu0 0
      %6283 = vmatprep.subr.bf16.mxu0 0
      %6284 = vmatpush1.bf16.msra.mxu0 0
      %6285 = vmatprep.mubr.bf16.mxu0 0
      %6286 = vmatmul.mubr.bf16.gmra.mrb[0].mxu0 %v6013
      %v6287 = vpop.f32.mrb[0].mxu0
      %v6288 = vadd.f32 0.0, %v6287
      %v6289 = vpop.f32.mrb[0].mxu0
      %v6290 = vadd.f32 0.0, %v6289
      %v6291 = vpop.f32.mrb[0].mxu0
      %v6292 = vadd.f32 0.0, %v6291
      %v6293 = vpop.f32.mrb[0].mxu0
      %v6294 = vadd.f32 0.0, %v6293
      %6295 = vmatprep.mubr.bf16.mxu0 0
      %6296 = vmatmul.mubr.bf16.gmra.mrb[0].mxu0 %v6016
      %v6297 = vpop.f32.mrb[0].mxu0
      %v6298 = vadd.f32 0.0, %v6297
      %v6299 = vpop.f32.mrb[0].mxu0
      %v6300 = vadd.f32 0.0, %v6299
      %v6301 = vpop.f32.mrb[0].mxu0
      %v6302 = vadd.f32 0.0, %v6301
      %v6303 = vpop.f32.mrb[0].mxu0
      %v6304 = vadd.f32 0.0, %v6303
      %6305 = vmatprep.mubr.bf16.mxu0 0
      %6306 = vmatmul.mubr.bf16.gmra.mrb[0].mxu0 %v6019
      %v6307 = vpop.f32.mrb[0].mxu0
      %v6308 = vadd.f32 0.0, %v6307
      %v6309 = vpop.f32.mrb[0].mxu0
      %v6310 = vadd.f32 0.0, %v6309
      %v6311 = vpop.f32.mrb[0].mxu0
      %v6312 = vadd.f32 0.0, %v6311
      %v6313 = vpop.f32.mrb[0].mxu0
      %v6314 = vadd.f32 0.0, %v6313
      %6315 = vmatprep.mubr.bf16.mxu0 0
      %6316 = vmatmul.mubr.bf16.gmra.mrb[0].mxu0 %v6022
      %v6317 = vpop.f32.mrb[0].mxu0
      %v6318 = vadd.f32 0.0, %v6317
      %v6319 = vpop.f32.mrb[0].mxu0
      %v6320 = vadd.f32 0.0, %v6319
      %v6321 = vpop.f32.mrb[0].mxu0
      %v6322 = vadd.f32 0.0, %v6321
      %v6323 = vpop.f32.mrb[0].mxu0
      %v6324 = vadd.f32 0.0, %v6323
      %6325 = vmatprep.mubr.bf16.mxu0 0
      %6326 = vmatmul.mubr.bf16.gmra.mrb[0].mxu0 %v6025
      %v6327 = vpop.f32.mrb[0].mxu0
      %v6328 = vadd.f32 0.0, %v6327
      %v6329 = vpop.f32.mrb[0].mxu0
      %v6330 = vadd.f32 0.0, %v6329
      %v6331 = vpop.f32.mrb[0].mxu0
      %v6332 = vadd.f32 0.0, %v6331
      %v6333 = vpop.f32.mrb[0].mxu0
      %v6334 = vadd.f32 0.0, %v6333
      %6335 = vmatprep.mubr.bf16.mxu0 0
      %6336 = vmatmul.mubr.bf16.gmra.mrb[0].mxu0 %v6028
      %v6337 = vpop.f32.mrb[0].mxu0
      %v6338 = vadd.f32 0.0, %v6337
      %v6339 = vpop.f32.mrb[0].mxu0
      %v6340 = vadd.f32 0.0, %v6339
      %v6341 = vpop.f32.mrb[0].mxu0
      %v6342 = vadd.f32 0.0, %v6341
      %v6343 = vpop.f32.mrb[0].mxu0
      %v6344 = vadd.f32 0.0, %v6343
      %6345 = vmatprep.mubr.bf16.mxu0 0
      %6346 = vmatmul.mubr.bf16.gmra.mrb[0].mxu0 %v6031
      %v6347 = vpop.f32.mrb[0].mxu0
      %v6348 = vadd.f32 0.0, %v6347
      %v6349 = vpop.f32.mrb[0].mxu0
      %v6350 = vadd.f32 0.0, %v6349
      %v6351 = vpop.f32.mrb[0].mxu0
      %v6352 = vadd.f32 0.0, %v6351
      %v6353 = vpop.f32.mrb[0].mxu0
      %v6354 = vadd.f32 0.0, %v6353
      %6355 = vmatprep.mubr.bf16.mxu0 0
      %6356 = vmatmul.mubr.bf16.gmra.mrb[0].mxu0 %v6034
      %v6357 = vpop.f32.mrb[0].mxu0
      %v6358 = vadd.f32 0.0, %v6357
      %v6359 = vpop.f32.mrb[0].mxu0
      %v6360 = vadd.f32 0.0, %v6359
      %v6361 = vpop.f32.mrb[0].mxu0
      %v6362 = vadd.f32 0.0, %v6361
      %v6363 = vpop.f32.mrb[0].mxu0
      %v6364 = vadd.f32 0.0, %v6363
      %6365 = vmatprep.mubr.bf16.mxu0 0
      %6366 = vmatmul.mubr.bf16.gmra.mrb[0].mxu0 %v6037
      %v6367 = vpop.f32.mrb[0].mxu0
      %v6368 = vadd.f32 0.0, %v6367
      %v6369 = vpop.f32.mrb[0].mxu0
      %v6370 = vadd.f32 0.0, %v6369
      %v6371 = vpop.f32.mrb[0].mxu0
      %v6372 = vadd.f32 0.0, %v6371
      %v6373 = vpop.f32.mrb[0].mxu0
      %v6374 = vadd.f32 0.0, %v6373
      %6375 = vmatprep.mubr.bf16.mxu0 0
      %6376 = vmatmul.mubr.bf16.gmra.mrb[0].mxu0 %v6040
      %v6377 = vpop.f32.mrb[0].mxu0
      %v6378 = vadd.f32 0.0, %v6377
      %v6379 = vpop.f32.mrb[0].mxu0
      %v6380 = vadd.f32 0.0, %v6379
      %v6381 = vpop.f32.mrb[0].mxu0
      %v6382 = vadd.f32 0.0, %v6381
      %v6383 = vpop.f32.mrb[0].mxu0
      %v6384 = vadd.f32 0.0, %v6383
      %6385 = vmatprep.mubr.bf16.mxu0 0
      %6386 = vmatmul.mubr.bf16.gmra.mrb[0].mxu0 %v6043
      %v6387 = vpop.f32.mrb[0].mxu0
      %v6388 = vadd.f32 0.0, %v6387
      %v6389 = vpop.f32.mrb[0].mxu0
      %v6390 = vadd.f32 0.0, %v6389
      %v6391 = vpop.f32.mrb[0].mxu0
      %v6392 = vadd.f32 0.0, %v6391
      %v6393 = vpop.f32.mrb[0].mxu0
      %v6394 = vadd.f32 0.0, %v6393
      %6395 = vmatprep.mubr.bf16.mxu0 0
      %6396 = vmatmul.mubr.bf16.gmra.mrb[0].mxu0 %v6046
      %v6397 = vpop.f32.mrb[0].mxu0
      %v6398 = vadd.f32 0.0, %v6397
      %v6399 = vpop.f32.mrb[0].mxu0
      %v6400 = vadd.f32 0.0, %v6399
      %v6401 = vpop.f32.mrb[0].mxu0
      %v6402 = vadd.f32 0.0, %v6401
      %v6403 = vpop.f32.mrb[0].mxu0
      %v6404 = vadd.f32 0.0, %v6403
      %6405 = vmatprep.mubr.bf16.mxu0 0
      %6406 = vmatmul.mubr.bf16.gmra.mrb[0].mxu0 %v6049
      %v6407 = vpop.f32.mrb[0].mxu0
      %v6408 = vadd.f32 0.0, %v6407
      %v6409 = vpop.f32.mrb[0].mxu0
      %v6410 = vadd.f32 0.0, %v6409
      %v6411 = vpop.f32.mrb[0].mxu0
      %v6412 = vadd.f32 0.0, %v6411
      %v6413 = vpop.f32.mrb[0].mxu0
      %v6414 = vadd.f32 0.0, %v6413
      %6415 = vmatprep.mubr.bf16.mxu0 0
      %6416 = vmatmul.mubr.bf16.gmra.mrb[0].mxu0 %v6052
      %v6417 = vpop.f32.mrb[0].mxu0
      %v6418 = vadd.f32 0.0, %v6417
      %v6419 = vpop.f32.mrb[0].mxu0
      %v6420 = vadd.f32 0.0, %v6419
      %v6421 = vpop.f32.mrb[0].mxu0
      %v6422 = vadd.f32 0.0, %v6421
      %v6423 = vpop.f32.mrb[0].mxu0
      %v6424 = vadd.f32 0.0, %v6423
      %6425 = vmatprep.mubr.bf16.mxu0 0
      %6426 = vmatmul.mubr.bf16.gmra.mrb[0].mxu0 %v6055
      %v6427 = vpop.f32.mrb[0].mxu0
      %v6428 = vadd.f32 0.0, %v6427
      %v6429 = vpop.f32.mrb[0].mxu0
      %v6430 = vadd.f32 0.0, %v6429
      %v6431 = vpop.f32.mrb[0].mxu0
      %v6432 = vadd.f32 0.0, %v6431
      %v6433 = vpop.f32.mrb[0].mxu0
      %v6434 = vadd.f32 0.0, %v6433
      %6435 = vmatprep.mubr.bf16.mxu0 0
      %6436 = vmatmul.mubr.bf16.gmra.mrb[0].mxu0 %v6058
      %v6437 = vpop.f32.mrb[0].mxu0
      %v6438 = vadd.f32 0.0, %v6437
      %v6439 = vpop.f32.mrb[0].mxu0
      %v6440 = vadd.f32 0.0, %v6439
      %v6441 = vpop.f32.mrb[0].mxu0
      %v6442 = vadd.f32 0.0, %v6441
      %v6443 = vpop.f32.mrb[0].mxu0
      %v6444 = vadd.f32 0.0, %v6443
      %6445 = vdwg.mxu0
      %v6446 = vmax.f32 %v6095, 0.0
      %v6447 = vmax.f32 %v6097, 0.0
      %v6448 = vmax.f32 %v6288, 0.0
      %v6449 = vmax.f32 %v6290, 0.0
      %v6450 = vmax.f32 %v6099, 0.0
      %v6451 = vmax.f32 %v6101, 0.0
      %v6452 = vmax.f32 %v6292, 0.0
      %v6453 = vmax.f32 %v6294, 0.0
      %v6454 = vmax.f32 %v6105, 0.0
      %v6455 = vmax.f32 %v6107, 0.0
      %v6456 = vmax.f32 %v6298, 0.0
      %v6457 = vmax.f32 %v6300, 0.0
      %v6458 = vmax.f32 %v6109, 0.0
      %v6459 = vmax.f32 %v6111, 0.0
      %v6460 = vmax.f32 %v6302, 0.0
      %v6461 = vmax.f32 %v6304, 0.0
      %v6462 = vmax.f32 %v6115, 0.0
      %v6463 = vmax.f32 %v6117, 0.0
      %v6464 = vmax.f32 %v6308, 0.0
      %v6465 = vmax.f32 %v6310, 0.0
      %v6466 = vmax.f32 %v6119, 0.0
      %v6467 = vmax.f32 %v6121, 0.0
      %v6468 = vmax.f32 %v6312, 0.0
      %v6469 = vmax.f32 %v6314, 0.0
      %v6470 = vmax.f32 %v6125, 0.0
      %v6471 = vmax.f32 %v6127, 0.0
      %v6472 = vmax.f32 %v6318, 0.0
      %v6473 = vmax.f32 %v6320, 0.0
      %v6474 = vmax.f32 %v6129, 0.0
      %v6475 = vmax.f32 %v6131, 0.0
      %v6476 = vmax.f32 %v6322, 0.0
      %v6477 = vmax.f32 %v6324, 0.0
      %v6478 = vmax.f32 %v6135, 0.0
      %v6479 = vmax.f32 %v6137, 0.0
      %v6480 = vmax.f32 %v6328, 0.0
      %v6481 = vmax.f32 %v6330, 0.0
      %v6482 = vmax.f32 %v6139, 0.0
      %v6483 = vmax.f32 %v6141, 0.0
      %v6484 = vmax.f32 %v6332, 0.0
      %v6485 = vmax.f32 %v6334, 0.0
      %v6486 = vmax.f32 %v6145, 0.0
      %v6487 = vmax.f32 %v6147, 0.0
      %v6488 = vmax.f32 %v6338, 0.0
      %v6489 = vmax.f32 %v6340, 0.0
      %v6490 = vmax.f32 %v6149, 0.0
      %v6491 = vmax.f32 %v6151, 0.0
      %v6492 = vmax.f32 %v6342, 0.0
      %v6493 = vmax.f32 %v6344, 0.0
      %v6494 = vmax.f32 %v6155, 0.0
      %v6495 = vmax.f32 %v6157, 0.0
      %v6496 = vmax.f32 %v6348, 0.0
      %v6497 = vmax.f32 %v6350, 0.0
      %v6498 = vmax.f32 %v6159, 0.0
      %v6499 = vmax.f32 %v6161, 0.0
      %v6500 = vmax.f32 %v6352, 0.0
      %v6501 = vmax.f32 %v6354, 0.0
      %v6502 = vmax.f32 %v6165, 0.0
      %v6503 = vmax.f32 %v6167, 0.0
      %v6504 = vmax.f32 %v6358, 0.0
      %v6505 = vmax.f32 %v6360, 0.0
      %v6506 = vmax.f32 %v6169, 0.0
      %v6507 = vmax.f32 %v6171, 0.0
      %v6508 = vmax.f32 %v6362, 0.0
      %v6509 = vmax.f32 %v6364, 0.0
      %v6510 = vmax.f32 %v6175, 0.0
      %v6511 = vmax.f32 %v6177, 0.0
      %v6512 = vmax.f32 %v6368, 0.0
      %v6513 = vmax.f32 %v6370, 0.0
      %v6514 = vmax.f32 %v6179, 0.0
      %v6515 = vmax.f32 %v6181, 0.0
      %v6516 = vmax.f32 %v6372, 0.0
      %v6517 = vmax.f32 %v6374, 0.0
      %v6518 = vmax.f32 %v6185, 0.0
      %v6519 = vmax.f32 %v6187, 0.0
      %v6520 = vmax.f32 %v6378, 0.0
      %v6521 = vmax.f32 %v6380, 0.0
      %v6522 = vmax.f32 %v6189, 0.0
      %v6523 = vmax.f32 %v6191, 0.0
      %v6524 = vmax.f32 %v6382, 0.0
      %v6525 = vmax.f32 %v6384, 0.0
      %v6526 = vmax.f32 %v6195, 0.0
      %v6527 = vmax.f32 %v6197, 0.0
      %v6528 = vmax.f32 %v6388, 0.0
      %v6529 = vmax.f32 %v6390, 0.0
      %v6530 = vmax.f32 %v6199, 0.0
      %v6531 = vmax.f32 %v6201, 0.0
      %v6532 = vmax.f32 %v6392, 0.0
      %v6533 = vmax.f32 %v6394, 0.0
      %v6534 = vmax.f32 %v6205, 0.0
      %v6535 = vmax.f32 %v6207, 0.0
      %v6536 = vmax.f32 %v6398, 0.0
      %v6537 = vmax.f32 %v6400, 0.0
      %v6538 = vmax.f32 %v6209, 0.0
      %v6539 = vmax.f32 %v6211, 0.0
      %v6540 = vmax.f32 %v6402, 0.0
      %v6541 = vmax.f32 %v6404, 0.0
      %v6542 = vmax.f32 %v6215, 0.0
      %v6543 = vmax.f32 %v6217, 0.0
      %v6544 = vmax.f32 %v6408, 0.0
      %v6545 = vmax.f32 %v6410, 0.0
      %v6546 = vmax.f32 %v6219, 0.0
      %v6547 = vmax.f32 %v6221, 0.0
      %v6548 = vmax.f32 %v6412, 0.0
      %v6549 = vmax.f32 %v6414, 0.0
      %v6550 = vmax.f32 %v6225, 0.0
      %v6551 = vmax.f32 %v6227, 0.0
      %v6552 = vmax.f32 %v6418, 0.0
      %v6553 = vmax.f32 %v6420, 0.0
      %v6554 = vmax.f32 %v6229, 0.0
      %v6555 = vmax.f32 %v6231, 0.0
      %v6556 = vmax.f32 %v6422, 0.0
      %v6557 = vmax.f32 %v6424, 0.0
      %v6558 = vmax.f32 %v6235, 0.0
      %v6559 = vmax.f32 %v6237, 0.0
      %v6560 = vmax.f32 %v6428, 0.0
      %v6561 = vmax.f32 %v6430, 0.0
      %v6562 = vmax.f32 %v6239, 0.0
      %v6563 = vmax.f32 %v6241, 0.0
      %v6564 = vmax.f32 %v6432, 0.0
      %v6565 = vmax.f32 %v6434, 0.0
      %v6566 = vmax.f32 %v6245, 0.0
      %v6567 = vmax.f32 %v6247, 0.0
      %v6568 = vmax.f32 %v6438, 0.0
      %v6569 = vmax.f32 %v6440, 0.0
      %v6570 = vmax.f32 %v6249, 0.0
      %v6571 = vmax.f32 %v6251, 0.0
      %v6572 = vmax.f32 %v6442, 0.0
      %v6573 = vmax.f32 %v6444, 0.0
      %v6574 = vmax.f32 %v6446, %v6450
      %v6575 = vmax.f32 %v6574, %v6454
      %v6576 = vmax.f32 %v6575, %v6458
      %v6577 = vmax.f32 %v6576, %v6462
      %v6578 = vmax.f32 %v6577, %v6466
      %v6579 = vmax.f32 %v6578, %v6470
      %v6580 = vmax.f32 %v6579, %v6474
      %v6581 = vmax.f32 %v6580, %v6478
      %v6582 = vmax.f32 %v6581, %v6482
      %v6583 = vmax.f32 %v6582, %v6486
      %v6584 = vmax.f32 %v6583, %v6490
      %v6585 = vmax.f32 %v6584, %v6494
      %v6586 = vmax.f32 %v6585, %v6498
      %v6587 = vmax.f32 %v6586, %v6502
      %v6588 = vmax.f32 %v6587, %v6506
      %v6589 = vmax.f32 %v6588, %v6510
      %v6590 = vmax.f32 %v6589, %v6514
      %v6591 = vmax.f32 %v6590, %v6518
      %v6592 = vmax.f32 %v6591, %v6522
      %v6593 = vmax.f32 %v6592, %v6526
      %v6594 = vmax.f32 %v6593, %v6530
      %v6595 = vmax.f32 %v6594, %v6534
      %v6596 = vmax.f32 %v6595, %v6538
      %v6597 = vmax.f32 %v6596, %v6542
      %v6598 = vmax.f32 %v6597, %v6546
      %v6599 = vmax.f32 %v6598, %v6550
      %v6600 = vmax.f32 %v6599, %v6554
      %v6601 = vmax.f32 %v6600, %v6558
      %v6602 = vmax.f32 %v6601, %v6562
      %v6603 = vmax.f32 %v6602, %v6566
      %v6604 = vmax.f32 %v6603, %v6570
      %v6605 = vrot.slane %v6604, 4
      %v6606 = vmax.f32 %v6604, %v6605
      %v6607 = vrot.slane %v6606, 2
      %v6608 = vmax.f32 %v6606, %v6607
      %v6609 = vrot.slane %v6608, 1
      %v6610 = vmax.f32 %v6608, %v6609
      %v6611 = vmax.f32 %v6447, %v6451
      %v6612 = vmax.f32 %v6611, %v6455
      %v6613 = vmax.f32 %v6612, %v6459
      %v6614 = vmax.f32 %v6613, %v6463
      %v6615 = vmax.f32 %v6614, %v6467
      %v6616 = vmax.f32 %v6615, %v6471
      %v6617 = vmax.f32 %v6616, %v6475
      %v6618 = vmax.f32 %v6617, %v6479
      %v6619 = vmax.f32 %v6618, %v6483
      %v6620 = vmax.f32 %v6619, %v6487
      %v6621 = vmax.f32 %v6620, %v6491
      %v6622 = vmax.f32 %v6621, %v6495
      %v6623 = vmax.f32 %v6622, %v6499
      %v6624 = vmax.f32 %v6623, %v6503
      %v6625 = vmax.f32 %v6624, %v6507
      %v6626 = vmax.f32 %v6625, %v6511
      %v6627 = vmax.f32 %v6626, %v6515
      %v6628 = vmax.f32 %v6627, %v6519
      %v6629 = vmax.f32 %v6628, %v6523
      %v6630 = vmax.f32 %v6629, %v6527
      %v6631 = vmax.f32 %v6630, %v6531
      %v6632 = vmax.f32 %v6631, %v6535
      %v6633 = vmax.f32 %v6632, %v6539
      %v6634 = vmax.f32 %v6633, %v6543
      %v6635 = vmax.f32 %v6634, %v6547
      %v6636 = vmax.f32 %v6635, %v6551
      %v6637 = vmax.f32 %v6636, %v6555
      %v6638 = vmax.f32 %v6637, %v6559
      %v6639 = vmax.f32 %v6638, %v6563
      %v6640 = vmax.f32 %v6639, %v6567
      %v6641 = vmax.f32 %v6640, %v6571
      %v6642 = vrot.slane %v6641, 4
      %v6643 = vmax.f32 %v6641, %v6642
      %v6644 = vrot.slane %v6643, 2
      %v6645 = vmax.f32 %v6643, %v6644
      %v6646 = vrot.slane %v6645, 1
      %v6647 = vmax.f32 %v6645, %v6646
      %v6648 = vmax.f32 %v6448, %v6452
      %v6649 = vmax.f32 %v6648, %v6456
      %v6650 = vmax.f32 %v6649, %v6460
      %v6651 = vmax.f32 %v6650, %v6464
      %v6652 = vmax.f32 %v6651, %v6468
      %v6653 = vmax.f32 %v6652, %v6472
      %v6654 = vmax.f32 %v6653, %v6476
      %v6655 = vmax.f32 %v6654, %v6480
      %v6656 = vmax.f32 %v6655, %v6484
      %v6657 = vmax.f32 %v6656, %v6488
      %v6658 = vmax.f32 %v6657, %v6492
      %v6659 = vmax.f32 %v6658, %v6496
      %v6660 = vmax.f32 %v6659, %v6500
      %v6661 = vmax.f32 %v6660, %v6504
      %v6662 = vmax.f32 %v6661, %v6508
      %v6663 = vmax.f32 %v6662, %v6512
      %v6664 = vmax.f32 %v6663, %v6516
      %v6665 = vmax.f32 %v6664, %v6520
      %v6666 = vmax.f32 %v6665, %v6524
      %v6667 = vmax.f32 %v6666, %v6528
      %v6668 = vmax.f32 %v6667, %v6532
      %v6669 = vmax.f32 %v6668, %v6536
      %v6670 = vmax.f32 %v6669, %v6540
      %v6671 = vmax.f32 %v6670, %v6544
      %v6672 = vmax.f32 %v6671, %v6548
      %v6673 = vmax.f32 %v6672, %v6552
      %v6674 = vmax.f32 %v6673, %v6556
      %v6675 = vmax.f32 %v6674, %v6560
      %v6676 = vmax.f32 %v6675, %v6564
      %v6677 = vmax.f32 %v6676, %v6568
      %v6678 = vmax.f32 %v6677, %v6572
      %v6679 = vrot.slane %v6678, 4
      %v6680 = vmax.f32 %v6678, %v6679
      %v6681 = vrot.slane %v6680, 2
      %v6682 = vmax.f32 %v6680, %v6681
      %v6683 = vrot.slane %v6682, 1
      %v6684 = vmax.f32 %v6682, %v6683
      %v6685 = vmax.f32 %v6449, %v6453
      %v6686 = vmax.f32 %v6685, %v6457
      %v6687 = vmax.f32 %v6686, %v6461
      %v6688 = vmax.f32 %v6687, %v6465
      %v6689 = vmax.f32 %v6688, %v6469
      %v6690 = vmax.f32 %v6689, %v6473
      %v6691 = vmax.f32 %v6690, %v6477
      %v6692 = vmax.f32 %v6691, %v6481
      %v6693 = vmax.f32 %v6692, %v6485
      %v6694 = vmax.f32 %v6693, %v6489
      %v6695 = vmax.f32 %v6694, %v6493
      %v6696 = vmax.f32 %v6695, %v6497
      %v6697 = vmax.f32 %v6696, %v6501
      %v6698 = vmax.f32 %v6697, %v6505
      %v6699 = vmax.f32 %v6698, %v6509
      %v6700 = vmax.f32 %v6699, %v6513
      %v6701 = vmax.f32 %v6700, %v6517
      %v6702 = vmax.f32 %v6701, %v6521
      %v6703 = vmax.f32 %v6702, %v6525
      %v6704 = vmax.f32 %v6703, %v6529
      %v6705 = vmax.f32 %v6704, %v6533
      %v6706 = vmax.f32 %v6705, %v6537
      %v6707 = vmax.f32 %v6706, %v6541
      %v6708 = vmax.f32 %v6707, %v6545
      %v6709 = vmax.f32 %v6708, %v6549
      %v6710 = vmax.f32 %v6709, %v6553
      %v6711 = vmax.f32 %v6710, %v6557
      %v6712 = vmax.f32 %v6711, %v6561
      %v6713 = vmax.f32 %v6712, %v6565
      %v6714 = vmax.f32 %v6713, %v6569
      %v6715 = vmax.f32 %v6714, %v6573
      %v6716 = vrot.slane %v6715, 4
      %v6717 = vmax.f32 %v6715, %v6716
      %v6718 = vrot.slane %v6717, 2
      %v6719 = vmax.f32 %v6717, %v6718
      %v6720 = vrot.slane %v6719, 1
      %v6721 = vmax.f32 %v6719, %v6720
      %v6726 = vcombine.low %v6610, %v6647
      %v6727 = vcombine.low %v6684, %v6721
      %v6729 = vunpack.c.l.s4 1966171168
      %v6730 = vunpack.c.0.s8 %v6729
      %v6731 = vlaneseq
      %v6732 = vshrl.u32 %v6731, 7
      %v6733 = vsub.s32 %v6730, %v6732
      %v6734 = vrot.slane %v6726, %v6733
      %v6736 = vunpack.c.l.s4 1966171168
      %v6737 = vunpack.c.0.s8 %v6736
      %v6738 = vlaneseq
      %v6739 = vshrl.u32 %v6738, 7
      %v6740 = vsub.s32 %v6737, %v6739
      %v6741 = vrot.slane %v6727, %v6740
      %v6742 = vcombine.low %v6734, %v6741
      %v6744 = vunpack.c.l.s4 1966171168
      %v6745 = vunpack.c.0.s8 %v6744
      %v6746 = vlaneseq
      %v6747 = vshrl.u32 %v6746, 7
      %v6748 = vsub.s32 %v6745, %v6747
      %v6749 = vrot.slane %v6742, %v6748
      %s6751 = scalar_lea.vmem [#allocation2], 5
      %6752 = vst.msk [vmem:[%s6751] ss:$8 sm:$0xf] %vm1316, %v6749
      %6753 = vst.msk [vmem:[%s6751] ss:$8 sm:$0x0] %vm1316, %v6749
      %v6754 = vadd.f32 %v6446, %v6450
      %v6755 = vadd.f32 %v6754, %v6454
      %v6756 = vadd.f32 %v6755, %v6458
      %v6757 = vadd.f32 %v6756, %v6462
      %v6758 = vadd.f32 %v6757, %v6466
      %v6759 = vadd.f32 %v6758, %v6470
      %v6760 = vadd.f32 %v6759, %v6474
      %v6761 = vadd.f32 %v6760, %v6478
      %v6762 = vadd.f32 %v6761, %v6482
      %v6763 = vadd.f32 %v6762, %v6486
      %v6764 = vadd.f32 %v6763, %v6490
      %v6765 = vadd.f32 %v6764, %v6494
      %v6766 = vadd.f32 %v6765, %v6498
      %v6767 = vadd.f32 %v6766, %v6502
      %v6768 = vadd.f32 %v6767, %v6506
      %v6769 = vadd.f32 %v6768, %v6510
      %v6770 = vadd.f32 %v6769, %v6514
      %v6771 = vadd.f32 %v6770, %v6518
      %v6772 = vadd.f32 %v6771, %v6522
      %v6773 = vadd.f32 %v6772, %v6526
      %v6774 = vadd.f32 %v6773, %v6530
      %v6775 = vadd.f32 %v6774, %v6534
      %v6776 = vadd.f32 %v6775, %v6538
      %v6777 = vadd.f32 %v6776, %v6542
      %v6778 = vadd.f32 %v6777, %v6546
      %v6779 = vadd.f32 %v6778, %v6550
      %v6780 = vadd.f32 %v6779, %v6554
      %v6781 = vadd.f32 %v6780, %v6558
      %v6782 = vadd.f32 %v6781, %v6562
      %v6783 = vadd.f32 %v6782, %v6566
      %v6784 = vadd.f32 %v6783, %v6570
      %v6785 = vrot.slane %v6784, 4
      %v6786 = vadd.f32 %v6784, %v6785
      %v6787 = vrot.slane %v6786, 2
      %v6788 = vadd.f32 %v6786, %v6787
      %v6789 = vrot.slane %v6788, 1
      %v6790 = vadd.f32 %v6788, %v6789
      %v6791 = vadd.f32 %v6447, %v6451
      %v6792 = vadd.f32 %v6791, %v6455
      %v6793 = vadd.f32 %v6792, %v6459
      %v6794 = vadd.f32 %v6793, %v6463
      %v6795 = vadd.f32 %v6794, %v6467
      %v6796 = vadd.f32 %v6795, %v6471
      %v6797 = vadd.f32 %v6796, %v6475
      %v6798 = vadd.f32 %v6797, %v6479
      %v6799 = vadd.f32 %v6798, %v6483
      %v6800 = vadd.f32 %v6799, %v6487
      %v6801 = vadd.f32 %v6800, %v6491
      %v6802 = vadd.f32 %v6801, %v6495
      %v6803 = vadd.f32 %v6802, %v6499
      %v6804 = vadd.f32 %v6803, %v6503
      %v6805 = vadd.f32 %v6804, %v6507
      %v6806 = vadd.f32 %v6805, %v6511
      %v6807 = vadd.f32 %v6806, %v6515
      %v6808 = vadd.f32 %v6807, %v6519
      %v6809 = vadd.f32 %v6808, %v6523
      %v6810 = vadd.f32 %v6809, %v6527
      %v6811 = vadd.f32 %v6810, %v6531
      %v6812 = vadd.f32 %v6811, %v6535
      %v6813 = vadd.f32 %v6812, %v6539
      %v6814 = vadd.f32 %v6813, %v6543
      %v6815 = vadd.f32 %v6814, %v6547
      %v6816 = vadd.f32 %v6815, %v6551
      %v6817 = vadd.f32 %v6816, %v6555
      %v6818 = vadd.f32 %v6817, %v6559
      %v6819 = vadd.f32 %v6818, %v6563
      %v6820 = vadd.f32 %v6819, %v6567
      %v6821 = vadd.f32 %v6820, %v6571
      %v6822 = vrot.slane %v6821, 4
      %v6823 = vadd.f32 %v6821, %v6822
      %v6824 = vrot.slane %v6823, 2
      %v6825 = vadd.f32 %v6823, %v6824
      %v6826 = vrot.slane %v6825, 1
      %v6827 = vadd.f32 %v6825, %v6826
      %v6828 = vadd.f32 %v6448, %v6452
      %v6829 = vadd.f32 %v6828, %v6456
      %v6830 = vadd.f32 %v6829, %v6460
      %v6831 = vadd.f32 %v6830, %v6464
      %v6832 = vadd.f32 %v6831, %v6468
      %v6833 = vadd.f32 %v6832, %v6472
      %v6834 = vadd.f32 %v6833, %v6476
      %v6835 = vadd.f32 %v6834, %v6480
      %v6836 = vadd.f32 %v6835, %v6484
      %v6837 = vadd.f32 %v6836, %v6488
      %v6838 = vadd.f32 %v6837, %v6492
      %v6839 = vadd.f32 %v6838, %v6496
      %v6840 = vadd.f32 %v6839, %v6500
      %v6841 = vadd.f32 %v6840, %v6504
      %v6842 = vadd.f32 %v6841, %v6508
      %v6843 = vadd.f32 %v6842, %v6512
      %v6844 = vadd.f32 %v6843, %v6516
      %v6845 = vadd.f32 %v6844, %v6520
      %v6846 = vadd.f32 %v6845, %v6524
      %v6847 = vadd.f32 %v6846, %v6528
      %v6848 = vadd.f32 %v6847, %v6532
      %v6849 = vadd.f32 %v6848, %v6536
      %v6850 = vadd.f32 %v6849, %v6540
      %v6851 = vadd.f32 %v6850, %v6544
      %v6852 = vadd.f32 %v6851, %v6548
      %v6853 = vadd.f32 %v6852, %v6552
      %v6854 = vadd.f32 %v6853, %v6556
      %v6855 = vadd.f32 %v6854, %v6560
      %v6856 = vadd.f32 %v6855, %v6564
      %v6857 = vadd.f32 %v6856, %v6568
      %v6858 = vadd.f32 %v6857, %v6572
      %v6859 = vrot.slane %v6858, 4
      %v6860 = vadd.f32 %v6858, %v6859
      %v6861 = vrot.slane %v6860, 2
      %v6862 = vadd.f32 %v6860, %v6861
      %v6863 = vrot.slane %v6862, 1
      %v6864 = vadd.f32 %v6862, %v6863
      %v6865 = vadd.f32 %v6449, %v6453
      %v6866 = vadd.f32 %v6865, %v6457
      %v6867 = vadd.f32 %v6866, %v6461
      %v6868 = vadd.f32 %v6867, %v6465
      %v6869 = vadd.f32 %v6868, %v6469
      %v6870 = vadd.f32 %v6869, %v6473
      %v6871 = vadd.f32 %v6870, %v6477
      %v6872 = vadd.f32 %v6871, %v6481
      %v6873 = vadd.f32 %v6872, %v6485
      %v6874 = vadd.f32 %v6873, %v6489
      %v6875 = vadd.f32 %v6874, %v6493
      %v6876 = vadd.f32 %v6875, %v6497
      %v6877 = vadd.f32 %v6876, %v6501
      %v6878 = vadd.f32 %v6877, %v6505
      %v6879 = vadd.f32 %v6878, %v6509
      %v6880 = vadd.f32 %v6879, %v6513
      %v6881 = vadd.f32 %v6880, %v6517
      %v6882 = vadd.f32 %v6881, %v6521
      %v6883 = vadd.f32 %v6882, %v6525
      %v6884 = vadd.f32 %v6883, %v6529
      %v6885 = vadd.f32 %v6884, %v6533
      %v6886 = vadd.f32 %v6885, %v6537
      %v6887 = vadd.f32 %v6886, %v6541
      %v6888 = vadd.f32 %v6887, %v6545
      %v6889 = vadd.f32 %v6888, %v6549
      %v6890 = vadd.f32 %v6889, %v6553
      %v6891 = vadd.f32 %v6890, %v6557
      %v6892 = vadd.f32 %v6891, %v6561
      %v6893 = vadd.f32 %v6892, %v6565
      %v6894 = vadd.f32 %v6893, %v6569
      %v6895 = vadd.f32 %v6894, %v6573
      %v6896 = vrot.slane %v6895, 4
      %v6897 = vadd.f32 %v6895, %v6896
      %v6898 = vrot.slane %v6897, 2
      %v6899 = vadd.f32 %v6897, %v6898
      %v6900 = vrot.slane %v6899, 1
      %v6901 = vadd.f32 %v6899, %v6900
      %v6902 = vmul.f32 %v6790, 0.00390625
      %v6903 = vmul.f32 %v6827, 0.00390625
      %v6904 = vmul.f32 %v6864, 0.00390625
      %v6905 = vmul.f32 %v6901, 0.00390625
      %v6910 = vcombine.low %v6902, %v6903
      %v6911 = vcombine.low %v6904, %v6905
      %v6913 = vunpack.c.l.s4 1966171168
      %v6914 = vunpack.c.0.s8 %v6913
      %v6915 = vlaneseq
      %v6916 = vshrl.u32 %v6915, 7
      %v6917 = vsub.s32 %v6914, %v6916
      %v6918 = vrot.slane %v6910, %v6917
      %v6920 = vunpack.c.l.s4 1966171168
      %v6921 = vunpack.c.0.s8 %v6920
      %v6922 = vlaneseq
      %v6923 = vshrl.u32 %v6922, 7
      %v6924 = vsub.s32 %v6921, %v6923
      %v6925 = vrot.slane %v6911, %v6924
      %v6926 = vcombine.low %v6918, %v6925
      %v6928 = vunpack.c.l.s4 1966171168
      %v6929 = vunpack.c.0.s8 %v6928
      %v6930 = vlaneseq
      %v6931 = vshrl.u32 %v6930, 7
      %v6932 = vsub.s32 %v6929, %v6931
      %v6933 = vrot.slane %v6926, %v6932
      %s6935 = scalar_lea.vmem [#allocation2], 37
      %6936 = vst.msk [vmem:[%s6935] ss:$8 sm:$0xf] %vm1316, %v6933
      %6937 = vst.msk [vmem:[%s6935] ss:$8 sm:$0x0] %vm1316, %v6933
      %s6938 = scalar_lea.vmem %s408, 768
      %v6939 = vld [vmem:[%s6938] sm:$0xf]
      %v6940 = vld [vmem:[%s6938 + $0x4] sm:$0xf]
      %v6941 = vld [vmem:[%s6938 + $0x8] sm:$0xf]
      %v6942 = vld [vmem:[%s6938 + $0xc] sm:$0xf]
      %v6943 = vld [vmem:[%s6938 + $0x10] sm:$0xf]
      %v6944 = vld [vmem:[%s6938 + $0x14] sm:$0xf]
      %v6945 = vld [vmem:[%s6938 + $0x18] sm:$0xf]
      %v6946 = vld [vmem:[%s6938 + $0x1c] sm:$0xf]
      %v6947 = vld [vmem:[%s6938 + $0x20] sm:$0xf]
      %v6948 = vld [vmem:[%s6938 + $0x24] sm:$0xf]
      %v6949 = vld [vmem:[%s6938 + $0x28] sm:$0xf]
      %v6950 = vld [vmem:[%s6938 + $0x2c] sm:$0xf]
      %v6951 = vld [vmem:[%s6938 + $0x30] sm:$0xf]
      %v6952 = vld [vmem:[%s6938 + $0x34] sm:$0xf]
      %v6953 = vld [vmem:[%s6938 + $0x38] sm:$0xf]
      %v6954 = vld [vmem:[%s6938 + $0x3c] sm:$0xf]
      %v6955 = vld [vmem:[%s6938 + $0x40] sm:$0xf]
      %v6956 = vld [vmem:[%s6938 + $0x44] sm:$0xf]
      %v6957 = vld [vmem:[%s6938 + $0x48] sm:$0xf]
      %v6958 = vld [vmem:[%s6938 + $0x4c] sm:$0xf]
      %v6959 = vld [vmem:[%s6938 + $0x50] sm:$0xf]
      %v6960 = vld [vmem:[%s6938 + $0x54] sm:$0xf]
      %v6961 = vld [vmem:[%s6938 + $0x58] sm:$0xf]
      %v6962 = vld [vmem:[%s6938 + $0x5c] sm:$0xf]
      %v6963 = vld [vmem:[%s6938 + $0x60] sm:$0xf]
      %v6964 = vld [vmem:[%s6938 + $0x64] sm:$0xf]
      %v6965 = vld [vmem:[%s6938 + $0x68] sm:$0xf]
      %v6966 = vld [vmem:[%s6938 + $0x6c] sm:$0xf]
      %v6967 = vld [vmem:[%s6938 + $0x70] sm:$0xf]
      %v6968 = vld [vmem:[%s6938 + $0x74] sm:$0xf]
      %v6969 = vld [vmem:[%s6938 + $0x78] sm:$0xf]
      %v6970 = vld [vmem:[%s6938 + $0x7c] sm:$0xf]
      %v6971 = vld [vmem:[%s1] sm:$0xff]
      %v6972 = vld [vmem:[%s1 + $0x8] sm:$0xff]
      %v6973 = vld [vmem:[%s1 + $0x10] sm:$0xff]
      %v6974 = vld [vmem:[%s1 + $0x18] sm:$0xff]
      %v6975 = vld [vmem:[%s1 + $0x20] sm:$0xff]
      %v6976 = vld [vmem:[%s1 + $0x28] sm:$0xff]
      %v6977 = vld [vmem:[%s1 + $0x30] sm:$0xff]
      %v6978 = vld [vmem:[%s1 + $0x38] sm:$0xff]
      %v7011 = vunpack.c.l.b16 %v6939
      %v7012 = vunpack.c.l.b16 %v6940
      %v7013 = vunpack.c.l.b16 %v6941
      %v7014 = vunpack.c.l.b16 %v6942
      %v7015 = vunpack.c.l.b16 %v6943
      %v7016 = vunpack.c.l.b16 %v6944
      %v7017 = vunpack.c.l.b16 %v6945
      %v7018 = vunpack.c.l.b16 %v6946
      %v7019 = vunpack.c.l.b16 %v6947
      %v7020 = vunpack.c.l.b16 %v6948
      %v7021 = vunpack.c.l.b16 %v6949
      %v7022 = vunpack.c.l.b16 %v6950
      %v7023 = vunpack.c.l.b16 %v6951
      %v7024 = vunpack.c.l.b16 %v6952
      %v7025 = vunpack.c.l.b16 %v6953
      %v7026 = vunpack.c.l.b16 %v6954
      %v7027 = vunpack.c.l.b16 %v6955
      %v7028 = vunpack.c.l.b16 %v6956
      %v7029 = vunpack.c.l.b16 %v6957
      %v7030 = vunpack.c.l.b16 %v6958
      %v7031 = vunpack.c.l.b16 %v6959
      %v7032 = vunpack.c.l.b16 %v6960
      %v7033 = vunpack.c.l.b16 %v6961
      %v7034 = vunpack.c.l.b16 %v6962
      %v7035 = vunpack.c.l.b16 %v6963
      %v7036 = vunpack.c.l.b16 %v6964
      %v7037 = vunpack.c.l.b16 %v6965
      %v7038 = vunpack.c.l.b16 %v6966
      %v7039 = vunpack.c.l.b16 %v6967
      %v7040 = vunpack.c.l.b16 %v6968
      %v7041 = vunpack.c.l.b16 %v6969
      %v7042 = vunpack.c.l.b16 %v6970
      %v7043 = vpack.c.b16 %v7012, %v7011
      %v7044 = vpack.c.b16 %v7014, %v7013
      %v7045 = vpack.c.b16 %v7016, %v7015
      %v7046 = vpack.c.b16 %v7018, %v7017
      %v7047 = vpack.c.b16 %v7020, %v7019
      %v7048 = vpack.c.b16 %v7022, %v7021
      %v7049 = vpack.c.b16 %v7024, %v7023
      %v7050 = vpack.c.b16 %v7026, %v7025
      %v7051 = vpack.c.b16 %v7028, %v7027
      %v7052 = vpack.c.b16 %v7030, %v7029
      %v7053 = vpack.c.b16 %v7032, %v7031
      %v7054 = vpack.c.b16 %v7034, %v7033
      %v7055 = vpack.c.b16 %v7036, %v7035
      %v7056 = vpack.c.b16 %v7038, %v7037
      %v7057 = vpack.c.b16 %v7040, %v7039
      %v7058 = vpack.c.b16 %v7042, %v7041
      %v7067 = vunpack.c.l.b16 %v6971
      %v7068 = vunpack.c.h.b16 %v6971
      %v7069 = vunpack.c.l.b16 %v6972
      %v7070 = vunpack.c.h.b16 %v6972
      %v7071 = vunpack.c.l.b16 %v6973
      %v7072 = vunpack.c.h.b16 %v6973
      %v7073 = vunpack.c.l.b16 %v6974
      %v7074 = vunpack.c.h.b16 %v6974
      %v7075 = vunpack.c.l.b16 %v6975
      %v7076 = vunpack.c.h.b16 %v6975
      %v7077 = vunpack.c.l.b16 %v6976
      %v7078 = vunpack.c.h.b16 %v6976
      %v7079 = vunpack.c.l.b16 %v6977
      %v7080 = vunpack.c.h.b16 %v6977
      %v7081 = vunpack.c.l.b16 %v6978
      %v7082 = vunpack.c.h.b16 %v6978
      %v7083 = vpack.c.b16 %v7071, %v7067
      %v7084 = vpack.c.b16 %v7072, %v7068
      %v7085 = vpack.c.b16 %v7073, %v7069
      %v7086 = vpack.c.b16 %v7074, %v7070
      %v7087 = vpack.c.b16 %v7079, %v7075
      %v7088 = vpack.c.b16 %v7080, %v7076
      %v7089 = vpack.c.b16 %v7081, %v7077
      %v7090 = vpack.c.b16 %v7082, %v7078
      %v7100 = vsel %vm573, %v7043, 0
      %v7103 = vsel %vm573, %v7044, 0
      %v7106 = vsel %vm573, %v7045, 0
      %v7109 = vsel %vm573, %v7046, 0
      %v7112 = vsel %vm573, %v7047, 0
      %v7115 = vsel %vm573, %v7048, 0
      %v7118 = vsel %vm573, %v7049, 0
      %v7121 = vsel %vm573, %v7050, 0
      %v7124 = vsel %vm573, %v7051, 0
      %v7127 = vsel %vm573, %v7052, 0
      %v7130 = vsel %vm573, %v7053, 0
      %v7133 = vsel %vm573, %v7054, 0
      %v7136 = vsel %vm573, %v7055, 0
      %v7139 = vsel %vm573, %v7056, 0
      %v7142 = vsel %vm573, %v7057, 0
      %v7145 = vsel %vm573, %v7058, 0
      %7147 = vmatprep.subr.bf16.mxu0 %v7084
      %7148 = vmatpush1.bf16.msra.mxu0 %v7083
      %7149 = vmatprep.subr.bf16.mxu0 %v7088
      %7150 = vmatpush1.bf16.msra.mxu0 %v7087
      %7151 = vmatprep.subr.bf16.mxu0 0
      %7152 = vmatpush1.bf16.msra.mxu0 0
      %7153 = vmatprep.subr.bf16.mxu0 0
      %7154 = vmatpush1.bf16.msra.mxu0 0
      %7155 = vmatprep.subr.bf16.mxu0 0
      %7156 = vmatpush1.bf16.msra.mxu0 0
      %7157 = vmatprep.subr.bf16.mxu0 0
      %7158 = vmatpush1.bf16.msra.mxu0 0
      %7159 = vmatprep.subr.bf16.mxu0 0
      %7160 = vmatpush1.bf16.msra.mxu0 0
      %7161 = vmatprep.subr.bf16.mxu0 0
      %7162 = vmatpush1.bf16.msra.mxu0 0
      %7163 = vmatprep.subr.bf16.mxu0 0
      %7164 = vmatpush1.bf16.msra.mxu0 0
      %7165 = vmatprep.subr.bf16.mxu0 0
      %7166 = vmatpush1.bf16.msra.mxu0 0
      %7167 = vmatprep.subr.bf16.mxu0 0
      %7168 = vmatpush1.bf16.msra.mxu0 0
      %7169 = vmatprep.subr.bf16.mxu0 0
      %7170 = vmatpush1.bf16.msra.mxu0 0
      %7171 = vmatprep.subr.bf16.mxu0 0
      %7172 = vmatpush1.bf16.msra.mxu0 0
      %7173 = vmatprep.subr.bf16.mxu0 0
      %7174 = vmatpush1.bf16.msra.mxu0 0
      %7175 = vmatprep.subr.bf16.mxu0 0
      %7176 = vmatpush1.bf16.msra.mxu0 0
      %7177 = vmatprep.subr.bf16.mxu0 0
      %7178 = vmatpush1.bf16.msra.mxu0 0
      %7179 = vmatprep.mubr.bf16.mxu0 0
      %7180 = vmatmul.mubr.bf16.gmra.mrb[0].mxu0 %v7100
      %v7181 = vpop.f32.mrb[0].mxu0
      %v7182 = vadd.f32 0.0, %v7181
      %v7183 = vpop.f32.mrb[0].mxu0
      %v7184 = vadd.f32 0.0, %v7183
      %v7185 = vpop.f32.mrb[0].mxu0
      %v7186 = vadd.f32 0.0, %v7185
      %v7187 = vpop.f32.mrb[0].mxu0
      %v7188 = vadd.f32 0.0, %v7187
      %7189 = vmatprep.mubr.bf16.mxu0 0
      %7190 = vmatmul.mubr.bf16.gmra.mrb[0].mxu0 %v7103
      %v7191 = vpop.f32.mrb[0].mxu0
      %v7192 = vadd.f32 0.0, %v7191
      %v7193 = vpop.f32.mrb[0].mxu0
      %v7194 = vadd.f32 0.0, %v7193
      %v7195 = vpop.f32.mrb[0].mxu0
      %v7196 = vadd.f32 0.0, %v7195
      %v7197 = vpop.f32.mrb[0].mxu0
      %v7198 = vadd.f32 0.0, %v7197
      %7199 = vmatprep.mubr.bf16.mxu0 0
      %7200 = vmatmul.mubr.bf16.gmra.mrb[0].mxu0 %v7106
      %v7201 = vpop.f32.mrb[0].mxu0
      %v7202 = vadd.f32 0.0, %v7201
      %v7203 = vpop.f32.mrb[0].mxu0
      %v7204 = vadd.f32 0.0, %v7203
      %v7205 = vpop.f32.mrb[0].mxu0
      %v7206 = vadd.f32 0.0, %v7205
      %v7207 = vpop.f32.mrb[0].mxu0
      %v7208 = vadd.f32 0.0, %v7207
      %7209 = vmatprep.mubr.bf16.mxu0 0
      %7210 = vmatmul.mubr.bf16.gmra.mrb[0].mxu0 %v7109
      %v7211 = vpop.f32.mrb[0].mxu0
      %v7212 = vadd.f32 0.0, %v7211
      %v7213 = vpop.f32.mrb[0].mxu0
      %v7214 = vadd.f32 0.0, %v7213
      %v7215 = vpop.f32.mrb[0].mxu0
      %v7216 = vadd.f32 0.0, %v7215
      %v7217 = vpop.f32.mrb[0].mxu0
      %v7218 = vadd.f32 0.0, %v7217
      %7219 = vmatprep.mubr.bf16.mxu0 0
      %7220 = vmatmul.mubr.bf16.gmra.mrb[0].mxu0 %v7112
      %v7221 = vpop.f32.mrb[0].mxu0
      %v7222 = vadd.f32 0.0, %v7221
      %v7223 = vpop.f32.mrb[0].mxu0
      %v7224 = vadd.f32 0.0, %v7223
      %v7225 = vpop.f32.mrb[0].mxu0
      %v7226 = vadd.f32 0.0, %v7225
      %v7227 = vpop.f32.mrb[0].mxu0
      %v7228 = vadd.f32 0.0, %v7227
      %7229 = vmatprep.mubr.bf16.mxu0 0
      %7230 = vmatmul.mubr.bf16.gmra.mrb[0].mxu0 %v7115
      %v7231 = vpop.f32.mrb[0].mxu0
      %v7232 = vadd.f32 0.0, %v7231
      %v7233 = vpop.f32.mrb[0].mxu0
      %v7234 = vadd.f32 0.0, %v7233
      %v7235 = vpop.f32.mrb[0].mxu0
      %v7236 = vadd.f32 0.0, %v7235
      %v7237 = vpop.f32.mrb[0].mxu0
      %v7238 = vadd.f32 0.0, %v7237
      %7239 = vmatprep.mubr.bf16.mxu0 0
      %7240 = vmatmul.mubr.bf16.gmra.mrb[0].mxu0 %v7118
      %v7241 = vpop.f32.mrb[0].mxu0
      %v7242 = vadd.f32 0.0, %v7241
      %v7243 = vpop.f32.mrb[0].mxu0
      %v7244 = vadd.f32 0.0, %v7243
      %v7245 = vpop.f32.mrb[0].mxu0
      %v7246 = vadd.f32 0.0, %v7245
      %v7247 = vpop.f32.mrb[0].mxu0
      %v7248 = vadd.f32 0.0, %v7247
      %7249 = vmatprep.mubr.bf16.mxu0 0
      %7250 = vmatmul.mubr.bf16.gmra.mrb[0].mxu0 %v7121
      %v7251 = vpop.f32.mrb[0].mxu0
      %v7252 = vadd.f32 0.0, %v7251
      %v7253 = vpop.f32.mrb[0].mxu0
      %v7254 = vadd.f32 0.0, %v7253
      %v7255 = vpop.f32.mrb[0].mxu0
      %v7256 = vadd.f32 0.0, %v7255
      %v7257 = vpop.f32.mrb[0].mxu0
      %v7258 = vadd.f32 0.0, %v7257
      %7259 = vmatprep.mubr.bf16.mxu0 0
      %7260 = vmatmul.mubr.bf16.gmra.mrb[0].mxu0 %v7124
      %v7261 = vpop.f32.mrb[0].mxu0
      %v7262 = vadd.f32 0.0, %v7261
      %v7263 = vpop.f32.mrb[0].mxu0
      %v7264 = vadd.f32 0.0, %v7263
      %v7265 = vpop.f32.mrb[0].mxu0
      %v7266 = vadd.f32 0.0, %v7265
      %v7267 = vpop.f32.mrb[0].mxu0
      %v7268 = vadd.f32 0.0, %v7267
      %7269 = vmatprep.mubr.bf16.mxu0 0
      %7270 = vmatmul.mubr.bf16.gmra.mrb[0].mxu0 %v7127
      %v7271 = vpop.f32.mrb[0].mxu0
      %v7272 = vadd.f32 0.0, %v7271
      %v7273 = vpop.f32.mrb[0].mxu0
      %v7274 = vadd.f32 0.0, %v7273
      %v7275 = vpop.f32.mrb[0].mxu0
      %v7276 = vadd.f32 0.0, %v7275
      %v7277 = vpop.f32.mrb[0].mxu0
      %v7278 = vadd.f32 0.0, %v7277
      %7279 = vmatprep.mubr.bf16.mxu0 0
      %7280 = vmatmul.mubr.bf16.gmra.mrb[0].mxu0 %v7130
      %v7281 = vpop.f32.mrb[0].mxu0
      %v7282 = vadd.f32 0.0, %v7281
      %v7283 = vpop.f32.mrb[0].mxu0
      %v7284 = vadd.f32 0.0, %v7283
      %v7285 = vpop.f32.mrb[0].mxu0
      %v7286 = vadd.f32 0.0, %v7285
      %v7287 = vpop.f32.mrb[0].mxu0
      %v7288 = vadd.f32 0.0, %v7287
      %7289 = vmatprep.mubr.bf16.mxu0 0
      %7290 = vmatmul.mubr.bf16.gmra.mrb[0].mxu0 %v7133
      %v7291 = vpop.f32.mrb[0].mxu0
      %v7292 = vadd.f32 0.0, %v7291
      %v7293 = vpop.f32.mrb[0].mxu0
      %v7294 = vadd.f32 0.0, %v7293
      %v7295 = vpop.f32.mrb[0].mxu0
      %v7296 = vadd.f32 0.0, %v7295
      %v7297 = vpop.f32.mrb[0].mxu0
      %v7298 = vadd.f32 0.0, %v7297
      %7299 = vmatprep.mubr.bf16.mxu0 0
      %7300 = vmatmul.mubr.bf16.gmra.mrb[0].mxu0 %v7136
      %v7301 = vpop.f32.mrb[0].mxu0
      %v7302 = vadd.f32 0.0, %v7301
      %v7303 = vpop.f32.mrb[0].mxu0
      %v7304 = vadd.f32 0.0, %v7303
      %v7305 = vpop.f32.mrb[0].mxu0
      %v7306 = vadd.f32 0.0, %v7305
      %v7307 = vpop.f32.mrb[0].mxu0
      %v7308 = vadd.f32 0.0, %v7307
      %7309 = vmatprep.mubr.bf16.mxu0 0
      %7310 = vmatmul.mubr.bf16.gmra.mrb[0].mxu0 %v7139
      %v7311 = vpop.f32.mrb[0].mxu0
      %v7312 = vadd.f32 0.0, %v7311
      %v7313 = vpop.f32.mrb[0].mxu0
      %v7314 = vadd.f32 0.0, %v7313
      %v7315 = vpop.f32.mrb[0].mxu0
      %v7316 = vadd.f32 0.0, %v7315
      %v7317 = vpop.f32.mrb[0].mxu0
      %v7318 = vadd.f32 0.0, %v7317
      %7319 = vmatprep.mubr.bf16.mxu0 0
      %7320 = vmatmul.mubr.bf16.gmra.mrb[0].mxu0 %v7142
      %v7321 = vpop.f32.mrb[0].mxu0
      %v7322 = vadd.f32 0.0, %v7321
      %v7323 = vpop.f32.mrb[0].mxu0
      %v7324 = vadd.f32 0.0, %v7323
      %v7325 = vpop.f32.mrb[0].mxu0
      %v7326 = vadd.f32 0.0, %v7325
      %v7327 = vpop.f32.mrb[0].mxu0
      %v7328 = vadd.f32 0.0, %v7327
      %7329 = vmatprep.mubr.bf16.mxu0 0
      %7330 = vmatmul.mubr.bf16.gmra.mrb[0].mxu0 %v7145
      %v7331 = vpop.f32.mrb[0].mxu0
      %v7332 = vadd.f32 0.0, %v7331
      %v7333 = vpop.f32.mrb[0].mxu0
      %v7334 = vadd.f32 0.0, %v7333
      %v7335 = vpop.f32.mrb[0].mxu0
      %v7336 = vadd.f32 0.0, %v7335
      %v7337 = vpop.f32.mrb[0].mxu0
      %v7338 = vadd.f32 0.0, %v7337
      %7339 = vdwg.mxu0
      %7340 = vmatprep.subr.bf16.mxu0 %v7086
      %7341 = vmatpush1.bf16.msra.mxu0 %v7085
      %7342 = vmatprep.subr.bf16.mxu0 %v7090
      %7343 = vmatpush1.bf16.msra.mxu0 %v7089
      %7344 = vmatprep.subr.bf16.mxu0 0
      %7345 = vmatpush1.bf16.msra.mxu0 0
      %7346 = vmatprep.subr.bf16.mxu0 0
      %7347 = vmatpush1.bf16.msra.mxu0 0
      %7348 = vmatprep.subr.bf16.mxu0 0
      %7349 = vmatpush1.bf16.msra.mxu0 0
      %7350 = vmatprep.subr.bf16.mxu0 0
      %7351 = vmatpush1.bf16.msra.mxu0 0
      %7352 = vmatprep.subr.bf16.mxu0 0
      %7353 = vmatpush1.bf16.msra.mxu0 0
      %7354 = vmatprep.subr.bf16.mxu0 0
      %7355 = vmatpush1.bf16.msra.mxu0 0
      %7356 = vmatprep.subr.bf16.mxu0 0
      %7357 = vmatpush1.bf16.msra.mxu0 0
      %7358 = vmatprep.subr.bf16.mxu0 0
      %7359 = vmatpush1.bf16.msra.mxu0 0
      %7360 = vmatprep.subr.bf16.mxu0 0
      %7361 = vmatpush1.bf16.msra.mxu0 0
      %7362 = vmatprep.subr.bf16.mxu0 0
      %7363 = vmatpush1.bf16.msra.mxu0 0
      %7364 = vmatprep.subr.bf16.mxu0 0
      %7365 = vmatpush1.bf16.msra.mxu0 0
      %7366 = vmatprep.subr.bf16.mxu0 0
      %7367 = vmatpush1.bf16.msra.mxu0 0
      %7368 = vmatprep.subr.bf16.mxu0 0
      %7369 = vmatpush1.bf16.msra.mxu0 0
      %7370 = vmatprep.subr.bf16.mxu0 0
      %7371 = vmatpush1.bf16.msra.mxu0 0
      %7372 = vmatprep.mubr.bf16.mxu0 0
      %7373 = vmatmul.mubr.bf16.gmra.mrb[0].mxu0 %v7100
      %v7374 = vpop.f32.mrb[0].mxu0
      %v7375 = vadd.f32 0.0, %v7374
      %v7376 = vpop.f32.mrb[0].mxu0
      %v7377 = vadd.f32 0.0, %v7376
      %v7378 = vpop.f32.mrb[0].mxu0
      %v7379 = vadd.f32 0.0, %v7378
      %v7380 = vpop.f32.mrb[0].mxu0
      %v7381 = vadd.f32 0.0, %v7380
      %7382 = vmatprep.mubr.bf16.mxu0 0
      %7383 = vmatmul.mubr.bf16.gmra.mrb[0].mxu0 %v7103
      %v7384 = vpop.f32.mrb[0].mxu0
      %v7385 = vadd.f32 0.0, %v7384
      %v7386 = vpop.f32.mrb[0].mxu0
      %v7387 = vadd.f32 0.0, %v7386
      %v7388 = vpop.f32.mrb[0].mxu0
      %v7389 = vadd.f32 0.0, %v7388
      %v7390 = vpop.f32.mrb[0].mxu0
      %v7391 = vadd.f32 0.0, %v7390
      %7392 = vmatprep.mubr.bf16.mxu0 0
      %7393 = vmatmul.mubr.bf16.gmra.mrb[0].mxu0 %v7106
      %v7394 = vpop.f32.mrb[0].mxu0
      %v7395 = vadd.f32 0.0, %v7394
      %v7396 = vpop.f32.mrb[0].mxu0
      %v7397 = vadd.f32 0.0, %v7396
      %v7398 = vpop.f32.mrb[0].mxu0
      %v7399 = vadd.f32 0.0, %v7398
      %v7400 = vpop.f32.mrb[0].mxu0
      %v7401 = vadd.f32 0.0, %v7400
      %7402 = vmatprep.mubr.bf16.mxu0 0
      %7403 = vmatmul.mubr.bf16.gmra.mrb[0].mxu0 %v7109
      %v7404 = vpop.f32.mrb[0].mxu0
      %v7405 = vadd.f32 0.0, %v7404
      %v7406 = vpop.f32.mrb[0].mxu0
      %v7407 = vadd.f32 0.0, %v7406
      %v7408 = vpop.f32.mrb[0].mxu0
      %v7409 = vadd.f32 0.0, %v7408
      %v7410 = vpop.f32.mrb[0].mxu0
      %v7411 = vadd.f32 0.0, %v7410
      %7412 = vmatprep.mubr.bf16.mxu0 0
      %7413 = vmatmul.mubr.bf16.gmra.mrb[0].mxu0 %v7112
      %v7414 = vpop.f32.mrb[0].mxu0
      %v7415 = vadd.f32 0.0, %v7414
      %v7416 = vpop.f32.mrb[0].mxu0
      %v7417 = vadd.f32 0.0, %v7416
      %v7418 = vpop.f32.mrb[0].mxu0
      %v7419 = vadd.f32 0.0, %v7418
      %v7420 = vpop.f32.mrb[0].mxu0
      %v7421 = vadd.f32 0.0, %v7420
      %7422 = vmatprep.mubr.bf16.mxu0 0
      %7423 = vmatmul.mubr.bf16.gmra.mrb[0].mxu0 %v7115
      %v7424 = vpop.f32.mrb[0].mxu0
      %v7425 = vadd.f32 0.0, %v7424
      %v7426 = vpop.f32.mrb[0].mxu0
      %v7427 = vadd.f32 0.0, %v7426
      %v7428 = vpop.f32.mrb[0].mxu0
      %v7429 = vadd.f32 0.0, %v7428
      %v7430 = vpop.f32.mrb[0].mxu0
      %v7431 = vadd.f32 0.0, %v7430
      %7432 = vmatprep.mubr.bf16.mxu0 0
      %7433 = vmatmul.mubr.bf16.gmra.mrb[0].mxu0 %v7118
      %v7434 = vpop.f32.mrb[0].mxu0
      %v7435 = vadd.f32 0.0, %v7434
      %v7436 = vpop.f32.mrb[0].mxu0
      %v7437 = vadd.f32 0.0, %v7436
      %v7438 = vpop.f32.mrb[0].mxu0
      %v7439 = vadd.f32 0.0, %v7438
      %v7440 = vpop.f32.mrb[0].mxu0
      %v7441 = vadd.f32 0.0, %v7440
      %7442 = vmatprep.mubr.bf16.mxu0 0
      %7443 = vmatmul.mubr.bf16.gmra.mrb[0].mxu0 %v7121
      %v7444 = vpop.f32.mrb[0].mxu0
      %v7445 = vadd.f32 0.0, %v7444
      %v7446 = vpop.f32.mrb[0].mxu0
      %v7447 = vadd.f32 0.0, %v7446
      %v7448 = vpop.f32.mrb[0].mxu0
      %v7449 = vadd.f32 0.0, %v7448
      %v7450 = vpop.f32.mrb[0].mxu0
      %v7451 = vadd.f32 0.0, %v7450
      %7452 = vmatprep.mubr.bf16.mxu0 0
      %7453 = vmatmul.mubr.bf16.gmra.mrb[0].mxu0 %v7124
      %v7454 = vpop.f32.mrb[0].mxu0
      %v7455 = vadd.f32 0.0, %v7454
      %v7456 = vpop.f32.mrb[0].mxu0
      %v7457 = vadd.f32 0.0, %v7456
      %v7458 = vpop.f32.mrb[0].mxu0
      %v7459 = vadd.f32 0.0, %v7458
      %v7460 = vpop.f32.mrb[0].mxu0
      %v7461 = vadd.f32 0.0, %v7460
      %7462 = vmatprep.mubr.bf16.mxu0 0
      %7463 = vmatmul.mubr.bf16.gmra.mrb[0].mxu0 %v7127
      %v7464 = vpop.f32.mrb[0].mxu0
      %v7465 = vadd.f32 0.0, %v7464
      %v7466 = vpop.f32.mrb[0].mxu0
      %v7467 = vadd.f32 0.0, %v7466
      %v7468 = vpop.f32.mrb[0].mxu0
      %v7469 = vadd.f32 0.0, %v7468
      %v7470 = vpop.f32.mrb[0].mxu0
      %v7471 = vadd.f32 0.0, %v7470
      %7472 = vmatprep.mubr.bf16.mxu0 0
      %7473 = vmatmul.mubr.bf16.gmra.mrb[0].mxu0 %v7130
      %v7474 = vpop.f32.mrb[0].mxu0
      %v7475 = vadd.f32 0.0, %v7474
      %v7476 = vpop.f32.mrb[0].mxu0
      %v7477 = vadd.f32 0.0, %v7476
      %v7478 = vpop.f32.mrb[0].mxu0
      %v7479 = vadd.f32 0.0, %v7478
      %v7480 = vpop.f32.mrb[0].mxu0
      %v7481 = vadd.f32 0.0, %v7480
      %7482 = vmatprep.mubr.bf16.mxu0 0
      %7483 = vmatmul.mubr.bf16.gmra.mrb[0].mxu0 %v7133
      %v7484 = vpop.f32.mrb[0].mxu0
      %v7485 = vadd.f32 0.0, %v7484
      %v7486 = vpop.f32.mrb[0].mxu0
      %v7487 = vadd.f32 0.0, %v7486
      %v7488 = vpop.f32.mrb[0].mxu0
      %v7489 = vadd.f32 0.0, %v7488
      %v7490 = vpop.f32.mrb[0].mxu0
      %v7491 = vadd.f32 0.0, %v7490
      %7492 = vmatprep.mubr.bf16.mxu0 0
      %7493 = vmatmul.mubr.bf16.gmra.mrb[0].mxu0 %v7136
      %v7494 = vpop.f32.mrb[0].mxu0
      %v7495 = vadd.f32 0.0, %v7494
      %v7496 = vpop.f32.mrb[0].mxu0
      %v7497 = vadd.f32 0.0, %v7496
      %v7498 = vpop.f32.mrb[0].mxu0
      %v7499 = vadd.f32 0.0, %v7498
      %v7500 = vpop.f32.mrb[0].mxu0
      %v7501 = vadd.f32 0.0, %v7500
      %7502 = vmatprep.mubr.bf16.mxu0 0
      %7503 = vmatmul.mubr.bf16.gmra.mrb[0].mxu0 %v7139
      %v7504 = vpop.f32.mrb[0].mxu0
      %v7505 = vadd.f32 0.0, %v7504
      %v7506 = vpop.f32.mrb[0].mxu0
      %v7507 = vadd.f32 0.0, %v7506
      %v7508 = vpop.f32.mrb[0].mxu0
      %v7509 = vadd.f32 0.0, %v7508
      %v7510 = vpop.f32.mrb[0].mxu0
      %v7511 = vadd.f32 0.0, %v7510
      %7512 = vmatprep.mubr.bf16.mxu0 0
      %7513 = vmatmul.mubr.bf16.gmra.mrb[0].mxu0 %v7142
      %v7514 = vpop.f32.mrb[0].mxu0
      %v7515 = vadd.f32 0.0, %v7514
      %v7516 = vpop.f32.mrb[0].mxu0
      %v7517 = vadd.f32 0.0, %v7516
      %v7518 = vpop.f32.mrb[0].mxu0
      %v7519 = vadd.f32 0.0, %v7518
      %v7520 = vpop.f32.mrb[0].mxu0
      %v7521 = vadd.f32 0.0, %v7520
      %7522 = vmatprep.mubr.bf16.mxu0 0
      %7523 = vmatmul.mubr.bf16.gmra.mrb[0].mxu0 %v7145
      %v7524 = vpop.f32.mrb[0].mxu0
      %v7525 = vadd.f32 0.0, %v7524
      %v7526 = vpop.f32.mrb[0].mxu0
      %v7527 = vadd.f32 0.0, %v7526
      %v7528 = vpop.f32.mrb[0].mxu0
      %v7529 = vadd.f32 0.0, %v7528
      %v7530 = vpop.f32.mrb[0].mxu0
      %v7531 = vadd.f32 0.0, %v7530
      %7532 = vdwg.mxu0
      %v7533 = vmax.f32 %v7182, 0.0
      %v7534 = vmax.f32 %v7184, 0.0
      %v7535 = vmax.f32 %v7375, 0.0
      %v7536 = vmax.f32 %v7377, 0.0
      %v7537 = vmax.f32 %v7186, 0.0
      %v7538 = vmax.f32 %v7188, 0.0
      %v7539 = vmax.f32 %v7379, 0.0
      %v7540 = vmax.f32 %v7381, 0.0
      %v7541 = vmax.f32 %v7192, 0.0
      %v7542 = vmax.f32 %v7194, 0.0
      %v7543 = vmax.f32 %v7385, 0.0
      %v7544 = vmax.f32 %v7387, 0.0
      %v7545 = vmax.f32 %v7196, 0.0
      %v7546 = vmax.f32 %v7198, 0.0
      %v7547 = vmax.f32 %v7389, 0.0
      %v7548 = vmax.f32 %v7391, 0.0
      %v7549 = vmax.f32 %v7202, 0.0
      %v7550 = vmax.f32 %v7204, 0.0
      %v7551 = vmax.f32 %v7395, 0.0
      %v7552 = vmax.f32 %v7397, 0.0
      %v7553 = vmax.f32 %v7206, 0.0
      %v7554 = vmax.f32 %v7208, 0.0
      %v7555 = vmax.f32 %v7399, 0.0
      %v7556 = vmax.f32 %v7401, 0.0
      %v7557 = vmax.f32 %v7212, 0.0
      %v7558 = vmax.f32 %v7214, 0.0
      %v7559 = vmax.f32 %v7405, 0.0
      %v7560 = vmax.f32 %v7407, 0.0
      %v7561 = vmax.f32 %v7216, 0.0
      %v7562 = vmax.f32 %v7218, 0.0
      %v7563 = vmax.f32 %v7409, 0.0
      %v7564 = vmax.f32 %v7411, 0.0
      %v7565 = vmax.f32 %v7222, 0.0
      %v7566 = vmax.f32 %v7224, 0.0
      %v7567 = vmax.f32 %v7415, 0.0
      %v7568 = vmax.f32 %v7417, 0.0
      %v7569 = vmax.f32 %v7226, 0.0
      %v7570 = vmax.f32 %v7228, 0.0
      %v7571 = vmax.f32 %v7419, 0.0
      %v7572 = vmax.f32 %v7421, 0.0
      %v7573 = vmax.f32 %v7232, 0.0
      %v7574 = vmax.f32 %v7234, 0.0
      %v7575 = vmax.f32 %v7425, 0.0
      %v7576 = vmax.f32 %v7427, 0.0
      %v7577 = vmax.f32 %v7236, 0.0
      %v7578 = vmax.f32 %v7238, 0.0
      %v7579 = vmax.f32 %v7429, 0.0
      %v7580 = vmax.f32 %v7431, 0.0
      %v7581 = vmax.f32 %v7242, 0.0
      %v7582 = vmax.f32 %v7244, 0.0
      %v7583 = vmax.f32 %v7435, 0.0
      %v7584 = vmax.f32 %v7437, 0.0
      %v7585 = vmax.f32 %v7246, 0.0
      %v7586 = vmax.f32 %v7248, 0.0
      %v7587 = vmax.f32 %v7439, 0.0
      %v7588 = vmax.f32 %v7441, 0.0
      %v7589 = vmax.f32 %v7252, 0.0
      %v7590 = vmax.f32 %v7254, 0.0
      %v7591 = vmax.f32 %v7445, 0.0
      %v7592 = vmax.f32 %v7447, 0.0
      %v7593 = vmax.f32 %v7256, 0.0
      %v7594 = vmax.f32 %v7258, 0.0
      %v7595 = vmax.f32 %v7449, 0.0
      %v7596 = vmax.f32 %v7451, 0.0
      %v7597 = vmax.f32 %v7262, 0.0
      %v7598 = vmax.f32 %v7264, 0.0
      %v7599 = vmax.f32 %v7455, 0.0
      %v7600 = vmax.f32 %v7457, 0.0
      %v7601 = vmax.f32 %v7266, 0.0
      %v7602 = vmax.f32 %v7268, 0.0
      %v7603 = vmax.f32 %v7459, 0.0
      %v7604 = vmax.f32 %v7461, 0.0
      %v7605 = vmax.f32 %v7272, 0.0
      %v7606 = vmax.f32 %v7274, 0.0
      %v7607 = vmax.f32 %v7465, 0.0
      %v7608 = vmax.f32 %v7467, 0.0
      %v7609 = vmax.f32 %v7276, 0.0
      %v7610 = vmax.f32 %v7278, 0.0
      %v7611 = vmax.f32 %v7469, 0.0
      %v7612 = vmax.f32 %v7471, 0.0
      %v7613 = vmax.f32 %v7282, 0.0
      %v7614 = vmax.f32 %v7284, 0.0
      %v7615 = vmax.f32 %v7475, 0.0
      %v7616 = vmax.f32 %v7477, 0.0
      %v7617 = vmax.f32 %v7286, 0.0
      %v7618 = vmax.f32 %v7288, 0.0
      %v7619 = vmax.f32 %v7479, 0.0
      %v7620 = vmax.f32 %v7481, 0.0
      %v7621 = vmax.f32 %v7292, 0.0
      %v7622 = vmax.f32 %v7294, 0.0
      %v7623 = vmax.f32 %v7485, 0.0
      %v7624 = vmax.f32 %v7487, 0.0
      %v7625 = vmax.f32 %v7296, 0.0
      %v7626 = vmax.f32 %v7298, 0.0
      %v7627 = vmax.f32 %v7489, 0.0
      %v7628 = vmax.f32 %v7491, 0.0
      %v7629 = vmax.f32 %v7302, 0.0
      %v7630 = vmax.f32 %v7304, 0.0
      %v7631 = vmax.f32 %v7495, 0.0
      %v7632 = vmax.f32 %v7497, 0.0
      %v7633 = vmax.f32 %v7306, 0.0
      %v7634 = vmax.f32 %v7308, 0.0
      %v7635 = vmax.f32 %v7499, 0.0
      %v7636 = vmax.f32 %v7501, 0.0
      %v7637 = vmax.f32 %v7312, 0.0
      %v7638 = vmax.f32 %v7314, 0.0
      %v7639 = vmax.f32 %v7505, 0.0
      %v7640 = vmax.f32 %v7507, 0.0
      %v7641 = vmax.f32 %v7316, 0.0
      %v7642 = vmax.f32 %v7318, 0.0
      %v7643 = vmax.f32 %v7509, 0.0
      %v7644 = vmax.f32 %v7511, 0.0
      %v7645 = vmax.f32 %v7322, 0.0
      %v7646 = vmax.f32 %v7324, 0.0
      %v7647 = vmax.f32 %v7515, 0.0
      %v7648 = vmax.f32 %v7517, 0.0
      %v7649 = vmax.f32 %v7326, 0.0
      %v7650 = vmax.f32 %v7328, 0.0
      %v7651 = vmax.f32 %v7519, 0.0
      %v7652 = vmax.f32 %v7521, 0.0
      %v7653 = vmax.f32 %v7332, 0.0
      %v7654 = vmax.f32 %v7334, 0.0
      %v7655 = vmax.f32 %v7525, 0.0
      %v7656 = vmax.f32 %v7527, 0.0
      %v7657 = vmax.f32 %v7336, 0.0
      %v7658 = vmax.f32 %v7338, 0.0
      %v7659 = vmax.f32 %v7529, 0.0
      %v7660 = vmax.f32 %v7531, 0.0
      %v7661 = vmax.f32 %v7533, %v7537
      %v7662 = vmax.f32 %v7661, %v7541
      %v7663 = vmax.f32 %v7662, %v7545
      %v7664 = vmax.f32 %v7663, %v7549
      %v7665 = vmax.f32 %v7664, %v7553
      %v7666 = vmax.f32 %v7665, %v7557
      %v7667 = vmax.f32 %v7666, %v7561
      %v7668 = vmax.f32 %v7667, %v7565
      %v7669 = vmax.f32 %v7668, %v7569
      %v7670 = vmax.f32 %v7669, %v7573
      %v7671 = vmax.f32 %v7670, %v7577
      %v7672 = vmax.f32 %v7671, %v7581
      %v7673 = vmax.f32 %v7672, %v7585
      %v7674 = vmax.f32 %v7673, %v7589
      %v7675 = vmax.f32 %v7674, %v7593
      %v7676 = vmax.f32 %v7675, %v7597
      %v7677 = vmax.f32 %v7676, %v7601
      %v7678 = vmax.f32 %v7677, %v7605
      %v7679 = vmax.f32 %v7678, %v7609
      %v7680 = vmax.f32 %v7679, %v7613
      %v7681 = vmax.f32 %v7680, %v7617
      %v7682 = vmax.f32 %v7681, %v7621
      %v7683 = vmax.f32 %v7682, %v7625
      %v7684 = vmax.f32 %v7683, %v7629
      %v7685 = vmax.f32 %v7684, %v7633
      %v7686 = vmax.f32 %v7685, %v7637
      %v7687 = vmax.f32 %v7686, %v7641
      %v7688 = vmax.f32 %v7687, %v7645
      %v7689 = vmax.f32 %v7688, %v7649
      %v7690 = vmax.f32 %v7689, %v7653
      %v7691 = vmax.f32 %v7690, %v7657
      %v7692 = vrot.slane %v7691, 4
      %v7693 = vmax.f32 %v7691, %v7692
      %v7694 = vrot.slane %v7693, 2
      %v7695 = vmax.f32 %v7693, %v7694
      %v7696 = vrot.slane %v7695, 1
      %v7697 = vmax.f32 %v7695, %v7696
      %v7698 = vmax.f32 %v7534, %v7538
      %v7699 = vmax.f32 %v7698, %v7542
      %v7700 = vmax.f32 %v7699, %v7546
      %v7701 = vmax.f32 %v7700, %v7550
      %v7702 = vmax.f32 %v7701, %v7554
      %v7703 = vmax.f32 %v7702, %v7558
      %v7704 = vmax.f32 %v7703, %v7562
      %v7705 = vmax.f32 %v7704, %v7566
      %v7706 = vmax.f32 %v7705, %v7570
      %v7707 = vmax.f32 %v7706, %v7574
      %v7708 = vmax.f32 %v7707, %v7578
      %v7709 = vmax.f32 %v7708, %v7582
      %v7710 = vmax.f32 %v7709, %v7586
      %v7711 = vmax.f32 %v7710, %v7590
      %v7712 = vmax.f32 %v7711, %v7594
      %v7713 = vmax.f32 %v7712, %v7598
      %v7714 = vmax.f32 %v7713, %v7602
      %v7715 = vmax.f32 %v7714, %v7606
      %v7716 = vmax.f32 %v7715, %v7610
      %v7717 = vmax.f32 %v7716, %v7614
      %v7718 = vmax.f32 %v7717, %v7618
      %v7719 = vmax.f32 %v7718, %v7622
      %v7720 = vmax.f32 %v7719, %v7626
      %v7721 = vmax.f32 %v7720, %v7630
      %v7722 = vmax.f32 %v7721, %v7634
      %v7723 = vmax.f32 %v7722, %v7638
      %v7724 = vmax.f32 %v7723, %v7642
      %v7725 = vmax.f32 %v7724, %v7646
      %v7726 = vmax.f32 %v7725, %v7650
      %v7727 = vmax.f32 %v7726, %v7654
      %v7728 = vmax.f32 %v7727, %v7658
      %v7729 = vrot.slane %v7728, 4
      %v7730 = vmax.f32 %v7728, %v7729
      %v7731 = vrot.slane %v7730, 2
      %v7732 = vmax.f32 %v7730, %v7731
      %v7733 = vrot.slane %v7732, 1
      %v7734 = vmax.f32 %v7732, %v7733
      %v7735 = vmax.f32 %v7535, %v7539
      %v7736 = vmax.f32 %v7735, %v7543
      %v7737 = vmax.f32 %v7736, %v7547
      %v7738 = vmax.f32 %v7737, %v7551
      %v7739 = vmax.f32 %v7738, %v7555
      %v7740 = vmax.f32 %v7739, %v7559
      %v7741 = vmax.f32 %v7740, %v7563
      %v7742 = vmax.f32 %v7741, %v7567
      %v7743 = vmax.f32 %v7742, %v7571
      %v7744 = vmax.f32 %v7743, %v7575
      %v7745 = vmax.f32 %v7744, %v7579
      %v7746 = vmax.f32 %v7745, %v7583
      %v7747 = vmax.f32 %v7746, %v7587
      %v7748 = vmax.f32 %v7747, %v7591
      %v7749 = vmax.f32 %v7748, %v7595
      %v7750 = vmax.f32 %v7749, %v7599
      %v7751 = vmax.f32 %v7750, %v7603
      %v7752 = vmax.f32 %v7751, %v7607
      %v7753 = vmax.f32 %v7752, %v7611
      %v7754 = vmax.f32 %v7753, %v7615
      %v7755 = vmax.f32 %v7754, %v7619
      %v7756 = vmax.f32 %v7755, %v7623
      %v7757 = vmax.f32 %v7756, %v7627
      %v7758 = vmax.f32 %v7757, %v7631
      %v7759 = vmax.f32 %v7758, %v7635
      %v7760 = vmax.f32 %v7759, %v7639
      %v7761 = vmax.f32 %v7760, %v7643
      %v7762 = vmax.f32 %v7761, %v7647
      %v7763 = vmax.f32 %v7762, %v7651
      %v7764 = vmax.f32 %v7763, %v7655
      %v7765 = vmax.f32 %v7764, %v7659
      %v7766 = vrot.slane %v7765, 4
      %v7767 = vmax.f32 %v7765, %v7766
      %v7768 = vrot.slane %v7767, 2
      %v7769 = vmax.f32 %v7767, %v7768
      %v7770 = vrot.slane %v7769, 1
      %v7771 = vmax.f32 %v7769, %v7770
      %v7772 = vmax.f32 %v7536, %v7540
      %v7773 = vmax.f32 %v7772, %v7544
      %v7774 = vmax.f32 %v7773, %v7548
      %v7775 = vmax.f32 %v7774, %v7552
      %v7776 = vmax.f32 %v7775, %v7556
      %v7777 = vmax.f32 %v7776, %v7560
      %v7778 = vmax.f32 %v7777, %v7564
      %v7779 = vmax.f32 %v7778, %v7568
      %v7780 = vmax.f32 %v7779, %v7572
      %v7781 = vmax.f32 %v7780, %v7576
      %v7782 = vmax.f32 %v7781, %v7580
      %v7783 = vmax.f32 %v7782, %v7584
      %v7784 = vmax.f32 %v7783, %v7588
      %v7785 = vmax.f32 %v7784, %v7592
      %v7786 = vmax.f32 %v7785, %v7596
      %v7787 = vmax.f32 %v7786, %v7600
      %v7788 = vmax.f32 %v7787, %v7604
      %v7789 = vmax.f32 %v7788, %v7608
      %v7790 = vmax.f32 %v7789, %v7612
      %v7791 = vmax.f32 %v7790, %v7616
      %v7792 = vmax.f32 %v7791, %v7620
      %v7793 = vmax.f32 %v7792, %v7624
      %v7794 = vmax.f32 %v7793, %v7628
      %v7795 = vmax.f32 %v7794, %v7632
      %v7796 = vmax.f32 %v7795, %v7636
      %v7797 = vmax.f32 %v7796, %v7640
      %v7798 = vmax.f32 %v7797, %v7644
      %v7799 = vmax.f32 %v7798, %v7648
      %v7800 = vmax.f32 %v7799, %v7652
      %v7801 = vmax.f32 %v7800, %v7656
      %v7802 = vmax.f32 %v7801, %v7660
      %v7803 = vrot.slane %v7802, 4
      %v7804 = vmax.f32 %v7802, %v7803
      %v7805 = vrot.slane %v7804, 2
      %v7806 = vmax.f32 %v7804, %v7805
      %v7807 = vrot.slane %v7806, 1
      %v7808 = vmax.f32 %v7806, %v7807
      %v7813 = vcombine.low %v7697, %v7734
      %v7814 = vcombine.low %v7771, %v7808
      %v7816 = vunpack.c.l.s4 1966171168
      %v7817 = vunpack.c.0.s8 %v7816
      %v7818 = vlaneseq
      %v7819 = vshrl.u32 %v7818, 7
      %v7820 = vsub.s32 %v7817, %v7819
      %v7821 = vrot.slane %v7813, %v7820
      %v7823 = vunpack.c.l.s4 1966171168
      %v7824 = vunpack.c.0.s8 %v7823
      %v7825 = vlaneseq
      %v7826 = vshrl.u32 %v7825, 7
      %v7827 = vsub.s32 %v7824, %v7826
      %v7828 = vrot.slane %v7814, %v7827
      %v7829 = vcombine.low %v7821, %v7828
      %v7831 = vunpack.c.l.s4 1966171168
      %v7832 = vunpack.c.0.s8 %v7831
      %v7833 = vlaneseq
      %v7834 = vshrl.u32 %v7833, 7
      %v7835 = vsub.s32 %v7832, %v7834
      %v7836 = vrot.slane %v7829, %v7835
      %s7838 = scalar_lea.vmem [#allocation2], 6
      %7839 = vst.msk [vmem:[%s7838] ss:$8 sm:$0xf] %vm1316, %v7836
      %7840 = vst.msk [vmem:[%s7838] ss:$8 sm:$0x0] %vm1316, %v7836
      %v7841 = vadd.f32 %v7533, %v7537
      %v7842 = vadd.f32 %v7841, %v7541
      %v7843 = vadd.f32 %v7842, %v7545
      %v7844 = vadd.f32 %v7843, %v7549
      %v7845 = vadd.f32 %v7844, %v7553
      %v7846 = vadd.f32 %v7845, %v7557
      %v7847 = vadd.f32 %v7846, %v7561
      %v7848 = vadd.f32 %v7847, %v7565
      %v7849 = vadd.f32 %v7848, %v7569
      %v7850 = vadd.f32 %v7849, %v7573
      %v7851 = vadd.f32 %v7850, %v7577
      %v7852 = vadd.f32 %v7851, %v7581
      %v7853 = vadd.f32 %v7852, %v7585
      %v7854 = vadd.f32 %v7853, %v7589
      %v7855 = vadd.f32 %v7854, %v7593
      %v7856 = vadd.f32 %v7855, %v7597
      %v7857 = vadd.f32 %v7856, %v7601
      %v7858 = vadd.f32 %v7857, %v7605
      %v7859 = vadd.f32 %v7858, %v7609
      %v7860 = vadd.f32 %v7859, %v7613
      %v7861 = vadd.f32 %v7860, %v7617
      %v7862 = vadd.f32 %v7861, %v7621
      %v7863 = vadd.f32 %v7862, %v7625
      %v7864 = vadd.f32 %v7863, %v7629
      %v7865 = vadd.f32 %v7864, %v7633
      %v7866 = vadd.f32 %v7865, %v7637
      %v7867 = vadd.f32 %v7866, %v7641
      %v7868 = vadd.f32 %v7867, %v7645
      %v7869 = vadd.f32 %v7868, %v7649
      %v7870 = vadd.f32 %v7869, %v7653
      %v7871 = vadd.f32 %v7870, %v7657
      %v7872 = vrot.slane %v7871, 4
      %v7873 = vadd.f32 %v7871, %v7872
      %v7874 = vrot.slane %v7873, 2
      %v7875 = vadd.f32 %v7873, %v7874
      %v7876 = vrot.slane %v7875, 1
      %v7877 = vadd.f32 %v7875, %v7876
      %v7878 = vadd.f32 %v7534, %v7538
      %v7879 = vadd.f32 %v7878, %v7542
      %v7880 = vadd.f32 %v7879, %v7546
      %v7881 = vadd.f32 %v7880, %v7550
      %v7882 = vadd.f32 %v7881, %v7554
      %v7883 = vadd.f32 %v7882, %v7558
      %v7884 = vadd.f32 %v7883, %v7562
      %v7885 = vadd.f32 %v7884, %v7566
      %v7886 = vadd.f32 %v7885, %v7570
      %v7887 = vadd.f32 %v7886, %v7574
      %v7888 = vadd.f32 %v7887, %v7578
      %v7889 = vadd.f32 %v7888, %v7582
      %v7890 = vadd.f32 %v7889, %v7586
      %v7891 = vadd.f32 %v7890, %v7590
      %v7892 = vadd.f32 %v7891, %v7594
      %v7893 = vadd.f32 %v7892, %v7598
      %v7894 = vadd.f32 %v7893, %v7602
      %v7895 = vadd.f32 %v7894, %v7606
      %v7896 = vadd.f32 %v7895, %v7610
      %v7897 = vadd.f32 %v7896, %v7614
      %v7898 = vadd.f32 %v7897, %v7618
      %v7899 = vadd.f32 %v7898, %v7622
      %v7900 = vadd.f32 %v7899, %v7626
      %v7901 = vadd.f32 %v7900, %v7630
      %v7902 = vadd.f32 %v7901, %v7634
      %v7903 = vadd.f32 %v7902, %v7638
      %v7904 = vadd.f32 %v7903, %v7642
      %v7905 = vadd.f32 %v7904, %v7646
      %v7906 = vadd.f32 %v7905, %v7650
      %v7907 = vadd.f32 %v7906, %v7654
      %v7908 = vadd.f32 %v7907, %v7658
      %v7909 = vrot.slane %v7908, 4
      %v7910 = vadd.f32 %v7908, %v7909
      %v7911 = vrot.slane %v7910, 2
      %v7912 = vadd.f32 %v7910, %v7911
      %v7913 = vrot.slane %v7912, 1
      %v7914 = vadd.f32 %v7912, %v7913
      %v7915 = vadd.f32 %v7535, %v7539
      %v7916 = vadd.f32 %v7915, %v7543
      %v7917 = vadd.f32 %v7916, %v7547
      %v7918 = vadd.f32 %v7917, %v7551
      %v7919 = vadd.f32 %v7918, %v7555
      %v7920 = vadd.f32 %v7919, %v7559
      %v7921 = vadd.f32 %v7920, %v7563
      %v7922 = vadd.f32 %v7921, %v7567
      %v7923 = vadd.f32 %v7922, %v7571
      %v7924 = vadd.f32 %v7923, %v7575
      %v7925 = vadd.f32 %v7924, %v7579
      %v7926 = vadd.f32 %v7925, %v7583
      %v7927 = vadd.f32 %v7926, %v7587
      %v7928 = vadd.f32 %v7927, %v7591
      %v7929 = vadd.f32 %v7928, %v7595
      %v7930 = vadd.f32 %v7929, %v7599
      %v7931 = vadd.f32 %v7930, %v7603
      %v7932 = vadd.f32 %v7931, %v7607
      %v7933 = vadd.f32 %v7932, %v7611
      %v7934 = vadd.f32 %v7933, %v7615
      %v7935 = vadd.f32 %v7934, %v7619
      %v7936 = vadd.f32 %v7935, %v7623
      %v7937 = vadd.f32 %v7936, %v7627
      %v7938 = vadd.f32 %v7937, %v7631
      %v7939 = vadd.f32 %v7938, %v7635
      %v7940 = vadd.f32 %v7939, %v7639
      %v7941 = vadd.f32 %v7940, %v7643
      %v7942 = vadd.f32 %v7941, %v7647
      %v7943 = vadd.f32 %v7942, %v7651
      %v7944 = vadd.f32 %v7943, %v7655
      %v7945 = vadd.f32 %v7944, %v7659
      %v7946 = vrot.slane %v7945, 4
      %v7947 = vadd.f32 %v7945, %v7946
      %v7948 = vrot.slane %v7947, 2
      %v7949 = vadd.f32 %v7947, %v7948
      %v7950 = vrot.slane %v7949, 1
      %v7951 = vadd.f32 %v7949, %v7950
      %v7952 = vadd.f32 %v7536, %v7540
      %v7953 = vadd.f32 %v7952, %v7544
      %v7954 = vadd.f32 %v7953, %v7548
      %v7955 = vadd.f32 %v7954, %v7552
      %v7956 = vadd.f32 %v7955, %v7556
      %v7957 = vadd.f32 %v7956, %v7560
      %v7958 = vadd.f32 %v7957, %v7564
      %v7959 = vadd.f32 %v7958, %v7568
      %v7960 = vadd.f32 %v7959, %v7572
      %v7961 = vadd.f32 %v7960, %v7576
      %v7962 = vadd.f32 %v7961, %v7580
      %v7963 = vadd.f32 %v7962, %v7584
      %v7964 = vadd.f32 %v7963, %v7588
      %v7965 = vadd.f32 %v7964, %v7592
      %v7966 = vadd.f32 %v7965, %v7596
      %v7967 = vadd.f32 %v7966, %v7600
      %v7968 = vadd.f32 %v7967, %v7604
      %v7969 = vadd.f32 %v7968, %v7608
      %v7970 = vadd.f32 %v7969, %v7612
      %v7971 = vadd.f32 %v7970, %v7616
      %v7972 = vadd.f32 %v7971, %v7620
      %v7973 = vadd.f32 %v7972, %v7624
      %v7974 = vadd.f32 %v7973, %v7628
      %v7975 = vadd.f32 %v7974, %v7632
      %v7976 = vadd.f32 %v7975, %v7636
      %v7977 = vadd.f32 %v7976, %v7640
      %v7978 = vadd.f32 %v7977, %v7644
      %v7979 = vadd.f32 %v7978, %v7648
      %v7980 = vadd.f32 %v7979, %v7652
      %v7981 = vadd.f32 %v7980, %v7656
      %v7982 = vadd.f32 %v7981, %v7660
      %v7983 = vrot.slane %v7982, 4
      %v7984 = vadd.f32 %v7982, %v7983
      %v7985 = vrot.slane %v7984, 2
      %v7986 = vadd.f32 %v7984, %v7985
      %v7987 = vrot.slane %v7986, 1
      %v7988 = vadd.f32 %v7986, %v7987
      %v7989 = vmul.f32 %v7877, 0.00390625
      %v7990 = vmul.f32 %v7914, 0.00390625
      %v7991 = vmul.f32 %v7951, 0.00390625
      %v7992 = vmul.f32 %v7988, 0.00390625
      %v7997 = vcombine.low %v7989, %v7990
      %v7998 = vcombine.low %v7991, %v7992
      %v8000 = vunpack.c.l.s4 1966171168
      %v8001 = vunpack.c.0.s8 %v8000
      %v8002 = vlaneseq
      %v8003 = vshrl.u32 %v8002, 7
      %v8004 = vsub.s32 %v8001, %v8003
      %v8005 = vrot.slane %v7997, %v8004
      %v8007 = vunpack.c.l.s4 1966171168
      %v8008 = vunpack.c.0.s8 %v8007
      %v8009 = vlaneseq
      %v8010 = vshrl.u32 %v8009, 7
      %v8011 = vsub.s32 %v8008, %v8010
      %v8012 = vrot.slane %v7998, %v8011
      %v8013 = vcombine.low %v8005, %v8012
      %v8015 = vunpack.c.l.s4 1966171168
      %v8016 = vunpack.c.0.s8 %v8015
      %v8017 = vlaneseq
      %v8018 = vshrl.u32 %v8017, 7
      %v8019 = vsub.s32 %v8016, %v8018
      %v8020 = vrot.slane %v8013, %v8019
      %s8022 = scalar_lea.vmem [#allocation2], 38
      %8023 = vst.msk [vmem:[%s8022] ss:$8 sm:$0xf] %vm1316, %v8020
      %8024 = vst.msk [vmem:[%s8022] ss:$8 sm:$0x0] %vm1316, %v8020
      %s8025 = scalar_lea.vmem %s408, 896
      %v8026 = vld [vmem:[%s8025] sm:$0xf]
      %v8027 = vld [vmem:[%s8025 + $0x4] sm:$0xf]
      %v8028 = vld [vmem:[%s8025 + $0x8] sm:$0xf]
      %v8029 = vld [vmem:[%s8025 + $0xc] sm:$0xf]
      %v8030 = vld [vmem:[%s8025 + $0x10] sm:$0xf]
      %v8031 = vld [vmem:[%s8025 + $0x14] sm:$0xf]
      %v8032 = vld [vmem:[%s8025 + $0x18] sm:$0xf]
      %v8033 = vld [vmem:[%s8025 + $0x1c] sm:$0xf]
      %v8034 = vld [vmem:[%s8025 + $0x20] sm:$0xf]
      %v8035 = vld [vmem:[%s8025 + $0x24] sm:$0xf]
      %v8036 = vld [vmem:[%s8025 + $0x28] sm:$0xf]
      %v8037 = vld [vmem:[%s8025 + $0x2c] sm:$0xf]
      %v8038 = vld [vmem:[%s8025 + $0x30] sm:$0xf]
      %v8039 = vld [vmem:[%s8025 + $0x34] sm:$0xf]
      %v8040 = vld [vmem:[%s8025 + $0x38] sm:$0xf]
      %v8041 = vld [vmem:[%s8025 + $0x3c] sm:$0xf]
      %v8042 = vld [vmem:[%s8025 + $0x40] sm:$0xf]
      %v8043 = vld [vmem:[%s8025 + $0x44] sm:$0xf]
      %v8044 = vld [vmem:[%s8025 + $0x48] sm:$0xf]
      %v8045 = vld [vmem:[%s8025 + $0x4c] sm:$0xf]
      %v8046 = vld [vmem:[%s8025 + $0x50] sm:$0xf]
      %v8047 = vld [vmem:[%s8025 + $0x54] sm:$0xf]
      %v8048 = vld [vmem:[%s8025 + $0x58] sm:$0xf]
      %v8049 = vld [vmem:[%s8025 + $0x5c] sm:$0xf]
      %v8050 = vld [vmem:[%s8025 + $0x60] sm:$0xf]
      %v8051 = vld [vmem:[%s8025 + $0x64] sm:$0xf]
      %v8052 = vld [vmem:[%s8025 + $0x68] sm:$0xf]
      %v8053 = vld [vmem:[%s8025 + $0x6c] sm:$0xf]
      %v8054 = vld [vmem:[%s8025 + $0x70] sm:$0xf]
      %v8055 = vld [vmem:[%s8025 + $0x74] sm:$0xf]
      %v8056 = vld [vmem:[%s8025 + $0x78] sm:$0xf]
      %v8057 = vld [vmem:[%s8025 + $0x7c] sm:$0xf]
      %v8058 = vld [vmem:[%s1] sm:$0xff]
      %v8059 = vld [vmem:[%s1 + $0x8] sm:$0xff]
      %v8060 = vld [vmem:[%s1 + $0x10] sm:$0xff]
      %v8061 = vld [vmem:[%s1 + $0x18] sm:$0xff]
      %v8062 = vld [vmem:[%s1 + $0x20] sm:$0xff]
      %v8063 = vld [vmem:[%s1 + $0x28] sm:$0xff]
      %v8064 = vld [vmem:[%s1 + $0x30] sm:$0xff]
      %v8065 = vld [vmem:[%s1 + $0x38] sm:$0xff]
      %v8098 = vunpack.c.l.b16 %v8026
      %v8099 = vunpack.c.l.b16 %v8027
      %v8100 = vunpack.c.l.b16 %v8028
      %v8101 = vunpack.c.l.b16 %v8029
      %v8102 = vunpack.c.l.b16 %v8030
      %v8103 = vunpack.c.l.b16 %v8031
      %v8104 = vunpack.c.l.b16 %v8032
      %v8105 = vunpack.c.l.b16 %v8033
      %v8106 = vunpack.c.l.b16 %v8034
      %v8107 = vunpack.c.l.b16 %v8035
      %v8108 = vunpack.c.l.b16 %v8036
      %v8109 = vunpack.c.l.b16 %v8037
      %v8110 = vunpack.c.l.b16 %v8038
      %v8111 = vunpack.c.l.b16 %v8039
      %v8112 = vunpack.c.l.b16 %v8040
      %v8113 = vunpack.c.l.b16 %v8041
      %v8114 = vunpack.c.l.b16 %v8042
      %v8115 = vunpack.c.l.b16 %v8043
      %v8116 = vunpack.c.l.b16 %v8044
      %v8117 = vunpack.c.l.b16 %v8045
      %v8118 = vunpack.c.l.b16 %v8046
      %v8119 = vunpack.c.l.b16 %v8047
      %v8120 = vunpack.c.l.b16 %v8048
      %v8121 = vunpack.c.l.b16 %v8049
      %v8122 = vunpack.c.l.b16 %v8050
      %v8123 = vunpack.c.l.b16 %v8051
      %v8124 = vunpack.c.l.b16 %v8052
      %v8125 = vunpack.c.l.b16 %v8053
      %v8126 = vunpack.c.l.b16 %v8054
      %v8127 = vunpack.c.l.b16 %v8055
      %v8128 = vunpack.c.l.b16 %v8056
      %v8129 = vunpack.c.l.b16 %v8057
      %v8130 = vpack.c.b16 %v8099, %v8098
      %v8131 = vpack.c.b16 %v8101, %v8100
      %v8132 = vpack.c.b16 %v8103, %v8102
      %v8133 = vpack.c.b16 %v8105, %v8104
      %v8134 = vpack.c.b16 %v8107, %v8106
      %v8135 = vpack.c.b16 %v8109, %v8108
      %v8136 = vpack.c.b16 %v8111, %v8110
      %v8137 = vpack.c.b16 %v8113, %v8112
      %v8138 = vpack.c.b16 %v8115, %v8114
      %v8139 = vpack.c.b16 %v8117, %v8116
      %v8140 = vpack.c.b16 %v8119, %v8118
      %v8141 = vpack.c.b16 %v8121, %v8120
      %v8142 = vpack.c.b16 %v8123, %v8122
      %v8143 = vpack.c.b16 %v8125, %v8124
      %v8144 = vpack.c.b16 %v8127, %v8126
      %v8145 = vpack.c.b16 %v8129, %v8128
      %v8154 = vunpack.c.l.b16 %v8058
      %v8155 = vunpack.c.h.b16 %v8058
      %v8156 = vunpack.c.l.b16 %v8059
      %v8157 = vunpack.c.h.b16 %v8059
      %v8158 = vunpack.c.l.b16 %v8060
      %v8159 = vunpack.c.h.b16 %v8060
      %v8160 = vunpack.c.l.b16 %v8061
      %v8161 = vunpack.c.h.b16 %v8061
      %v8162 = vunpack.c.l.b16 %v8062
      %v8163 = vunpack.c.h.b16 %v8062
      %v8164 = vunpack.c.l.b16 %v8063
      %v8165 = vunpack.c.h.b16 %v8063
      %v8166 = vunpack.c.l.b16 %v8064
      %v8167 = vunpack.c.h.b16 %v8064
      %v8168 = vunpack.c.l.b16 %v8065
      %v8169 = vunpack.c.h.b16 %v8065
      %v8170 = vpack.c.b16 %v8158, %v8154
      %v8171 = vpack.c.b16 %v8159, %v8155
      %v8172 = vpack.c.b16 %v8160, %v8156
      %v8173 = vpack.c.b16 %v8161, %v8157
      %v8174 = vpack.c.b16 %v8166, %v8162
      %v8175 = vpack.c.b16 %v8167, %v8163
      %v8176 = vpack.c.b16 %v8168, %v8164
      %v8177 = vpack.c.b16 %v8169, %v8165
      %v8187 = vsel %vm573, %v8130, 0
      %v8190 = vsel %vm573, %v8131, 0
      %v8193 = vsel %vm573, %v8132, 0
      %v8196 = vsel %vm573, %v8133, 0
      %v8199 = vsel %vm573, %v8134, 0
      %v8202 = vsel %vm573, %v8135, 0
      %v8205 = vsel %vm573, %v8136, 0
      %v8208 = vsel %vm573, %v8137, 0
      %v8211 = vsel %vm573, %v8138, 0
      %v8214 = vsel %vm573, %v8139, 0
      %v8217 = vsel %vm573, %v8140, 0
      %v8220 = vsel %vm573, %v8141, 0
      %v8223 = vsel %vm573, %v8142, 0
      %v8226 = vsel %vm573, %v8143, 0
      %v8229 = vsel %vm573, %v8144, 0
      %v8232 = vsel %vm573, %v8145, 0
      %8234 = vmatprep.subr.bf16.mxu0 %v8171
      %8235 = vmatpush1.bf16.msra.mxu0 %v8170
      %8236 = vmatprep.subr.bf16.mxu0 %v8175
      %8237 = vmatpush1.bf16.msra.mxu0 %v8174
      %8238 = vmatprep.subr.bf16.mxu0 0
      %8239 = vmatpush1.bf16.msra.mxu0 0
      %8240 = vmatprep.subr.bf16.mxu0 0
      %8241 = vmatpush1.bf16.msra.mxu0 0
      %8242 = vmatprep.subr.bf16.mxu0 0
      %8243 = vmatpush1.bf16.msra.mxu0 0
      %8244 = vmatprep.subr.bf16.mxu0 0
      %8245 = vmatpush1.bf16.msra.mxu0 0
      %8246 = vmatprep.subr.bf16.mxu0 0
      %8247 = vmatpush1.bf16.msra.mxu0 0
      %8248 = vmatprep.subr.bf16.mxu0 0
      %8249 = vmatpush1.bf16.msra.mxu0 0
      %8250 = vmatprep.subr.bf16.mxu0 0
      %8251 = vmatpush1.bf16.msra.mxu0 0
      %8252 = vmatprep.subr.bf16.mxu0 0
      %8253 = vmatpush1.bf16.msra.mxu0 0
      %8254 = vmatprep.subr.bf16.mxu0 0
      %8255 = vmatpush1.bf16.msra.mxu0 0
      %8256 = vmatprep.subr.bf16.mxu0 0
      %8257 = vmatpush1.bf16.msra.mxu0 0
      %8258 = vmatprep.subr.bf16.mxu0 0
      %8259 = vmatpush1.bf16.msra.mxu0 0
      %8260 = vmatprep.subr.bf16.mxu0 0
      %8261 = vmatpush1.bf16.msra.mxu0 0
      %8262 = vmatprep.subr.bf16.mxu0 0
      %8263 = vmatpush1.bf16.msra.mxu0 0
      %8264 = vmatprep.subr.bf16.mxu0 0
      %8265 = vmatpush1.bf16.msra.mxu0 0
      %8266 = vmatprep.mubr.bf16.mxu0 0
      %8267 = vmatmul.mubr.bf16.gmra.mrb[0].mxu0 %v8187
      %v8268 = vpop.f32.mrb[0].mxu0
      %v8269 = vadd.f32 0.0, %v8268
      %v8270 = vpop.f32.mrb[0].mxu0
      %v8271 = vadd.f32 0.0, %v8270
      %v8272 = vpop.f32.mrb[0].mxu0
      %v8273 = vadd.f32 0.0, %v8272
      %v8274 = vpop.f32.mrb[0].mxu0
      %v8275 = vadd.f32 0.0, %v8274
      %8276 = vmatprep.mubr.bf16.mxu0 0
      %8277 = vmatmul.mubr.bf16.gmra.mrb[0].mxu0 %v8190
      %v8278 = vpop.f32.mrb[0].mxu0
      %v8279 = vadd.f32 0.0, %v8278
      %v8280 = vpop.f32.mrb[0].mxu0
      %v8281 = vadd.f32 0.0, %v8280
      %v8282 = vpop.f32.mrb[0].mxu0
      %v8283 = vadd.f32 0.0, %v8282
      %v8284 = vpop.f32.mrb[0].mxu0
      %v8285 = vadd.f32 0.0, %v8284
      %8286 = vmatprep.mubr.bf16.mxu0 0
      %8287 = vmatmul.mubr.bf16.gmra.mrb[0].mxu0 %v8193
      %v8288 = vpop.f32.mrb[0].mxu0
      %v8289 = vadd.f32 0.0, %v8288
      %v8290 = vpop.f32.mrb[0].mxu0
      %v8291 = vadd.f32 0.0, %v8290
      %v8292 = vpop.f32.mrb[0].mxu0
      %v8293 = vadd.f32 0.0, %v8292
      %v8294 = vpop.f32.mrb[0].mxu0
      %v8295 = vadd.f32 0.0, %v8294
      %8296 = vmatprep.mubr.bf16.mxu0 0
      %8297 = vmatmul.mubr.bf16.gmra.mrb[0].mxu0 %v8196
      %v8298 = vpop.f32.mrb[0].mxu0
      %v8299 = vadd.f32 0.0, %v8298
      %v8300 = vpop.f32.mrb[0].mxu0
      %v8301 = vadd.f32 0.0, %v8300
      %v8302 = vpop.f32.mrb[0].mxu0
      %v8303 = vadd.f32 0.0, %v8302
      %v8304 = vpop.f32.mrb[0].mxu0
      %v8305 = vadd.f32 0.0, %v8304
      %8306 = vmatprep.mubr.bf16.mxu0 0
      %8307 = vmatmul.mubr.bf16.gmra.mrb[0].mxu0 %v8199
      %v8308 = vpop.f32.mrb[0].mxu0
      %v8309 = vadd.f32 0.0, %v8308
      %v8310 = vpop.f32.mrb[0].mxu0
      %v8311 = vadd.f32 0.0, %v8310
      %v8312 = vpop.f32.mrb[0].mxu0
      %v8313 = vadd.f32 0.0, %v8312
      %v8314 = vpop.f32.mrb[0].mxu0
      %v8315 = vadd.f32 0.0, %v8314
      %8316 = vmatprep.mubr.bf16.mxu0 0
      %8317 = vmatmul.mubr.bf16.gmra.mrb[0].mxu0 %v8202
      %v8318 = vpop.f32.mrb[0].mxu0
      %v8319 = vadd.f32 0.0, %v8318
      %v8320 = vpop.f32.mrb[0].mxu0
      %v8321 = vadd.f32 0.0, %v8320
      %v8322 = vpop.f32.mrb[0].mxu0
      %v8323 = vadd.f32 0.0, %v8322
      %v8324 = vpop.f32.mrb[0].mxu0
      %v8325 = vadd.f32 0.0, %v8324
      %8326 = vmatprep.mubr.bf16.mxu0 0
      %8327 = vmatmul.mubr.bf16.gmra.mrb[0].mxu0 %v8205
      %v8328 = vpop.f32.mrb[0].mxu0
      %v8329 = vadd.f32 0.0, %v8328
      %v8330 = vpop.f32.mrb[0].mxu0
      %v8331 = vadd.f32 0.0, %v8330
      %v8332 = vpop.f32.mrb[0].mxu0
      %v8333 = vadd.f32 0.0, %v8332
      %v8334 = vpop.f32.mrb[0].mxu0
      %v8335 = vadd.f32 0.0, %v8334
      %8336 = vmatprep.mubr.bf16.mxu0 0
      %8337 = vmatmul.mubr.bf16.gmra.mrb[0].mxu0 %v8208
      %v8338 = vpop.f32.mrb[0].mxu0
      %v8339 = vadd.f32 0.0, %v8338
      %v8340 = vpop.f32.mrb[0].mxu0
      %v8341 = vadd.f32 0.0, %v8340
      %v8342 = vpop.f32.mrb[0].mxu0
      %v8343 = vadd.f32 0.0, %v8342
      %v8344 = vpop.f32.mrb[0].mxu0
      %v8345 = vadd.f32 0.0, %v8344
      %8346 = vmatprep.mubr.bf16.mxu0 0
      %8347 = vmatmul.mubr.bf16.gmra.mrb[0].mxu0 %v8211
      %v8348 = vpop.f32.mrb[0].mxu0
      %v8349 = vadd.f32 0.0, %v8348
      %v8350 = vpop.f32.mrb[0].mxu0
      %v8351 = vadd.f32 0.0, %v8350
      %v8352 = vpop.f32.mrb[0].mxu0
      %v8353 = vadd.f32 0.0, %v8352
      %v8354 = vpop.f32.mrb[0].mxu0
      %v8355 = vadd.f32 0.0, %v8354
      %8356 = vmatprep.mubr.bf16.mxu0 0
      %8357 = vmatmul.mubr.bf16.gmra.mrb[0].mxu0 %v8214
      %v8358 = vpop.f32.mrb[0].mxu0
      %v8359 = vadd.f32 0.0, %v8358
      %v8360 = vpop.f32.mrb[0].mxu0
      %v8361 = vadd.f32 0.0, %v8360
      %v8362 = vpop.f32.mrb[0].mxu0
      %v8363 = vadd.f32 0.0, %v8362
      %v8364 = vpop.f32.mrb[0].mxu0
      %v8365 = vadd.f32 0.0, %v8364
      %8366 = vmatprep.mubr.bf16.mxu0 0
      %8367 = vmatmul.mubr.bf16.gmra.mrb[0].mxu0 %v8217
      %v8368 = vpop.f32.mrb[0].mxu0
      %v8369 = vadd.f32 0.0, %v8368
      %v8370 = vpop.f32.mrb[0].mxu0
      %v8371 = vadd.f32 0.0, %v8370
      %v8372 = vpop.f32.mrb[0].mxu0
      %v8373 = vadd.f32 0.0, %v8372
      %v8374 = vpop.f32.mrb[0].mxu0
      %v8375 = vadd.f32 0.0, %v8374
      %8376 = vmatprep.mubr.bf16.mxu0 0
      %8377 = vmatmul.mubr.bf16.gmra.mrb[0].mxu0 %v8220
      %v8378 = vpop.f32.mrb[0].mxu0
      %v8379 = vadd.f32 0.0, %v8378
      %v8380 = vpop.f32.mrb[0].mxu0
      %v8381 = vadd.f32 0.0, %v8380
      %v8382 = vpop.f32.mrb[0].mxu0
      %v8383 = vadd.f32 0.0, %v8382
      %v8384 = vpop.f32.mrb[0].mxu0
      %v8385 = vadd.f32 0.0, %v8384
      %8386 = vmatprep.mubr.bf16.mxu0 0
      %8387 = vmatmul.mubr.bf16.gmra.mrb[0].mxu0 %v8223
      %v8388 = vpop.f32.mrb[0].mxu0
      %v8389 = vadd.f32 0.0, %v8388
      %v8390 = vpop.f32.mrb[0].mxu0
      %v8391 = vadd.f32 0.0, %v8390
      %v8392 = vpop.f32.mrb[0].mxu0
      %v8393 = vadd.f32 0.0, %v8392
      %v8394 = vpop.f32.mrb[0].mxu0
      %v8395 = vadd.f32 0.0, %v8394
      %8396 = vmatprep.mubr.bf16.mxu0 0
      %8397 = vmatmul.mubr.bf16.gmra.mrb[0].mxu0 %v8226
      %v8398 = vpop.f32.mrb[0].mxu0
      %v8399 = vadd.f32 0.0, %v8398
      %v8400 = vpop.f32.mrb[0].mxu0
      %v8401 = vadd.f32 0.0, %v8400
      %v8402 = vpop.f32.mrb[0].mxu0
      %v8403 = vadd.f32 0.0, %v8402
      %v8404 = vpop.f32.mrb[0].mxu0
      %v8405 = vadd.f32 0.0, %v8404
      %8406 = vmatprep.mubr.bf16.mxu0 0
      %8407 = vmatmul.mubr.bf16.gmra.mrb[0].mxu0 %v8229
      %v8408 = vpop.f32.mrb[0].mxu0
      %v8409 = vadd.f32 0.0, %v8408
      %v8410 = vpop.f32.mrb[0].mxu0
      %v8411 = vadd.f32 0.0, %v8410
      %v8412 = vpop.f32.mrb[0].mxu0
      %v8413 = vadd.f32 0.0, %v8412
      %v8414 = vpop.f32.mrb[0].mxu0
      %v8415 = vadd.f32 0.0, %v8414
      %8416 = vmatprep.mubr.bf16.mxu0 0
      %8417 = vmatmul.mubr.bf16.gmra.mrb[0].mxu0 %v8232
      %v8418 = vpop.f32.mrb[0].mxu0
      %v8419 = vadd.f32 0.0, %v8418
      %v8420 = vpop.f32.mrb[0].mxu0
      %v8421 = vadd.f32 0.0, %v8420
      %v8422 = vpop.f32.mrb[0].mxu0
      %v8423 = vadd.f32 0.0, %v8422
      %v8424 = vpop.f32.mrb[0].mxu0
      %v8425 = vadd.f32 0.0, %v8424
      %8426 = vdwg.mxu0
      %8427 = vmatprep.subr.bf16.mxu0 %v8173
      %8428 = vmatpush1.bf16.msra.mxu0 %v8172
      %8429 = vmatprep.subr.bf16.mxu0 %v8177
      %8430 = vmatpush1.bf16.msra.mxu0 %v8176
      %8431 = vmatprep.subr.bf16.mxu0 0
      %8432 = vmatpush1.bf16.msra.mxu0 0
      %8433 = vmatprep.subr.bf16.mxu0 0
      %8434 = vmatpush1.bf16.msra.mxu0 0
      %8435 = vmatprep.subr.bf16.mxu0 0
      %8436 = vmatpush1.bf16.msra.mxu0 0
      %8437 = vmatprep.subr.bf16.mxu0 0
      %8438 = vmatpush1.bf16.msra.mxu0 0
      %8439 = vmatprep.subr.bf16.mxu0 0
      %8440 = vmatpush1.bf16.msra.mxu0 0
      %8441 = vmatprep.subr.bf16.mxu0 0
      %8442 = vmatpush1.bf16.msra.mxu0 0
      %8443 = vmatprep.subr.bf16.mxu0 0
      %8444 = vmatpush1.bf16.msra.mxu0 0
      %8445 = vmatprep.subr.bf16.mxu0 0
      %8446 = vmatpush1.bf16.msra.mxu0 0
      %8447 = vmatprep.subr.bf16.mxu0 0
      %8448 = vmatpush1.bf16.msra.mxu0 0
      %8449 = vmatprep.subr.bf16.mxu0 0
      %8450 = vmatpush1.bf16.msra.mxu0 0
      %8451 = vmatprep.subr.bf16.mxu0 0
      %8452 = vmatpush1.bf16.msra.mxu0 0
      %8453 = vmatprep.subr.bf16.mxu0 0
      %8454 = vmatpush1.bf16.msra.mxu0 0
      %8455 = vmatprep.subr.bf16.mxu0 0
      %8456 = vmatpush1.bf16.msra.mxu0 0
      %8457 = vmatprep.subr.bf16.mxu0 0
      %8458 = vmatpush1.bf16.msra.mxu0 0
      %8459 = vmatprep.mubr.bf16.mxu0 0
      %8460 = vmatmul.mubr.bf16.gmra.mrb[0].mxu0 %v8187
      %v8461 = vpop.f32.mrb[0].mxu0
      %v8462 = vadd.f32 0.0, %v8461
      %v8463 = vpop.f32.mrb[0].mxu0
      %v8464 = vadd.f32 0.0, %v8463
      %v8465 = vpop.f32.mrb[0].mxu0
      %v8466 = vadd.f32 0.0, %v8465
      %v8467 = vpop.f32.mrb[0].mxu0
      %v8468 = vadd.f32 0.0, %v8467
      %8469 = vmatprep.mubr.bf16.mxu0 0
      %8470 = vmatmul.mubr.bf16.gmra.mrb[0].mxu0 %v8190
      %v8471 = vpop.f32.mrb[0].mxu0
      %v8472 = vadd.f32 0.0, %v8471
      %v8473 = vpop.f32.mrb[0].mxu0
      %v8474 = vadd.f32 0.0, %v8473
      %v8475 = vpop.f32.mrb[0].mxu0
      %v8476 = vadd.f32 0.0, %v8475
      %v8477 = vpop.f32.mrb[0].mxu0
      %v8478 = vadd.f32 0.0, %v8477
      %8479 = vmatprep.mubr.bf16.mxu0 0
      %8480 = vmatmul.mubr.bf16.gmra.mrb[0].mxu0 %v8193
      %v8481 = vpop.f32.mrb[0].mxu0
      %v8482 = vadd.f32 0.0, %v8481
      %v8483 = vpop.f32.mrb[0].mxu0
      %v8484 = vadd.f32 0.0, %v8483
      %v8485 = vpop.f32.mrb[0].mxu0
      %v8486 = vadd.f32 0.0, %v8485
      %v8487 = vpop.f32.mrb[0].mxu0
      %v8488 = vadd.f32 0.0, %v8487
      %8489 = vmatprep.mubr.bf16.mxu0 0
      %8490 = vmatmul.mubr.bf16.gmra.mrb[0].mxu0 %v8196
      %v8491 = vpop.f32.mrb[0].mxu0
      %v8492 = vadd.f32 0.0, %v8491
      %v8493 = vpop.f32.mrb[0].mxu0
      %v8494 = vadd.f32 0.0, %v8493
      %v8495 = vpop.f32.mrb[0].mxu0
      %v8496 = vadd.f32 0.0, %v8495
      %v8497 = vpop.f32.mrb[0].mxu0
      %v8498 = vadd.f32 0.0, %v8497
      %8499 = vmatprep.mubr.bf16.mxu0 0
      %8500 = vmatmul.mubr.bf16.gmra.mrb[0].mxu0 %v8199
      %v8501 = vpop.f32.mrb[0].mxu0
      %v8502 = vadd.f32 0.0, %v8501
      %v8503 = vpop.f32.mrb[0].mxu0
      %v8504 = vadd.f32 0.0, %v8503
      %v8505 = vpop.f32.mrb[0].mxu0
      %v8506 = vadd.f32 0.0, %v8505
      %v8507 = vpop.f32.mrb[0].mxu0
      %v8508 = vadd.f32 0.0, %v8507
      %8509 = vmatprep.mubr.bf16.mxu0 0
      %8510 = vmatmul.mubr.bf16.gmra.mrb[0].mxu0 %v8202
      %v8511 = vpop.f32.mrb[0].mxu0
      %v8512 = vadd.f32 0.0, %v8511
      %v8513 = vpop.f32.mrb[0].mxu0
      %v8514 = vadd.f32 0.0, %v8513
      %v8515 = vpop.f32.mrb[0].mxu0
      %v8516 = vadd.f32 0.0, %v8515
      %v8517 = vpop.f32.mrb[0].mxu0
      %v8518 = vadd.f32 0.0, %v8517
      %8519 = vmatprep.mubr.bf16.mxu0 0
      %8520 = vmatmul.mubr.bf16.gmra.mrb[0].mxu0 %v8205
      %v8521 = vpop.f32.mrb[0].mxu0
      %v8522 = vadd.f32 0.0, %v8521
      %v8523 = vpop.f32.mrb[0].mxu0
      %v8524 = vadd.f32 0.0, %v8523
      %v8525 = vpop.f32.mrb[0].mxu0
      %v8526 = vadd.f32 0.0, %v8525
      %v8527 = vpop.f32.mrb[0].mxu0
      %v8528 = vadd.f32 0.0, %v8527
      %8529 = vmatprep.mubr.bf16.mxu0 0
      %8530 = vmatmul.mubr.bf16.gmra.mrb[0].mxu0 %v8208
      %v8531 = vpop.f32.mrb[0].mxu0
      %v8532 = vadd.f32 0.0, %v8531
      %v8533 = vpop.f32.mrb[0].mxu0
      %v8534 = vadd.f32 0.0, %v8533
      %v8535 = vpop.f32.mrb[0].mxu0
      %v8536 = vadd.f32 0.0, %v8535
      %v8537 = vpop.f32.mrb[0].mxu0
      %v8538 = vadd.f32 0.0, %v8537
      %8539 = vmatprep.mubr.bf16.mxu0 0
      %8540 = vmatmul.mubr.bf16.gmra.mrb[0].mxu0 %v8211
      %v8541 = vpop.f32.mrb[0].mxu0
      %v8542 = vadd.f32 0.0, %v8541
      %v8543 = vpop.f32.mrb[0].mxu0
      %v8544 = vadd.f32 0.0, %v8543
      %v8545 = vpop.f32.mrb[0].mxu0
      %v8546 = vadd.f32 0.0, %v8545
      %v8547 = vpop.f32.mrb[0].mxu0
      %v8548 = vadd.f32 0.0, %v8547
      %8549 = vmatprep.mubr.bf16.mxu0 0
      %8550 = vmatmul.mubr.bf16.gmra.mrb[0].mxu0 %v8214
      %v8551 = vpop.f32.mrb[0].mxu0
      %v8552 = vadd.f32 0.0, %v8551
      %v8553 = vpop.f32.mrb[0].mxu0
      %v8554 = vadd.f32 0.0, %v8553
      %v8555 = vpop.f32.mrb[0].mxu0
      %v8556 = vadd.f32 0.0, %v8555
      %v8557 = vpop.f32.mrb[0].mxu0
      %v8558 = vadd.f32 0.0, %v8557
      %8559 = vmatprep.mubr.bf16.mxu0 0
      %8560 = vmatmul.mubr.bf16.gmra.mrb[0].mxu0 %v8217
      %v8561 = vpop.f32.mrb[0].mxu0
      %v8562 = vadd.f32 0.0, %v8561
      %v8563 = vpop.f32.mrb[0].mxu0
      %v8564 = vadd.f32 0.0, %v8563
      %v8565 = vpop.f32.mrb[0].mxu0
      %v8566 = vadd.f32 0.0, %v8565
      %v8567 = vpop.f32.mrb[0].mxu0
      %v8568 = vadd.f32 0.0, %v8567
      %8569 = vmatprep.mubr.bf16.mxu0 0
      %8570 = vmatmul.mubr.bf16.gmra.mrb[0].mxu0 %v8220
      %v8571 = vpop.f32.mrb[0].mxu0
      %v8572 = vadd.f32 0.0, %v8571
      %v8573 = vpop.f32.mrb[0].mxu0
      %v8574 = vadd.f32 0.0, %v8573
      %v8575 = vpop.f32.mrb[0].mxu0
      %v8576 = vadd.f32 0.0, %v8575
      %v8577 = vpop.f32.mrb[0].mxu0
      %v8578 = vadd.f32 0.0, %v8577
      %8579 = vmatprep.mubr.bf16.mxu0 0
      %8580 = vmatmul.mubr.bf16.gmra.mrb[0].mxu0 %v8223
      %v8581 = vpop.f32.mrb[0].mxu0
      %v8582 = vadd.f32 0.0, %v8581
      %v8583 = vpop.f32.mrb[0].mxu0
      %v8584 = vadd.f32 0.0, %v8583
      %v8585 = vpop.f32.mrb[0].mxu0
      %v8586 = vadd.f32 0.0, %v8585
      %v8587 = vpop.f32.mrb[0].mxu0
      %v8588 = vadd.f32 0.0, %v8587
      %8589 = vmatprep.mubr.bf16.mxu0 0
      %8590 = vmatmul.mubr.bf16.gmra.mrb[0].mxu0 %v8226
      %v8591 = vpop.f32.mrb[0].mxu0
      %v8592 = vadd.f32 0.0, %v8591
      %v8593 = vpop.f32.mrb[0].mxu0
      %v8594 = vadd.f32 0.0, %v8593
      %v8595 = vpop.f32.mrb[0].mxu0
      %v8596 = vadd.f32 0.0, %v8595
      %v8597 = vpop.f32.mrb[0].mxu0
      %v8598 = vadd.f32 0.0, %v8597
      %8599 = vmatprep.mubr.bf16.mxu0 0
      %8600 = vmatmul.mubr.bf16.gmra.mrb[0].mxu0 %v8229
      %v8601 = vpop.f32.mrb[0].mxu0
      %v8602 = vadd.f32 0.0, %v8601
      %v8603 = vpop.f32.mrb[0].mxu0
      %v8604 = vadd.f32 0.0, %v8603
      %v8605 = vpop.f32.mrb[0].mxu0
      %v8606 = vadd.f32 0.0, %v8605
      %v8607 = vpop.f32.mrb[0].mxu0
      %v8608 = vadd.f32 0.0, %v8607
      %8609 = vmatprep.mubr.bf16.mxu0 0
      %8610 = vmatmul.mubr.bf16.gmra.mrb[0].mxu0 %v8232
      %v8611 = vpop.f32.mrb[0].mxu0
      %v8612 = vadd.f32 0.0, %v8611
      %v8613 = vpop.f32.mrb[0].mxu0
      %v8614 = vadd.f32 0.0, %v8613
      %v8615 = vpop.f32.mrb[0].mxu0
      %v8616 = vadd.f32 0.0, %v8615
      %v8617 = vpop.f32.mrb[0].mxu0
      %v8618 = vadd.f32 0.0, %v8617
      %8619 = vdwg.mxu0
      %v8620 = vmax.f32 %v8269, 0.0
      %v8621 = vmax.f32 %v8271, 0.0
      %v8622 = vmax.f32 %v8462, 0.0
      %v8623 = vmax.f32 %v8464, 0.0
      %v8624 = vmax.f32 %v8273, 0.0
      %v8625 = vmax.f32 %v8275, 0.0
      %v8626 = vmax.f32 %v8466, 0.0
      %v8627 = vmax.f32 %v8468, 0.0
      %v8628 = vmax.f32 %v8279, 0.0
      %v8629 = vmax.f32 %v8281, 0.0
      %v8630 = vmax.f32 %v8472, 0.0
      %v8631 = vmax.f32 %v8474, 0.0
      %v8632 = vmax.f32 %v8283, 0.0
      %v8633 = vmax.f32 %v8285, 0.0
      %v8634 = vmax.f32 %v8476, 0.0
      %v8635 = vmax.f32 %v8478, 0.0
      %v8636 = vmax.f32 %v8289, 0.0
      %v8637 = vmax.f32 %v8291, 0.0
      %v8638 = vmax.f32 %v8482, 0.0
      %v8639 = vmax.f32 %v8484, 0.0
      %v8640 = vmax.f32 %v8293, 0.0
      %v8641 = vmax.f32 %v8295, 0.0
      %v8642 = vmax.f32 %v8486, 0.0
      %v8643 = vmax.f32 %v8488, 0.0
      %v8644 = vmax.f32 %v8299, 0.0
      %v8645 = vmax.f32 %v8301, 0.0
      %v8646 = vmax.f32 %v8492, 0.0
      %v8647 = vmax.f32 %v8494, 0.0
      %v8648 = vmax.f32 %v8303, 0.0
      %v8649 = vmax.f32 %v8305, 0.0
      %v8650 = vmax.f32 %v8496, 0.0
      %v8651 = vmax.f32 %v8498, 0.0
      %v8652 = vmax.f32 %v8309, 0.0
      %v8653 = vmax.f32 %v8311, 0.0
      %v8654 = vmax.f32 %v8502, 0.0
      %v8655 = vmax.f32 %v8504, 0.0
      %v8656 = vmax.f32 %v8313, 0.0
      %v8657 = vmax.f32 %v8315, 0.0
      %v8658 = vmax.f32 %v8506, 0.0
      %v8659 = vmax.f32 %v8508, 0.0
      %v8660 = vmax.f32 %v8319, 0.0
      %v8661 = vmax.f32 %v8321, 0.0
      %v8662 = vmax.f32 %v8512, 0.0
      %v8663 = vmax.f32 %v8514, 0.0
      %v8664 = vmax.f32 %v8323, 0.0
      %v8665 = vmax.f32 %v8325, 0.0
      %v8666 = vmax.f32 %v8516, 0.0
      %v8667 = vmax.f32 %v8518, 0.0
      %v8668 = vmax.f32 %v8329, 0.0
      %v8669 = vmax.f32 %v8331, 0.0
      %v8670 = vmax.f32 %v8522, 0.0
      %v8671 = vmax.f32 %v8524, 0.0
      %v8672 = vmax.f32 %v8333, 0.0
      %v8673 = vmax.f32 %v8335, 0.0
      %v8674 = vmax.f32 %v8526, 0.0
      %v8675 = vmax.f32 %v8528, 0.0
      %v8676 = vmax.f32 %v8339, 0.0
      %v8677 = vmax.f32 %v8341, 0.0
      %v8678 = vmax.f32 %v8532, 0.0
      %v8679 = vmax.f32 %v8534, 0.0
      %v8680 = vmax.f32 %v8343, 0.0
      %v8681 = vmax.f32 %v8345, 0.0
      %v8682 = vmax.f32 %v8536, 0.0
      %v8683 = vmax.f32 %v8538, 0.0
      %v8684 = vmax.f32 %v8349, 0.0
      %v8685 = vmax.f32 %v8351, 0.0
      %v8686 = vmax.f32 %v8542, 0.0
      %v8687 = vmax.f32 %v8544, 0.0
      %v8688 = vmax.f32 %v8353, 0.0
      %v8689 = vmax.f32 %v8355, 0.0
      %v8690 = vmax.f32 %v8546, 0.0
      %v8691 = vmax.f32 %v8548, 0.0
      %v8692 = vmax.f32 %v8359, 0.0
      %v8693 = vmax.f32 %v8361, 0.0
      %v8694 = vmax.f32 %v8552, 0.0
      %v8695 = vmax.f32 %v8554, 0.0
      %v8696 = vmax.f32 %v8363, 0.0
      %v8697 = vmax.f32 %v8365, 0.0
      %v8698 = vmax.f32 %v8556, 0.0
      %v8699 = vmax.f32 %v8558, 0.0
      %v8700 = vmax.f32 %v8369, 0.0
      %v8701 = vmax.f32 %v8371, 0.0
      %v8702 = vmax.f32 %v8562, 0.0
      %v8703 = vmax.f32 %v8564, 0.0
      %v8704 = vmax.f32 %v8373, 0.0
      %v8705 = vmax.f32 %v8375, 0.0
      %v8706 = vmax.f32 %v8566, 0.0
      %v8707 = vmax.f32 %v8568, 0.0
      %v8708 = vmax.f32 %v8379, 0.0
      %v8709 = vmax.f32 %v8381, 0.0
      %v8710 = vmax.f32 %v8572, 0.0
      %v8711 = vmax.f32 %v8574, 0.0
      %v8712 = vmax.f32 %v8383, 0.0
      %v8713 = vmax.f32 %v8385, 0.0
      %v8714 = vmax.f32 %v8576, 0.0
      %v8715 = vmax.f32 %v8578, 0.0
      %v8716 = vmax.f32 %v8389, 0.0
      %v8717 = vmax.f32 %v8391, 0.0
      %v8718 = vmax.f32 %v8582, 0.0
      %v8719 = vmax.f32 %v8584, 0.0
      %v8720 = vmax.f32 %v8393, 0.0
      %v8721 = vmax.f32 %v8395, 0.0
      %v8722 = vmax.f32 %v8586, 0.0
      %v8723 = vmax.f32 %v8588, 0.0
      %v8724 = vmax.f32 %v8399, 0.0
      %v8725 = vmax.f32 %v8401, 0.0
      %v8726 = vmax.f32 %v8592, 0.0
      %v8727 = vmax.f32 %v8594, 0.0
      %v8728 = vmax.f32 %v8403, 0.0
      %v8729 = vmax.f32 %v8405, 0.0
      %v8730 = vmax.f32 %v8596, 0.0
      %v8731 = vmax.f32 %v8598, 0.0
      %v8732 = vmax.f32 %v8409, 0.0
      %v8733 = vmax.f32 %v8411, 0.0
      %v8734 = vmax.f32 %v8602, 0.0
      %v8735 = vmax.f32 %v8604, 0.0
      %v8736 = vmax.f32 %v8413, 0.0
      %v8737 = vmax.f32 %v8415, 0.0
      %v8738 = vmax.f32 %v8606, 0.0
      %v8739 = vmax.f32 %v8608, 0.0
      %v8740 = vmax.f32 %v8419, 0.0
      %v8741 = vmax.f32 %v8421, 0.0
      %v8742 = vmax.f32 %v8612, 0.0
      %v8743 = vmax.f32 %v8614, 0.0
      %v8744 = vmax.f32 %v8423, 0.0
      %v8745 = vmax.f32 %v8425, 0.0
      %v8746 = vmax.f32 %v8616, 0.0
      %v8747 = vmax.f32 %v8618, 0.0
      %v8748 = vmax.f32 %v8620, %v8624
      %v8749 = vmax.f32 %v8748, %v8628
      %v8750 = vmax.f32 %v8749, %v8632
      %v8751 = vmax.f32 %v8750, %v8636
      %v8752 = vmax.f32 %v8751, %v8640
      %v8753 = vmax.f32 %v8752, %v8644
      %v8754 = vmax.f32 %v8753, %v8648
      %v8755 = vmax.f32 %v8754, %v8652
      %v8756 = vmax.f32 %v8755, %v8656
      %v8757 = vmax.f32 %v8756, %v8660
      %v8758 = vmax.f32 %v8757, %v8664
      %v8759 = vmax.f32 %v8758, %v8668
      %v8760 = vmax.f32 %v8759, %v8672
      %v8761 = vmax.f32 %v8760, %v8676
      %v8762 = vmax.f32 %v8761, %v8680
      %v8763 = vmax.f32 %v8762, %v8684
      %v8764 = vmax.f32 %v8763, %v8688
      %v8765 = vmax.f32 %v8764, %v8692
      %v8766 = vmax.f32 %v8765, %v8696
      %v8767 = vmax.f32 %v8766, %v8700
      %v8768 = vmax.f32 %v8767, %v8704
      %v8769 = vmax.f32 %v8768, %v8708
      %v8770 = vmax.f32 %v8769, %v8712
      %v8771 = vmax.f32 %v8770, %v8716
      %v8772 = vmax.f32 %v8771, %v8720
      %v8773 = vmax.f32 %v8772, %v8724
      %v8774 = vmax.f32 %v8773, %v8728
      %v8775 = vmax.f32 %v8774, %v8732
      %v8776 = vmax.f32 %v8775, %v8736
      %v8777 = vmax.f32 %v8776, %v8740
      %v8778 = vmax.f32 %v8777, %v8744
      %v8779 = vrot.slane %v8778, 4
      %v8780 = vmax.f32 %v8778, %v8779
      %v8781 = vrot.slane %v8780, 2
      %v8782 = vmax.f32 %v8780, %v8781
      %v8783 = vrot.slane %v8782, 1
      %v8784 = vmax.f32 %v8782, %v8783
      %v8785 = vmax.f32 %v8621, %v8625
      %v8786 = vmax.f32 %v8785, %v8629
      %v8787 = vmax.f32 %v8786, %v8633
      %v8788 = vmax.f32 %v8787, %v8637
      %v8789 = vmax.f32 %v8788, %v8641
      %v8790 = vmax.f32 %v8789, %v8645
      %v8791 = vmax.f32 %v8790, %v8649
      %v8792 = vmax.f32 %v8791, %v8653
      %v8793 = vmax.f32 %v8792, %v8657
      %v8794 = vmax.f32 %v8793, %v8661
      %v8795 = vmax.f32 %v8794, %v8665
      %v8796 = vmax.f32 %v8795, %v8669
      %v8797 = vmax.f32 %v8796, %v8673
      %v8798 = vmax.f32 %v8797, %v8677
      %v8799 = vmax.f32 %v8798, %v8681
      %v8800 = vmax.f32 %v8799, %v8685
      %v8801 = vmax.f32 %v8800, %v8689
      %v8802 = vmax.f32 %v8801, %v8693
      %v8803 = vmax.f32 %v8802, %v8697
      %v8804 = vmax.f32 %v8803, %v8701
      %v8805 = vmax.f32 %v8804, %v8705
      %v8806 = vmax.f32 %v8805, %v8709
      %v8807 = vmax.f32 %v8806, %v8713
      %v8808 = vmax.f32 %v8807, %v8717
      %v8809 = vmax.f32 %v8808, %v8721
      %v8810 = vmax.f32 %v8809, %v8725
      %v8811 = vmax.f32 %v8810, %v8729
      %v8812 = vmax.f32 %v8811, %v8733
      %v8813 = vmax.f32 %v8812, %v8737
      %v8814 = vmax.f32 %v8813, %v8741
      %v8815 = vmax.f32 %v8814, %v8745
      %v8816 = vrot.slane %v8815, 4
      %v8817 = vmax.f32 %v8815, %v8816
      %v8818 = vrot.slane %v8817, 2
      %v8819 = vmax.f32 %v8817, %v8818
      %v8820 = vrot.slane %v8819, 1
      %v8821 = vmax.f32 %v8819, %v8820
      %v8822 = vmax.f32 %v8622, %v8626
      %v8823 = vmax.f32 %v8822, %v8630
      %v8824 = vmax.f32 %v8823, %v8634
      %v8825 = vmax.f32 %v8824, %v8638
      %v8826 = vmax.f32 %v8825, %v8642
      %v8827 = vmax.f32 %v8826, %v8646
      %v8828 = vmax.f32 %v8827, %v8650
      %v8829 = vmax.f32 %v8828, %v8654
      %v8830 = vmax.f32 %v8829, %v8658
      %v8831 = vmax.f32 %v8830, %v8662
      %v8832 = vmax.f32 %v8831, %v8666
      %v8833 = vmax.f32 %v8832, %v8670
      %v8834 = vmax.f32 %v8833, %v8674
      %v8835 = vmax.f32 %v8834, %v8678
      %v8836 = vmax.f32 %v8835, %v8682
      %v8837 = vmax.f32 %v8836, %v8686
      %v8838 = vmax.f32 %v8837, %v8690
      %v8839 = vmax.f32 %v8838, %v8694
      %v8840 = vmax.f32 %v8839, %v8698
      %v8841 = vmax.f32 %v8840, %v8702
      %v8842 = vmax.f32 %v8841, %v8706
      %v8843 = vmax.f32 %v8842, %v8710
      %v8844 = vmax.f32 %v8843, %v8714
      %v8845 = vmax.f32 %v8844, %v8718
      %v8846 = vmax.f32 %v8845, %v8722
      %v8847 = vmax.f32 %v8846, %v8726
      %v8848 = vmax.f32 %v8847, %v8730
      %v8849 = vmax.f32 %v8848, %v8734
      %v8850 = vmax.f32 %v8849, %v8738
      %v8851 = vmax.f32 %v8850, %v8742
      %v8852 = vmax.f32 %v8851, %v8746
      %v8853 = vrot.slane %v8852, 4
      %v8854 = vmax.f32 %v8852, %v8853
      %v8855 = vrot.slane %v8854, 2
      %v8856 = vmax.f32 %v8854, %v8855
      %v8857 = vrot.slane %v8856, 1
      %v8858 = vmax.f32 %v8856, %v8857
      %v8859 = vmax.f32 %v8623, %v8627
      %v8860 = vmax.f32 %v8859, %v8631
      %v8861 = vmax.f32 %v8860, %v8635
      %v8862 = vmax.f32 %v8861, %v8639
      %v8863 = vmax.f32 %v8862, %v8643
      %v8864 = vmax.f32 %v8863, %v8647
      %v8865 = vmax.f32 %v8864, %v8651
      %v8866 = vmax.f32 %v8865, %v8655
      %v8867 = vmax.f32 %v8866, %v8659
      %v8868 = vmax.f32 %v8867, %v8663
      %v8869 = vmax.f32 %v8868, %v8667
      %v8870 = vmax.f32 %v8869, %v8671
      %v8871 = vmax.f32 %v8870, %v8675
      %v8872 = vmax.f32 %v8871, %v8679
      %v8873 = vmax.f32 %v8872, %v8683
      %v8874 = vmax.f32 %v8873, %v8687
      %v8875 = vmax.f32 %v8874, %v8691
      %v8876 = vmax.f32 %v8875, %v8695
      %v8877 = vmax.f32 %v8876, %v8699
      %v8878 = vmax.f32 %v8877, %v8703
      %v8879 = vmax.f32 %v8878, %v8707
      %v8880 = vmax.f32 %v8879, %v8711
      %v8881 = vmax.f32 %v8880, %v8715
      %v8882 = vmax.f32 %v8881, %v8719
      %v8883 = vmax.f32 %v8882, %v8723
      %v8884 = vmax.f32 %v8883, %v8727
      %v8885 = vmax.f32 %v8884, %v8731
      %v8886 = vmax.f32 %v8885, %v8735
      %v8887 = vmax.f32 %v8886, %v8739
      %v8888 = vmax.f32 %v8887, %v8743
      %v8889 = vmax.f32 %v8888, %v8747
      %v8890 = vrot.slane %v8889, 4
      %v8891 = vmax.f32 %v8889, %v8890
      %v8892 = vrot.slane %v8891, 2
      %v8893 = vmax.f32 %v8891, %v8892
      %v8894 = vrot.slane %v8893, 1
      %v8895 = vmax.f32 %v8893, %v8894
      %v8900 = vcombine.low %v8784, %v8821
      %v8901 = vcombine.low %v8858, %v8895
      %v8903 = vunpack.c.l.s4 1966171168
      %v8904 = vunpack.c.0.s8 %v8903
      %v8905 = vlaneseq
      %v8906 = vshrl.u32 %v8905, 7
      %v8907 = vsub.s32 %v8904, %v8906
      %v8908 = vrot.slane %v8900, %v8907
      %v8910 = vunpack.c.l.s4 1966171168
      %v8911 = vunpack.c.0.s8 %v8910
      %v8912 = vlaneseq
      %v8913 = vshrl.u32 %v8912, 7
      %v8914 = vsub.s32 %v8911, %v8913
      %v8915 = vrot.slane %v8901, %v8914
      %v8916 = vcombine.low %v8908, %v8915
      %v8918 = vunpack.c.l.s4 1966171168
      %v8919 = vunpack.c.0.s8 %v8918
      %v8920 = vlaneseq
      %v8921 = vshrl.u32 %v8920, 7
      %v8922 = vsub.s32 %v8919, %v8921
      %v8923 = vrot.slane %v8916, %v8922
      %s8925 = scalar_lea.vmem [#allocation2], 7
      %8926 = vst.msk [vmem:[%s8925] ss:$8 sm:$0xf] %vm1316, %v8923
      %8927 = vst.msk [vmem:[%s8925] ss:$8 sm:$0x0] %vm1316, %v8923
      %v8928 = vadd.f32 %v8620, %v8624
      %v8929 = vadd.f32 %v8928, %v8628
      %v8930 = vadd.f32 %v8929, %v8632
      %v8931 = vadd.f32 %v8930, %v8636
      %v8932 = vadd.f32 %v8931, %v8640
      %v8933 = vadd.f32 %v8932, %v8644
      %v8934 = vadd.f32 %v8933, %v8648
      %v8935 = vadd.f32 %v8934, %v8652
      %v8936 = vadd.f32 %v8935, %v8656
      %v8937 = vadd.f32 %v8936, %v8660
      %v8938 = vadd.f32 %v8937, %v8664
      %v8939 = vadd.f32 %v8938, %v8668
      %v8940 = vadd.f32 %v8939, %v8672
      %v8941 = vadd.f32 %v8940, %v8676
      %v8942 = vadd.f32 %v8941, %v8680
      %v8943 = vadd.f32 %v8942, %v8684
      %v8944 = vadd.f32 %v8943, %v8688
      %v8945 = vadd.f32 %v8944, %v8692
      %v8946 = vadd.f32 %v8945, %v8696
      %v8947 = vadd.f32 %v8946, %v8700
      %v8948 = vadd.f32 %v8947, %v8704
      %v8949 = vadd.f32 %v8948, %v8708
      %v8950 = vadd.f32 %v8949, %v8712
      %v8951 = vadd.f32 %v8950, %v8716
      %v8952 = vadd.f32 %v8951, %v8720
      %v8953 = vadd.f32 %v8952, %v8724
      %v8954 = vadd.f32 %v8953, %v8728
      %v8955 = vadd.f32 %v8954, %v8732
      %v8956 = vadd.f32 %v8955, %v8736
      %v8957 = vadd.f32 %v8956, %v8740
      %v8958 = vadd.f32 %v8957, %v8744
      %v8959 = vrot.slane %v8958, 4
      %v8960 = vadd.f32 %v8958, %v8959
      %v8961 = vrot.slane %v8960, 2
      %v8962 = vadd.f32 %v8960, %v8961
      %v8963 = vrot.slane %v8962, 1
      %v8964 = vadd.f32 %v8962, %v8963
      %v8965 = vadd.f32 %v8621, %v8625
      %v8966 = vadd.f32 %v8965, %v8629
      %v8967 = vadd.f32 %v8966, %v8633
      %v8968 = vadd.f32 %v8967, %v8637
      %v8969 = vadd.f32 %v8968, %v8641
      %v8970 = vadd.f32 %v8969, %v8645
      %v8971 = vadd.f32 %v8970, %v8649
      %v8972 = vadd.f32 %v8971, %v8653
      %v8973 = vadd.f32 %v8972, %v8657
      %v8974 = vadd.f32 %v8973, %v8661
      %v8975 = vadd.f32 %v8974, %v8665
      %v8976 = vadd.f32 %v8975, %v8669
      %v8977 = vadd.f32 %v8976, %v8673
      %v8978 = vadd.f32 %v8977, %v8677
      %v8979 = vadd.f32 %v8978, %v8681
      %v8980 = vadd.f32 %v8979, %v8685
      %v8981 = vadd.f32 %v8980, %v8689
      %v8982 = vadd.f32 %v8981, %v8693
      %v8983 = vadd.f32 %v8982, %v8697
      %v8984 = vadd.f32 %v8983, %v8701
      %v8985 = vadd.f32 %v8984, %v8705
      %v8986 = vadd.f32 %v8985, %v8709
      %v8987 = vadd.f32 %v8986, %v8713
      %v8988 = vadd.f32 %v8987, %v8717
      %v8989 = vadd.f32 %v8988, %v8721
      %v8990 = vadd.f32 %v8989, %v8725
      %v8991 = vadd.f32 %v8990, %v8729
      %v8992 = vadd.f32 %v8991, %v8733
      %v8993 = vadd.f32 %v8992, %v8737
      %v8994 = vadd.f32 %v8993, %v8741
      %v8995 = vadd.f32 %v8994, %v8745
      %v8996 = vrot.slane %v8995, 4
      %v8997 = vadd.f32 %v8995, %v8996
      %v8998 = vrot.slane %v8997, 2
      %v8999 = vadd.f32 %v8997, %v8998
      %v9000 = vrot.slane %v8999, 1
      %v9001 = vadd.f32 %v8999, %v9000
      %v9002 = vadd.f32 %v8622, %v8626
      %v9003 = vadd.f32 %v9002, %v8630
      %v9004 = vadd.f32 %v9003, %v8634
      %v9005 = vadd.f32 %v9004, %v8638
      %v9006 = vadd.f32 %v9005, %v8642
      %v9007 = vadd.f32 %v9006, %v8646
      %v9008 = vadd.f32 %v9007, %v8650
      %v9009 = vadd.f32 %v9008, %v8654
      %v9010 = vadd.f32 %v9009, %v8658
      %v9011 = vadd.f32 %v9010, %v8662
      %v9012 = vadd.f32 %v9011, %v8666
      %v9013 = vadd.f32 %v9012, %v8670
      %v9014 = vadd.f32 %v9013, %v8674
      %v9015 = vadd.f32 %v9014, %v8678
      %v9016 = vadd.f32 %v9015, %v8682
      %v9017 = vadd.f32 %v9016, %v8686
      %v9018 = vadd.f32 %v9017, %v8690
      %v9019 = vadd.f32 %v9018, %v8694
      %v9020 = vadd.f32 %v9019, %v8698
      %v9021 = vadd.f32 %v9020, %v8702
      %v9022 = vadd.f32 %v9021, %v8706
      %v9023 = vadd.f32 %v9022, %v8710
      %v9024 = vadd.f32 %v9023, %v8714
      %v9025 = vadd.f32 %v9024, %v8718
      %v9026 = vadd.f32 %v9025, %v8722
      %v9027 = vadd.f32 %v9026, %v8726
      %v9028 = vadd.f32 %v9027, %v8730
      %v9029 = vadd.f32 %v9028, %v8734
      %v9030 = vadd.f32 %v9029, %v8738
      %v9031 = vadd.f32 %v9030, %v8742
      %v9032 = vadd.f32 %v9031, %v8746
      %v9033 = vrot.slane %v9032, 4
      %v9034 = vadd.f32 %v9032, %v9033
      %v9035 = vrot.slane %v9034, 2
      %v9036 = vadd.f32 %v9034, %v9035
      %v9037 = vrot.slane %v9036, 1
      %v9038 = vadd.f32 %v9036, %v9037
      %v9039 = vadd.f32 %v8623, %v8627
      %v9040 = vadd.f32 %v9039, %v8631
      %v9041 = vadd.f32 %v9040, %v8635
      %v9042 = vadd.f32 %v9041, %v8639
      %v9043 = vadd.f32 %v9042, %v8643
      %v9044 = vadd.f32 %v9043, %v8647
      %v9045 = vadd.f32 %v9044, %v8651
      %v9046 = vadd.f32 %v9045, %v8655
      %v9047 = vadd.f32 %v9046, %v8659
      %v9048 = vadd.f32 %v9047, %v8663
      %v9049 = vadd.f32 %v9048, %v8667
      %v9050 = vadd.f32 %v9049, %v8671
      %v9051 = vadd.f32 %v9050, %v8675
      %v9052 = vadd.f32 %v9051, %v8679
      %v9053 = vadd.f32 %v9052, %v8683
      %v9054 = vadd.f32 %v9053, %v8687
      %v9055 = vadd.f32 %v9054, %v8691
      %v9056 = vadd.f32 %v9055, %v8695
      %v9057 = vadd.f32 %v9056, %v8699
      %v9058 = vadd.f32 %v9057, %v8703
      %v9059 = vadd.f32 %v9058, %v8707
      %v9060 = vadd.f32 %v9059, %v8711
      %v9061 = vadd.f32 %v9060, %v8715
      %v9062 = vadd.f32 %v9061, %v8719
      %v9063 = vadd.f32 %v9062, %v8723
      %v9064 = vadd.f32 %v9063, %v8727
      %v9065 = vadd.f32 %v9064, %v8731
      %v9066 = vadd.f32 %v9065, %v8735
      %v9067 = vadd.f32 %v9066, %v8739
      %v9068 = vadd.f32 %v9067, %v8743
      %v9069 = vadd.f32 %v9068, %v8747
      %v9070 = vrot.slane %v9069, 4
      %v9071 = vadd.f32 %v9069, %v9070
      %v9072 = vrot.slane %v9071, 2
      %v9073 = vadd.f32 %v9071, %v9072
      %v9074 = vrot.slane %v9073, 1
      %v9075 = vadd.f32 %v9073, %v9074
      %v9076 = vmul.f32 %v8964, 0.00390625
      %v9077 = vmul.f32 %v9001, 0.00390625
      %v9078 = vmul.f32 %v9038, 0.00390625
      %v9079 = vmul.f32 %v9075, 0.00390625
      %v9084 = vcombine.low %v9076, %v9077
      %v9085 = vcombine.low %v9078, %v9079
      %v9087 = vunpack.c.l.s4 1966171168
      %v9088 = vunpack.c.0.s8 %v9087
      %v9089 = vlaneseq
      %v9090 = vshrl.u32 %v9089, 7
      %v9091 = vsub.s32 %v9088, %v9090
      %v9092 = vrot.slane %v9084, %v9091
      %v9094 = vunpack.c.l.s4 1966171168
      %v9095 = vunpack.c.0.s8 %v9094
      %v9096 = vlaneseq
      %v9097 = vshrl.u32 %v9096, 7
      %v9098 = vsub.s32 %v9095, %v9097
      %v9099 = vrot.slane %v9085, %v9098
      %v9100 = vcombine.low %v9092, %v9099
      %v9102 = vunpack.c.l.s4 1966171168
      %v9103 = vunpack.c.0.s8 %v9102
      %v9104 = vlaneseq
      %v9105 = vshrl.u32 %v9104, 7
      %v9106 = vsub.s32 %v9103, %v9105
      %v9107 = vrot.slane %v9100, %v9106
      %s9109 = scalar_lea.vmem [#allocation2], 39
      %9110 = vst.msk [vmem:[%s9109] ss:$8 sm:$0xf] %vm1316, %v9107
      %9111 = vst.msk [vmem:[%s9109] ss:$8 sm:$0x0] %vm1316, %v9107
      %v9112 = vld [vmem:[#allocation2] sm:$0xff]
      %v9113 = vld [vmem:[#allocation2 + $0x8] sm:$0xff]
      %v9114 = vld [vmem:[#allocation2 + $0x10] sm:$0xff]
      %v9115 = vld [vmem:[#allocation2 + $0x18] sm:$0xff]
      %v9116 = vld [vmem:[#allocation2 + $0x20] sm:$0xff]
      %v9117 = vld [vmem:[#allocation2 + $0x28] sm:$0xff]
      %v9118 = vld [vmem:[#allocation2 + $0x30] sm:$0xff]
      %v9119 = vld [vmem:[#allocation2 + $0x38] sm:$0xff]
      %v9120 = vpack.c.bf16 %v9112, %v9112
      %v9121 = vpack.c.bf16 %v9113, %v9113
      %v9122 = vpack.c.bf16 %v9114, %v9114
      %v9123 = vpack.c.bf16 %v9115, %v9115
      %v9124 = vpack.c.bf16 %v9116, %v9116
      %v9125 = vpack.c.bf16 %v9117, %v9117
      %v9126 = vpack.c.bf16 %v9118, %v9118
      %v9127 = vpack.c.bf16 %v9119, %v9119
      %v9128 = vld [vmem:[%s2] sm:$0xf]
      %v9129 = vld [vmem:[%s2 + $0x4] sm:$0xf]
      %v9130 = vld [vmem:[%s2 + $0x8] sm:$0xf]
      %v9131 = vld [vmem:[%s2 + $0xc] sm:$0xf]
      %v9132 = vld [vmem:[%s2 + $0x10] sm:$0xf]
      %v9133 = vld [vmem:[%s2 + $0x14] sm:$0xf]
      %v9134 = vld [vmem:[%s2 + $0x18] sm:$0xf]
      %v9135 = vld [vmem:[%s2 + $0x1c] sm:$0xf]
      %v9136 = vld [vmem:[%s2 + $0x20] sm:$0xf]
      %v9137 = vld [vmem:[%s2 + $0x24] sm:$0xf]
      %v9138 = vld [vmem:[%s2 + $0x28] sm:$0xf]
      %v9139 = vld [vmem:[%s2 + $0x2c] sm:$0xf]
      %v9140 = vld [vmem:[%s2 + $0x30] sm:$0xf]
      %v9141 = vld [vmem:[%s2 + $0x34] sm:$0xf]
      %v9142 = vld [vmem:[%s2 + $0x38] sm:$0xf]
      %v9143 = vld [vmem:[%s2 + $0x3c] sm:$0xf]
      %v9144 = vld [vmem:[%s2 + $0x40] sm:$0xf]
      %v9145 = vld [vmem:[%s2 + $0x44] sm:$0xf]
      %v9146 = vld [vmem:[%s2 + $0x48] sm:$0xf]
      %v9147 = vld [vmem:[%s2 + $0x4c] sm:$0xf]
      %v9148 = vld [vmem:[%s2 + $0x50] sm:$0xf]
      %v9149 = vld [vmem:[%s2 + $0x54] sm:$0xf]
      %v9150 = vld [vmem:[%s2 + $0x58] sm:$0xf]
      %v9151 = vld [vmem:[%s2 + $0x5c] sm:$0xf]
      %v9152 = vld [vmem:[%s2 + $0x60] sm:$0xf]
      %v9153 = vld [vmem:[%s2 + $0x64] sm:$0xf]
      %v9154 = vld [vmem:[%s2 + $0x68] sm:$0xf]
      %v9155 = vld [vmem:[%s2 + $0x6c] sm:$0xf]
      %v9156 = vld [vmem:[%s2 + $0x70] sm:$0xf]
      %v9157 = vld [vmem:[%s2 + $0x74] sm:$0xf]
      %v9158 = vld [vmem:[%s2 + $0x78] sm:$0xf]
      %v9159 = vld [vmem:[%s2 + $0x7c] sm:$0xf]
      %v9160 = vld [vmem:[%s2 + $0x80] sm:$0xf]
      %v9161 = vld [vmem:[%s2 + $0x84] sm:$0xf]
      %v9162 = vld [vmem:[%s2 + $0x88] sm:$0xf]
      %v9163 = vld [vmem:[%s2 + $0x8c] sm:$0xf]
      %v9164 = vld [vmem:[%s2 + $0x90] sm:$0xf]
      %v9165 = vld [vmem:[%s2 + $0x94] sm:$0xf]
      %v9166 = vld [vmem:[%s2 + $0x98] sm:$0xf]
      %v9167 = vld [vmem:[%s2 + $0x9c] sm:$0xf]
      %v9168 = vld [vmem:[%s2 + $0xa0] sm:$0xf]
      %v9169 = vld [vmem:[%s2 + $0xa4] sm:$0xf]
      %v9170 = vld [vmem:[%s2 + $0xa8] sm:$0xf]
      %v9171 = vld [vmem:[%s2 + $0xac] sm:$0xf]
      %v9172 = vld [vmem:[%s2 + $0xb0] sm:$0xf]
      %v9173 = vld [vmem:[%s2 + $0xb4] sm:$0xf]
      %v9174 = vld [vmem:[%s2 + $0xb8] sm:$0xf]
      %v9175 = vld [vmem:[%s2 + $0xbc] sm:$0xf]
      %v9176 = vld [vmem:[%s2 + $0xc0] sm:$0xf]
      %v9177 = vld [vmem:[%s2 + $0xc4] sm:$0xf]
      %v9178 = vld [vmem:[%s2 + $0xc8] sm:$0xf]
      %v9179 = vld [vmem:[%s2 + $0xcc] sm:$0xf]
      %v9180 = vld [vmem:[%s2 + $0xd0] sm:$0xf]
      %v9181 = vld [vmem:[%s2 + $0xd4] sm:$0xf]
      %v9182 = vld [vmem:[%s2 + $0xd8] sm:$0xf]
      %v9183 = vld [vmem:[%s2 + $0xdc] sm:$0xf]
      %v9184 = vld [vmem:[%s2 + $0xe0] sm:$0xf]
      %v9185 = vld [vmem:[%s2 + $0xe4] sm:$0xf]
      %v9186 = vld [vmem:[%s2 + $0xe8] sm:$0xf]
      %v9187 = vld [vmem:[%s2 + $0xec] sm:$0xf]
      %v9188 = vld [vmem:[%s2 + $0xf0] sm:$0xf]
      %v9189 = vld [vmem:[%s2 + $0xf4] sm:$0xf]
      %v9190 = vld [vmem:[%s2 + $0xf8] sm:$0xf]
      %v9191 = vld [vmem:[%s2 + $0xfc] sm:$0xf]
      %v9192 = vld [vmem:[%s2 + $0x100] sm:$0xf]
      %v9193 = vld [vmem:[%s2 + $0x104] sm:$0xf]
      %v9194 = vld [vmem:[%s2 + $0x108] sm:$0xf]
      %v9195 = vld [vmem:[%s2 + $0x10c] sm:$0xf]
      %v9196 = vld [vmem:[%s2 + $0x110] sm:$0xf]
      %v9197 = vld [vmem:[%s2 + $0x114] sm:$0xf]
      %v9198 = vld [vmem:[%s2 + $0x118] sm:$0xf]
      %v9199 = vld [vmem:[%s2 + $0x11c] sm:$0xf]
      %v9200 = vld [vmem:[%s2 + $0x120] sm:$0xf]
      %v9201 = vld [vmem:[%s2 + $0x124] sm:$0xf]
      %v9202 = vld [vmem:[%s2 + $0x128] sm:$0xf]
      %v9203 = vld [vmem:[%s2 + $0x12c] sm:$0xf]
      %v9204 = vld [vmem:[%s2 + $0x130] sm:$0xf]
      %v9205 = vld [vmem:[%s2 + $0x134] sm:$0xf]
      %v9206 = vld [vmem:[%s2 + $0x138] sm:$0xf]
      %v9207 = vld [vmem:[%s2 + $0x13c] sm:$0xf]
      %v9208 = vld [vmem:[%s2 + $0x140] sm:$0xf]
      %v9209 = vld [vmem:[%s2 + $0x144] sm:$0xf]
      %v9210 = vld [vmem:[%s2 + $0x148] sm:$0xf]
      %v9211 = vld [vmem:[%s2 + $0x14c] sm:$0xf]
      %v9212 = vld [vmem:[%s2 + $0x150] sm:$0xf]
      %v9213 = vld [vmem:[%s2 + $0x154] sm:$0xf]
      %v9214 = vld [vmem:[%s2 + $0x158] sm:$0xf]
      %v9215 = vld [vmem:[%s2 + $0x15c] sm:$0xf]
      %v9216 = vld [vmem:[%s2 + $0x160] sm:$0xf]
      %v9217 = vld [vmem:[%s2 + $0x164] sm:$0xf]
      %v9218 = vld [vmem:[%s2 + $0x168] sm:$0xf]
      %v9219 = vld [vmem:[%s2 + $0x16c] sm:$0xf]
      %v9220 = vld [vmem:[%s2 + $0x170] sm:$0xf]
      %v9221 = vld [vmem:[%s2 + $0x174] sm:$0xf]
      %v9222 = vld [vmem:[%s2 + $0x178] sm:$0xf]
      %v9223 = vld [vmem:[%s2 + $0x17c] sm:$0xf]
      %v9224 = vld [vmem:[%s2 + $0x180] sm:$0xf]
      %v9225 = vld [vmem:[%s2 + $0x184] sm:$0xf]
      %v9226 = vld [vmem:[%s2 + $0x188] sm:$0xf]
      %v9227 = vld [vmem:[%s2 + $0x18c] sm:$0xf]
      %v9228 = vld [vmem:[%s2 + $0x190] sm:$0xf]
      %v9229 = vld [vmem:[%s2 + $0x194] sm:$0xf]
      %v9230 = vld [vmem:[%s2 + $0x198] sm:$0xf]
      %v9231 = vld [vmem:[%s2 + $0x19c] sm:$0xf]
      %v9232 = vld [vmem:[%s2 + $0x1a0] sm:$0xf]
      %v9233 = vld [vmem:[%s2 + $0x1a4] sm:$0xf]
      %v9234 = vld [vmem:[%s2 + $0x1a8] sm:$0xf]
      %v9235 = vld [vmem:[%s2 + $0x1ac] sm:$0xf]
      %v9236 = vld [vmem:[%s2 + $0x1b0] sm:$0xf]
      %v9237 = vld [vmem:[%s2 + $0x1b4] sm:$0xf]
      %v9238 = vld [vmem:[%s2 + $0x1b8] sm:$0xf]
      %v9239 = vld [vmem:[%s2 + $0x1bc] sm:$0xf]
      %v9240 = vld [vmem:[%s2 + $0x1c0] sm:$0xf]
      %v9241 = vld [vmem:[%s2 + $0x1c4] sm:$0xf]
      %v9242 = vld [vmem:[%s2 + $0x1c8] sm:$0xf]
      %v9243 = vld [vmem:[%s2 + $0x1cc] sm:$0xf]
      %v9244 = vld [vmem:[%s2 + $0x1d0] sm:$0xf]
      %v9245 = vld [vmem:[%s2 + $0x1d4] sm:$0xf]
      %v9246 = vld [vmem:[%s2 + $0x1d8] sm:$0xf]
      %v9247 = vld [vmem:[%s2 + $0x1dc] sm:$0xf]
      %v9248 = vld [vmem:[%s2 + $0x1e0] sm:$0xf]
      %v9249 = vld [vmem:[%s2 + $0x1e4] sm:$0xf]
      %v9250 = vld [vmem:[%s2 + $0x1e8] sm:$0xf]
      %v9251 = vld [vmem:[%s2 + $0x1ec] sm:$0xf]
      %v9252 = vld [vmem:[%s2 + $0x1f0] sm:$0xf]
      %v9253 = vld [vmem:[%s2 + $0x1f4] sm:$0xf]
      %v9254 = vld [vmem:[%s2 + $0x1f8] sm:$0xf]
      %v9255 = vld [vmem:[%s2 + $0x1fc] sm:$0xf]
      %v9256 = vld [vmem:[%s3] sm:$0x1]
      %v9258 = vlaneseq
      %v9259 = vshrl.u32 %v9258, 7
      %v9260 = vsub.s32 0, %v9259
      %v9261 = vrot.slane %v9256, %v9260
      %v9391 = vunpack.c.l.b16 %v9128
      %v9392 = vunpack.c.l.b16 %v9129
      %v9393 = vunpack.c.l.b16 %v9130
      %v9394 = vunpack.c.l.b16 %v9131
      %v9395 = vunpack.c.l.b16 %v9132
      %v9396 = vunpack.c.l.b16 %v9133
      %v9397 = vunpack.c.l.b16 %v9134
      %v9398 = vunpack.c.l.b16 %v9135
      %v9399 = vunpack.c.l.b16 %v9136
      %v9400 = vunpack.c.l.b16 %v9137
      %v9401 = vunpack.c.l.b16 %v9138
      %v9402 = vunpack.c.l.b16 %v9139
      %v9403 = vunpack.c.l.b16 %v9140
      %v9404 = vunpack.c.l.b16 %v9141
      %v9405 = vunpack.c.l.b16 %v9142
      %v9406 = vunpack.c.l.b16 %v9143
      %v9407 = vunpack.c.l.b16 %v9144
      %v9408 = vunpack.c.l.b16 %v9145
      %v9409 = vunpack.c.l.b16 %v9146
      %v9410 = vunpack.c.l.b16 %v9147
      %v9411 = vunpack.c.l.b16 %v9148
      %v9412 = vunpack.c.l.b16 %v9149
      %v9413 = vunpack.c.l.b16 %v9150
      %v9414 = vunpack.c.l.b16 %v9151
      %v9415 = vunpack.c.l.b16 %v9152
      %v9416 = vunpack.c.l.b16 %v9153
      %v9417 = vunpack.c.l.b16 %v9154
      %v9418 = vunpack.c.l.b16 %v9155
      %v9419 = vunpack.c.l.b16 %v9156
      %v9420 = vunpack.c.l.b16 %v9157
      %v9421 = vunpack.c.l.b16 %v9158
      %v9422 = vunpack.c.l.b16 %v9159
      %v9423 = vunpack.c.l.b16 %v9160
      %v9424 = vunpack.c.l.b16 %v9161
      %v9425 = vunpack.c.l.b16 %v9162
      %v9426 = vunpack.c.l.b16 %v9163
      %v9427 = vunpack.c.l.b16 %v9164
      %v9428 = vunpack.c.l.b16 %v9165
      %v9429 = vunpack.c.l.b16 %v9166
      %v9430 = vunpack.c.l.b16 %v9167
      %v9431 = vunpack.c.l.b16 %v9168
      %v9432 = vunpack.c.l.b16 %v9169
      %v9433 = vunpack.c.l.b16 %v9170
      %v9434 = vunpack.c.l.b16 %v9171
      %v9435 = vunpack.c.l.b16 %v9172
      %v9436 = vunpack.c.l.b16 %v9173
      %v9437 = vunpack.c.l.b16 %v9174
      %v9438 = vunpack.c.l.b16 %v9175
      %v9439 = vunpack.c.l.b16 %v9176
      %v9440 = vunpack.c.l.b16 %v9177
      %v9441 = vunpack.c.l.b16 %v9178
      %v9442 = vunpack.c.l.b16 %v9179
      %v9443 = vunpack.c.l.b16 %v9180
      %v9444 = vunpack.c.l.b16 %v9181
      %v9445 = vunpack.c.l.b16 %v9182
      %v9446 = vunpack.c.l.b16 %v9183
      %v9447 = vunpack.c.l.b16 %v9184
      %v9448 = vunpack.c.l.b16 %v9185
      %v9449 = vunpack.c.l.b16 %v9186
      %v9450 = vunpack.c.l.b16 %v9187
      %v9451 = vunpack.c.l.b16 %v9188
      %v9452 = vunpack.c.l.b16 %v9189
      %v9453 = vunpack.c.l.b16 %v9190
      %v9454 = vunpack.c.l.b16 %v9191
      %v9455 = vunpack.c.l.b16 %v9192
      %v9456 = vunpack.c.l.b16 %v9193
      %v9457 = vunpack.c.l.b16 %v9194
      %v9458 = vunpack.c.l.b16 %v9195
      %v9459 = vunpack.c.l.b16 %v9196
      %v9460 = vunpack.c.l.b16 %v9197
      %v9461 = vunpack.c.l.b16 %v9198
      %v9462 = vunpack.c.l.b16 %v9199
      %v9463 = vunpack.c.l.b16 %v9200
      %v9464 = vunpack.c.l.b16 %v9201
      %v9465 = vunpack.c.l.b16 %v9202
      %v9466 = vunpack.c.l.b16 %v9203
      %v9467 = vunpack.c.l.b16 %v9204
      %v9468 = vunpack.c.l.b16 %v9205
      %v9469 = vunpack.c.l.b16 %v9206
      %v9470 = vunpack.c.l.b16 %v9207
      %v9471 = vunpack.c.l.b16 %v9208
      %v9472 = vunpack.c.l.b16 %v9209
      %v9473 = vunpack.c.l.b16 %v9210
      %v9474 = vunpack.c.l.b16 %v9211
      %v9475 = vunpack.c.l.b16 %v9212
      %v9476 = vunpack.c.l.b16 %v9213
      %v9477 = vunpack.c.l.b16 %v9214
      %v9478 = vunpack.c.l.b16 %v9215
      %v9479 = vunpack.c.l.b16 %v9216
      %v9480 = vunpack.c.l.b16 %v9217
      %v9481 = vunpack.c.l.b16 %v9218
      %v9482 = vunpack.c.l.b16 %v9219
      %v9483 = vunpack.c.l.b16 %v9220
      %v9484 = vunpack.c.l.b16 %v9221
      %v9485 = vunpack.c.l.b16 %v9222
      %v9486 = vunpack.c.l.b16 %v9223
      %v9487 = vunpack.c.l.b16 %v9224
      %v9488 = vunpack.c.l.b16 %v9225
      %v9489 = vunpack.c.l.b16 %v9226
      %v9490 = vunpack.c.l.b16 %v9227
      %v9491 = vunpack.c.l.b16 %v9228
      %v9492 = vunpack.c.l.b16 %v9229
      %v9493 = vunpack.c.l.b16 %v9230
      %v9494 = vunpack.c.l.b16 %v9231
      %v9495 = vunpack.c.l.b16 %v9232
      %v9496 = vunpack.c.l.b16 %v9233
      %v9497 = vunpack.c.l.b16 %v9234
      %v9498 = vunpack.c.l.b16 %v9235
      %v9499 = vunpack.c.l.b16 %v9236
      %v9500 = vunpack.c.l.b16 %v9237
      %v9501 = vunpack.c.l.b16 %v9238
      %v9502 = vunpack.c.l.b16 %v9239
      %v9503 = vunpack.c.l.b16 %v9240
      %v9504 = vunpack.c.l.b16 %v9241
      %v9505 = vunpack.c.l.b16 %v9242
      %v9506 = vunpack.c.l.b16 %v9243
      %v9507 = vunpack.c.l.b16 %v9244
      %v9508 = vunpack.c.l.b16 %v9245
      %v9509 = vunpack.c.l.b16 %v9246
      %v9510 = vunpack.c.l.b16 %v9247
      %v9511 = vunpack.c.l.b16 %v9248
      %v9512 = vunpack.c.l.b16 %v9249
      %v9513 = vunpack.c.l.b16 %v9250
      %v9514 = vunpack.c.l.b16 %v9251
      %v9515 = vunpack.c.l.b16 %v9252
      %v9516 = vunpack.c.l.b16 %v9253
      %v9517 = vunpack.c.l.b16 %v9254
      %v9518 = vunpack.c.l.b16 %v9255
      %v9519 = vpack.c.b16 %v9392, %v9391
      %v9520 = vpack.c.b16 %v9394, %v9393
      %v9521 = vpack.c.b16 %v9396, %v9395
      %v9522 = vpack.c.b16 %v9398, %v9397
      %v9523 = vpack.c.b16 %v9400, %v9399
      %v9524 = vpack.c.b16 %v9402, %v9401
      %v9525 = vpack.c.b16 %v9404, %v9403
      %v9526 = vpack.c.b16 %v9406, %v9405
      %v9527 = vpack.c.b16 %v9408, %v9407
      %v9528 = vpack.c.b16 %v9410, %v9409
      %v9529 = vpack.c.b16 %v9412, %v9411
      %v9530 = vpack.c.b16 %v9414, %v9413
      %v9531 = vpack.c.b16 %v9416, %v9415
      %v9532 = vpack.c.b16 %v9418, %v9417
      %v9533 = vpack.c.b16 %v9420, %v9419
      %v9534 = vpack.c.b16 %v9422, %v9421
      %v9535 = vpack.c.b16 %v9424, %v9423
      %v9536 = vpack.c.b16 %v9426, %v9425
      %v9537 = vpack.c.b16 %v9428, %v9427
      %v9538 = vpack.c.b16 %v9430, %v9429
      %v9539 = vpack.c.b16 %v9432, %v9431
      %v9540 = vpack.c.b16 %v9434, %v9433
      %v9541 = vpack.c.b16 %v9436, %v9435
      %v9542 = vpack.c.b16 %v9438, %v9437
      %v9543 = vpack.c.b16 %v9440, %v9439
      %v9544 = vpack.c.b16 %v9442, %v9441
      %v9545 = vpack.c.b16 %v9444, %v9443
      %v9546 = vpack.c.b16 %v9446, %v9445
      %v9547 = vpack.c.b16 %v9448, %v9447
      %v9548 = vpack.c.b16 %v9450, %v9449
      %v9549 = vpack.c.b16 %v9452, %v9451
      %v9550 = vpack.c.b16 %v9454, %v9453
      %v9551 = vpack.c.b16 %v9456, %v9455
      %v9552 = vpack.c.b16 %v9458, %v9457
      %v9553 = vpack.c.b16 %v9460, %v9459
      %v9554 = vpack.c.b16 %v9462, %v9461
      %v9555 = vpack.c.b16 %v9464, %v9463
      %v9556 = vpack.c.b16 %v9466, %v9465
      %v9557 = vpack.c.b16 %v9468, %v9467
      %v9558 = vpack.c.b16 %v9470, %v9469
      %v9559 = vpack.c.b16 %v9472, %v9471
      %v9560 = vpack.c.b16 %v9474, %v9473
      %v9561 = vpack.c.b16 %v9476, %v9475
      %v9562 = vpack.c.b16 %v9478, %v9477
      %v9563 = vpack.c.b16 %v9480, %v9479
      %v9564 = vpack.c.b16 %v9482, %v9481
      %v9565 = vpack.c.b16 %v9484, %v9483
      %v9566 = vpack.c.b16 %v9486, %v9485
      %v9567 = vpack.c.b16 %v9488, %v9487
      %v9568 = vpack.c.b16 %v9490, %v9489
      %v9569 = vpack.c.b16 %v9492, %v9491
      %v9570 = vpack.c.b16 %v9494, %v9493
      %v9571 = vpack.c.b16 %v9496, %v9495
      %v9572 = vpack.c.b16 %v9498, %v9497
      %v9573 = vpack.c.b16 %v9500, %v9499
      %v9574 = vpack.c.b16 %v9502, %v9501
      %v9575 = vpack.c.b16 %v9504, %v9503
      %v9576 = vpack.c.b16 %v9506, %v9505
      %v9577 = vpack.c.b16 %v9508, %v9507
      %v9578 = vpack.c.b16 %v9510, %v9509
      %v9579 = vpack.c.b16 %v9512, %v9511
      %v9580 = vpack.c.b16 %v9514, %v9513
      %v9581 = vpack.c.b16 %v9516, %v9515
      %v9582 = vpack.c.b16 %v9518, %v9517
      %9647 = vmatprep.subr.bf16.mxu0 0
      %9648 = vmatpush1.bf16.msra.mxu0 %v9519
      %9649 = vmatprep.subr.bf16.mxu0 0
      %9650 = vmatpush1.bf16.msra.mxu0 %v9520
      %9651 = vmatprep.subr.bf16.mxu0 0
      %9652 = vmatpush1.bf16.msra.mxu0 %v9521
      %9653 = vmatprep.subr.bf16.mxu0 0
      %9654 = vmatpush1.bf16.msra.mxu0 %v9522
      %9655 = vmatprep.subr.bf16.mxu0 0
      %9656 = vmatpush1.bf16.msra.mxu0 %v9523
      %9657 = vmatprep.subr.bf16.mxu0 0
      %9658 = vmatpush1.bf16.msra.mxu0 %v9524
      %9659 = vmatprep.subr.bf16.mxu0 0
      %9660 = vmatpush1.bf16.msra.mxu0 %v9525
      %9661 = vmatprep.subr.bf16.mxu0 0
      %9662 = vmatpush1.bf16.msra.mxu0 %v9526
      %9663 = vmatprep.subr.bf16.mxu0 0
      %9664 = vmatpush1.bf16.msra.mxu0 %v9527
      %9665 = vmatprep.subr.bf16.mxu0 0
      %9666 = vmatpush1.bf16.msra.mxu0 %v9528
      %9667 = vmatprep.subr.bf16.mxu0 0
      %9668 = vmatpush1.bf16.msra.mxu0 %v9529
      %9669 = vmatprep.subr.bf16.mxu0 0
      %9670 = vmatpush1.bf16.msra.mxu0 %v9530
      %9671 = vmatprep.subr.bf16.mxu0 0
      %9672 = vmatpush1.bf16.msra.mxu0 %v9531
      %9673 = vmatprep.subr.bf16.mxu0 0
      %9674 = vmatpush1.bf16.msra.mxu0 %v9532
      %9675 = vmatprep.subr.bf16.mxu0 0
      %9676 = vmatpush1.bf16.msra.mxu0 %v9533
      %9677 = vmatprep.subr.bf16.mxu0 0
      %9678 = vmatpush1.bf16.msra.mxu0 %v9534
      %9679 = vmatprep.mubr.bf16.mxu0 %v9121
      %9680 = vmatmul.mubr.bf16.gmra.mrb[0].mxu0 %v9120
      %v9681 = vpop.f32.mrb[0].mxu0
      %v9682 = vadd.f32 %v9261, %v9681
      %v9683 = vpop.f32.mrb[0].mxu0
      %v9684 = vpop.f32.mrb[0].mxu0
      %v9685 = vpop.f32.mrb[0].mxu0
      %9686 = vdwg.mxu0
      %9687 = vmatprep.subr.bf16.mxu0 0
      %9688 = vmatpush1.bf16.msra.mxu0 %v9535
      %9689 = vmatprep.subr.bf16.mxu0 0
      %9690 = vmatpush1.bf16.msra.mxu0 %v9536
      %9691 = vmatprep.subr.bf16.mxu0 0
      %9692 = vmatpush1.bf16.msra.mxu0 %v9537
      %9693 = vmatprep.subr.bf16.mxu0 0
      %9694 = vmatpush1.bf16.msra.mxu0 %v9538
      %9695 = vmatprep.subr.bf16.mxu0 0
      %9696 = vmatpush1.bf16.msra.mxu0 %v9539
      %9697 = vmatprep.subr.bf16.mxu0 0
      %9698 = vmatpush1.bf16.msra.mxu0 %v9540
      %9699 = vmatprep.subr.bf16.mxu0 0
      %9700 = vmatpush1.bf16.msra.mxu0 %v9541
      %9701 = vmatprep.subr.bf16.mxu0 0
      %9702 = vmatpush1.bf16.msra.mxu0 %v9542
      %9703 = vmatprep.subr.bf16.mxu0 0
      %9704 = vmatpush1.bf16.msra.mxu0 %v9543
      %9705 = vmatprep.subr.bf16.mxu0 0
      %9706 = vmatpush1.bf16.msra.mxu0 %v9544
      %9707 = vmatprep.subr.bf16.mxu0 0
      %9708 = vmatpush1.bf16.msra.mxu0 %v9545
      %9709 = vmatprep.subr.bf16.mxu0 0
      %9710 = vmatpush1.bf16.msra.mxu0 %v9546
      %9711 = vmatprep.subr.bf16.mxu0 0
      %9712 = vmatpush1.bf16.msra.mxu0 %v9547
      %9713 = vmatprep.subr.bf16.mxu0 0
      %9714 = vmatpush1.bf16.msra.mxu0 %v9548
      %9715 = vmatprep.subr.bf16.mxu0 0
      %9716 = vmatpush1.bf16.msra.mxu0 %v9549
      %9717 = vmatprep.subr.bf16.mxu0 0
      %9718 = vmatpush1.bf16.msra.mxu0 %v9550
      %9719 = vmatprep.mubr.bf16.mxu0 %v9123
      %9720 = vmatmul.mubr.bf16.gmra.mrb[0].mxu0 %v9122
      %v9721 = vpop.f32.mrb[0].mxu0
      %v9722 = vadd.f32 %v9682, %v9721
      %v9723 = vpop.f32.mrb[0].mxu0
      %v9724 = vpop.f32.mrb[0].mxu0
      %v9725 = vpop.f32.mrb[0].mxu0
      %9726 = vdwg.mxu0
      %9727 = vmatprep.subr.bf16.mxu0 0
      %9728 = vmatpush1.bf16.msra.mxu0 %v9551
      %9729 = vmatprep.subr.bf16.mxu0 0
      %9730 = vmatpush1.bf16.msra.mxu0 %v9552
      %9731 = vmatprep.subr.bf16.mxu0 0
      %9732 = vmatpush1.bf16.msra.mxu0 %v9553
      %9733 = vmatprep.subr.bf16.mxu0 0
      %9734 = vmatpush1.bf16.msra.mxu0 %v9554
      %9735 = vmatprep.subr.bf16.mxu0 0
      %9736 = vmatpush1.bf16.msra.mxu0 %v9555
      %9737 = vmatprep.subr.bf16.mxu0 0
      %9738 = vmatpush1.bf16.msra.mxu0 %v9556
      %9739 = vmatprep.subr.bf16.mxu0 0
      %9740 = vmatpush1.bf16.msra.mxu0 %v9557
      %9741 = vmatprep.subr.bf16.mxu0 0
      %9742 = vmatpush1.bf16.msra.mxu0 %v9558
      %9743 = vmatprep.subr.bf16.mxu0 0
      %9744 = vmatpush1.bf16.msra.mxu0 %v9559
      %9745 = vmatprep.subr.bf16.mxu0 0
      %9746 = vmatpush1.bf16.msra.mxu0 %v9560
      %9747 = vmatprep.subr.bf16.mxu0 0
      %9748 = vmatpush1.bf16.msra.mxu0 %v9561
      %9749 = vmatprep.subr.bf16.mxu0 0
      %9750 = vmatpush1.bf16.msra.mxu0 %v9562
      %9751 = vmatprep.subr.bf16.mxu0 0
      %9752 = vmatpush1.bf16.msra.mxu0 %v9563
      %9753 = vmatprep.subr.bf16.mxu0 0
      %9754 = vmatpush1.bf16.msra.mxu0 %v9564
      %9755 = vmatprep.subr.bf16.mxu0 0
      %9756 = vmatpush1.bf16.msra.mxu0 %v9565
      %9757 = vmatprep.subr.bf16.mxu0 0
      %9758 = vmatpush1.bf16.msra.mxu0 %v9566
      %9759 = vmatprep.mubr.bf16.mxu0 %v9125
      %9760 = vmatmul.mubr.bf16.gmra.mrb[0].mxu0 %v9124
      %v9761 = vpop.f32.mrb[0].mxu0
      %v9762 = vadd.f32 %v9722, %v9761
      %v9763 = vpop.f32.mrb[0].mxu0
      %v9764 = vpop.f32.mrb[0].mxu0
      %v9765 = vpop.f32.mrb[0].mxu0
      %9766 = vdwg.mxu0
      %9767 = vmatprep.subr.bf16.mxu0 0
      %9768 = vmatpush1.bf16.msra.mxu0 %v9567
      %9769 = vmatprep.subr.bf16.mxu0 0
      %9770 = vmatpush1.bf16.msra.mxu0 %v9568
      %9771 = vmatprep.subr.bf16.mxu0 0
      %9772 = vmatpush1.bf16.msra.mxu0 %v9569
      %9773 = vmatprep.subr.bf16.mxu0 0
      %9774 = vmatpush1.bf16.msra.mxu0 %v9570
      %9775 = vmatprep.subr.bf16.mxu0 0
      %9776 = vmatpush1.bf16.msra.mxu0 %v9571
      %9777 = vmatprep.subr.bf16.mxu0 0
      %9778 = vmatpush1.bf16.msra.mxu0 %v9572
      %9779 = vmatprep.subr.bf16.mxu0 0
      %9780 = vmatpush1.bf16.msra.mxu0 %v9573
      %9781 = vmatprep.subr.bf16.mxu0 0
      %9782 = vmatpush1.bf16.msra.mxu0 %v9574
      %9783 = vmatprep.subr.bf16.mxu0 0
      %9784 = vmatpush1.bf16.msra.mxu0 %v9575
      %9785 = vmatprep.subr.bf16.mxu0 0
      %9786 = vmatpush1.bf16.msra.mxu0 %v9576
      %9787 = vmatprep.subr.bf16.mxu0 0
      %9788 = vmatpush1.bf16.msra.mxu0 %v9577
      %9789 = vmatprep.subr.bf16.mxu0 0
      %9790 = vmatpush1.bf16.msra.mxu0 %v9578
      %9791 = vmatprep.subr.bf16.mxu0 0
      %9792 = vmatpush1.bf16.msra.mxu0 %v9579
      %9793 = vmatprep.subr.bf16.mxu0 0
      %9794 = vmatpush1.bf16.msra.mxu0 %v9580
      %9795 = vmatprep.subr.bf16.mxu0 0
      %9796 = vmatpush1.bf16.msra.mxu0 %v9581
      %9797 = vmatprep.subr.bf16.mxu0 0
      %9798 = vmatpush1.bf16.msra.mxu0 %v9582
      %9799 = vmatprep.mubr.bf16.mxu0 %v9127
      %9800 = vmatmul.mubr.bf16.gmra.mrb[0].mxu0 %v9126
      %v9801 = vpop.f32.mrb[0].mxu0
      %v9802 = vadd.f32 %v9762, %v9801
      %v9803 = vpop.f32.mrb[0].mxu0
      %v9804 = vpop.f32.mrb[0].mxu0
      %v9805 = vpop.f32.mrb[0].mxu0
      %9806 = vdwg.mxu0
      %v9807 = vmax.f32 %v9802, 0.0
      %v9808 = vpack.c.bf16 %v9807, %v9807
      %v9809 = vld [vmem:[%s4] sm:$0xff]
      %v9810 = vld [vmem:[%s4 + $0x8] sm:$0xf]
      %v9811 = vld [vmem:[%s4 + $0xc] sm:$0xff]
      %v9812 = vld [vmem:[%s4 + $0x14] sm:$0xf]
      %v9813 = vld [vmem:[%s4 + $0x18] sm:$0xff]
      %v9814 = vld [vmem:[%s4 + $0x20] sm:$0xf]
      %v9815 = vld [vmem:[%s4 + $0x24] sm:$0xff]
      %v9816 = vld [vmem:[%s4 + $0x2c] sm:$0xf]
      %v9817 = vld [vmem:[%s4 + $0x30] sm:$0xff]
      %v9818 = vld [vmem:[%s4 + $0x38] sm:$0xf]
      %v9819 = vld [vmem:[%s4 + $0x3c] sm:$0xff]
      %v9820 = vld [vmem:[%s4 + $0x44] sm:$0xf]
      %v9821 = vld [vmem:[%s4 + $0x48] sm:$0xff]
      %v9822 = vld [vmem:[%s4 + $0x50] sm:$0xf]
      %v9823 = vld [vmem:[%s4 + $0x54] sm:$0xff]
      %v9824 = vld [vmem:[%s4 + $0x5c] sm:$0xf]
      %v9825 = vld [vmem:[%s4 + $0x60] sm:$0xff]
      %v9826 = vld [vmem:[%s4 + $0x68] sm:$0xf]
      %v9827 = vld [vmem:[%s4 + $0x6c] sm:$0xff]
      %v9828 = vld [vmem:[%s4 + $0x74] sm:$0xf]
      %v9829 = vld [vmem:[%s4 + $0x78] sm:$0xff]
      %v9830 = vld [vmem:[%s4 + $0x80] sm:$0xf]
      %v9831 = vld [vmem:[%s4 + $0x84] sm:$0xff]
      %v9832 = vld [vmem:[%s4 + $0x8c] sm:$0xf]
      %v9833 = vld [vmem:[%s4 + $0x90] sm:$0xff]
      %v9834 = vld [vmem:[%s4 + $0x98] sm:$0xf]
      %v9835 = vld [vmem:[%s4 + $0x9c] sm:$0xff]
      %v9836 = vld [vmem:[%s4 + $0xa4] sm:$0xf]
      %v9837 = vld [vmem:[%s4 + $0xa8] sm:$0xff]
      %v9838 = vld [vmem:[%s4 + $0xb0] sm:$0xf]
      %v9839 = vld [vmem:[%s4 + $0xb4] sm:$0xff]
      %v9840 = vld [vmem:[%s4 + $0xbc] sm:$0xf]
      %v9841 = vld [vmem:[%s5] sm:$0x7]
      %v9843 = vlaneseq
      %v9844 = vshrl.u32 %v9843, 7
      %v9845 = vsub.s32 0, %v9844
      %v9846 = vrot.slane %v9841, %v9845
      %v9847 = vlaneseq
      %v9848 = vshrl.u32 %v9847, 7
      %v9849 = vsub.s32 1, %v9848
      %v9850 = vrot.slane %v9841, %v9849
      %v9851 = vlaneseq
      %v9852 = vshrl.u32 %v9851, 7
      %v9853 = vsub.s32 2, %v9852
      %v9854 = vrot.slane %v9841, %v9853
      %v9890 = vunpack.c.l.b16 %v9809
      %v9891 = vunpack.c.h.b16 %v9809
      %v9892 = vunpack.c.l.b16 %v9810
      %v9893 = vunpack.c.l.b16 %v9811
      %v9894 = vunpack.c.h.b16 %v9811
      %v9895 = vunpack.c.l.b16 %v9812
      %v9896 = vunpack.c.l.b16 %v9813
      %v9897 = vunpack.c.h.b16 %v9813
      %v9898 = vunpack.c.l.b16 %v9814
      %v9899 = vunpack.c.l.b16 %v9815
      %v9900 = vunpack.c.h.b16 %v9815
      %v9901 = vunpack.c.l.b16 %v9816
      %v9902 = vunpack.c.l.b16 %v9817
      %v9903 = vunpack.c.h.b16 %v9817
      %v9904 = vunpack.c.l.b16 %v9818
      %v9905 = vunpack.c.l.b16 %v9819
      %v9906 = vunpack.c.h.b16 %v9819
      %v9907 = vunpack.c.l.b16 %v9820
      %v9908 = vunpack.c.l.b16 %v9821
      %v9909 = vunpack.c.h.b16 %v9821
      %v9910 = vunpack.c.l.b16 %v9822
      %v9911 = vunpack.c.l.b16 %v9823
      %v9912 = vunpack.c.h.b16 %v9823
      %v9913 = vunpack.c.l.b16 %v9824
      %v9914 = vunpack.c.l.b16 %v9825
      %v9915 = vunpack.c.h.b16 %v9825
      %v9916 = vunpack.c.l.b16 %v9826
      %v9917 = vunpack.c.l.b16 %v9827
      %v9918 = vunpack.c.h.b16 %v9827
      %v9919 = vunpack.c.l.b16 %v9828
      %v9920 = vunpack.c.l.b16 %v9829
      %v9921 = vunpack.c.h.b16 %v9829
      %v9922 = vunpack.c.l.b16 %v9830
      %v9923 = vunpack.c.l.b16 %v9831
      %v9924 = vunpack.c.h.b16 %v9831
      %v9925 = vunpack.c.l.b16 %v9832
      %v9926 = vunpack.c.l.b16 %v9833
      %v9927 = vunpack.c.h.b16 %v9833
      %v9928 = vunpack.c.l.b16 %v9834
      %v9929 = vunpack.c.l.b16 %v9835
      %v9930 = vunpack.c.h.b16 %v9835
      %v9931 = vunpack.c.l.b16 %v9836
      %v9932 = vunpack.c.l.b16 %v9837
      %v9933 = vunpack.c.h.b16 %v9837
      %v9934 = vunpack.c.l.b16 %v9838
      %v9935 = vunpack.c.l.b16 %v9839
      %v9936 = vunpack.c.h.b16 %v9839
      %v9937 = vunpack.c.l.b16 %v9840
      %v9938 = vpack.c.b16 %v9893, %v9890
      %v9939 = vpack.c.b16 %v9894, %v9891
      %v9940 = vpack.c.b16 %v9895, %v9892
      %v9941 = vpack.c.b16 %v9899, %v9896
      %v9942 = vpack.c.b16 %v9900, %v9897
      %v9943 = vpack.c.b16 %v9901, %v9898
      %v9944 = vpack.c.b16 %v9905, %v9902
      %v9945 = vpack.c.b16 %v9906, %v9903
      %v9946 = vpack.c.b16 %v9907, %v9904
      %v9947 = vpack.c.b16 %v9911, %v9908
      %v9948 = vpack.c.b16 %v9912, %v9909
      %v9949 = vpack.c.b16 %v9913, %v9910
      %v9950 = vpack.c.b16 %v9917, %v9914
      %v9951 = vpack.c.b16 %v9918, %v9915
      %v9952 = vpack.c.b16 %v9919, %v9916
      %v9953 = vpack.c.b16 %v9923, %v9920
      %v9954 = vpack.c.b16 %v9924, %v9921
      %v9955 = vpack.c.b16 %v9925, %v9922
      %v9956 = vpack.c.b16 %v9929, %v9926
      %v9957 = vpack.c.b16 %v9930, %v9927
      %v9958 = vpack.c.b16 %v9931, %v9928
      %v9959 = vpack.c.b16 %v9935, %v9932
      %v9960 = vpack.c.b16 %v9936, %v9933
      %v9961 = vpack.c.b16 %v9937, %v9934
      %9986 = vmatprep.subr.bf16.mxu0 %v9939
      %9987 = vmatpush1.bf16.msra.mxu0 %v9938
      %9988 = vmatprep.subr.bf16.mxu0 %v9942
      %9989 = vmatpush1.bf16.msra.mxu0 %v9941
      %9990 = vmatprep.subr.bf16.mxu0 %v9945
      %9991 = vmatpush1.bf16.msra.mxu0 %v9944
      %9992 = vmatprep.subr.bf16.mxu0 %v9948
      %9993 = vmatpush1.bf16.msra.mxu0 %v9947
      %9994 = vmatprep.subr.bf16.mxu0 %v9951
      %9995 = vmatpush1.bf16.msra.mxu0 %v9950
      %9996 = vmatprep.subr.bf16.mxu0 %v9954
      %9997 = vmatpush1.bf16.msra.mxu0 %v9953
      %9998 = vmatprep.subr.bf16.mxu0 %v9957
      %9999 = vmatpush1.bf16.msra.mxu0 %v9956
      %10000 = vmatprep.subr.bf16.mxu0 %v9960
      %10001 = vmatpush1.bf16.msra.mxu0 %v9959
      %10002 = vmatprep.subr.bf16.mxu0 0
      %10003 = vmatpush1.bf16.msra.mxu0 0
      %10004 = vmatprep.subr.bf16.mxu0 0
      %10005 = vmatpush1.bf16.msra.mxu0 0
      %10006 = vmatprep.subr.bf16.mxu0 0
      %10007 = vmatpush1.bf16.msra.mxu0 0
      %10008 = vmatprep.subr.bf16.mxu0 0
      %10009 = vmatpush1.bf16.msra.mxu0 0
      %10010 = vmatprep.subr.bf16.mxu0 0
      %10011 = vmatpush1.bf16.msra.mxu0 0
      %10012 = vmatprep.subr.bf16.mxu0 0
      %10013 = vmatpush1.bf16.msra.mxu0 0
      %10014 = vmatprep.subr.bf16.mxu0 0
      %10015 = vmatpush1.bf16.msra.mxu0 0
      %10016 = vmatprep.subr.bf16.mxu0 0
      %10017 = vmatpush1.bf16.msra.mxu0 0
      %10018 = vmatprep.mubr.bf16.mxu0 0
      %10019 = vmatmul.mubr.bf16.gmra.mrb[0].mxu0 %v9808
      %v10020 = vpop.f32.mrb[0].mxu0
      %v10021 = vadd.f32 %v9846, %v10020
      %v10022 = vpop.f32.mrb[0].mxu0
      %v10023 = vadd.f32 %v9850, %v10022
      %v10024 = vpop.f32.mrb[0].mxu0
      %v10025 = vpop.f32.mrb[0].mxu0
      %10026 = vdwg.mxu0
      %10027 = vmatprep.subr.bf16.mxu0 0
      %10028 = vmatpush1.bf16.msra.mxu0 %v9940
      %10029 = vmatprep.subr.bf16.mxu0 0
      %10030 = vmatpush1.bf16.msra.mxu0 %v9943
      %10031 = vmatprep.subr.bf16.mxu0 0
      %10032 = vmatpush1.bf16.msra.mxu0 %v9946
      %10033 = vmatprep.subr.bf16.mxu0 0
      %10034 = vmatpush1.bf16.msra.mxu0 %v9949
      %10035 = vmatprep.subr.bf16.mxu0 0
      %10036 = vmatpush1.bf16.msra.mxu0 %v9952
      %10037 = vmatprep.subr.bf16.mxu0 0
      %10038 = vmatpush1.bf16.msra.mxu0 %v9955
      %10039 = vmatprep.subr.bf16.mxu0 0
      %10040 = vmatpush1.bf16.msra.mxu0 %v9958
      %10041 = vmatprep.subr.bf16.mxu0 0
      %10042 = vmatpush1.bf16.msra.mxu0 %v9961
      %10043 = vmatprep.subr.bf16.mxu0 0
      %10044 = vmatpush1.bf16.msra.mxu0 0
      %10045 = vmatprep.subr.bf16.mxu0 0
      %10046 = vmatpush1.bf16.msra.mxu0 0
      %10047 = vmatprep.subr.bf16.mxu0 0
      %10048 = vmatpush1.bf16.msra.mxu0 0
      %10049 = vmatprep.subr.bf16.mxu0 0
      %10050 = vmatpush1.bf16.msra.mxu0 0
      %10051 = vmatprep.subr.bf16.mxu0 0
      %10052 = vmatpush1.bf16.msra.mxu0 0
      %10053 = vmatprep.subr.bf16.mxu0 0
      %10054 = vmatpush1.bf16.msra.mxu0 0
      %10055 = vmatprep.subr.bf16.mxu0 0
      %10056 = vmatpush1.bf16.msra.mxu0 0
      %10057 = vmatprep.subr.bf16.mxu0 0
      %10058 = vmatpush1.bf16.msra.mxu0 0
      %10059 = vmatprep.mubr.bf16.mxu0 0
      %10060 = vmatmul.mubr.bf16.gmra.mrb[0].mxu0 %v9808
      %v10061 = vpop.f32.mrb[0].mxu0
      %v10062 = vadd.f32 %v9854, %v10061
      %v10063 = vpop.f32.mrb[0].mxu0
      %v10064 = vpop.f32.mrb[0].mxu0
      %v10065 = vpop.f32.mrb[0].mxu0
      %10066 = vdwg.mxu0
      %v10067 = vld [vmem:[%s7] sm:$0x1]
      %v10068 = vmul.f32 %v10021, 0.17677669
      %v10069 = vpack.c.bf16 %v10068, %v10068
      %v10070 = vpack.c.bf16 %v10023, %v10023
      %v10071 = vpack.c.bf16 %v10062, %v10062
      %v10073 = vsel %vm573, %v10069, 0
      %v10076 = vsel %vm573, %v10070, 0
      %10078 = vmatprep.subr.bf16.mxu0 0
      %10079 = vmatpush1.bf16.xpose.msra.mxu0 %v10076
      %10080 = vmatprep.subr.bf16.mxu0 0
      %10081 = vmatpush1.bf16.xpose.msra.mxu0 0
      %10082 = vmatprep.subr.bf16.mxu0 0
      %10083 = vmatpush1.bf16.xpose.msra.mxu0 0
      %10084 = vmatprep.subr.bf16.mxu0 0
      %10085 = vmatpush1.bf16.xpose.msra.mxu0 0
      %10086 = vmatprep.subr.bf16.mxu0 0
      %10087 = vmatpush1.bf16.xpose.msra.mxu0 0
      %10088 = vmatprep.subr.bf16.mxu0 0
      %10089 = vmatpush1.bf16.xpose.msra.mxu0 0
      %10090 = vmatprep.subr.bf16.mxu0 0
      %10091 = vmatpush1.bf16.xpose.msra.mxu0 0
      %10092 = vmatprep.subr.bf16.mxu0 0
      %10093 = vmatpush1.bf16.xpose.msra.mxu0 0
      %10094 = vmatprep.subr.bf16.mxu0 0
      %10095 = vmatpush1.bf16.xpose.msra.mxu0 0
      %10096 = vmatprep.subr.bf16.mxu0 0
      %10097 = vmatpush1.bf16.xpose.msra.mxu0 0
      %10098 = vmatprep.subr.bf16.mxu0 0
      %10099 = vmatpush1.bf16.xpose.msra.mxu0 0
      %10100 = vmatprep.subr.bf16.mxu0 0
      %10101 = vmatpush1.bf16.xpose.msra.mxu0 0
      %10102 = vmatprep.subr.bf16.mxu0 0
      %10103 = vmatpush1.bf16.xpose.msra.mxu0 0
      %10104 = vmatprep.subr.bf16.mxu0 0
      %10105 = vmatpush1.bf16.xpose.msra.mxu0 0
      %10106 = vmatprep.subr.bf16.mxu0 0
      %10107 = vmatpush1.bf16.xpose.msra.mxu0 0
      %10108 = vmatprep.subr.bf16.mxu0 0
      %10109 = vmatpush1.bf16.xpose.msra.mxu0 0
      %10110 = vmatprep.mubr.bf16.mxu0 0
      %10111 = vmatmul.mubr.bf16.gmra.mrb[0].mxu0 %v10073
      %v10112 = vpop.f32.mrb[0].mxu0
      %v10113 = vadd.f32 0.0, %v10112
      %v10114 = vpop.f32.mrb[0].mxu0
      %v10115 = vpop.f32.mrb[0].mxu0
      %v10116 = vpop.f32.mrb[0].mxu0
      %10117 = vdwg.mxu0
      %vm10118 = vcmask 64512
      %v10119 = vsel %vm10118, %v10113, -inf
      %10120 = vmax.xlane.f32.xlu0 %v10119
      %v10121 = vpop.xlane.xlu0 %10120
      %v10122 = vsub.f32 %v10113, %v10121
      %v10123 = vmul.f32 %v10122, 1.442695
      %v10124 = vpow.pop %v10123
      %v10125 = vsel %vm10118, %v10124, 0.0
      %10126 = vadd.xlane.f32.xlu0 %v10125
      %v10127 = vpop.xlane.xlu0 %10126
      %v10128 = vrcp.pop %v10127
      %v10129 = vmul.f32 %v10124, %v10128
      %v10130 = vsel %vm10118, %v10129, 0.0
      %v10131 = vrot.slane %v10130, 4
      %v10132 = vadd.f32 %v10130, %v10131
      %v10133 = vrot.slane %v10132, 2
      %v10134 = vadd.f32 %v10132, %v10133
      %v10135 = vrot.slane %v10134, 1
      %v10136 = vadd.f32 %v10134, %v10135
      %v10137 = vmul.f32 %v10136, 0.125
      %v10138 = vpack.c.bf16 %v10137, %v10137
      %v10140 = vsel %vm10118, %v10138, 0
      %vm10142 = vcmask 1043456
      %v10144 = vsel %vm10142, %v10071, 0
      %10146 = vmatprep.subr.bf16.mxu0 0
      %10147 = vmatpush1.bf16.msra.mxu0 %v10144
      %10148 = vmatprep.subr.bf16.mxu0 0
      %10149 = vmatpush1.bf16.msra.mxu0 0
      %10150 = vmatprep.subr.bf16.mxu0 0
      %10151 = vmatpush1.bf16.msra.mxu0 0
      %10152 = vmatprep.subr.bf16.mxu0 0
      %10153 = vmatpush1.bf16.msra.mxu0 0
      %10154 = vmatprep.subr.bf16.mxu0 0
      %10155 = vmatpush1.bf16.msra.mxu0 0
      %10156 = vmatprep.subr.bf16.mxu0 0
      %10157 = vmatpush1.bf16.msra.mxu0 0
      %10158 = vmatprep.subr.bf16.mxu0 0
      %10159 = vmatpush1.bf16.msra.mxu0 0
      %10160 = vmatprep.subr.bf16.mxu0 0
      %10161 = vmatpush1.bf16.msra.mxu0 0
      %10162 = vmatprep.subr.bf16.mxu0 0
      %10163 = vmatpush1.bf16.msra.mxu0 0
      %10164 = vmatprep.subr.bf16.mxu0 0
      %10165 = vmatpush1.bf16.msra.mxu0 0
      %10166 = vmatprep.subr.bf16.mxu0 0
      %10167 = vmatpush1.bf16.msra.mxu0 0
      %10168 = vmatprep.subr.bf16.mxu0 0
      %10169 = vmatpush1.bf16.msra.mxu0 0
      %10170 = vmatprep.subr.bf16.mxu0 0
      %10171 = vmatpush1.bf16.msra.mxu0 0
      %10172 = vmatprep.subr.bf16.mxu0 0
      %10173 = vmatpush1.bf16.msra.mxu0 0
      %10174 = vmatprep.subr.bf16.mxu0 0
      %10175 = vmatpush1.bf16.msra.mxu0 0
      %10176 = vmatprep.subr.bf16.mxu0 0
      %10177 = vmatpush1.bf16.msra.mxu0 0
      %10178 = vmatprep.mubr.bf16.mxu0 0
      %10179 = vmatmul.mubr.bf16.gmra.mrb[0].mxu0 %v10140
      %v10180 = vpop.f32.mrb[0].mxu0
      %v10181 = vadd.f32 0.0, %v10180
      %v10182 = vpop.f32.mrb[0].mxu0
      %v10183 = vpop.f32.mrb[0].mxu0
      %v10184 = vpop.f32.mrb[0].mxu0
      %10185 = vdwg.mxu0
      %v10186 = vpack.c.bf16 %v10181, %v10181
      %v10187 = vld [vmem:[%s6] sm:$0xf]
      %v10188 = vld [vmem:[%s6 + $0x4] sm:$0xf]
      %v10189 = vld [vmem:[%s6 + $0x8] sm:$0xf]
      %v10190 = vld [vmem:[%s6 + $0xc] sm:$0xf]
      %v10195 = vunpack.c.l.b16 %v10187
      %v10196 = vunpack.c.l.b16 %v10188
      %v10197 = vunpack.c.l.b16 %v10189
      %v10198 = vunpack.c.l.b16 %v10190
      %v10199 = vpack.c.b16 %v10196, %v10195
      %v10200 = vpack.c.b16 %v10198, %v10197
      %v10204 = vsel %vm573, %v10186, 0
      %10206 = vmatprep.subr.bf16.mxu0 0
      %10207 = vmatpush1.bf16.msra.mxu0 %v10199
      %10208 = vmatprep.subr.bf16.mxu0 0
      %10209 = vmatpush1.bf16.msra.mxu0 %v10200
      %10210 = vmatprep.subr.bf16.mxu0 0
      %10211 = vmatpush1.bf16.msra.mxu0 0
      %10212 = vmatprep.subr.bf16.mxu0 0
      %10213 = vmatpush1.bf16.msra.mxu0 0
      %10214 = vmatprep.subr.bf16.mxu0 0
      %10215 = vmatpush1.bf16.msra.mxu0 0
      %10216 = vmatprep.subr.bf16.mxu0 0
      %10217 = vmatpush1.bf16.msra.mxu0 0
      %10218 = vmatprep.subr.bf16.mxu0 0
      %10219 = vmatpush1.bf16.msra.mxu0 0
      %10220 = vmatprep.subr.bf16.mxu0 0
      %10221 = vmatpush1.bf16.msra.mxu0 0
      %10222 = vmatprep.subr.bf16.mxu0 0
      %10223 = vmatpush1.bf16.msra.mxu0 0
      %10224 = vmatprep.subr.bf16.mxu0 0
      %10225 = vmatpush1.bf16.msra.mxu0 0
      %10226 = vmatprep.subr.bf16.mxu0 0
      %10227 = vmatpush1.bf16.msra.mxu0 0
      %10228 = vmatprep.subr.bf16.mxu0 0
      %10229 = vmatpush1.bf16.msra.mxu0 0
      %10230 = vmatprep.subr.bf16.mxu0 0
      %10231 = vmatpush1.bf16.msra.mxu0 0
      %10232 = vmatprep.subr.bf16.mxu0 0
      %10233 = vmatpush1.bf16.msra.mxu0 0
      %10234 = vmatprep.subr.bf16.mxu0 0
      %10235 = vmatpush1.bf16.msra.mxu0 0
      %10236 = vmatprep.subr.bf16.mxu0 0
      %10237 = vmatpush1.bf16.msra.mxu0 0
      %10238 = vmatprep.mubr.bf16.mxu0 0
      %10239 = vmatmul.mubr.bf16.gmra.mrb[0].mxu0 %v10204
      %v10240 = vpop.f32.mrb[0].mxu0
      %v10241 = vadd.f32 0.0, %v10240
      %v10242 = vpop.f32.mrb[0].mxu0
      %v10243 = vpop.f32.mrb[0].mxu0
      %v10244 = vpop.f32.mrb[0].mxu0
      %10245 = vdwg.mxu0
      %v10246 = vadd.f32 %v10067, %v10241
      %10248 = vrot.lane.b32.xlu0 %v10069, 96
      %v10249 = vpop.permute.xlu0 %10248
      %10251 = vrot.lane.b32.xlu0 %v10070, 96
      %v10252 = vpop.permute.xlu0 %10251
      %v10254 = vsel %vm573, %v10249, 0
      %v10257 = vsel %vm573, %v10252, 0
      %10259 = vmatprep.subr.bf16.mxu0 0
      %10260 = vmatpush1.bf16.xpose.msra.mxu0 %v10257
      %10261 = vmatprep.subr.bf16.mxu0 0
      %10262 = vmatpush1.bf16.xpose.msra.mxu0 0
      %10263 = vmatprep.subr.bf16.mxu0 0
      %10264 = vmatpush1.bf16.xpose.msra.mxu0 0
      %10265 = vmatprep.subr.bf16.mxu0 0
      %10266 = vmatpush1.bf16.xpose.msra.mxu0 0
      %10267 = vmatprep.subr.bf16.mxu0 0
      %10268 = vmatpush1.bf16.xpose.msra.mxu0 0
      %10269 = vmatprep.subr.bf16.mxu0 0
      %10270 = vmatpush1.bf16.xpose.msra.mxu0 0
      %10271 = vmatprep.subr.bf16.mxu0 0
      %10272 = vmatpush1.bf16.xpose.msra.mxu0 0
      %10273 = vmatprep.subr.bf16.mxu0 0
      %10274 = vmatpush1.bf16.xpose.msra.mxu0 0
      %10275 = vmatprep.subr.bf16.mxu0 0
      %10276 = vmatpush1.bf16.xpose.msra.mxu0 0
      %10277 = vmatprep.subr.bf16.mxu0 0
      %10278 = vmatpush1.bf16.xpose.msra.mxu0 0
      %10279 = vmatprep.subr.bf16.mxu0 0
      %10280 = vmatpush1.bf16.xpose.msra.mxu0 0
      %10281 = vmatprep.subr.bf16.mxu0 0
      %10282 = vmatpush1.bf16.xpose.msra.mxu0 0
      %10283 = vmatprep.subr.bf16.mxu0 0
      %10284 = vmatpush1.bf16.xpose.msra.mxu0 0
      %10285 = vmatprep.subr.bf16.mxu0 0
      %10286 = vmatpush1.bf16.xpose.msra.mxu0 0
      %10287 = vmatprep.subr.bf16.mxu0 0
      %10288 = vmatpush1.bf16.xpose.msra.mxu0 0
      %10289 = vmatprep.subr.bf16.mxu0 0
      %10290 = vmatpush1.bf16.xpose.msra.mxu0 0
      %10291 = vmatprep.mubr.bf16.mxu0 0
      %10292 = vmatmul.mubr.bf16.gmra.mrb[0].mxu0 %v10254
      %v10293 = vpop.f32.mrb[0].mxu0
      %v10294 = vadd.f32 0.0, %v10293
      %v10295 = vpop.f32.mrb[0].mxu0
      %v10296 = vpop.f32.mrb[0].mxu0
      %v10297 = vpop.f32.mrb[0].mxu0
      %10298 = vdwg.mxu0
      %v10299 = vsel %vm10118, %v10294, -inf
      %10300 = vmax.xlane.f32.xlu0 %v10299
      %v10301 = vpop.xlane.xlu0 %10300
      %v10302 = vsub.f32 %v10294, %v10301
      %v10303 = vmul.f32 %v10302, 1.442695
      %v10304 = vpow.pop %v10303
      %v10305 = vsel %vm10118, %v10304, 0.0
      %10306 = vadd.xlane.f32.xlu0 %v10305
      %v10307 = vpop.xlane.xlu0 %10306
      %v10308 = vrcp.pop %v10307
      %v10309 = vmul.f32 %v10304, %v10308
      %v10310 = vsel %vm10118, %v10309, 0.0
      %v10311 = vrot.slane %v10310, 4
      %v10312 = vadd.f32 %v10310, %v10311
      %v10313 = vrot.slane %v10312, 2
      %v10314 = vadd.f32 %v10312, %v10313
      %v10315 = vrot.slane %v10314, 1
      %v10316 = vadd.f32 %v10314, %v10315
      %v10317 = vmul.f32 %v10316, 0.125
      %v10318 = vpack.c.bf16 %v10317, %v10317
      %10320 = vrot.lane.b32.xlu0 %v10071, 96
      %v10321 = vpop.permute.xlu0 %10320
      %v10323 = vsel %vm10118, %v10318, 0
      %v10326 = vsel %vm10142, %v10321, 0
      %10328 = vmatprep.subr.bf16.mxu0 0
      %10329 = vmatpush1.bf16.msra.mxu0 %v10326
      %10330 = vmatprep.subr.bf16.mxu0 0
      %10331 = vmatpush1.bf16.msra.mxu0 0
      %10332 = vmatprep.subr.bf16.mxu0 0
      %10333 = vmatpush1.bf16.msra.mxu0 0
      %10334 = vmatprep.subr.bf16.mxu0 0
      %10335 = vmatpush1.bf16.msra.mxu0 0
      %10336 = vmatprep.subr.bf16.mxu0 0
      %10337 = vmatpush1.bf16.msra.mxu0 0
      %10338 = vmatprep.subr.bf16.mxu0 0
      %10339 = vmatpush1.bf16.msra.mxu0 0
      %10340 = vmatprep.subr.bf16.mxu0 0
      %10341 = vmatpush1.bf16.msra.mxu0 0
      %10342 = vmatprep.subr.bf16.mxu0 0
      %10343 = vmatpush1.bf16.msra.mxu0 0
      %10344 = vmatprep.subr.bf16.mxu0 0
      %10345 = vmatpush1.bf16.msra.mxu0 0
      %10346 = vmatprep.subr.bf16.mxu0 0
      %10347 = vmatpush1.bf16.msra.mxu0 0
      %10348 = vmatprep.subr.bf16.mxu0 0
      %10349 = vmatpush1.bf16.msra.mxu0 0
      %10350 = vmatprep.subr.bf16.mxu0 0
      %10351 = vmatpush1.bf16.msra.mxu0 0
      %10352 = vmatprep.subr.bf16.mxu0 0
      %10353 = vmatpush1.bf16.msra.mxu0 0
      %10354 = vmatprep.subr.bf16.mxu0 0
      %10355 = vmatpush1.bf16.msra.mxu0 0
      %10356 = vmatprep.subr.bf16.mxu0 0
      %10357 = vmatpush1.bf16.msra.mxu0 0
      %10358 = vmatprep.subr.bf16.mxu0 0
      %10359 = vmatpush1.bf16.msra.mxu0 0
      %10360 = vmatprep.mubr.bf16.mxu0 0
      %10361 = vmatmul.mubr.bf16.gmra.mrb[0].mxu0 %v10323
      %v10362 = vpop.f32.mrb[0].mxu0
      %v10363 = vadd.f32 0.0, %v10362
      %v10364 = vpop.f32.mrb[0].mxu0
      %v10365 = vpop.f32.mrb[0].mxu0
      %v10366 = vpop.f32.mrb[0].mxu0
      %10367 = vdwg.mxu0
      %v10368 = vpack.c.bf16 %v10363, %v10363
      %v10369 = vld [vmem:[%s6 + $0x10] sm:$0xf]
      %v10370 = vld [vmem:[%s6 + $0x14] sm:$0xf]
      %v10371 = vld [vmem:[%s6 + $0x18] sm:$0xf]
      %v10372 = vld [vmem:[%s6 + $0x1c] sm:$0xf]
      %v10377 = vunpack.c.l.b16 %v10369
      %v10378 = vunpack.c.l.b16 %v10370
      %v10379 = vunpack.c.l.b16 %v10371
      %v10380 = vunpack.c.l.b16 %v10372
      %v10381 = vpack.c.b16 %v10378, %v10377
      %v10382 = vpack.c.b16 %v10380, %v10379
      %v10386 = vsel %vm573, %v10368, 0
      %10388 = vmatprep.subr.bf16.mxu0 0
      %10389 = vmatpush1.bf16.msra.mxu0 %v10381
      %10390 = vmatprep.subr.bf16.mxu0 0
      %10391 = vmatpush1.bf16.msra.mxu0 %v10382
      %10392 = vmatprep.subr.bf16.mxu0 0
      %10393 = vmatpush1.bf16.msra.mxu0 0
      %10394 = vmatprep.subr.bf16.mxu0 0
      %10395 = vmatpush1.bf16.msra.mxu0 0
      %10396 = vmatprep.subr.bf16.mxu0 0
      %10397 = vmatpush1.bf16.msra.mxu0 0
      %10398 = vmatprep.subr.bf16.mxu0 0
      %10399 = vmatpush1.bf16.msra.mxu0 0
      %10400 = vmatprep.subr.bf16.mxu0 0
      %10401 = vmatpush1.bf16.msra.mxu0 0
      %10402 = vmatprep.subr.bf16.mxu0 0
      %10403 = vmatpush1.bf16.msra.mxu0 0
      %10404 = vmatprep.subr.bf16.mxu0 0
      %10405 = vmatpush1.bf16.msra.mxu0 0
      %10406 = vmatprep.subr.bf16.mxu0 0
      %10407 = vmatpush1.bf16.msra.mxu0 0
      %10408 = vmatprep.subr.bf16.mxu0 0
      %10409 = vmatpush1.bf16.msra.mxu0 0
      %10410 = vmatprep.subr.bf16.mxu0 0
      %10411 = vmatpush1.bf16.msra.mxu0 0
      %10412 = vmatprep.subr.bf16.mxu0 0
      %10413 = vmatpush1.bf16.msra.mxu0 0
      %10414 = vmatprep.subr.bf16.mxu0 0
      %10415 = vmatpush1.bf16.msra.mxu0 0
      %10416 = vmatprep.subr.bf16.mxu0 0
      %10417 = vmatpush1.bf16.msra.mxu0 0
      %10418 = vmatprep.subr.bf16.mxu0 0
      %10419 = vmatpush1.bf16.msra.mxu0 0
      %10420 = vmatprep.mubr.bf16.mxu0 0
      %10421 = vmatmul.mubr.bf16.gmra.mrb[0].mxu0 %v10386
      %v10422 = vpop.f32.mrb[0].mxu0
      %v10423 = vadd.f32 0.0, %v10422
      %v10424 = vpop.f32.mrb[0].mxu0
      %v10425 = vpop.f32.mrb[0].mxu0
      %v10426 = vpop.f32.mrb[0].mxu0
      %10427 = vdwg.mxu0
      %v10428 = vadd.f32 %v10246, %v10423
      %10429 = vrot.lane.b32.xlu0 %v10069, 64
      %v10430 = vpop.permute.xlu0 %10429
      %10431 = vrot.lane.b32.xlu0 %v10070, 64
      %v10432 = vpop.permute.xlu0 %10431
      %v10434 = vsel %vm573, %v10430, 0
      %v10437 = vsel %vm573, %v10432, 0
      %10439 = vmatprep.subr.bf16.mxu0 0
      %10440 = vmatpush1.bf16.xpose.msra.mxu0 %v10437
      %10441 = vmatprep.subr.bf16.mxu0 0
      %10442 = vmatpush1.bf16.xpose.msra.mxu0 0
      %10443 = vmatprep.subr.bf16.mxu0 0
      %10444 = vmatpush1.bf16.xpose.msra.mxu0 0
      %10445 = vmatprep.subr.bf16.mxu0 0
      %10446 = vmatpush1.bf16.xpose.msra.mxu0 0
      %10447 = vmatprep.subr.bf16.mxu0 0
      %10448 = vmatpush1.bf16.xpose.msra.mxu0 0
      %10449 = vmatprep.subr.bf16.mxu0 0
      %10450 = vmatpush1.bf16.xpose.msra.mxu0 0
      %10451 = vmatprep.subr.bf16.mxu0 0
      %10452 = vmatpush1.bf16.xpose.msra.mxu0 0
      %10453 = vmatprep.subr.bf16.mxu0 0
      %10454 = vmatpush1.bf16.xpose.msra.mxu0 0
      %10455 = vmatprep.subr.bf16.mxu0 0
      %10456 = vmatpush1.bf16.xpose.msra.mxu0 0
      %10457 = vmatprep.subr.bf16.mxu0 0
      %10458 = vmatpush1.bf16.xpose.msra.mxu0 0
      %10459 = vmatprep.subr.bf16.mxu0 0
      %10460 = vmatpush1.bf16.xpose.msra.mxu0 0
      %10461 = vmatprep.subr.bf16.mxu0 0
      %10462 = vmatpush1.bf16.xpose.msra.mxu0 0
      %10463 = vmatprep.subr.bf16.mxu0 0
      %10464 = vmatpush1.bf16.xpose.msra.mxu0 0
      %10465 = vmatprep.subr.bf16.mxu0 0
      %10466 = vmatpush1.bf16.xpose.msra.mxu0 0
      %10467 = vmatprep.subr.bf16.mxu0 0
      %10468 = vmatpush1.bf16.xpose.msra.mxu0 0
      %10469 = vmatprep.subr.bf16.mxu0 0
      %10470 = vmatpush1.bf16.xpose.msra.mxu0 0
      %10471 = vmatprep.mubr.bf16.mxu0 0
      %10472 = vmatmul.mubr.bf16.gmra.mrb[0].mxu0 %v10434
      %v10473 = vpop.f32.mrb[0].mxu0
      %v10474 = vadd.f32 0.0, %v10473
      %v10475 = vpop.f32.mrb[0].mxu0
      %v10476 = vpop.f32.mrb[0].mxu0
      %v10477 = vpop.f32.mrb[0].mxu0
      %10478 = vdwg.mxu0
      %v10479 = vsel %vm10118, %v10474, -inf
      %10480 = vmax.xlane.f32.xlu0 %v10479
      %v10481 = vpop.xlane.xlu0 %10480
      %v10482 = vsub.f32 %v10474, %v10481
      %v10483 = vmul.f32 %v10482, 1.442695
      %v10484 = vpow.pop %v10483
      %v10485 = vsel %vm10118, %v10484, 0.0
      %10486 = vadd.xlane.f32.xlu0 %v10485
      %v10487 = vpop.xlane.xlu0 %10486
      %v10488 = vrcp.pop %v10487
      %v10489 = vmul.f32 %v10484, %v10488
      %v10490 = vsel %vm10118, %v10489, 0.0
      %v10491 = vrot.slane %v10490, 4
      %v10492 = vadd.f32 %v10490, %v10491
      %v10493 = vrot.slane %v10492, 2
      %v10494 = vadd.f32 %v10492, %v10493
      %v10495 = vrot.slane %v10494, 1
      %v10496 = vadd.f32 %v10494, %v10495
      %v10497 = vmul.f32 %v10496, 0.125
      %v10498 = vpack.c.bf16 %v10497, %v10497
      %10499 = vrot.lane.b32.xlu0 %v10071, 64
      %v10500 = vpop.permute.xlu0 %10499
      %v10502 = vsel %vm10118, %v10498, 0
      %v10505 = vsel %vm10142, %v10500, 0
      %10507 = vmatprep.subr.bf16.mxu0 0
      %10508 = vmatpush1.bf16.msra.mxu0 %v10505
      %10509 = vmatprep.subr.bf16.mxu0 0
      %10510 = vmatpush1.bf16.msra.mxu0 0
      %10511 = vmatprep.subr.bf16.mxu0 0
      %10512 = vmatpush1.bf16.msra.mxu0 0
      %10513 = vmatprep.subr.bf16.mxu0 0
      %10514 = vmatpush1.bf16.msra.mxu0 0
      %10515 = vmatprep.subr.bf16.mxu0 0
      %10516 = vmatpush1.bf16.msra.mxu0 0
      %10517 = vmatprep.subr.bf16.mxu0 0
      %10518 = vmatpush1.bf16.msra.mxu0 0
      %10519 = vmatprep.subr.bf16.mxu0 0
      %10520 = vmatpush1.bf16.msra.mxu0 0
      %10521 = vmatprep.subr.bf16.mxu0 0
      %10522 = vmatpush1.bf16.msra.mxu0 0
      %10523 = vmatprep.subr.bf16.mxu0 0
      %10524 = vmatpush1.bf16.msra.mxu0 0
      %10525 = vmatprep.subr.bf16.mxu0 0
      %10526 = vmatpush1.bf16.msra.mxu0 0
      %10527 = vmatprep.subr.bf16.mxu0 0
      %10528 = vmatpush1.bf16.msra.mxu0 0
      %10529 = vmatprep.subr.bf16.mxu0 0
      %10530 = vmatpush1.bf16.msra.mxu0 0
      %10531 = vmatprep.subr.bf16.mxu0 0
      %10532 = vmatpush1.bf16.msra.mxu0 0
      %10533 = vmatprep.subr.bf16.mxu0 0
      %10534 = vmatpush1.bf16.msra.mxu0 0
      %10535 = vmatprep.subr.bf16.mxu0 0
      %10536 = vmatpush1.bf16.msra.mxu0 0
      %10537 = vmatprep.subr.bf16.mxu0 0
      %10538 = vmatpush1.bf16.msra.mxu0 0
      %10539 = vmatprep.mubr.bf16.mxu0 0
      %10540 = vmatmul.mubr.bf16.gmra.mrb[0].mxu0 %v10502
      %v10541 = vpop.f32.mrb[0].mxu0
      %v10542 = vadd.f32 0.0, %v10541
      %v10543 = vpop.f32.mrb[0].mxu0
      %v10544 = vpop.f32.mrb[0].mxu0
      %v10545 = vpop.f32.mrb[0].mxu0
      %10546 = vdwg.mxu0
      %v10547 = vpack.c.bf16 %v10542, %v10542
      %v10548 = vld [vmem:[%s6 + $0x20] sm:$0xf]
      %v10549 = vld [vmem:[%s6 + $0x24] sm:$0xf]
      %v10550 = vld [vmem:[%s6 + $0x28] sm:$0xf]
      %v10551 = vld [vmem:[%s6 + $0x2c] sm:$0xf]
      %v10556 = vunpack.c.l.b16 %v10548
      %v10557 = vunpack.c.l.b16 %v10549
      %v10558 = vunpack.c.l.b16 %v10550
      %v10559 = vunpack.c.l.b16 %v10551
      %v10560 = vpack.c.b16 %v10557, %v10556
      %v10561 = vpack.c.b16 %v10559, %v10558
      %v10565 = vsel %vm573, %v10547, 0
      %10567 = vmatprep.subr.bf16.mxu0 0
      %10568 = vmatpush1.bf16.msra.mxu0 %v10560
      %10569 = vmatprep.subr.bf16.mxu0 0
      %10570 = vmatpush1.bf16.msra.mxu0 %v10561
      %10571 = vmatprep.subr.bf16.mxu0 0
      %10572 = vmatpush1.bf16.msra.mxu0 0
      %10573 = vmatprep.subr.bf16.mxu0 0
      %10574 = vmatpush1.bf16.msra.mxu0 0
      %10575 = vmatprep.subr.bf16.mxu0 0
      %10576 = vmatpush1.bf16.msra.mxu0 0
      %10577 = vmatprep.subr.bf16.mxu0 0
      %10578 = vmatpush1.bf16.msra.mxu0 0
      %10579 = vmatprep.subr.bf16.mxu0 0
      %10580 = vmatpush1.bf16.msra.mxu0 0
      %10581 = vmatprep.subr.bf16.mxu0 0
      %10582 = vmatpush1.bf16.msra.mxu0 0
      %10583 = vmatprep.subr.bf16.mxu0 0
      %10584 = vmatpush1.bf16.msra.mxu0 0
      %10585 = vmatprep.subr.bf16.mxu0 0
      %10586 = vmatpush1.bf16.msra.mxu0 0
      %10587 = vmatprep.subr.bf16.mxu0 0
      %10588 = vmatpush1.bf16.msra.mxu0 0
      %10589 = vmatprep.subr.bf16.mxu0 0
      %10590 = vmatpush1.bf16.msra.mxu0 0
      %10591 = vmatprep.subr.bf16.mxu0 0
      %10592 = vmatpush1.bf16.msra.mxu0 0
      %10593 = vmatprep.subr.bf16.mxu0 0
      %10594 = vmatpush1.bf16.msra.mxu0 0
      %10595 = vmatprep.subr.bf16.mxu0 0
      %10596 = vmatpush1.bf16.msra.mxu0 0
      %10597 = vmatprep.subr.bf16.mxu0 0
      %10598 = vmatpush1.bf16.msra.mxu0 0
      %10599 = vmatprep.mubr.bf16.mxu0 0
      %10600 = vmatmul.mubr.bf16.gmra.mrb[0].mxu0 %v10565
      %v10601 = vpop.f32.mrb[0].mxu0
      %v10602 = vadd.f32 0.0, %v10601
      %v10603 = vpop.f32.mrb[0].mxu0
      %v10604 = vpop.f32.mrb[0].mxu0
      %v10605 = vpop.f32.mrb[0].mxu0
      %10606 = vdwg.mxu0
      %v10607 = vadd.f32 %v10428, %v10602
      %10608 = vrot.lane.b32.xlu0 %v10069, 32
      %v10609 = vpop.permute.xlu0 %10608
      %10610 = vrot.lane.b32.xlu0 %v10070, 32
      %v10611 = vpop.permute.xlu0 %10610
      %v10613 = vsel %vm573, %v10609, 0
      %v10616 = vsel %vm573, %v10611, 0
      %10618 = vmatprep.subr.bf16.mxu0 0
      %10619 = vmatpush1.bf16.xpose.msra.mxu0 %v10616
      %10620 = vmatprep.subr.bf16.mxu0 0
      %10621 = vmatpush1.bf16.xpose.msra.mxu0 0
      %10622 = vmatprep.subr.bf16.mxu0 0
      %10623 = vmatpush1.bf16.xpose.msra.mxu0 0
      %10624 = vmatprep.subr.bf16.mxu0 0
      %10625 = vmatpush1.bf16.xpose.msra.mxu0 0
      %10626 = vmatprep.subr.bf16.mxu0 0
      %10627 = vmatpush1.bf16.xpose.msra.mxu0 0
      %10628 = vmatprep.subr.bf16.mxu0 0
      %10629 = vmatpush1.bf16.xpose.msra.mxu0 0
      %10630 = vmatprep.subr.bf16.mxu0 0
      %10631 = vmatpush1.bf16.xpose.msra.mxu0 0
      %10632 = vmatprep.subr.bf16.mxu0 0
      %10633 = vmatpush1.bf16.xpose.msra.mxu0 0
      %10634 = vmatprep.subr.bf16.mxu0 0
      %10635 = vmatpush1.bf16.xpose.msra.mxu0 0
      %10636 = vmatprep.subr.bf16.mxu0 0
      %10637 = vmatpush1.bf16.xpose.msra.mxu0 0
      %10638 = vmatprep.subr.bf16.mxu0 0
      %10639 = vmatpush1.bf16.xpose.msra.mxu0 0
      %10640 = vmatprep.subr.bf16.mxu0 0
      %10641 = vmatpush1.bf16.xpose.msra.mxu0 0
      %10642 = vmatprep.subr.bf16.mxu0 0
      %10643 = vmatpush1.bf16.xpose.msra.mxu0 0
      %10644 = vmatprep.subr.bf16.mxu0 0
      %10645 = vmatpush1.bf16.xpose.msra.mxu0 0
      %10646 = vmatprep.subr.bf16.mxu0 0
      %10647 = vmatpush1.bf16.xpose.msra.mxu0 0
      %10648 = vmatprep.subr.bf16.mxu0 0
      %10649 = vmatpush1.bf16.xpose.msra.mxu0 0
      %10650 = vmatprep.mubr.bf16.mxu0 0
      %10651 = vmatmul.mubr.bf16.gmra.mrb[0].mxu0 %v10613
      %v10652 = vpop.f32.mrb[0].mxu0
      %v10653 = vadd.f32 0.0, %v10652
      %v10654 = vpop.f32.mrb[0].mxu0
      %v10655 = vpop.f32.mrb[0].mxu0
      %v10656 = vpop.f32.mrb[0].mxu0
      %10657 = vdwg.mxu0
      %v10658 = vsel %vm10118, %v10653, -inf
      %10659 = vmax.xlane.f32.xlu0 %v10658
      %v10660 = vpop.xlane.xlu0 %10659
      %v10661 = vsub.f32 %v10653, %v10660
      %v10662 = vmul.f32 %v10661, 1.442695
      %v10663 = vpow.pop %v10662
      %v10664 = vsel %vm10118, %v10663, 0.0
      %10665 = vadd.xlane.f32.xlu0 %v10664
      %v10666 = vpop.xlane.xlu0 %10665
      %v10667 = vrcp.pop %v10666
      %v10668 = vmul.f32 %v10663, %v10667
      %v10669 = vsel %vm10118, %v10668, 0.0
      %v10670 = vrot.slane %v10669, 4
      %v10671 = vadd.f32 %v10669, %v10670
      %v10672 = vrot.slane %v10671, 2
      %v10673 = vadd.f32 %v10671, %v10672
      %v10674 = vrot.slane %v10673, 1
      %v10675 = vadd.f32 %v10673, %v10674
      %v10676 = vmul.f32 %v10675, 0.125
      %v10677 = vpack.c.bf16 %v10676, %v10676
      %10678 = vrot.lane.b32.xlu0 %v10071, 32
      %v10679 = vpop.permute.xlu0 %10678
      %v10681 = vsel %vm10118, %v10677, 0
      %v10684 = vsel %vm10142, %v10679, 0
      %10686 = vmatprep.subr.bf16.mxu0 0
      %10687 = vmatpush1.bf16.msra.mxu0 %v10684
      %10688 = vmatprep.subr.bf16.mxu0 0
      %10689 = vmatpush1.bf16.msra.mxu0 0
      %10690 = vmatprep.subr.bf16.mxu0 0
      %10691 = vmatpush1.bf16.msra.mxu0 0
      %10692 = vmatprep.subr.bf16.mxu0 0
      %10693 = vmatpush1.bf16.msra.mxu0 0
      %10694 = vmatprep.subr.bf16.mxu0 0
      %10695 = vmatpush1.bf16.msra.mxu0 0
      %10696 = vmatprep.subr.bf16.mxu0 0
      %10697 = vmatpush1.bf16.msra.mxu0 0
      %10698 = vmatprep.subr.bf16.mxu0 0
      %10699 = vmatpush1.bf16.msra.mxu0 0
      %10700 = vmatprep.subr.bf16.mxu0 0
      %10701 = vmatpush1.bf16.msra.mxu0 0
      %10702 = vmatprep.subr.bf16.mxu0 0
      %10703 = vmatpush1.bf16.msra.mxu0 0
      %10704 = vmatprep.subr.bf16.mxu0 0
      %10705 = vmatpush1.bf16.msra.mxu0 0
      %10706 = vmatprep.subr.bf16.mxu0 0
      %10707 = vmatpush1.bf16.msra.mxu0 0
      %10708 = vmatprep.subr.bf16.mxu0 0
      %10709 = vmatpush1.bf16.msra.mxu0 0
      %10710 = vmatprep.subr.bf16.mxu0 0
      %10711 = vmatpush1.bf16.msra.mxu0 0
      %10712 = vmatprep.subr.bf16.mxu0 0
      %10713 = vmatpush1.bf16.msra.mxu0 0
      %10714 = vmatprep.subr.bf16.mxu0 0
      %10715 = vmatpush1.bf16.msra.mxu0 0
      %10716 = vmatprep.subr.bf16.mxu0 0
      %10717 = vmatpush1.bf16.msra.mxu0 0
      %10718 = vmatprep.mubr.bf16.mxu0 0
      %10719 = vmatmul.mubr.bf16.gmra.mrb[0].mxu0 %v10681
      %v10720 = vpop.f32.mrb[0].mxu0
      %v10721 = vadd.f32 0.0, %v10720
      %v10722 = vpop.f32.mrb[0].mxu0
      %v10723 = vpop.f32.mrb[0].mxu0
      %v10724 = vpop.f32.mrb[0].mxu0
      %10725 = vdwg.mxu0
      %v10726 = vpack.c.bf16 %v10721, %v10721
      %v10727 = vld [vmem:[%s6 + $0x30] sm:$0xf]
      %v10728 = vld [vmem:[%s6 + $0x34] sm:$0xf]
      %v10729 = vld [vmem:[%s6 + $0x38] sm:$0xf]
      %v10730 = vld [vmem:[%s6 + $0x3c] sm:$0xf]
      %v10735 = vunpack.c.l.b16 %v10727
      %v10736 = vunpack.c.l.b16 %v10728
      %v10737 = vunpack.c.l.b16 %v10729
      %v10738 = vunpack.c.l.b16 %v10730
      %v10739 = vpack.c.b16 %v10736, %v10735
      %v10740 = vpack.c.b16 %v10738, %v10737
      %v10744 = vsel %vm573, %v10726, 0
      %10746 = vmatprep.subr.bf16.mxu0 0
      %10747 = vmatpush1.bf16.msra.mxu0 %v10739
      %10748 = vmatprep.subr.bf16.mxu0 0
      %10749 = vmatpush1.bf16.msra.mxu0 %v10740
      %10750 = vmatprep.subr.bf16.mxu0 0
      %10751 = vmatpush1.bf16.msra.mxu0 0
      %10752 = vmatprep.subr.bf16.mxu0 0
      %10753 = vmatpush1.bf16.msra.mxu0 0
      %10754 = vmatprep.subr.bf16.mxu0 0
      %10755 = vmatpush1.bf16.msra.mxu0 0
      %10756 = vmatprep.subr.bf16.mxu0 0
      %10757 = vmatpush1.bf16.msra.mxu0 0
      %10758 = vmatprep.subr.bf16.mxu0 0
      %10759 = vmatpush1.bf16.msra.mxu0 0
      %10760 = vmatprep.subr.bf16.mxu0 0
      %10761 = vmatpush1.bf16.msra.mxu0 0
      %10762 = vmatprep.subr.bf16.mxu0 0
      %10763 = vmatpush1.bf16.msra.mxu0 0
      %10764 = vmatprep.subr.bf16.mxu0 0
      %10765 = vmatpush1.bf16.msra.mxu0 0
      %10766 = vmatprep.subr.bf16.mxu0 0
      %10767 = vmatpush1.bf16.msra.mxu0 0
      %10768 = vmatprep.subr.bf16.mxu0 0
      %10769 = vmatpush1.bf16.msra.mxu0 0
      %10770 = vmatprep.subr.bf16.mxu0 0
      %10771 = vmatpush1.bf16.msra.mxu0 0
      %10772 = vmatprep.subr.bf16.mxu0 0
      %10773 = vmatpush1.bf16.msra.mxu0 0
      %10774 = vmatprep.subr.bf16.mxu0 0
      %10775 = vmatpush1.bf16.msra.mxu0 0
      %10776 = vmatprep.subr.bf16.mxu0 0
      %10777 = vmatpush1.bf16.msra.mxu0 0
      %10778 = vmatprep.mubr.bf16.mxu0 0
      %10779 = vmatmul.mubr.bf16.gmra.mrb[0].mxu0 %v10744
      %v10780 = vpop.f32.mrb[0].mxu0
      %v10781 = vadd.f32 0.0, %v10780
      %v10782 = vpop.f32.mrb[0].mxu0
      %v10783 = vpop.f32.mrb[0].mxu0
      %v10784 = vpop.f32.mrb[0].mxu0
      %10785 = vdwg.mxu0
      %v10786 = vadd.f32 %v10607, %v10781
      %v10787 = vpack.c.bf16 %v10786, %v10786
      %v10788 = vld [vmem:[%s8] sm:$0xf]
      %v10789 = vld [vmem:[%s8 + $0x4] sm:$0xf]
      %v10790 = vld [vmem:[%s8 + $0x8] sm:$0xf]
      %v10791 = vld [vmem:[%s8 + $0xc] sm:$0xf]
      %v10792 = vld [vmem:[%s8 + $0x10] sm:$0xf]
      %v10793 = vld [vmem:[%s8 + $0x14] sm:$0xf]
      %v10794 = vld [vmem:[%s8 + $0x18] sm:$0xf]
      %v10795 = vld [vmem:[%s8 + $0x1c] sm:$0xf]
      %v10796 = vld [vmem:[%s8 + $0x20] sm:$0xf]
      %v10797 = vld [vmem:[%s8 + $0x24] sm:$0xf]
      %v10798 = vld [vmem:[%s8 + $0x28] sm:$0xf]
      %v10799 = vld [vmem:[%s8 + $0x2c] sm:$0xf]
      %v10800 = vld [vmem:[%s8 + $0x30] sm:$0xf]
      %v10801 = vld [vmem:[%s8 + $0x34] sm:$0xf]
      %v10802 = vld [vmem:[%s8 + $0x38] sm:$0xf]
      %v10803 = vld [vmem:[%s8 + $0x3c] sm:$0xf]
      %v10804 = vld [vmem:[%s9] sm:$0x1]
      %v10821 = vunpack.c.l.b16 %v10788
      %v10822 = vunpack.c.l.b16 %v10789
      %v10823 = vunpack.c.l.b16 %v10790
      %v10824 = vunpack.c.l.b16 %v10791
      %v10825 = vunpack.c.l.b16 %v10792
      %v10826 = vunpack.c.l.b16 %v10793
      %v10827 = vunpack.c.l.b16 %v10794
      %v10828 = vunpack.c.l.b16 %v10795
      %v10829 = vunpack.c.l.b16 %v10796
      %v10830 = vunpack.c.l.b16 %v10797
      %v10831 = vunpack.c.l.b16 %v10798
      %v10832 = vunpack.c.l.b16 %v10799
      %v10833 = vunpack.c.l.b16 %v10800
      %v10834 = vunpack.c.l.b16 %v10801
      %v10835 = vunpack.c.l.b16 %v10802
      %v10836 = vunpack.c.l.b16 %v10803
      %v10837 = vpack.c.b16 %v10822, %v10821
      %v10838 = vpack.c.b16 %v10824, %v10823
      %v10839 = vpack.c.b16 %v10826, %v10825
      %v10840 = vpack.c.b16 %v10828, %v10827
      %v10841 = vpack.c.b16 %v10830, %v10829
      %v10842 = vpack.c.b16 %v10832, %v10831
      %v10843 = vpack.c.b16 %v10834, %v10833
      %v10844 = vpack.c.b16 %v10836, %v10835
      %10853 = vmatprep.subr.bf16.mxu0 0
      %10854 = vmatpush1.bf16.msra.mxu0 %v10837
      %10855 = vmatprep.subr.bf16.mxu0 0
      %10856 = vmatpush1.bf16.msra.mxu0 %v10838
      %10857 = vmatprep.subr.bf16.mxu0 0
      %10858 = vmatpush1.bf16.msra.mxu0 %v10839
      %10859 = vmatprep.subr.bf16.mxu0 0
      %10860 = vmatpush1.bf16.msra.mxu0 %v10840
      %10861 = vmatprep.subr.bf16.mxu0 0
      %10862 = vmatpush1.bf16.msra.mxu0 %v10841
      %10863 = vmatprep.subr.bf16.mxu0 0
      %10864 = vmatpush1.bf16.msra.mxu0 %v10842
      %10865 = vmatprep.subr.bf16.mxu0 0
      %10866 = vmatpush1.bf16.msra.mxu0 %v10843
      %10867 = vmatprep.subr.bf16.mxu0 0
      %10868 = vmatpush1.bf16.msra.mxu0 %v10844
      %10869 = vmatprep.subr.bf16.mxu0 0
      %10870 = vmatpush1.bf16.msra.mxu0 0
      %10871 = vmatprep.subr.bf16.mxu0 0
      %10872 = vmatpush1.bf16.msra.mxu0 0
      %10873 = vmatprep.subr.bf16.mxu0 0
      %10874 = vmatpush1.bf16.msra.mxu0 0
      %10875 = vmatprep.subr.bf16.mxu0 0
      %10876 = vmatpush1.bf16.msra.mxu0 0
      %10877 = vmatprep.subr.bf16.mxu0 0
      %10878 = vmatpush1.bf16.msra.mxu0 0
      %10879 = vmatprep.subr.bf16.mxu0 0
      %10880 = vmatpush1.bf16.msra.mxu0 0
      %10881 = vmatprep.subr.bf16.mxu0 0
      %10882 = vmatpush1.bf16.msra.mxu0 0
      %10883 = vmatprep.subr.bf16.mxu0 0
      %10884 = vmatpush1.bf16.msra.mxu0 0
      %10885 = vmatprep.mubr.bf16.mxu0 0
      %10886 = vmatmul.mubr.bf16.gmra.mrb[0].mxu0 %v10787
      %v10887 = vpop.f32.mrb[0].mxu0
      %v10888 = vadd.f32 %v10804, %v10887
      %v10889 = vpop.f32.mrb[0].mxu0
      %v10890 = vpop.f32.mrb[0].mxu0
      %v10891 = vpop.f32.mrb[0].mxu0
      %10892 = vdwg.mxu0
      %v10893 = vmax.f32 %v10888, 0.0
      %v10894 = vpack.c.bf16 %v10893, %v10893
      %v10895 = vld [vmem:[%s10] sm:$0xf]
      %v10896 = vld [vmem:[%s10 + $0x4] sm:$0xf]
      %v10897 = vld [vmem:[%s10 + $0x8] sm:$0xf]
      %v10898 = vld [vmem:[%s10 + $0xc] sm:$0xf]
      %v10899 = vld [vmem:[#allocation3] sm:$0x1]
      %v10904 = vunpack.c.l.b16 %v10895
      %v10905 = vunpack.c.l.b16 %v10896
      %v10906 = vunpack.c.l.b16 %v10897
      %v10907 = vunpack.c.l.b16 %v10898
      %v10908 = vpack.c.b16 %v10905, %v10904
      %v10909 = vpack.c.b16 %v10907, %v10906
      %v10913 = vsel %vm573, %v10894, 0
      %10915 = vmatprep.subr.bf16.mxu0 0
      %10916 = vmatpush1.bf16.msra.mxu0 %v10908
      %10917 = vmatprep.subr.bf16.mxu0 0
      %10918 = vmatpush1.bf16.msra.mxu0 %v10909
      %10919 = vmatprep.subr.bf16.mxu0 0
      %10920 = vmatpush1.bf16.msra.mxu0 0
      %10921 = vmatprep.subr.bf16.mxu0 0
      %10922 = vmatpush1.bf16.msra.mxu0 0
      %10923 = vmatprep.subr.bf16.mxu0 0
      %10924 = vmatpush1.bf16.msra.mxu0 0
      %10925 = vmatprep.subr.bf16.mxu0 0
      %10926 = vmatpush1.bf16.msra.mxu0 0
      %10927 = vmatprep.subr.bf16.mxu0 0
      %10928 = vmatpush1.bf16.msra.mxu0 0
      %10929 = vmatprep.subr.bf16.mxu0 0
      %10930 = vmatpush1.bf16.msra.mxu0 0
      %10931 = vmatprep.subr.bf16.mxu0 0
      %10932 = vmatpush1.bf16.msra.mxu0 0
      %10933 = vmatprep.subr.bf16.mxu0 0
      %10934 = vmatpush1.bf16.msra.mxu0 0
      %10935 = vmatprep.subr.bf16.mxu0 0
      %10936 = vmatpush1.bf16.msra.mxu0 0
      %10937 = vmatprep.subr.bf16.mxu0 0
      %10938 = vmatpush1.bf16.msra.mxu0 0
      %10939 = vmatprep.subr.bf16.mxu0 0
      %10940 = vmatpush1.bf16.msra.mxu0 0
      %10941 = vmatprep.subr.bf16.mxu0 0
      %10942 = vmatpush1.bf16.msra.mxu0 0
      %10943 = vmatprep.subr.bf16.mxu0 0
      %10944 = vmatpush1.bf16.msra.mxu0 0
      %10945 = vmatprep.subr.bf16.mxu0 0
      %10946 = vmatpush1.bf16.msra.mxu0 0
      %10947 = vmatprep.mubr.bf16.mxu0 0
      %10948 = vmatmul.mubr.bf16.gmra.mrb[0].mxu0 %v10913
      %v10949 = vpop.f32.mrb[0].mxu0
      %v10950 = vadd.f32 %v10899, %v10949
      %v10951 = vpop.f32.mrb[0].mxu0
      %v10952 = vpop.f32.mrb[0].mxu0
      %v10953 = vpop.f32.mrb[0].mxu0
      %10954 = vdwg.mxu0
      %10956 = vset.pattern.permute.xlu0 0
      %10957 = vperm.xlu0 %10956, %v10950
      %v10958 = vpop.permute.xlu0 %10957
      %10960 = vst [vmem:[%s411] sm:$0x1] %v10958
      %p10961 = scmp.lt.s32.totalorder %s25, 1
      %s10962 = scalar_select %p10961, %s25, 1
      %s10963 = scalar_lea.vmem %s12, %s10962
      // Predicated region
      $region69: #{vqa_forward.1} parent=67 // pred_check
        %p10964 = pneg %p300
      $region70: #{vqa_forward.1} parent=67 // pred_check_branch
        %10966 = sbr.rel (%p10964) target = $region72
      $region71: #{vqa_forward.1} parent=67 // pred_region
        _
      $region72: #{vqa_forward.1} parent=67 // pred_fallthru
        _
    $region68: #{vqa_forward.1} parent=5 // pred_fallthru
      _
    %p10967 = scmp.le.s32.totalorder 2, %s20
    // Predicated region
    $region73: #{vqa_forward.1} parent=5 // pred_check
      %p10968 = pneg %p10967
    $region74: #{vqa_forward.1} parent=5 // pred_check_branch
      %10970 = sbr.rel (%p10968) target = $region76
    $region75: #{vqa_forward.1} parent=5 // pred_region
      %s10971 = ssub.s32 %s20, 2
      // Predicated region
      $region77: #{vqa_forward.1} parent=75 // pred_check
        %p10972 = pneg %p306
      $region78: #{vqa_forward.1} parent=75 // pred_check_branch
        %10974 = sbr.rel (%p10972) target = $region80
      $region79: #{vqa_forward.1} parent=75 // pred_region
        %p10975 = scmp.lt.s32.totalorder %s26, 1
        %s10976 = scalar_select %p10975, %s26, 1
        %s10977 = scalar_lea.vmem %s12, %s10976
      $region80: #{vqa_forward.1} parent=75 // pred_fallthru
        _
    $region76: #{vqa_forward.1} parent=5 // pred_fallthru
      _
  $region6: #{vqa_forward.1} parent=0 // loop_footer
    %s24 = sadd.s32 1, %s20
  $region7: #{vqa_forward.1} parent=0 // loop_footer_branch
    %19 = sbr.rel target = $region3
  $region8: #{vqa_forward.1} parent=0 // loop_exit
    _

</llo_original>
